<compile_context>
chip_gen: v6e
topology: v6e:2x2x1
jax: 0.10.0
libtpu: 0.0.40
codegen_flags: <defaults>
</compile_context>

<pallas_src>
import numpy as np
import jax
import jax.numpy as jnp
from jax import lax
from jax.experimental import pallas as pl
from jax.experimental.pallas import tpu as pltpu

# ----------------------------- problem sizes --------------------------------
B = 2              # batch
DIM = 32           # channels ("dim"); >= 16 so ChannelAttention(ratio=16) is non-degenerate
H = W = 8          # spatial
HW = H * W         # 64 flattened spatial positions (lane axis inside the kernel)
CA_RATIO = 16      # ChannelAttention ratio
CR = DIM // CA_RATIO          # 2
SE_RED = 4                    # SEAttention reduction
SR = DIM // SE_RED            # 8
HID = 4 * DIM                 # 128, pointwise-MLP hidden width
EPS = 1e-6
LS_INIT = 1e-6                # layer_scale_init_value

K = 7                         # 7x7 convolutions
PAD = 3 * W + 3               # 27: flat-index offset of pixel (0,0) in the padded row buffer
PADW = 128                    # per-image lane-dense padded width (HW + 2*PAD = 118 -> 128)

# Host-precomputed horizontal border masks: row (dw+3) zeroes columns whose source column
# w+dw falls outside [0, W) (kills row-wrap of the flattened layout).  Rows 3 and 7 unused.
_COL = np.arange(HW, dtype=np.int32) % W
_BORDER_MASKS = np.stack(
    [((_COL + dw >= 0) & (_COL + dw < W)).astype(np.float32) for dw in range(-3, 4)]
    + [np.ones((HW,), np.float32)],
    axis=0)                                                   # (8, HW)


# --------------------------- the fused block kernel ---------------------------
def _make_block_kernel(nimg):
    """Kernel processing `nimg` images per grid step (nimg=1 on v7x, nimg=B on v5e/v6e)."""

    def kernel(x_ref, mask_ref, wdw_ref, bdw_ref, ca1_ref, ca2_ref, sa_ref,
               se1_ref, se2_ref, lnw_ref, lnb_ref, w1_ref, b1_ref,
               w2_ref, b2_ref, g_ref, o_ref, xpad_ref, mpad_ref, ypack_ref):
        # Zero the padded conv row buffers.  nimg == B => single grid step => runs once per
        # call.  nimg == 1 (v7x, parallel grid) => scratch is per-core, so the fill must be
        # unconditional; a program_id==0 guard would skip initialisation on the second core.
        xpad_ref[...] = jnp.zeros((DIM, nimg * PADW), jnp.float32)
        mpad_ref[...] = jnp.zeros((2, nimg * PADW), jnp.float32)

        wdw = wdw_ref[...]                                    # (C, 49) depthwise taps
        bdw = bdw_ref[...]                                    # (C, 1)
        ca1 = ca1_ref[...]                                    # (C, CR) = CBAM fc1.weight^T
        ca2 = ca2_ref[...]                                    # (C, CR) = CBAM fc2.weight
        sa_w = sa_ref[...]                                    # (2, 49) spatial-attn taps
        se1 = se1_ref[...]                                    # (C, SR) = SE fc[0].weight^T
        se2 = se2_ref[...]                                    # (C, SR) = SE fc[2].weight
        mrow = {dw: mask_ref[dw + 3:dw + 4, :]                # hoisted (1, HW) border masks
                for dw in range(-3, 4) if dw != 0}

        def conv7x7(pad_ref, base, wt, nrows):
            # pad_ref: zero-padded row buffer, image interior at lanes [base+PAD, base+PAD+HW)
            # wt:      (nrows, 49) per-row taps flattened as kh*7+kw
            # kw-outer / kh-inner so the horizontal border mask is applied once per kw column.
            # TODO(synk): per-tap lane-packing of both images' windows (XLU-vs-VALU tradeoff)
            # left out pending re-profiling after the mask hoist, per the perf review.
            acc = jnp.zeros((nrows, HW), jnp.float32)
            for kw in range(K):
                dw = kw - 3
                part = jnp.zeros((nrows, HW), jnp.float32)
                for kh in range(K):
                    start = base + PAD + (kh - 3) * W + dw    # static lane offset
                    win = pad_ref[:, start:start + HW]        # shifted window, (nrows, HW)
                    part = part + win * wt[:, kh * K + kw:kh * K + kw + 1]
                if dw != 0:
                    part = part * mrow[dw]                    # kill horizontal row-wrap once
                acc = acc + part
            return acc

        xs = []
        for g in range(nimg):
            x_g = x_ref[g]                                    # (C, HW), residual shortcut
            xs.append(x_g)
            base = g * PADW

            # ---- depthwise 7x7 conv (padding=3, groups=dim); padding done in-kernel ----
            xpad_ref[:, base + PAD:base + PAD + HW] = x_g
            y = conv7x7(xpad_ref, base, wdw, DIM) + bdw       # (C, HW)

            # ---- CBAM channel attention (tiny shared MLP on VPU/XLU, no MXU) ----
            avg_c = jnp.mean(y, axis=1, keepdims=True)        # (C, 1)
            max_c = jnp.max(y, axis=1, keepdims=True)         # (C, 1)
            h_avg = jnp.maximum(jnp.sum(avg_c * ca1, axis=0, keepdims=True), 0.0)   # (1, CR)
            h_max = jnp.maximum(jnp.sum(max_c * ca1, axis=0, keepdims=True), 0.0)
            # fc2 is linear & bias-free: fc2(h_avg) + fc2(h_max) == fc2(h_avg + h_max)
            ca = jax.nn.sigmoid(jnp.sum(ca2 * (h_avg + h_max), axis=1, keepdims=True))  # (C,1)
            y1 = y * ca

            # ---- CBAM spatial attention: 7x7 conv over [mean_C, max_C] maps ----
            mpad_ref[0:1, base + PAD:base + PAD + HW] = jnp.mean(y1, axis=0, keepdims=True)
            mpad_ref[1:2, base + PAD:base + PAD + HW] = jnp.max(y1, axis=0, keepdims=True)
            sa_logit = jnp.sum(conv7x7(mpad_ref, base, sa_w, 2), axis=0, keepdims=True)  # (1,HW)
            y2 = y1 * jax.nn.sigmoid(sa_logit)

            # ---- SE attention (VPU) ----
            se_avg = jnp.mean(y2, axis=1, keepdims=True)                                # (C, 1)
            h_se = jnp.maximum(jnp.sum(se_avg * se1, axis=0, keepdims=True), 0.0)       # (1, SR)
            se = jax.nn.sigmoid(jnp.sum(se2 * h_se, axis=1, keepdims=True))             # (C, 1)

            # lane-pack this image's result into its 64-lane block of the packed buffer
            ypack_ref[:, g * HW:(g + 1) * HW] = y2 * se

        # ---- lane-packed tail: LayerNorm -> MLP (bf16 MXU) -> GELU -> layer scale ----
        y3 = ypack_ref[...]                                   # (C, nimg*HW): full-lane vregs
        mu = jnp.mean(y3, axis=0, keepdims=True)              # (1, nimg*HW)
        var = jnp.mean((y3 - mu) ** 2, axis=0, keepdims=True)  # biased var == F.layer_norm
        yn = (y3 - mu) * lax.rsqrt(var + EPS) * lnw_ref[...] + lnb_ref[...]

        hid = jnp.dot(w1_ref[...], yn.astype(jnp.bfloat16),
                      preferred_element_type=jnp.float32) + b1_ref[...]   # (HID, nimg*HW)
        # tanh-form GELU: one native EUP tanh per element.
        # TODO(synk): nn.GELU() defaults to exact erf; tanh form differs by ~1e-3 relative on
        # the activation (accepted by the perf review).
        hid = 0.5 * hid * (1.0 + jnp.tanh(0.7978845608028654 *
                                          (hid + 0.044715 * hid * hid * hid)))
        z = jnp.dot(w2_ref[...], hid.astype(jnp.bfloat16),
                    preferred_element_type=jnp.float32) + b2_ref[...]     # (C, nimg*HW)
        z = z * g_ref[...]                                    # layer scale

        # residual add + per-image store (drop_path(0.0) == identity)
        for g in range(nimg):
            o_ref[g] = xs[g] + z[:, g * HW:(g + 1) * HW]

    return kernel


# ------------------------------- wrapper --------------------------------------
def _images_per_step():
    # v7x has 2 TensorCores/chip: keep one image per grid step so the parallel B-grid feeds
    # both cores.  Single-TC chips (v5e/v6e) take the whole batch in one lane-dense step.
    try:
        kind = jax.devices()[0].device_kind.lower()
    except Exception:
        kind = ""
    return 1 if "v7" in kind else B


def block_forward(x_nchw, p):
    """ConvNeXt Block forward.  x_nchw: (B, DIM, H, W) float32 (PyTorch NCHW layout)."""
    x_flat = x_nchw.reshape(B, DIM, HW)        # free reshape; I/O stays channels-first NCHW

    nimg = _images_per_step()
    nsteps = B // nimg
    masks = jnp.asarray(_BORDER_MASKS)

    if nimg == 1:
        x_spec = pl.BlockSpec((1, DIM, HW), lambda n: (n, 0, 0))
        sem = ("parallel",)
    else:
        x_spec = pl.BlockSpec((B, DIM, HW), lambda n: (0, 0, 0))
        sem = ("arbitrary",)

    def w_spec(shape):
        return pl.BlockSpec(shape, lambda n: (0, 0))

    flops = B * (2 * 49 * DIM * HW             # depthwise 7x7
                 + 2 * 49 * 2 * HW             # spatial-attention 7x7
                 + 2 * 2 * DIM * HID * HW)     # the two pointwise convs
    transc = B * (HID * HW + HW + 3 * DIM)
    weight_bytes = (4 * (DIM * 49 + DIM + 2 * DIM * CR + 2 * 49 + 2 * DIM * SR
                         + 2 * DIM + HID + DIM + DIM + 8 * HW)
                    + 2 * (HID * DIM + DIM * HID))            # bf16 MXU weights
    bytes_accessed = 4 * 2 * B * DIM * HW + weight_bytes

    out = pl.pallas_call(
        _make_block_kernel(nimg),
        out_shape=jax.ShapeDtypeStruct((B, DIM, HW), jnp.float32),
        grid=(nsteps,),
        in_specs=[
            x_spec,                 # x (also the residual shortcut)
            w_spec((8, HW)),        # host-precomputed horizontal border masks
            w_spec((DIM, 49)),      # depthwise conv weight  (torch (C,1,7,7) -> (C,49))
            w_spec((DIM, 1)),       # depthwise conv bias
            w_spec((DIM, CR)),      # CBAM channel-attn fc1 weight, transposed
            w_spec((DIM, CR)),      # CBAM channel-attn fc2 weight
            w_spec((2, 49)),        # CBAM spatial-attn 7x7 weights (row0=mean, row1=max map)
            w_spec((DIM, SR)),      # SE fc1 weight, transposed
            w_spec((DIM, SR)),      # SE fc2 weight
            w_spec((DIM, 1)),       # LayerNorm weight
            w_spec((DIM, 1)),       # LayerNorm bias
            w_spec((HID, DIM)),     # pwconv1 weight (bf16, torch (4*dim, dim) layout)
            w_spec((HID, 1)),       # pwconv1 bias (f32)
            w_spec((DIM, HID)),     # pwconv2 weight (bf16, torch (dim, 4*dim) layout)
            w_spec((DIM, 1)),       # pwconv2 bias (f32)
            w_spec((DIM, 1)),       # gamma (layer scale)
        ],
        out_specs=x_spec,
        scratch_shapes=[
            pltpu.VMEM((DIM, nimg * PADW), jnp.float32),   # zero-padded dwconv row buffer
            pltpu.VMEM((2, nimg * PADW), jnp.float32),     # zero-padded spatial-attn buffer
            pltpu.VMEM((DIM, nimg * HW), jnp.float32),     # lane-packed post-attention result
        ],
        compiler_params=pltpu.CompilerParams(dimension_semantics=sem),
        cost_estimate=pl.CostEstimate(flops=flops, transcendentals=transc,
                                      bytes_accessed=bytes_accessed),
    )(x_flat, masks, p["dw_w"], p["dw_b"], p["ca1"], p["ca2"], p["sa_w"],
      p["se1"], p["se2"], p["ln_w"], p["ln_b"], p["w1"], p["b1"],
      p["w2"], p["b2"], p["gamma"])
    return out.reshape(B, DIM, H, W)


# ------------------------------- parameters -----------------------------------
def init_params(key):
    ks = jax.random.split(key, 11)
    p = {}
    # dwconv: torch weight (C,1,7,7) stored as (C,49) (row-major over kh,kw); bias (C,) -> (C,1)
    p["dw_w"] = 0.05 * jax.random.normal(ks[0], (DIM, 49), jnp.float32)
    p["dw_b"] = 0.05 * jax.random.normal(ks[1], (DIM, 1), jnp.float32)
    # CBAM channel attention 1x1 convs (no bias): fc1 (CR,C) stored transposed; fc2 (C,CR) as-is
    p["ca1"] = 0.1 * jax.random.normal(ks[2], (DIM, CR), jnp.float32)
    p["ca2"] = 0.1 * jax.random.normal(ks[3], (DIM, CR), jnp.float32)
    # CBAM spatial attention: torch (1,2,7,7) -> (2,49); row 0 = mean-map, row 1 = max-map taps
    p["sa_w"] = 0.1 * jax.random.normal(ks[4], (2, 49), jnp.float32)
    # SE attention (no bias): fc[0] (SR,C) stored transposed; fc[2] (C,SR) as-is
    p["se1"] = 0.1 * jax.random.normal(ks[5], (DIM, SR), jnp.float32)
    p["se2"] = 0.1 * jax.random.normal(ks[6], (DIM, SR), jnp.float32)
    # LayerNorm (channels_last): PyTorch init ones / zeros, stored as (C,1) columns
    p["ln_w"] = jnp.ones((DIM, 1), jnp.float32)
    p["ln_b"] = jnp.zeros((DIM, 1), jnp.float32)
    # pwconv1 / pwconv2 Linear weights kept in torch (out,in) layout, stored bf16 so the MXU
    # gets native bf16 operands (accumulation stays f32 in-kernel); biases stay f32.
    p["w1"] = (0.05 * jax.random.normal(ks[7], (HID, DIM), jnp.float32)).astype(jnp.bfloat16)
    p["b1"] = 0.05 * jax.random.normal(ks[8], (HID, 1), jnp.float32)
    p["w2"] = (0.05 * jax.random.normal(ks[9], (DIM, HID), jnp.float32)).astype(jnp.bfloat16)
    p["b2"] = 0.05 * jax.random.normal(ks[10], (DIM, 1), jnp.float32)
    # gamma layer-scale: init = layer_scale_init_value * ones(dim)
    p["gamma"] = jnp.full((DIM, 1), LS_INIT, jnp.float32)
    return p


if __name__ == "__main__":
    key = jax.random.PRNGKey(0)
    kx, kp = jax.random.split(key)
    x = jax.random.normal(kx, (B, DIM, H, W), jnp.float32)     # NCHW, like PyTorch
    params = init_params(kp)

    out = jax.block_until_ready(jax.jit(block_forward)(x, params))
    assert out.shape == (B, DIM, H, W)
    assert bool(jnp.all(jnp.isfinite(out)))
    # With gamma = 1e-6 the non-residual branch is ~1e-7 in magnitude, so the output must sit
    # right on top of the shortcut; this cheaply catches any layout / residual-plumbing error.
    assert float(jnp.max(jnp.abs(out - x))) < 1e-2
    print("KERNEL_OK")
</pallas_src>

<mosaic_0001>
module attributes {stable_mosaic.version = 11 : i64} {
  func.func @kernel(%arg0: i32, %arg1: memref<2x32x64xf32, #tpu.memory_space<vmem>>, %arg2: memref<8x64xf32, #tpu.memory_space<vmem>>, %arg3: memref<32x49xf32, #tpu.memory_space<vmem>>, %arg4: memref<32x1xf32, #tpu.memory_space<vmem>>, %arg5: memref<32x2xf32, #tpu.memory_space<vmem>>, %arg6: memref<32x2xf32, #tpu.memory_space<vmem>>, %arg7: memref<2x49xf32, #tpu.memory_space<vmem>>, %arg8: memref<32x8xf32, #tpu.memory_space<vmem>>, %arg9: memref<32x8xf32, #tpu.memory_space<vmem>>, %arg10: memref<32x1xf32, #tpu.memory_space<vmem>>, %arg11: memref<32x1xf32, #tpu.memory_space<vmem>>, %arg12: memref<128x32xbf16, #tpu.memory_space<vmem>>, %arg13: memref<128x1xf32, #tpu.memory_space<vmem>>, %arg14: memref<32x128xbf16, #tpu.memory_space<vmem>>, %arg15: memref<32x1xf32, #tpu.memory_space<vmem>>, %arg16: memref<32x1xf32, #tpu.memory_space<vmem>>, %arg17: memref<2x32x64xf32, #tpu.memory_space<vmem>>, %arg18: memref<32x256xf32, #tpu.memory_space<vmem>>, %arg19: memref<2x256xf32, #tpu.memory_space<vmem>>, %arg20: memref<32x128xf32, #tpu.memory_space<vmem>>) attributes {dimension_semantics = [#tpu.dimension_semantics<arbitrary>], iteration_bounds = array<i64: 1>, scalar_prefetch = 0 : i64, scratch_operands = 3 : i64, tpu.core_type = #tpu.core_type<tc>, window_params = [{pipeline_mode = #tpu.pipeline_mode<synchronous>, transform_indices = @transform_0, window_bounds = array<i64: 2, 32, 64>}, {pipeline_mode = #tpu.pipeline_mode<synchronous>, transform_indices = @transform_1, window_bounds = array<i64: 8, 64>}, {pipeline_mode = #tpu.pipeline_mode<synchronous>, transform_indices = @transform_2, window_bounds = array<i64: 32, 49>}, {pipeline_mode = #tpu.pipeline_mode<synchronous>, transform_indices = @transform_3, window_bounds = array<i64: 32, 1>}, {pipeline_mode = #tpu.pipeline_mode<synchronous>, transform_indices = @transform_4, window_bounds = array<i64: 32, 2>}, {pipeline_mode = #tpu.pipeline_mode<synchronous>, transform_indices = @transform_5, window_bounds = array<i64: 32, 2>}, {pipeline_mode = #tpu.pipeline_mode<synchronous>, transform_indices = @transform_6, window_bounds = array<i64: 2, 49>}, {pipeline_mode = #tpu.pipeline_mode<synchronous>, transform_indices = @transform_7, window_bounds = array<i64: 32, 8>}, {pipeline_mode = #tpu.pipeline_mode<synchronous>, transform_indices = @transform_8, window_bounds = array<i64: 32, 8>}, {pipeline_mode = #tpu.pipeline_mode<synchronous>, transform_indices = @transform_9, window_bounds = array<i64: 32, 1>}, {pipeline_mode = #tpu.pipeline_mode<synchronous>, transform_indices = @transform_10, window_bounds = array<i64: 32, 1>}, {pipeline_mode = #tpu.pipeline_mode<synchronous>, transform_indices = @transform_11, window_bounds = array<i64: 128, 32>}, {pipeline_mode = #tpu.pipeline_mode<synchronous>, transform_indices = @transform_12, window_bounds = array<i64: 128, 1>}, {pipeline_mode = #tpu.pipeline_mode<synchronous>, transform_indices = @transform_13, window_bounds = array<i64: 32, 128>}, {pipeline_mode = #tpu.pipeline_mode<synchronous>, transform_indices = @transform_14, window_bounds = array<i64: 32, 1>}, {pipeline_mode = #tpu.pipeline_mode<synchronous>, transform_indices = @transform_15, window_bounds = array<i64: 32, 1>}, {pipeline_mode = #tpu.pipeline_mode<synchronous>, transform_indices = @transform_16, window_bounds = array<i64: 2, 32, 64>}]} {
    %cst = arith.constant 0.000000e+00 : f32
    %0 = vector.broadcast %cst : f32 to vector<32x256xf32>
    %c0 = arith.constant 0 : index
    %c0_0 = arith.constant 0 : index
    %1 = vector.load %arg18[%c0, %c0_0] : memref<32x256xf32, #tpu.memory_space<vmem>>, vector<32x256xf32>
    tpu.vector_store %arg18[%c0, %c0_0], %0 {strides = array<i32>} : memref<32x256xf32, #tpu.memory_space<vmem>>, vector<32x256xf32>,
    %cst_1 = arith.constant 0.000000e+00 : f32
    %2 = vector.broadcast %cst_1 : f32 to vector<2x256xf32>
    %c0_2 = arith.constant 0 : index
    %c0_3 = arith.constant 0 : index
    %3 = vector.load %arg19[%c0_2, %c0_3] : memref<2x256xf32, #tpu.memory_space<vmem>>, vector<2x256xf32>
    tpu.vector_store %arg19[%c0_2, %c0_3], %2 {strides = array<i32>} : memref<2x256xf32, #tpu.memory_space<vmem>>, vector<2x256xf32>,
    %c0_4 = arith.constant 0 : index
    %c0_5 = arith.constant 0 : index
    %4 = vector.load %arg3[%c0_4, %c0_5] : memref<32x49xf32, #tpu.memory_space<vmem>>, vector<32x49xf32>
    %c0_6 = arith.constant 0 : index
    %c0_7 = arith.constant 0 : index
    %5 = vector.load %arg4[%c0_6, %c0_7] : memref<32x1xf32, #tpu.memory_space<vmem>>, vector<32x1xf32>
    %c0_8 = arith.constant 0 : index
    %c0_9 = arith.constant 0 : index
    %6 = vector.load %arg5[%c0_8, %c0_9] : memref<32x2xf32, #tpu.memory_space<vmem>>, vector<32x2xf32>
    %c0_10 = arith.constant 0 : index
    %c0_11 = arith.constant 0 : index
    %7 = vector.load %arg6[%c0_10, %c0_11] : memref<32x2xf32, #tpu.memory_space<vmem>>, vector<32x2xf32>
    %c0_12 = arith.constant 0 : index
    %c0_13 = arith.constant 0 : index
    %8 = vector.load %arg7[%c0_12, %c0_13] : memref<2x49xf32, #tpu.memory_space<vmem>>, vector<2x49xf32>
    %c0_14 = arith.constant 0 : index
    %c0_15 = arith.constant 0 : index
    %9 = vector.load %arg8[%c0_14, %c0_15] : memref<32x8xf32, #tpu.memory_space<vmem>>, vector<32x8xf32>
    %c0_16 = arith.constant 0 : index
    %c0_17 = arith.constant 0 : index
    %10 = vector.load %arg9[%c0_16, %c0_17] : memref<32x8xf32, #tpu.memory_space<vmem>>, vector<32x8xf32>
    %c0_18 = arith.constant 0 : index
    %c0_19 = arith.constant 0 : index
    %11 = vector.load %arg2[%c0_18, %c0_19] : memref<8x64xf32, #tpu.memory_space<vmem>>, vector<1x64xf32>
    %c1 = arith.constant 1 : index
    %c0_20 = arith.constant 0 : index
    %12 = vector.load %arg2[%c1, %c0_20] : memref<8x64xf32, #tpu.memory_space<vmem>>, vector<1x64xf32>
    %c2 = arith.constant 2 : index
    %c0_21 = arith.constant 0 : index
    %13 = vector.load %arg2[%c2, %c0_21] : memref<8x64xf32, #tpu.memory_space<vmem>>, vector<1x64xf32>
    %c4 = arith.constant 4 : index
    %c0_22 = arith.constant 0 : index
    %14 = vector.load %arg2[%c4, %c0_22] : memref<8x64xf32, #tpu.memory_space<vmem>>, vector<1x64xf32>
    %c5 = arith.constant 5 : index
    %c0_23 = arith.constant 0 : index
    %15 = vector.load %arg2[%c5, %c0_23] : memref<8x64xf32, #tpu.memory_space<vmem>>, vector<1x64xf32>
    %c6 = arith.constant 6 : index
    %c0_24 = arith.constant 0 : index
    %16 = vector.load %arg2[%c6, %c0_24] : memref<8x64xf32, #tpu.memory_space<vmem>>, vector<1x64xf32>
    %c0_25 = arith.constant 0 : index
    %c0_26 = arith.constant 0 : index
    %c0_27 = arith.constant 0 : index
    %17 = vector.load %arg1[%c0_25, %c0_26, %c0_27] : memref<2x32x64xf32, #tpu.memory_space<vmem>>, vector<1x32x64xf32>
    %18 = vector.shape_cast %17 : vector<1x32x64xf32> to vector<32x64xf32>
    %c0_28 = arith.constant 0 : index
    %c27 = arith.constant 27 : index
    %19 = vector.load %arg18[%c0_28, %c27] : memref<32x256xf32, #tpu.memory_space<vmem>>, vector<32x64xf32>
    tpu.vector_store %arg18[%c0_28, %c27], %18 {strides = array<i32>} : memref<32x256xf32, #tpu.memory_space<vmem>>, vector<32x64xf32>,
    %cst_29 = arith.constant 0.000000e+00 : f32
    %20 = vector.broadcast %cst_29 : f32 to vector<32x64xf32>
    %cst_30 = arith.constant 0.000000e+00 : f32
    %21 = vector.broadcast %cst_30 : f32 to vector<32x64xf32>
    %c0_31 = arith.constant 0 : index
    %c0_32 = arith.constant 0 : index
    %22 = vector.load %arg18[%c0_31, %c0_32] : memref<32x256xf32, #tpu.memory_space<vmem>>, vector<32x64xf32>
    %23 = vector.extract_strided_slice %4 {offsets = [0, 0], sizes = [32, 1], strides = [1, 1]} : vector<32x49xf32> to vector<32x1xf32>
    %24 = vector.broadcast %23 : vector<32x1xf32> to vector<32x64xf32>
    %25 = arith.mulf %22, %24 : vector<32x64xf32>
    %26 = arith.addf %21, %25 : vector<32x64xf32>
    %c0_33 = arith.constant 0 : index
    %c8 = arith.constant 8 : index
    %27 = vector.load %arg18[%c0_33, %c8] : memref<32x256xf32, #tpu.memory_space<vmem>>, vector<32x64xf32>
    %28 = vector.extract_strided_slice %4 {offsets = [0, 7], sizes = [32, 1], strides = [1, 1]} : vector<32x49xf32> to vector<32x1xf32>
    %29 = vector.broadcast %28 : vector<32x1xf32> to vector<32x64xf32>
    %30 = arith.mulf %27, %29 : vector<32x64xf32>
    %31 = arith.addf %26, %30 : vector<32x64xf32>
    %c0_34 = arith.constant 0 : index
    %c16 = arith.constant 16 : index
    %32 = vector.load %arg18[%c0_34, %c16] : memref<32x256xf32, #tpu.memory_space<vmem>>, vector<32x64xf32>
    %33 = vector.extract_strided_slice %4 {offsets = [0, 14], sizes = [32, 1], strides = [1, 1]} : vector<32x49xf32> to vector<32x1xf32>
    %34 = vector.broadcast %33 : vector<32x1xf32> to vector<32x64xf32>
    %35 = arith.mulf %32, %34 : vector<32x64xf32>
    %36 = arith.addf %31, %35 : vector<32x64xf32>
    %c0_35 = arith.constant 0 : index
    %c24 = arith.constant 24 : index
    %37 = vector.load %arg18[%c0_35, %c24] : memref<32x256xf32, #tpu.memory_space<vmem>>, vector<32x64xf32>
    %38 = vector.extract_strided_slice %4 {offsets = [0, 21], sizes = [32, 1], strides = [1, 1]} : vector<32x49xf32> to vector<32x1xf32>
    %39 = vector.broadcast %38 : vector<32x1xf32> to vector<32x64xf32>
    %40 = arith.mulf %37, %39 : vector<32x64xf32>
    %41 = arith.addf %36, %40 : vector<32x64xf32>
    %c0_36 = arith.constant 0 : index
    %c32 = arith.constant 32 : index
    %42 = vector.load %arg18[%c0_36, %c32] : memref<32x256xf32, #tpu.memory_space<vmem>>, vector<32x64xf32>
    %43 = vector.extract_strided_slice %4 {offsets = [0, 28], sizes = [32, 1], strides = [1, 1]} : vector<32x49xf32> to vector<32x1xf32>
    %44 = vector.broadcast %43 : vector<32x1xf32> to vector<32x64xf32>
    %45 = arith.mulf %42, %44 : vector<32x64xf32>
    %46 = arith.addf %41, %45 : vector<32x64xf32>
    %c0_37 = arith.constant 0 : index
    %c40 = arith.constant 40 : index
    %47 = vector.load %arg18[%c0_37, %c40] : memref<32x256xf32, #tpu.memory_space<vmem>>, vector<32x64xf32>
    %48 = vector.extract_strided_slice %4 {offsets = [0, 35], sizes = [32, 1], strides = [1, 1]} : vector<32x49xf32> to vector<32x1xf32>
    %49 = vector.broadcast %48 : vector<32x1xf32> to vector<32x64xf32>
    %50 = arith.mulf %47, %49 : vector<32x64xf32>
    %51 = arith.addf %46, %50 : vector<32x64xf32>
    %c0_38 = arith.constant 0 : index
    %c48 = arith.constant 48 : index
    %52 = vector.load %arg18[%c0_38, %c48] : memref<32x256xf32, #tpu.memory_space<vmem>>, vector<32x64xf32>
    %53 = vector.extract_strided_slice %4 {offsets = [0, 42], sizes = [32, 1], strides = [1, 1]} : vector<32x49xf32> to vector<32x1xf32>
    %54 = vector.broadcast %53 : vector<32x1xf32> to vector<32x64xf32>
    %55 = arith.mulf %52, %54 : vector<32x64xf32>
    %56 = arith.addf %51, %55 : vector<32x64xf32>
    %57 = vector.broadcast %11 : vector<1x64xf32> to vector<32x64xf32>
    %58 = arith.mulf %56, %57 : vector<32x64xf32>
    %59 = arith.addf %20, %58 : vector<32x64xf32>
    %cst_39 = arith.constant 0.000000e+00 : f32
    %60 = vector.broadcast %cst_39 : f32 to vector<32x64xf32>
    %c0_40 = arith.constant 0 : index
    %c1_41 = arith.constant 1 : index
    %61 = vector.load %arg18[%c0_40, %c1_41] : memref<32x256xf32, #tpu.memory_space<vmem>>, vector<32x64xf32>
    %62 = vector.extract_strided_slice %4 {offsets = [0, 1], sizes = [32, 1], strides = [1, 1]} : vector<32x49xf32> to vector<32x1xf32>
    %63 = vector.broadcast %62 : vector<32x1xf32> to vector<32x64xf32>
    %64 = arith.mulf %61, %63 : vector<32x64xf32>
    %65 = arith.addf %60, %64 : vector<32x64xf32>
    %c0_42 = arith.constant 0 : index
    %c9 = arith.constant 9 : index
    %66 = vector.load %arg18[%c0_42, %c9] : memref<32x256xf32, #tpu.memory_space<vmem>>, vector<32x64xf32>
    %67 = vector.extract_strided_slice %4 {offsets = [0, 8], sizes = [32, 1], strides = [1, 1]} : vector<32x49xf32> to vector<32x1xf32>
    %68 = vector.broadcast %67 : vector<32x1xf32> to vector<32x64xf32>
    %69 = arith.mulf %66, %68 : vector<32x64xf32>
    %70 = arith.addf %65, %69 : vector<32x64xf32>
    %c0_43 = arith.constant 0 : index
    %c17 = arith.constant 17 : index
    %71 = vector.load %arg18[%c0_43, %c17] : memref<32x256xf32, #tpu.memory_space<vmem>>, vector<32x64xf32>
    %72 = vector.extract_strided_slice %4 {offsets = [0, 15], sizes = [32, 1], strides = [1, 1]} : vector<32x49xf32> to vector<32x1xf32>
    %73 = vector.broadcast %72 : vector<32x1xf32> to vector<32x64xf32>
    %74 = arith.mulf %71, %73 : vector<32x64xf32>
    %75 = arith.addf %70, %74 : vector<32x64xf32>
    %c0_44 = arith.constant 0 : index
    %c25 = arith.constant 25 : index
    %76 = vector.load %arg18[%c0_44, %c25] : memref<32x256xf32, #tpu.memory_space<vmem>>, vector<32x64xf32>
    %77 = vector.extract_strided_slice %4 {offsets = [0, 22], sizes = [32, 1], strides = [1, 1]} : vector<32x49xf32> to vector<32x1xf32>
    %78 = vector.broadcast %77 : vector<32x1xf32> to vector<32x64xf32>
    %79 = arith.mulf %76, %78 : vector<32x64xf32>
    %80 = arith.addf %75, %79 : vector<32x64xf32>
    %c0_45 = arith.constant 0 : index
    %c33 = arith.constant 33 : index
    %81 = vector.load %arg18[%c0_45, %c33] : memref<32x256xf32, #tpu.memory_space<vmem>>, vector<32x64xf32>
    %82 = vector.extract_strided_slice %4 {offsets = [0, 29], sizes = [32, 1], strides = [1, 1]} : vector<32x49xf32> to vector<32x1xf32>
    %83 = vector.broadcast %82 : vector<32x1xf32> to vector<32x64xf32>
    %84 = arith.mulf %81, %83 : vector<32x64xf32>
    %85 = arith.addf %80, %84 : vector<32x64xf32>
    %c0_46 = arith.constant 0 : index
    %c41 = arith.constant 41 : index
    %86 = vector.load %arg18[%c0_46, %c41] : memref<32x256xf32, #tpu.memory_space<vmem>>, vector<32x64xf32>
    %87 = vector.extract_strided_slice %4 {offsets = [0, 36], sizes = [32, 1], strides = [1, 1]} : vector<32x49xf32> to vector<32x1xf32>
    %88 = vector.broadcast %87 : vector<32x1xf32> to vector<32x64xf32>
    %89 = arith.mulf %86, %88 : vector<32x64xf32>
    %90 = arith.addf %85, %89 : vector<32x64xf32>
    %c0_47 = arith.constant 0 : index
    %c49 = arith.constant 49 : index
    %91 = vector.load %arg18[%c0_47, %c49] : memref<32x256xf32, #tpu.memory_space<vmem>>, vector<32x64xf32>
    %92 = vector.extract_strided_slice %4 {offsets = [0, 43], sizes = [32, 1], strides = [1, 1]} : vector<32x49xf32> to vector<32x1xf32>
    %93 = vector.broadcast %92 : vector<32x1xf32> to vector<32x64xf32>
    %94 = arith.mulf %91, %93 : vector<32x64xf32>
    %95 = arith.addf %90, %94 : vector<32x64xf32>
    %96 = vector.broadcast %12 : vector<1x64xf32> to vector<32x64xf32>
    %97 = arith.mulf %95, %96 : vector<32x64xf32>
    %98 = arith.addf %59, %97 : vector<32x64xf32>
    %cst_48 = arith.constant 0.000000e+00 : f32
    %99 = vector.broadcast %cst_48 : f32 to vector<32x64xf32>
    %c0_49 = arith.constant 0 : index
    %c2_50 = arith.constant 2 : index
    %100 = vector.load %arg18[%c0_49, %c2_50] : memref<32x256xf32, #tpu.memory_space<vmem>>, vector<32x64xf32>
    %101 = vector.extract_strided_slice %4 {offsets = [0, 2], sizes = [32, 1], strides = [1, 1]} : vector<32x49xf32> to vector<32x1xf32>
    %102 = vector.broadcast %101 : vector<32x1xf32> to vector<32x64xf32>
    %103 = arith.mulf %100, %102 : vector<32x64xf32>
    %104 = arith.addf %99, %103 : vector<32x64xf32>
    %c0_51 = arith.constant 0 : index
    %c10 = arith.constant 10 : index
    %105 = vector.load %arg18[%c0_51, %c10] : memref<32x256xf32, #tpu.memory_space<vmem>>, vector<32x64xf32>
    %106 = vector.extract_strided_slice %4 {offsets = [0, 9], sizes = [32, 1], strides = [1, 1]} : vector<32x49xf32> to vector<32x1xf32>
    %107 = vector.broadcast %106 : vector<32x1xf32> to vector<32x64xf32>
    %108 = arith.mulf %105, %107 : vector<32x64xf32>
    %109 = arith.addf %104, %108 : vector<32x64xf32>
    %c0_52 = arith.constant 0 : index
    %c18 = arith.constant 18 : index
    %110 = vector.load %arg18[%c0_52, %c18] : memref<32x256xf32, #tpu.memory_space<vmem>>, vector<32x64xf32>
    %111 = vector.extract_strided_slice %4 {offsets = [0, 16], sizes = [32, 1], strides = [1, 1]} : vector<32x49xf32> to vector<32x1xf32>
    %112 = vector.broadcast %111 : vector<32x1xf32> to vector<32x64xf32>
    %113 = arith.mulf %110, %112 : vector<32x64xf32>
    %114 = arith.addf %109, %113 : vector<32x64xf32>
    %c0_53 = arith.constant 0 : index
    %c26 = arith.constant 26 : index
    %115 = vector.load %arg18[%c0_53, %c26] : memref<32x256xf32, #tpu.memory_space<vmem>>, vector<32x64xf32>
    %116 = vector.extract_strided_slice %4 {offsets = [0, 23], sizes = [32, 1], strides = [1, 1]} : vector<32x49xf32> to vector<32x1xf32>
    %117 = vector.broadcast %116 : vector<32x1xf32> to vector<32x64xf32>
    %118 = arith.mulf %115, %117 : vector<32x64xf32>
    %119 = arith.addf %114, %118 : vector<32x64xf32>
    %c0_54 = arith.constant 0 : index
    %c34 = arith.constant 34 : index
    %120 = vector.load %arg18[%c0_54, %c34] : memref<32x256xf32, #tpu.memory_space<vmem>>, vector<32x64xf32>
    %121 = vector.extract_strided_slice %4 {offsets = [0, 30], sizes = [32, 1], strides = [1, 1]} : vector<32x49xf32> to vector<32x1xf32>
    %122 = vector.broadcast %121 : vector<32x1xf32> to vector<32x64xf32>
    %123 = arith.mulf %120, %122 : vector<32x64xf32>
    %124 = arith.addf %119, %123 : vector<32x64xf32>
    %c0_55 = arith.constant 0 : index
    %c42 = arith.constant 42 : index
    %125 = vector.load %arg18[%c0_55, %c42] : memref<32x256xf32, #tpu.memory_space<vmem>>, vector<32x64xf32>
    %126 = vector.extract_strided_slice %4 {offsets = [0, 37], sizes = [32, 1], strides = [1, 1]} : vector<32x49xf32> to vector<32x1xf32>
    %127 = vector.broadcast %126 : vector<32x1xf32> to vector<32x64xf32>
    %128 = arith.mulf %125, %127 : vector<32x64xf32>
    %129 = arith.addf %124, %128 : vector<32x64xf32>
    %c0_56 = arith.constant 0 : index
    %c50 = arith.constant 50 : index
    %130 = vector.load %arg18[%c0_56, %c50] : memref<32x256xf32, #tpu.memory_space<vmem>>, vector<32x64xf32>
    %131 = vector.extract_strided_slice %4 {offsets = [0, 44], sizes = [32, 1], strides = [1, 1]} : vector<32x49xf32> to vector<32x1xf32>
    %132 = vector.broadcast %131 : vector<32x1xf32> to vector<32x64xf32>
    %133 = arith.mulf %130, %132 : vector<32x64xf32>
    %134 = arith.addf %129, %133 : vector<32x64xf32>
    %135 = vector.broadcast %13 : vector<1x64xf32> to vector<32x64xf32>
    %136 = arith.mulf %134, %135 : vector<32x64xf32>
    %137 = arith.addf %98, %136 : vector<32x64xf32>
    %cst_57 = arith.constant 0.000000e+00 : f32
    %138 = vector.broadcast %cst_57 : f32 to vector<32x64xf32>
    %c0_58 = arith.constant 0 : index
    %c3 = arith.constant 3 : index
    %139 = vector.load %arg18[%c0_58, %c3] : memref<32x256xf32, #tpu.memory_space<vmem>>, vector<32x64xf32>
    %140 = vector.extract_strided_slice %4 {offsets = [0, 3], sizes = [32, 1], strides = [1, 1]} : vector<32x49xf32> to vector<32x1xf32>
    %141 = vector.broadcast %140 : vector<32x1xf32> to vector<32x64xf32>
    %142 = arith.mulf %139, %141 : vector<32x64xf32>
    %143 = arith.addf %138, %142 : vector<32x64xf32>
    %c0_59 = arith.constant 0 : index
    %c11 = arith.constant 11 : index
    %144 = vector.load %arg18[%c0_59, %c11] : memref<32x256xf32, #tpu.memory_space<vmem>>, vector<32x64xf32>
    %145 = vector.extract_strided_slice %4 {offsets = [0, 10], sizes = [32, 1], strides = [1, 1]} : vector<32x49xf32> to vector<32x1xf32>
    %146 = vector.broadcast %145 : vector<32x1xf32> to vector<32x64xf32>
    %147 = arith.mulf %144, %146 : vector<32x64xf32>
    %148 = arith.addf %143, %147 : vector<32x64xf32>
    %c0_60 = arith.constant 0 : index
    %c19 = arith.constant 19 : index
    %149 = vector.load %arg18[%c0_60, %c19] : memref<32x256xf32, #tpu.memory_space<vmem>>, vector<32x64xf32>
    %150 = vector.extract_strided_slice %4 {offsets = [0, 17], sizes = [32, 1], strides = [1, 1]} : vector<32x49xf32> to vector<32x1xf32>
    %151 = vector.broadcast %150 : vector<32x1xf32> to vector<32x64xf32>
    %152 = arith.mulf %149, %151 : vector<32x64xf32>
    %153 = arith.addf %148, %152 : vector<32x64xf32>
    %c0_61 = arith.constant 0 : index
    %c27_62 = arith.constant 27 : index
    %154 = vector.load %arg18[%c0_61, %c27_62] : memref<32x256xf32, #tpu.memory_space<vmem>>, vector<32x64xf32>
    %155 = vector.extract_strided_slice %4 {offsets = [0, 24], sizes = [32, 1], strides = [1, 1]} : vector<32x49xf32> to vector<32x1xf32>
    %156 = vector.broadcast %155 : vector<32x1xf32> to vector<32x64xf32>
    %157 = arith.mulf %154, %156 : vector<32x64xf32>
    %158 = arith.addf %153, %157 : vector<32x64xf32>
    %c0_63 = arith.constant 0 : index
    %c35 = arith.constant 35 : index
    %159 = vector.load %arg18[%c0_63, %c35] : memref<32x256xf32, #tpu.memory_space<vmem>>, vector<32x64xf32>
    %160 = vector.extract_strided_slice %4 {offsets = [0, 31], sizes = [32, 1], strides = [1, 1]} : vector<32x49xf32> to vector<32x1xf32>
    %161 = vector.broadcast %160 : vector<32x1xf32> to vector<32x64xf32>
    %162 = arith.mulf %159, %161 : vector<32x64xf32>
    %163 = arith.addf %158, %162 : vector<32x64xf32>
    %c0_64 = arith.constant 0 : index
    %c43 = arith.constant 43 : index
    %164 = vector.load %arg18[%c0_64, %c43] : memref<32x256xf32, #tpu.memory_space<vmem>>, vector<32x64xf32>
    %165 = vector.extract_strided_slice %4 {offsets = [0, 38], sizes = [32, 1], strides = [1, 1]} : vector<32x49xf32> to vector<32x1xf32>
    %166 = vector.broadcast %165 : vector<32x1xf32> to vector<32x64xf32>
    %167 = arith.mulf %164, %166 : vector<32x64xf32>
    %168 = arith.addf %163, %167 : vector<32x64xf32>
    %c0_65 = arith.constant 0 : index
    %c51 = arith.constant 51 : index
    %169 = vector.load %arg18[%c0_65, %c51] : memref<32x256xf32, #tpu.memory_space<vmem>>, vector<32x64xf32>
    %170 = vector.extract_strided_slice %4 {offsets = [0, 45], sizes = [32, 1], strides = [1, 1]} : vector<32x49xf32> to vector<32x1xf32>
    %171 = vector.broadcast %170 : vector<32x1xf32> to vector<32x64xf32>
    %172 = arith.mulf %169, %171 : vector<32x64xf32>
    %173 = arith.addf %168, %172 : vector<32x64xf32>
    %174 = arith.addf %137, %173 : vector<32x64xf32>
    %cst_66 = arith.constant 0.000000e+00 : f32
    %175 = vector.broadcast %cst_66 : f32 to vector<32x64xf32>
    %c0_67 = arith.constant 0 : index
    %c4_68 = arith.constant 4 : index
    %176 = vector.load %arg18[%c0_67, %c4_68] : memref<32x256xf32, #tpu.memory_space<vmem>>, vector<32x64xf32>
    %177 = vector.extract_strided_slice %4 {offsets = [0, 4], sizes = [32, 1], strides = [1, 1]} : vector<32x49xf32> to vector<32x1xf32>
    %178 = vector.broadcast %177 : vector<32x1xf32> to vector<32x64xf32>
    %179 = arith.mulf %176, %178 : vector<32x64xf32>
    %180 = arith.addf %175, %179 : vector<32x64xf32>
    %c0_69 = arith.constant 0 : index
    %c12 = arith.constant 12 : index
    %181 = vector.load %arg18[%c0_69, %c12] : memref<32x256xf32, #tpu.memory_space<vmem>>, vector<32x64xf32>
    %182 = vector.extract_strided_slice %4 {offsets = [0, 11], sizes = [32, 1], strides = [1, 1]} : vector<32x49xf32> to vector<32x1xf32>
    %183 = vector.broadcast %182 : vector<32x1xf32> to vector<32x64xf32>
    %184 = arith.mulf %181, %183 : vector<32x64xf32>
    %185 = arith.addf %180, %184 : vector<32x64xf32>
    %c0_70 = arith.constant 0 : index
    %c20 = arith.constant 20 : index
    %186 = vector.load %arg18[%c0_70, %c20] : memref<32x256xf32, #tpu.memory_space<vmem>>, vector<32x64xf32>
    %187 = vector.extract_strided_slice %4 {offsets = [0, 18], sizes = [32, 1], strides = [1, 1]} : vector<32x49xf32> to vector<32x1xf32>
    %188 = vector.broadcast %187 : vector<32x1xf32> to vector<32x64xf32>
    %189 = arith.mulf %186, %188 : vector<32x64xf32>
    %190 = arith.addf %185, %189 : vector<32x64xf32>
    %c0_71 = arith.constant 0 : index
    %c28 = arith.constant 28 : index
    %191 = vector.load %arg18[%c0_71, %c28] : memref<32x256xf32, #tpu.memory_space<vmem>>, vector<32x64xf32>
    %192 = vector.extract_strided_slice %4 {offsets = [0, 25], sizes = [32, 1], strides = [1, 1]} : vector<32x49xf32> to vector<32x1xf32>
    %193 = vector.broadcast %192 : vector<32x1xf32> to vector<32x64xf32>
    %194 = arith.mulf %191, %193 : vector<32x64xf32>
    %195 = arith.addf %190, %194 : vector<32x64xf32>
    %c0_72 = arith.constant 0 : index
    %c36 = arith.constant 36 : index
    %196 = vector.load %arg18[%c0_72, %c36] : memref<32x256xf32, #tpu.memory_space<vmem>>, vector<32x64xf32>
    %197 = vector.extract_strided_slice %4 {offsets = [0, 32], sizes = [32, 1], strides = [1, 1]} : vector<32x49xf32> to vector<32x1xf32>
    %198 = vector.broadcast %197 : vector<32x1xf32> to vector<32x64xf32>
    %199 = arith.mulf %196, %198 : vector<32x64xf32>
    %200 = arith.addf %195, %199 : vector<32x64xf32>
    %c0_73 = arith.constant 0 : index
    %c44 = arith.constant 44 : index
    %201 = vector.load %arg18[%c0_73, %c44] : memref<32x256xf32, #tpu.memory_space<vmem>>, vector<32x64xf32>
    %202 = vector.extract_strided_slice %4 {offsets = [0, 39], sizes = [32, 1], strides = [1, 1]} : vector<32x49xf32> to vector<32x1xf32>
    %203 = vector.broadcast %202 : vector<32x1xf32> to vector<32x64xf32>
    %204 = arith.mulf %201, %203 : vector<32x64xf32>
    %205 = arith.addf %200, %204 : vector<32x64xf32>
    %c0_74 = arith.constant 0 : index
    %c52 = arith.constant 52 : index
    %206 = vector.load %arg18[%c0_74, %c52] : memref<32x256xf32, #tpu.memory_space<vmem>>, vector<32x64xf32>
    %207 = vector.extract_strided_slice %4 {offsets = [0, 46], sizes = [32, 1], strides = [1, 1]} : vector<32x49xf32> to vector<32x1xf32>
    %208 = vector.broadcast %207 : vector<32x1xf32> to vector<32x64xf32>
    %209 = arith.mulf %206, %208 : vector<32x64xf32>
    %210 = arith.addf %205, %209 : vector<32x64xf32>
    %211 = vector.broadcast %14 : vector<1x64xf32> to vector<32x64xf32>
    %212 = arith.mulf %210, %211 : vector<32x64xf32>
    %213 = arith.addf %174, %212 : vector<32x64xf32>
    %cst_75 = arith.constant 0.000000e+00 : f32
    %214 = vector.broadcast %cst_75 : f32 to vector<32x64xf32>
    %c0_76 = arith.constant 0 : index
    %c5_77 = arith.constant 5 : index
    %215 = vector.load %arg18[%c0_76, %c5_77] : memref<32x256xf32, #tpu.memory_space<vmem>>, vector<32x64xf32>
    %216 = vector.extract_strided_slice %4 {offsets = [0, 5], sizes = [32, 1], strides = [1, 1]} : vector<32x49xf32> to vector<32x1xf32>
    %217 = vector.broadcast %216 : vector<32x1xf32> to vector<32x64xf32>
    %218 = arith.mulf %215, %217 : vector<32x64xf32>
    %219 = arith.addf %214, %218 : vector<32x64xf32>
    %c0_78 = arith.constant 0 : index
    %c13 = arith.constant 13 : index
    %220 = vector.load %arg18[%c0_78, %c13] : memref<32x256xf32, #tpu.memory_space<vmem>>, vector<32x64xf32>
    %221 = vector.extract_strided_slice %4 {offsets = [0, 12], sizes = [32, 1], strides = [1, 1]} : vector<32x49xf32> to vector<32x1xf32>
    %222 = vector.broadcast %221 : vector<32x1xf32> to vector<32x64xf32>
    %223 = arith.mulf %220, %222 : vector<32x64xf32>
    %224 = arith.addf %219, %223 : vector<32x64xf32>
    %c0_79 = arith.constant 0 : index
    %c21 = arith.constant 21 : index
    %225 = vector.load %arg18[%c0_79, %c21] : memref<32x256xf32, #tpu.memory_space<vmem>>, vector<32x64xf32>
    %226 = vector.extract_strided_slice %4 {offsets = [0, 19], sizes = [32, 1], strides = [1, 1]} : vector<32x49xf32> to vector<32x1xf32>
    %227 = vector.broadcast %226 : vector<32x1xf32> to vector<32x64xf32>
    %228 = arith.mulf %225, %227 : vector<32x64xf32>
    %229 = arith.addf %224, %228 : vector<32x64xf32>
    %c0_80 = arith.constant 0 : index
    %c29 = arith.constant 29 : index
    %230 = vector.load %arg18[%c0_80, %c29] : memref<32x256xf32, #tpu.memory_space<vmem>>, vector<32x64xf32>
    %231 = vector.extract_strided_slice %4 {offsets = [0, 26], sizes = [32, 1], strides = [1, 1]} : vector<32x49xf32> to vector<32x1xf32>
    %232 = vector.broadcast %231 : vector<32x1xf32> to vector<32x64xf32>
    %233 = arith.mulf %230, %232 : vector<32x64xf32>
    %234 = arith.addf %229, %233 : vector<32x64xf32>
    %c0_81 = arith.constant 0 : index
    %c37 = arith.constant 37 : index
    %235 = vector.load %arg18[%c0_81, %c37] : memref<32x256xf32, #tpu.memory_space<vmem>>, vector<32x64xf32>
    %236 = vector.extract_strided_slice %4 {offsets = [0, 33], sizes = [32, 1], strides = [1, 1]} : vector<32x49xf32> to vector<32x1xf32>
    %237 = vector.broadcast %236 : vector<32x1xf32> to vector<32x64xf32>
    %238 = arith.mulf %235, %237 : vector<32x64xf32>
    %239 = arith.addf %234, %238 : vector<32x64xf32>
    %c0_82 = arith.constant 0 : index
    %c45 = arith.constant 45 : index
    %240 = vector.load %arg18[%c0_82, %c45] : memref<32x256xf32, #tpu.memory_space<vmem>>, vector<32x64xf32>
    %241 = vector.extract_strided_slice %4 {offsets = [0, 40], sizes = [32, 1], strides = [1, 1]} : vector<32x49xf32> to vector<32x1xf32>
    %242 = vector.broadcast %241 : vector<32x1xf32> to vector<32x64xf32>
    %243 = arith.mulf %240, %242 : vector<32x64xf32>
    %244 = arith.addf %239, %243 : vector<32x64xf32>
    %c0_83 = arith.constant 0 : index
    %c53 = arith.constant 53 : index
    %245 = vector.load %arg18[%c0_83, %c53] : memref<32x256xf32, #tpu.memory_space<vmem>>, vector<32x64xf32>
    %246 = vector.extract_strided_slice %4 {offsets = [0, 47], sizes = [32, 1], strides = [1, 1]} : vector<32x49xf32> to vector<32x1xf32>
    %247 = vector.broadcast %246 : vector<32x1xf32> to vector<32x64xf32>
    %248 = arith.mulf %245, %247 : vector<32x64xf32>
    %249 = arith.addf %244, %248 : vector<32x64xf32>
    %250 = vector.broadcast %15 : vector<1x64xf32> to vector<32x64xf32>
    %251 = arith.mulf %249, %250 : vector<32x64xf32>
    %252 = arith.addf %213, %251 : vector<32x64xf32>
    %cst_84 = arith.constant 0.000000e+00 : f32
    %253 = vector.broadcast %cst_84 : f32 to vector<32x64xf32>
    %c0_85 = arith.constant 0 : index
    %c6_86 = arith.constant 6 : index
    %254 = vector.load %arg18[%c0_85, %c6_86] : memref<32x256xf32, #tpu.memory_space<vmem>>, vector<32x64xf32>
    %255 = vector.extract_strided_slice %4 {offsets = [0, 6], sizes = [32, 1], strides = [1, 1]} : vector<32x49xf32> to vector<32x1xf32>
    %256 = vector.broadcast %255 : vector<32x1xf32> to vector<32x64xf32>
    %257 = arith.mulf %254, %256 : vector<32x64xf32>
    %258 = arith.addf %253, %257 : vector<32x64xf32>
    %c0_87 = arith.constant 0 : index
    %c14 = arith.constant 14 : index
    %259 = vector.load %arg18[%c0_87, %c14] : memref<32x256xf32, #tpu.memory_space<vmem>>, vector<32x64xf32>
    %260 = vector.extract_strided_slice %4 {offsets = [0, 13], sizes = [32, 1], strides = [1, 1]} : vector<32x49xf32> to vector<32x1xf32>
    %261 = vector.broadcast %260 : vector<32x1xf32> to vector<32x64xf32>
    %262 = arith.mulf %259, %261 : vector<32x64xf32>
    %263 = arith.addf %258, %262 : vector<32x64xf32>
    %c0_88 = arith.constant 0 : index
    %c22 = arith.constant 22 : index
    %264 = vector.load %arg18[%c0_88, %c22] : memref<32x256xf32, #tpu.memory_space<vmem>>, vector<32x64xf32>
    %265 = vector.extract_strided_slice %4 {offsets = [0, 20], sizes = [32, 1], strides = [1, 1]} : vector<32x49xf32> to vector<32x1xf32>
    %266 = vector.broadcast %265 : vector<32x1xf32> to vector<32x64xf32>
    %267 = arith.mulf %264, %266 : vector<32x64xf32>
    %268 = arith.addf %263, %267 : vector<32x64xf32>
    %c0_89 = arith.constant 0 : index
    %c30 = arith.constant 30 : index
    %269 = vector.load %arg18[%c0_89, %c30] : memref<32x256xf32, #tpu.memory_space<vmem>>, vector<32x64xf32>
    %270 = vector.extract_strided_slice %4 {offsets = [0, 27], sizes = [32, 1], strides = [1, 1]} : vector<32x49xf32> to vector<32x1xf32>
    %271 = vector.broadcast %270 : vector<32x1xf32> to vector<32x64xf32>
    %272 = arith.mulf %269, %271 : vector<32x64xf32>
    %273 = arith.addf %268, %272 : vector<32x64xf32>
    %c0_90 = arith.constant 0 : index
    %c38 = arith.constant 38 : index
    %274 = vector.load %arg18[%c0_90, %c38] : memref<32x256xf32, #tpu.memory_space<vmem>>, vector<32x64xf32>
    %275 = vector.extract_strided_slice %4 {offsets = [0, 34], sizes = [32, 1], strides = [1, 1]} : vector<32x49xf32> to vector<32x1xf32>
    %276 = vector.broadcast %275 : vector<32x1xf32> to vector<32x64xf32>
    %277 = arith.mulf %274, %276 : vector<32x64xf32>
    %278 = arith.addf %273, %277 : vector<32x64xf32>
    %c0_91 = arith.constant 0 : index
    %c46 = arith.constant 46 : index
    %279 = vector.load %arg18[%c0_91, %c46] : memref<32x256xf32, #tpu.memory_space<vmem>>, vector<32x64xf32>
    %280 = vector.extract_strided_slice %4 {offsets = [0, 41], sizes = [32, 1], strides = [1, 1]} : vector<32x49xf32> to vector<32x1xf32>
    %281 = vector.broadcast %280 : vector<32x1xf32> to vector<32x64xf32>
    %282 = arith.mulf %279, %281 : vector<32x64xf32>
    %283 = arith.addf %278, %282 : vector<32x64xf32>
    %c0_92 = arith.constant 0 : index
    %c54 = arith.constant 54 : index
    %284 = vector.load %arg18[%c0_92, %c54] : memref<32x256xf32, #tpu.memory_space<vmem>>, vector<32x64xf32>
    %285 = vector.extract_strided_slice %4 {offsets = [0, 48], sizes = [32, 1], strides = [1, 1]} : vector<32x49xf32> to vector<32x1xf32>
    %286 = vector.broadcast %285 : vector<32x1xf32> to vector<32x64xf32>
    %287 = arith.mulf %284, %286 : vector<32x64xf32>
    %288 = arith.addf %283, %287 : vector<32x64xf32>
    %289 = vector.broadcast %16 : vector<1x64xf32> to vector<32x64xf32>
    %290 = arith.mulf %288, %289 : vector<32x64xf32>
    %291 = arith.addf %252, %290 : vector<32x64xf32>
    %292 = vector.broadcast %5 : vector<32x1xf32> to vector<32x64xf32>
    %293 = arith.addf %291, %292 : vector<32x64xf32>
    %cst_93 = arith.constant dense<0.000000e+00> : vector<32xf32>
    %294 = vector.multi_reduction <add>, %293, %cst_93 [1] : vector<32x64xf32> to vector<32xf32>
    %295 = vector.shape_cast %294 : vector<32xf32> to vector<32x1xf32>
    %cst_94 = arith.constant 6.400000e+01 : f32
    %296 = vector.broadcast %cst_94 : f32 to vector<32x1xf32>
    %297 = arith.divf %295, %296 : vector<32x1xf32>
    %cst_95 = arith.constant dense<0xFF800000> : vector<32xf32>
    %298 = vector.multi_reduction <maximumf>, %293, %cst_95 [1] : vector<32x64xf32> to vector<32xf32>
    %299 = vector.shape_cast %298 : vector<32xf32> to vector<32x1xf32>
    %300 = vector.broadcast %297 : vector<32x1xf32> to vector<32x2xf32>
    %301 = arith.mulf %300, %6 : vector<32x2xf32>
    %cst_96 = arith.constant dense<0.000000e+00> : vector<2xf32>
    %302 = vector.multi_reduction <add>, %301, %cst_96 [0] : vector<32x2xf32> to vector<2xf32>
    %303 = vector.shape_cast %302 : vector<2xf32> to vector<1x2xf32>
    %cst_97 = arith.constant 0.000000e+00 : f32
    %304 = vector.broadcast %cst_97 : f32 to vector<1x2xf32>
    %305 = arith.maximumf %303, %304 : vector<1x2xf32>
    %306 = vector.broadcast %299 : vector<32x1xf32> to vector<32x2xf32>
    %307 = arith.mulf %306, %6 : vector<32x2xf32>
    %cst_98 = arith.constant dense<0.000000e+00> : vector<2xf32>
    %308 = vector.multi_reduction <add>, %307, %cst_98 [0] : vector<32x2xf32> to vector<2xf32>
    %309 = vector.shape_cast %308 : vector<2xf32> to vector<1x2xf32>
    %cst_99 = arith.constant 0.000000e+00 : f32
    %310 = vector.broadcast %cst_99 : f32 to vector<1x2xf32>
    %311 = arith.maximumf %309, %310 : vector<1x2xf32>
    %312 = arith.addf %305, %311 : vector<1x2xf32>
    %313 = vector.broadcast %312 : vector<1x2xf32> to vector<32x2xf32>
    %314 = arith.mulf %7, %313 : vector<32x2xf32>
    %cst_100 = arith.constant dense<0.000000e+00> : vector<32xf32>
    %315 = vector.multi_reduction <add>, %314, %cst_100 [1] : vector<32x2xf32> to vector<32xf32>
    %316 = vector.shape_cast %315 : vector<32xf32> to vector<32x1xf32>
    %317 = arith.negf %316 : vector<32x1xf32>
    %318 = math.exp %317 : vector<32x1xf32>
    %cst_101 = arith.constant 1.000000e+00 : f32
    %319 = vector.broadcast %cst_101 : f32 to vector<32x1xf32>
    %320 = arith.addf %319, %318 : vector<32x1xf32>
    %321 = arith.divf %319, %320 : vector<32x1xf32>
    %322 = vector.broadcast %321 : vector<32x1xf32> to vector<32x64xf32>
    %323 = arith.mulf %293, %322 : vector<32x64xf32>
    %cst_102 = arith.constant dense<0.000000e+00> : vector<64xf32>
    %324 = vector.multi_reduction <add>, %323, %cst_102 [0] : vector<32x64xf32> to vector<64xf32>
    %325 = vector.shape_cast %324 : vector<64xf32> to vector<1x64xf32>
    %cst_103 = arith.constant 3.200000e+01 : f32
    %326 = vector.broadcast %cst_103 : f32 to vector<1x64xf32>
    %327 = arith.divf %325, %326 : vector<1x64xf32>
    %c0_104 = arith.constant 0 : index
    %c27_105 = arith.constant 27 : index
    %328 = vector.load %arg19[%c0_104, %c27_105] : memref<2x256xf32, #tpu.memory_space<vmem>>, vector<1x64xf32>
    tpu.vector_store %arg19[%c0_104, %c27_105], %327 {strides = array<i32>} : memref<2x256xf32, #tpu.memory_space<vmem>>, vector<1x64xf32>,
    %cst_106 = arith.constant dense<0xFF800000> : vector<64xf32>
    %329 = vector.multi_reduction <maximumf>, %323, %cst_106 [0] : vector<32x64xf32> to vector<64xf32>
    %330 = vector.shape_cast %329 : vector<64xf32> to vector<1x64xf32>
    %c1_107 = arith.constant 1 : index
    %c27_108 = arith.constant 27 : index
    %331 = vector.load %arg19[%c1_107, %c27_108] : memref<2x256xf32, #tpu.memory_space<vmem>>, vector<1x64xf32>
    tpu.vector_store %arg19[%c1_107, %c27_108], %330 {strides = array<i32>} : memref<2x256xf32, #tpu.memory_space<vmem>>, vector<1x64xf32>,
    %cst_109 = arith.constant 0.000000e+00 : f32
    %332 = vector.broadcast %cst_109 : f32 to vector<2x64xf32>
    %cst_110 = arith.constant 0.000000e+00 : f32
    %333 = vector.broadcast %cst_110 : f32 to vector<2x64xf32>
    %c0_111 = arith.constant 0 : index
    %c0_112 = arith.constant 0 : index
    %334 = vector.load %arg19[%c0_111, %c0_112] : memref<2x256xf32, #tpu.memory_space<vmem>>, vector<2x64xf32>
    %335 = vector.extract_strided_slice %8 {offsets = [0, 0], sizes = [2, 1], strides = [1, 1]} : vector<2x49xf32> to vector<2x1xf32>
    %336 = vector.broadcast %335 : vector<2x1xf32> to vector<2x64xf32>
    %337 = arith.mulf %334, %336 : vector<2x64xf32>
    %338 = arith.addf %333, %337 : vector<2x64xf32>
    %c0_113 = arith.constant 0 : index
    %c8_114 = arith.constant 8 : index
    %339 = vector.load %arg19[%c0_113, %c8_114] : memref<2x256xf32, #tpu.memory_space<vmem>>, vector<2x64xf32>
    %340 = vector.extract_strided_slice %8 {offsets = [0, 7], sizes = [2, 1], strides = [1, 1]} : vector<2x49xf32> to vector<2x1xf32>
    %341 = vector.broadcast %340 : vector<2x1xf32> to vector<2x64xf32>
    %342 = arith.mulf %339, %341 : vector<2x64xf32>
    %343 = arith.addf %338, %342 : vector<2x64xf32>
    %c0_115 = arith.constant 0 : index
    %c16_116 = arith.constant 16 : index
    %344 = vector.load %arg19[%c0_115, %c16_116] : memref<2x256xf32, #tpu.memory_space<vmem>>, vector<2x64xf32>
    %345 = vector.extract_strided_slice %8 {offsets = [0, 14], sizes = [2, 1], strides = [1, 1]} : vector<2x49xf32> to vector<2x1xf32>
    %346 = vector.broadcast %345 : vector<2x1xf32> to vector<2x64xf32>
    %347 = arith.mulf %344, %346 : vector<2x64xf32>
    %348 = arith.addf %343, %347 : vector<2x64xf32>
    %c0_117 = arith.constant 0 : index
    %c24_118 = arith.constant 24 : index
    %349 = vector.load %arg19[%c0_117, %c24_118] : memref<2x256xf32, #tpu.memory_space<vmem>>, vector<2x64xf32>
    %350 = vector.extract_strided_slice %8 {offsets = [0, 21], sizes = [2, 1], strides = [1, 1]} : vector<2x49xf32> to vector<2x1xf32>
    %351 = vector.broadcast %350 : vector<2x1xf32> to vector<2x64xf32>
    %352 = arith.mulf %349, %351 : vector<2x64xf32>
    %353 = arith.addf %348, %352 : vector<2x64xf32>
    %c0_119 = arith.constant 0 : index
    %c32_120 = arith.constant 32 : index
    %354 = vector.load %arg19[%c0_119, %c32_120] : memref<2x256xf32, #tpu.memory_space<vmem>>, vector<2x64xf32>
    %355 = vector.extract_strided_slice %8 {offsets = [0, 28], sizes = [2, 1], strides = [1, 1]} : vector<2x49xf32> to vector<2x1xf32>
    %356 = vector.broadcast %355 : vector<2x1xf32> to vector<2x64xf32>
    %357 = arith.mulf %354, %356 : vector<2x64xf32>
    %358 = arith.addf %353, %357 : vector<2x64xf32>
    %c0_121 = arith.constant 0 : index
    %c40_122 = arith.constant 40 : index
    %359 = vector.load %arg19[%c0_121, %c40_122] : memref<2x256xf32, #tpu.memory_space<vmem>>, vector<2x64xf32>
    %360 = vector.extract_strided_slice %8 {offsets = [0, 35], sizes = [2, 1], strides = [1, 1]} : vector<2x49xf32> to vector<2x1xf32>
    %361 = vector.broadcast %360 : vector<2x1xf32> to vector<2x64xf32>
    %362 = arith.mulf %359, %361 : vector<2x64xf32>
    %363 = arith.addf %358, %362 : vector<2x64xf32>
    %c0_123 = arith.constant 0 : index
    %c48_124 = arith.constant 48 : index
    %364 = vector.load %arg19[%c0_123, %c48_124] : memref<2x256xf32, #tpu.memory_space<vmem>>, vector<2x64xf32>
    %365 = vector.extract_strided_slice %8 {offsets = [0, 42], sizes = [2, 1], strides = [1, 1]} : vector<2x49xf32> to vector<2x1xf32>
    %366 = vector.broadcast %365 : vector<2x1xf32> to vector<2x64xf32>
    %367 = arith.mulf %364, %366 : vector<2x64xf32>
    %368 = arith.addf %363, %367 : vector<2x64xf32>
    %369 = vector.broadcast %11 : vector<1x64xf32> to vector<2x64xf32>
    %370 = arith.mulf %368, %369 : vector<2x64xf32>
    %371 = arith.addf %332, %370 : vector<2x64xf32>
    %cst_125 = arith.constant 0.000000e+00 : f32
    %372 = vector.broadcast %cst_125 : f32 to vector<2x64xf32>
    %c0_126 = arith.constant 0 : index
    %c1_127 = arith.constant 1 : index
    %373 = vector.load %arg19[%c0_126, %c1_127] : memref<2x256xf32, #tpu.memory_space<vmem>>, vector<2x64xf32>
    %374 = vector.extract_strided_slice %8 {offsets = [0, 1], sizes = [2, 1], strides = [1, 1]} : vector<2x49xf32> to vector<2x1xf32>
    %375 = vector.broadcast %374 : vector<2x1xf32> to vector<2x64xf32>
    %376 = arith.mulf %373, %375 : vector<2x64xf32>
    %377 = arith.addf %372, %376 : vector<2x64xf32>
    %c0_128 = arith.constant 0 : index
    %c9_129 = arith.constant 9 : index
    %378 = vector.load %arg19[%c0_128, %c9_129] : memref<2x256xf32, #tpu.memory_space<vmem>>, vector<2x64xf32>
    %379 = vector.extract_strided_slice %8 {offsets = [0, 8], sizes = [2, 1], strides = [1, 1]} : vector<2x49xf32> to vector<2x1xf32>
    %380 = vector.broadcast %379 : vector<2x1xf32> to vector<2x64xf32>
    %381 = arith.mulf %378, %380 : vector<2x64xf32>
    %382 = arith.addf %377, %381 : vector<2x64xf32>
    %c0_130 = arith.constant 0 : index
    %c17_131 = arith.constant 17 : index
    %383 = vector.load %arg19[%c0_130, %c17_131] : memref<2x256xf32, #tpu.memory_space<vmem>>, vector<2x64xf32>
    %384 = vector.extract_strided_slice %8 {offsets = [0, 15], sizes = [2, 1], strides = [1, 1]} : vector<2x49xf32> to vector<2x1xf32>
    %385 = vector.broadcast %384 : vector<2x1xf32> to vector<2x64xf32>
    %386 = arith.mulf %383, %385 : vector<2x64xf32>
    %387 = arith.addf %382, %386 : vector<2x64xf32>
    %c0_132 = arith.constant 0 : index
    %c25_133 = arith.constant 25 : index
    %388 = vector.load %arg19[%c0_132, %c25_133] : memref<2x256xf32, #tpu.memory_space<vmem>>, vector<2x64xf32>
    %389 = vector.extract_strided_slice %8 {offsets = [0, 22], sizes = [2, 1], strides = [1, 1]} : vector<2x49xf32> to vector<2x1xf32>
    %390 = vector.broadcast %389 : vector<2x1xf32> to vector<2x64xf32>
    %391 = arith.mulf %388, %390 : vector<2x64xf32>
    %392 = arith.addf %387, %391 : vector<2x64xf32>
    %c0_134 = arith.constant 0 : index
    %c33_135 = arith.constant 33 : index
    %393 = vector.load %arg19[%c0_134, %c33_135] : memref<2x256xf32, #tpu.memory_space<vmem>>, vector<2x64xf32>
    %394 = vector.extract_strided_slice %8 {offsets = [0, 29], sizes = [2, 1], strides = [1, 1]} : vector<2x49xf32> to vector<2x1xf32>
    %395 = vector.broadcast %394 : vector<2x1xf32> to vector<2x64xf32>
    %396 = arith.mulf %393, %395 : vector<2x64xf32>
    %397 = arith.addf %392, %396 : vector<2x64xf32>
    %c0_136 = arith.constant 0 : index
    %c41_137 = arith.constant 41 : index
    %398 = vector.load %arg19[%c0_136, %c41_137] : memref<2x256xf32, #tpu.memory_space<vmem>>, vector<2x64xf32>
    %399 = vector.extract_strided_slice %8 {offsets = [0, 36], sizes = [2, 1], strides = [1, 1]} : vector<2x49xf32> to vector<2x1xf32>
    %400 = vector.broadcast %399 : vector<2x1xf32> to vector<2x64xf32>
    %401 = arith.mulf %398, %400 : vector<2x64xf32>
    %402 = arith.addf %397, %401 : vector<2x64xf32>
    %c0_138 = arith.constant 0 : index
    %c49_139 = arith.constant 49 : index
    %403 = vector.load %arg19[%c0_138, %c49_139] : memref<2x256xf32, #tpu.memory_space<vmem>>, vector<2x64xf32>
    %404 = vector.extract_strided_slice %8 {offsets = [0, 43], sizes = [2, 1], strides = [1, 1]} : vector<2x49xf32> to vector<2x1xf32>
    %405 = vector.broadcast %404 : vector<2x1xf32> to vector<2x64xf32>
    %406 = arith.mulf %403, %405 : vector<2x64xf32>
    %407 = arith.addf %402, %406 : vector<2x64xf32>
    %408 = vector.broadcast %12 : vector<1x64xf32> to vector<2x64xf32>
    %409 = arith.mulf %407, %408 : vector<2x64xf32>
    %410 = arith.addf %371, %409 : vector<2x64xf32>
    %cst_140 = arith.constant 0.000000e+00 : f32
    %411 = vector.broadcast %cst_140 : f32 to vector<2x64xf32>
    %c0_141 = arith.constant 0 : index
    %c2_142 = arith.constant 2 : index
    %412 = vector.load %arg19[%c0_141, %c2_142] : memref<2x256xf32, #tpu.memory_space<vmem>>, vector<2x64xf32>
    %413 = vector.extract_strided_slice %8 {offsets = [0, 2], sizes = [2, 1], strides = [1, 1]} : vector<2x49xf32> to vector<2x1xf32>
    %414 = vector.broadcast %413 : vector<2x1xf32> to vector<2x64xf32>
    %415 = arith.mulf %412, %414 : vector<2x64xf32>
    %416 = arith.addf %411, %415 : vector<2x64xf32>
    %c0_143 = arith.constant 0 : index
    %c10_144 = arith.constant 10 : index
    %417 = vector.load %arg19[%c0_143, %c10_144] : memref<2x256xf32, #tpu.memory_space<vmem>>, vector<2x64xf32>
    %418 = vector.extract_strided_slice %8 {offsets = [0, 9], sizes = [2, 1], strides = [1, 1]} : vector<2x49xf32> to vector<2x1xf32>
    %419 = vector.broadcast %418 : vector<2x1xf32> to vector<2x64xf32>
    %420 = arith.mulf %417, %419 : vector<2x64xf32>
    %421 = arith.addf %416, %420 : vector<2x64xf32>
    %c0_145 = arith.constant 0 : index
    %c18_146 = arith.constant 18 : index
    %422 = vector.load %arg19[%c0_145, %c18_146] : memref<2x256xf32, #tpu.memory_space<vmem>>, vector<2x64xf32>
    %423 = vector.extract_strided_slice %8 {offsets = [0, 16], sizes = [2, 1], strides = [1, 1]} : vector<2x49xf32> to vector<2x1xf32>
    %424 = vector.broadcast %423 : vector<2x1xf32> to vector<2x64xf32>
    %425 = arith.mulf %422, %424 : vector<2x64xf32>
    %426 = arith.addf %421, %425 : vector<2x64xf32>
    %c0_147 = arith.constant 0 : index
    %c26_148 = arith.constant 26 : index
    %427 = vector.load %arg19[%c0_147, %c26_148] : memref<2x256xf32, #tpu.memory_space<vmem>>, vector<2x64xf32>
    %428 = vector.extract_strided_slice %8 {offsets = [0, 23], sizes = [2, 1], strides = [1, 1]} : vector<2x49xf32> to vector<2x1xf32>
    %429 = vector.broadcast %428 : vector<2x1xf32> to vector<2x64xf32>
    %430 = arith.mulf %427, %429 : vector<2x64xf32>
    %431 = arith.addf %426, %430 : vector<2x64xf32>
    %c0_149 = arith.constant 0 : index
    %c34_150 = arith.constant 34 : index
    %432 = vector.load %arg19[%c0_149, %c34_150] : memref<2x256xf32, #tpu.memory_space<vmem>>, vector<2x64xf32>
    %433 = vector.extract_strided_slice %8 {offsets = [0, 30], sizes = [2, 1], strides = [1, 1]} : vector<2x49xf32> to vector<2x1xf32>
    %434 = vector.broadcast %433 : vector<2x1xf32> to vector<2x64xf32>
    %435 = arith.mulf %432, %434 : vector<2x64xf32>
    %436 = arith.addf %431, %435 : vector<2x64xf32>
    %c0_151 = arith.constant 0 : index
    %c42_152 = arith.constant 42 : index
    %437 = vector.load %arg19[%c0_151, %c42_152] : memref<2x256xf32, #tpu.memory_space<vmem>>, vector<2x64xf32>
    %438 = vector.extract_strided_slice %8 {offsets = [0, 37], sizes = [2, 1], strides = [1, 1]} : vector<2x49xf32> to vector<2x1xf32>
    %439 = vector.broadcast %438 : vector<2x1xf32> to vector<2x64xf32>
    %440 = arith.mulf %437, %439 : vector<2x64xf32>
    %441 = arith.addf %436, %440 : vector<2x64xf32>
    %c0_153 = arith.constant 0 : index
    %c50_154 = arith.constant 50 : index
    %442 = vector.load %arg19[%c0_153, %c50_154] : memref<2x256xf32, #tpu.memory_space<vmem>>, vector<2x64xf32>
    %443 = vector.extract_strided_slice %8 {offsets = [0, 44], sizes = [2, 1], strides = [1, 1]} : vector<2x49xf32> to vector<2x1xf32>
    %444 = vector.broadcast %443 : vector<2x1xf32> to vector<2x64xf32>
    %445 = arith.mulf %442, %444 : vector<2x64xf32>
    %446 = arith.addf %441, %445 : vector<2x64xf32>
    %447 = vector.broadcast %13 : vector<1x64xf32> to vector<2x64xf32>
    %448 = arith.mulf %446, %447 : vector<2x64xf32>
    %449 = arith.addf %410, %448 : vector<2x64xf32>
    %cst_155 = arith.constant 0.000000e+00 : f32
    %450 = vector.broadcast %cst_155 : f32 to vector<2x64xf32>
    %c0_156 = arith.constant 0 : index
    %c3_157 = arith.constant 3 : index
    %451 = vector.load %arg19[%c0_156, %c3_157] : memref<2x256xf32, #tpu.memory_space<vmem>>, vector<2x64xf32>
    %452 = vector.extract_strided_slice %8 {offsets = [0, 3], sizes = [2, 1], strides = [1, 1]} : vector<2x49xf32> to vector<2x1xf32>
    %453 = vector.broadcast %452 : vector<2x1xf32> to vector<2x64xf32>
    %454 = arith.mulf %451, %453 : vector<2x64xf32>
    %455 = arith.addf %450, %454 : vector<2x64xf32>
    %c0_158 = arith.constant 0 : index
    %c11_159 = arith.constant 11 : index
    %456 = vector.load %arg19[%c0_158, %c11_159] : memref<2x256xf32, #tpu.memory_space<vmem>>, vector<2x64xf32>
    %457 = vector.extract_strided_slice %8 {offsets = [0, 10], sizes = [2, 1], strides = [1, 1]} : vector<2x49xf32> to vector<2x1xf32>
    %458 = vector.broadcast %457 : vector<2x1xf32> to vector<2x64xf32>
    %459 = arith.mulf %456, %458 : vector<2x64xf32>
    %460 = arith.addf %455, %459 : vector<2x64xf32>
    %c0_160 = arith.constant 0 : index
    %c19_161 = arith.constant 19 : index
    %461 = vector.load %arg19[%c0_160, %c19_161] : memref<2x256xf32, #tpu.memory_space<vmem>>, vector<2x64xf32>
    %462 = vector.extract_strided_slice %8 {offsets = [0, 17], sizes = [2, 1], strides = [1, 1]} : vector<2x49xf32> to vector<2x1xf32>
    %463 = vector.broadcast %462 : vector<2x1xf32> to vector<2x64xf32>
    %464 = arith.mulf %461, %463 : vector<2x64xf32>
    %465 = arith.addf %460, %464 : vector<2x64xf32>
    %c0_162 = arith.constant 0 : index
    %c27_163 = arith.constant 27 : index
    %466 = vector.load %arg19[%c0_162, %c27_163] : memref<2x256xf32, #tpu.memory_space<vmem>>, vector<2x64xf32>
    %467 = vector.extract_strided_slice %8 {offsets = [0, 24], sizes = [2, 1], strides = [1, 1]} : vector<2x49xf32> to vector<2x1xf32>
    %468 = vector.broadcast %467 : vector<2x1xf32> to vector<2x64xf32>
    %469 = arith.mulf %466, %468 : vector<2x64xf32>
    %470 = arith.addf %465, %469 : vector<2x64xf32>
    %c0_164 = arith.constant 0 : index
    %c35_165 = arith.constant 35 : index
    %471 = vector.load %arg19[%c0_164, %c35_165] : memref<2x256xf32, #tpu.memory_space<vmem>>, vector<2x64xf32>
    %472 = vector.extract_strided_slice %8 {offsets = [0, 31], sizes = [2, 1], strides = [1, 1]} : vector<2x49xf32> to vector<2x1xf32>
    %473 = vector.broadcast %472 : vector<2x1xf32> to vector<2x64xf32>
    %474 = arith.mulf %471, %473 : vector<2x64xf32>
    %475 = arith.addf %470, %474 : vector<2x64xf32>
    %c0_166 = arith.constant 0 : index
    %c43_167 = arith.constant 43 : index
    %476 = vector.load %arg19[%c0_166, %c43_167] : memref<2x256xf32, #tpu.memory_space<vmem>>, vector<2x64xf32>
    %477 = vector.extract_strided_slice %8 {offsets = [0, 38], sizes = [2, 1], strides = [1, 1]} : vector<2x49xf32> to vector<2x1xf32>
    %478 = vector.broadcast %477 : vector<2x1xf32> to vector<2x64xf32>
    %479 = arith.mulf %476, %478 : vector<2x64xf32>
    %480 = arith.addf %475, %479 : vector<2x64xf32>
    %c0_168 = arith.constant 0 : index
    %c51_169 = arith.constant 51 : index
    %481 = vector.load %arg19[%c0_168, %c51_169] : memref<2x256xf32, #tpu.memory_space<vmem>>, vector<2x64xf32>
    %482 = vector.extract_strided_slice %8 {offsets = [0, 45], sizes = [2, 1], strides = [1, 1]} : vector<2x49xf32> to vector<2x1xf32>
    %483 = vector.broadcast %482 : vector<2x1xf32> to vector<2x64xf32>
    %484 = arith.mulf %481, %483 : vector<2x64xf32>
    %485 = arith.addf %480, %484 : vector<2x64xf32>
    %486 = arith.addf %449, %485 : vector<2x64xf32>
    %cst_170 = arith.constant 0.000000e+00 : f32
    %487 = vector.broadcast %cst_170 : f32 to vector<2x64xf32>
    %c0_171 = arith.constant 0 : index
    %c4_172 = arith.constant 4 : index
    %488 = vector.load %arg19[%c0_171, %c4_172] : memref<2x256xf32, #tpu.memory_space<vmem>>, vector<2x64xf32>
    %489 = vector.extract_strided_slice %8 {offsets = [0, 4], sizes = [2, 1], strides = [1, 1]} : vector<2x49xf32> to vector<2x1xf32>
    %490 = vector.broadcast %489 : vector<2x1xf32> to vector<2x64xf32>
    %491 = arith.mulf %488, %490 : vector<2x64xf32>
    %492 = arith.addf %487, %491 : vector<2x64xf32>
    %c0_173 = arith.constant 0 : index
    %c12_174 = arith.constant 12 : index
    %493 = vector.load %arg19[%c0_173, %c12_174] : memref<2x256xf32, #tpu.memory_space<vmem>>, vector<2x64xf32>
    %494 = vector.extract_strided_slice %8 {offsets = [0, 11], sizes = [2, 1], strides = [1, 1]} : vector<2x49xf32> to vector<2x1xf32>
    %495 = vector.broadcast %494 : vector<2x1xf32> to vector<2x64xf32>
    %496 = arith.mulf %493, %495 : vector<2x64xf32>
    %497 = arith.addf %492, %496 : vector<2x64xf32>
    %c0_175 = arith.constant 0 : index
    %c20_176 = arith.constant 20 : index
    %498 = vector.load %arg19[%c0_175, %c20_176] : memref<2x256xf32, #tpu.memory_space<vmem>>, vector<2x64xf32>
    %499 = vector.extract_strided_slice %8 {offsets = [0, 18], sizes = [2, 1], strides = [1, 1]} : vector<2x49xf32> to vector<2x1xf32>
    %500 = vector.broadcast %499 : vector<2x1xf32> to vector<2x64xf32>
    %501 = arith.mulf %498, %500 : vector<2x64xf32>
    %502 = arith.addf %497, %501 : vector<2x64xf32>
    %c0_177 = arith.constant 0 : index
    %c28_178 = arith.constant 28 : index
    %503 = vector.load %arg19[%c0_177, %c28_178] : memref<2x256xf32, #tpu.memory_space<vmem>>, vector<2x64xf32>
    %504 = vector.extract_strided_slice %8 {offsets = [0, 25], sizes = [2, 1], strides = [1, 1]} : vector<2x49xf32> to vector<2x1xf32>
    %505 = vector.broadcast %504 : vector<2x1xf32> to vector<2x64xf32>
    %506 = arith.mulf %503, %505 : vector<2x64xf32>
    %507 = arith.addf %502, %506 : vector<2x64xf32>
    %c0_179 = arith.constant 0 : index
    %c36_180 = arith.constant 36 : index
    %508 = vector.load %arg19[%c0_179, %c36_180] : memref<2x256xf32, #tpu.memory_space<vmem>>, vector<2x64xf32>
    %509 = vector.extract_strided_slice %8 {offsets = [0, 32], sizes = [2, 1], strides = [1, 1]} : vector<2x49xf32> to vector<2x1xf32>
    %510 = vector.broadcast %509 : vector<2x1xf32> to vector<2x64xf32>
    %511 = arith.mulf %508, %510 : vector<2x64xf32>
    %512 = arith.addf %507, %511 : vector<2x64xf32>
    %c0_181 = arith.constant 0 : index
    %c44_182 = arith.constant 44 : index
    %513 = vector.load %arg19[%c0_181, %c44_182] : memref<2x256xf32, #tpu.memory_space<vmem>>, vector<2x64xf32>
    %514 = vector.extract_strided_slice %8 {offsets = [0, 39], sizes = [2, 1], strides = [1, 1]} : vector<2x49xf32> to vector<2x1xf32>
    %515 = vector.broadcast %514 : vector<2x1xf32> to vector<2x64xf32>
    %516 = arith.mulf %513, %515 : vector<2x64xf32>
    %517 = arith.addf %512, %516 : vector<2x64xf32>
    %c0_183 = arith.constant 0 : index
    %c52_184 = arith.constant 52 : index
    %518 = vector.load %arg19[%c0_183, %c52_184] : memref<2x256xf32, #tpu.memory_space<vmem>>, vector<2x64xf32>
    %519 = vector.extract_strided_slice %8 {offsets = [0, 46], sizes = [2, 1], strides = [1, 1]} : vector<2x49xf32> to vector<2x1xf32>
    %520 = vector.broadcast %519 : vector<2x1xf32> to vector<2x64xf32>
    %521 = arith.mulf %518, %520 : vector<2x64xf32>
    %522 = arith.addf %517, %521 : vector<2x64xf32>
    %523 = vector.broadcast %14 : vector<1x64xf32> to vector<2x64xf32>
    %524 = arith.mulf %522, %523 : vector<2x64xf32>
    %525 = arith.addf %486, %524 : vector<2x64xf32>
    %cst_185 = arith.constant 0.000000e+00 : f32
    %526 = vector.broadcast %cst_185 : f32 to vector<2x64xf32>
    %c0_186 = arith.constant 0 : index
    %c5_187 = arith.constant 5 : index
    %527 = vector.load %arg19[%c0_186, %c5_187] : memref<2x256xf32, #tpu.memory_space<vmem>>, vector<2x64xf32>
    %528 = vector.extract_strided_slice %8 {offsets = [0, 5], sizes = [2, 1], strides = [1, 1]} : vector<2x49xf32> to vector<2x1xf32>
    %529 = vector.broadcast %528 : vector<2x1xf32> to vector<2x64xf32>
    %530 = arith.mulf %527, %529 : vector<2x64xf32>
    %531 = arith.addf %526, %530 : vector<2x64xf32>
    %c0_188 = arith.constant 0 : index
    %c13_189 = arith.constant 13 : index
    %532 = vector.load %arg19[%c0_188, %c13_189] : memref<2x256xf32, #tpu.memory_space<vmem>>, vector<2x64xf32>
    %533 = vector.extract_strided_slice %8 {offsets = [0, 12], sizes = [2, 1], strides = [1, 1]} : vector<2x49xf32> to vector<2x1xf32>
    %534 = vector.broadcast %533 : vector<2x1xf32> to vector<2x64xf32>
    %535 = arith.mulf %532, %534 : vector<2x64xf32>
    %536 = arith.addf %531, %535 : vector<2x64xf32>
    %c0_190 = arith.constant 0 : index
    %c21_191 = arith.constant 21 : index
    %537 = vector.load %arg19[%c0_190, %c21_191] : memref<2x256xf32, #tpu.memory_space<vmem>>, vector<2x64xf32>
    %538 = vector.extract_strided_slice %8 {offsets = [0, 19], sizes = [2, 1], strides = [1, 1]} : vector<2x49xf32> to vector<2x1xf32>
    %539 = vector.broadcast %538 : vector<2x1xf32> to vector<2x64xf32>
    %540 = arith.mulf %537, %539 : vector<2x64xf32>
    %541 = arith.addf %536, %540 : vector<2x64xf32>
    %c0_192 = arith.constant 0 : index
    %c29_193 = arith.constant 29 : index
    %542 = vector.load %arg19[%c0_192, %c29_193] : memref<2x256xf32, #tpu.memory_space<vmem>>, vector<2x64xf32>
    %543 = vector.extract_strided_slice %8 {offsets = [0, 26], sizes = [2, 1], strides = [1, 1]} : vector<2x49xf32> to vector<2x1xf32>
    %544 = vector.broadcast %543 : vector<2x1xf32> to vector<2x64xf32>
    %545 = arith.mulf %542, %544 : vector<2x64xf32>
    %546 = arith.addf %541, %545 : vector<2x64xf32>
    %c0_194 = arith.constant 0 : index
    %c37_195 = arith.constant 37 : index
    %547 = vector.load %arg19[%c0_194, %c37_195] : memref<2x256xf32, #tpu.memory_space<vmem>>, vector<2x64xf32>
    %548 = vector.extract_strided_slice %8 {offsets = [0, 33], sizes = [2, 1], strides = [1, 1]} : vector<2x49xf32> to vector<2x1xf32>
    %549 = vector.broadcast %548 : vector<2x1xf32> to vector<2x64xf32>
    %550 = arith.mulf %547, %549 : vector<2x64xf32>
    %551 = arith.addf %546, %550 : vector<2x64xf32>
    %c0_196 = arith.constant 0 : index
    %c45_197 = arith.constant 45 : index
    %552 = vector.load %arg19[%c0_196, %c45_197] : memref<2x256xf32, #tpu.memory_space<vmem>>, vector<2x64xf32>
    %553 = vector.extract_strided_slice %8 {offsets = [0, 40], sizes = [2, 1], strides = [1, 1]} : vector<2x49xf32> to vector<2x1xf32>
    %554 = vector.broadcast %553 : vector<2x1xf32> to vector<2x64xf32>
    %555 = arith.mulf %552, %554 : vector<2x64xf32>
    %556 = arith.addf %551, %555 : vector<2x64xf32>
    %c0_198 = arith.constant 0 : index
    %c53_199 = arith.constant 53 : index
    %557 = vector.load %arg19[%c0_198, %c53_199] : memref<2x256xf32, #tpu.memory_space<vmem>>, vector<2x64xf32>
    %558 = vector.extract_strided_slice %8 {offsets = [0, 47], sizes = [2, 1], strides = [1, 1]} : vector<2x49xf32> to vector<2x1xf32>
    %559 = vector.broadcast %558 : vector<2x1xf32> to vector<2x64xf32>
    %560 = arith.mulf %557, %559 : vector<2x64xf32>
    %561 = arith.addf %556, %560 : vector<2x64xf32>
    %562 = vector.broadcast %15 : vector<1x64xf32> to vector<2x64xf32>
    %563 = arith.mulf %561, %562 : vector<2x64xf32>
    %564 = arith.addf %525, %563 : vector<2x64xf32>
    %cst_200 = arith.constant 0.000000e+00 : f32
    %565 = vector.broadcast %cst_200 : f32 to vector<2x64xf32>
    %c0_201 = arith.constant 0 : index
    %c6_202 = arith.constant 6 : index
    %566 = vector.load %arg19[%c0_201, %c6_202] : memref<2x256xf32, #tpu.memory_space<vmem>>, vector<2x64xf32>
    %567 = vector.extract_strided_slice %8 {offsets = [0, 6], sizes = [2, 1], strides = [1, 1]} : vector<2x49xf32> to vector<2x1xf32>
    %568 = vector.broadcast %567 : vector<2x1xf32> to vector<2x64xf32>
    %569 = arith.mulf %566, %568 : vector<2x64xf32>
    %570 = arith.addf %565, %569 : vector<2x64xf32>
    %c0_203 = arith.constant 0 : index
    %c14_204 = arith.constant 14 : index
    %571 = vector.load %arg19[%c0_203, %c14_204] : memref<2x256xf32, #tpu.memory_space<vmem>>, vector<2x64xf32>
    %572 = vector.extract_strided_slice %8 {offsets = [0, 13], sizes = [2, 1], strides = [1, 1]} : vector<2x49xf32> to vector<2x1xf32>
    %573 = vector.broadcast %572 : vector<2x1xf32> to vector<2x64xf32>
    %574 = arith.mulf %571, %573 : vector<2x64xf32>
    %575 = arith.addf %570, %574 : vector<2x64xf32>
    %c0_205 = arith.constant 0 : index
    %c22_206 = arith.constant 22 : index
    %576 = vector.load %arg19[%c0_205, %c22_206] : memref<2x256xf32, #tpu.memory_space<vmem>>, vector<2x64xf32>
    %577 = vector.extract_strided_slice %8 {offsets = [0, 20], sizes = [2, 1], strides = [1, 1]} : vector<2x49xf32> to vector<2x1xf32>
    %578 = vector.broadcast %577 : vector<2x1xf32> to vector<2x64xf32>
    %579 = arith.mulf %576, %578 : vector<2x64xf32>
    %580 = arith.addf %575, %579 : vector<2x64xf32>
    %c0_207 = arith.constant 0 : index
    %c30_208 = arith.constant 30 : index
    %581 = vector.load %arg19[%c0_207, %c30_208] : memref<2x256xf32, #tpu.memory_space<vmem>>, vector<2x64xf32>
    %582 = vector.extract_strided_slice %8 {offsets = [0, 27], sizes = [2, 1], strides = [1, 1]} : vector<2x49xf32> to vector<2x1xf32>
    %583 = vector.broadcast %582 : vector<2x1xf32> to vector<2x64xf32>
    %584 = arith.mulf %581, %583 : vector<2x64xf32>
    %585 = arith.addf %580, %584 : vector<2x64xf32>
    %c0_209 = arith.constant 0 : index
    %c38_210 = arith.constant 38 : index
    %586 = vector.load %arg19[%c0_209, %c38_210] : memref<2x256xf32, #tpu.memory_space<vmem>>, vector<2x64xf32>
    %587 = vector.extract_strided_slice %8 {offsets = [0, 34], sizes = [2, 1], strides = [1, 1]} : vector<2x49xf32> to vector<2x1xf32>
    %588 = vector.broadcast %587 : vector<2x1xf32> to vector<2x64xf32>
    %589 = arith.mulf %586, %588 : vector<2x64xf32>
    %590 = arith.addf %585, %589 : vector<2x64xf32>
    %c0_211 = arith.constant 0 : index
    %c46_212 = arith.constant 46 : index
    %591 = vector.load %arg19[%c0_211, %c46_212] : memref<2x256xf32, #tpu.memory_space<vmem>>, vector<2x64xf32>
    %592 = vector.extract_strided_slice %8 {offsets = [0, 41], sizes = [2, 1], strides = [1, 1]} : vector<2x49xf32> to vector<2x1xf32>
    %593 = vector.broadcast %592 : vector<2x1xf32> to vector<2x64xf32>
    %594 = arith.mulf %591, %593 : vector<2x64xf32>
    %595 = arith.addf %590, %594 : vector<2x64xf32>
    %c0_213 = arith.constant 0 : index
    %c54_214 = arith.constant 54 : index
    %596 = vector.load %arg19[%c0_213, %c54_214] : memref<2x256xf32, #tpu.memory_space<vmem>>, vector<2x64xf32>
    %597 = vector.extract_strided_slice %8 {offsets = [0, 48], sizes = [2, 1], strides = [1, 1]} : vector<2x49xf32> to vector<2x1xf32>
    %598 = vector.broadcast %597 : vector<2x1xf32> to vector<2x64xf32>
    %599 = arith.mulf %596, %598 : vector<2x64xf32>
    %600 = arith.addf %595, %599 : vector<2x64xf32>
    %601 = vector.broadcast %16 : vector<1x64xf32> to vector<2x64xf32>
    %602 = arith.mulf %600, %601 : vector<2x64xf32>
    %603 = arith.addf %564, %602 : vector<2x64xf32>
    %cst_215 = arith.constant dense<0.000000e+00> : vector<64xf32>
    %604 = vector.multi_reduction <add>, %603, %cst_215 [0] : vector<2x64xf32> to vector<64xf32>
    %605 = vector.shape_cast %604 : vector<64xf32> to vector<1x64xf32>
    %606 = arith.negf %605 : vector<1x64xf32>
    %607 = math.exp %606 : vector<1x64xf32>
    %cst_216 = arith.constant 1.000000e+00 : f32
    %608 = vector.broadcast %cst_216 : f32 to vector<1x64xf32>
    %609 = arith.addf %608, %607 : vector<1x64xf32>
    %610 = arith.divf %608, %609 : vector<1x64xf32>
    %611 = vector.broadcast %610 : vector<1x64xf32> to vector<32x64xf32>
    %612 = arith.mulf %323, %611 : vector<32x64xf32>
    %cst_217 = arith.constant dense<0.000000e+00> : vector<32xf32>
    %613 = vector.multi_reduction <add>, %612, %cst_217 [1] : vector<32x64xf32> to vector<32xf32>
    %614 = vector.shape_cast %613 : vector<32xf32> to vector<32x1xf32>
    %cst_218 = arith.constant 6.400000e+01 : f32
    %615 = vector.broadcast %cst_218 : f32 to vector<32x1xf32>
    %616 = arith.divf %614, %615 : vector<32x1xf32>
    %617 = vector.broadcast %616 : vector<32x1xf32> to vector<32x8xf32>
    %618 = arith.mulf %617, %9 : vector<32x8xf32>
    %cst_219 = arith.constant dense<0.000000e+00> : vector<8xf32>
    %619 = vector.multi_reduction <add>, %618, %cst_219 [0] : vector<32x8xf32> to vector<8xf32>
    %620 = vector.shape_cast %619 : vector<8xf32> to vector<1x8xf32>
    %cst_220 = arith.constant 0.000000e+00 : f32
    %621 = vector.broadcast %cst_220 : f32 to vector<1x8xf32>
    %622 = arith.maximumf %620, %621 : vector<1x8xf32>
    %623 = vector.broadcast %622 : vector<1x8xf32> to vector<32x8xf32>
    %624 = arith.mulf %10, %623 : vector<32x8xf32>
    %cst_221 = arith.constant dense<0.000000e+00> : vector<32xf32>
    %625 = vector.multi_reduction <add>, %624, %cst_221 [1] : vector<32x8xf32> to vector<32xf32>
    %626 = vector.shape_cast %625 : vector<32xf32> to vector<32x1xf32>
    %627 = arith.negf %626 : vector<32x1xf32>
    %628 = math.exp %627 : vector<32x1xf32>
    %cst_222 = arith.constant 1.000000e+00 : f32
    %629 = vector.broadcast %cst_222 : f32 to vector<32x1xf32>
    %630 = arith.addf %629, %628 : vector<32x1xf32>
    %631 = arith.divf %629, %630 : vector<32x1xf32>
    %632 = vector.broadcast %631 : vector<32x1xf32> to vector<32x64xf32>
    %633 = arith.mulf %612, %632 : vector<32x64xf32>
    %c0_223 = arith.constant 0 : index
    %c0_224 = arith.constant 0 : index
    %634 = vector.load %arg20[%c0_223, %c0_224] : memref<32x128xf32, #tpu.memory_space<vmem>>, vector<32x64xf32>
    tpu.vector_store %arg20[%c0_223, %c0_224], %633 {strides = array<i32>} : memref<32x128xf32, #tpu.memory_space<vmem>>, vector<32x64xf32>,
    %c1_225 = arith.constant 1 : index
    %c0_226 = arith.constant 0 : index
    %c0_227 = arith.constant 0 : index
    %635 = vector.load %arg1[%c1_225, %c0_226, %c0_227] : memref<2x32x64xf32, #tpu.memory_space<vmem>>, vector<1x32x64xf32>
    %636 = vector.shape_cast %635 : vector<1x32x64xf32> to vector<32x64xf32>
    %c0_228 = arith.constant 0 : index
    %c155 = arith.constant 155 : index
    %637 = vector.load %arg18[%c0_228, %c155] : memref<32x256xf32, #tpu.memory_space<vmem>>, vector<32x64xf32>
    tpu.vector_store %arg18[%c0_228, %c155], %636 {strides = array<i32>} : memref<32x256xf32, #tpu.memory_space<vmem>>, vector<32x64xf32>,
    %cst_229 = arith.constant 0.000000e+00 : f32
    %638 = vector.broadcast %cst_229 : f32 to vector<32x64xf32>
    %cst_230 = arith.constant 0.000000e+00 : f32
    %639 = vector.broadcast %cst_230 : f32 to vector<32x64xf32>
    %c0_231 = arith.constant 0 : index
    %c128 = arith.constant 128 : index
    %640 = vector.load %arg18[%c0_231, %c128] : memref<32x256xf32, #tpu.memory_space<vmem>>, vector<32x64xf32>
    %641 = vector.extract_strided_slice %4 {offsets = [0, 0], sizes = [32, 1], strides = [1, 1]} : vector<32x49xf32> to vector<32x1xf32>
    %642 = vector.broadcast %641 : vector<32x1xf32> to vector<32x64xf32>
    %643 = arith.mulf %640, %642 : vector<32x64xf32>
    %644 = arith.addf %639, %643 : vector<32x64xf32>
    %c0_232 = arith.constant 0 : index
    %c136 = arith.constant 136 : index
    %645 = vector.load %arg18[%c0_232, %c136] : memref<32x256xf32, #tpu.memory_space<vmem>>, vector<32x64xf32>
    %646 = vector.extract_strided_slice %4 {offsets = [0, 7], sizes = [32, 1], strides = [1, 1]} : vector<32x49xf32> to vector<32x1xf32>
    %647 = vector.broadcast %646 : vector<32x1xf32> to vector<32x64xf32>
    %648 = arith.mulf %645, %647 : vector<32x64xf32>
    %649 = arith.addf %644, %648 : vector<32x64xf32>
    %c0_233 = arith.constant 0 : index
    %c144 = arith.constant 144 : index
    %650 = vector.load %arg18[%c0_233, %c144] : memref<32x256xf32, #tpu.memory_space<vmem>>, vector<32x64xf32>
    %651 = vector.extract_strided_slice %4 {offsets = [0, 14], sizes = [32, 1], strides = [1, 1]} : vector<32x49xf32> to vector<32x1xf32>
    %652 = vector.broadcast %651 : vector<32x1xf32> to vector<32x64xf32>
    %653 = arith.mulf %650, %652 : vector<32x64xf32>
    %654 = arith.addf %649, %653 : vector<32x64xf32>
    %c0_234 = arith.constant 0 : index
    %c152 = arith.constant 152 : index
    %655 = vector.load %arg18[%c0_234, %c152] : memref<32x256xf32, #tpu.memory_space<vmem>>, vector<32x64xf32>
    %656 = vector.extract_strided_slice %4 {offsets = [0, 21], sizes = [32, 1], strides = [1, 1]} : vector<32x49xf32> to vector<32x1xf32>
    %657 = vector.broadcast %656 : vector<32x1xf32> to vector<32x64xf32>
    %658 = arith.mulf %655, %657 : vector<32x64xf32>
    %659 = arith.addf %654, %658 : vector<32x64xf32>
    %c0_235 = arith.constant 0 : index
    %c160 = arith.constant 160 : index
    %660 = vector.load %arg18[%c0_235, %c160] : memref<32x256xf32, #tpu.memory_space<vmem>>, vector<32x64xf32>
    %661 = vector.extract_strided_slice %4 {offsets = [0, 28], sizes = [32, 1], strides = [1, 1]} : vector<32x49xf32> to vector<32x1xf32>
    %662 = vector.broadcast %661 : vector<32x1xf32> to vector<32x64xf32>
    %663 = arith.mulf %660, %662 : vector<32x64xf32>
    %664 = arith.addf %659, %663 : vector<32x64xf32>
    %c0_236 = arith.constant 0 : index
    %c168 = arith.constant 168 : index
    %665 = vector.load %arg18[%c0_236, %c168] : memref<32x256xf32, #tpu.memory_space<vmem>>, vector<32x64xf32>
    %666 = vector.extract_strided_slice %4 {offsets = [0, 35], sizes = [32, 1], strides = [1, 1]} : vector<32x49xf32> to vector<32x1xf32>
    %667 = vector.broadcast %666 : vector<32x1xf32> to vector<32x64xf32>
    %668 = arith.mulf %665, %667 : vector<32x64xf32>
    %669 = arith.addf %664, %668 : vector<32x64xf32>
    %c0_237 = arith.constant 0 : index
    %c176 = arith.constant 176 : index
    %670 = vector.load %arg18[%c0_237, %c176] : memref<32x256xf32, #tpu.memory_space<vmem>>, vector<32x64xf32>
    %671 = vector.extract_strided_slice %4 {offsets = [0, 42], sizes = [32, 1], strides = [1, 1]} : vector<32x49xf32> to vector<32x1xf32>
    %672 = vector.broadcast %671 : vector<32x1xf32> to vector<32x64xf32>
    %673 = arith.mulf %670, %672 : vector<32x64xf32>
    %674 = arith.addf %669, %673 : vector<32x64xf32>
    %675 = vector.broadcast %11 : vector<1x64xf32> to vector<32x64xf32>
    %676 = arith.mulf %674, %675 : vector<32x64xf32>
    %677 = arith.addf %638, %676 : vector<32x64xf32>
    %cst_238 = arith.constant 0.000000e+00 : f32
    %678 = vector.broadcast %cst_238 : f32 to vector<32x64xf32>
    %c0_239 = arith.constant 0 : index
    %c129 = arith.constant 129 : index
    %679 = vector.load %arg18[%c0_239, %c129] : memref<32x256xf32, #tpu.memory_space<vmem>>, vector<32x64xf32>
    %680 = vector.extract_strided_slice %4 {offsets = [0, 1], sizes = [32, 1], strides = [1, 1]} : vector<32x49xf32> to vector<32x1xf32>
    %681 = vector.broadcast %680 : vector<32x1xf32> to vector<32x64xf32>
    %682 = arith.mulf %679, %681 : vector<32x64xf32>
    %683 = arith.addf %678, %682 : vector<32x64xf32>
    %c0_240 = arith.constant 0 : index
    %c137 = arith.constant 137 : index
    %684 = vector.load %arg18[%c0_240, %c137] : memref<32x256xf32, #tpu.memory_space<vmem>>, vector<32x64xf32>
    %685 = vector.extract_strided_slice %4 {offsets = [0, 8], sizes = [32, 1], strides = [1, 1]} : vector<32x49xf32> to vector<32x1xf32>
    %686 = vector.broadcast %685 : vector<32x1xf32> to vector<32x64xf32>
    %687 = arith.mulf %684, %686 : vector<32x64xf32>
    %688 = arith.addf %683, %687 : vector<32x64xf32>
    %c0_241 = arith.constant 0 : index
    %c145 = arith.constant 145 : index
    %689 = vector.load %arg18[%c0_241, %c145] : memref<32x256xf32, #tpu.memory_space<vmem>>, vector<32x64xf32>
    %690 = vector.extract_strided_slice %4 {offsets = [0, 15], sizes = [32, 1], strides = [1, 1]} : vector<32x49xf32> to vector<32x1xf32>
    %691 = vector.broadcast %690 : vector<32x1xf32> to vector<32x64xf32>
    %692 = arith.mulf %689, %691 : vector<32x64xf32>
    %693 = arith.addf %688, %692 : vector<32x64xf32>
    %c0_242 = arith.constant 0 : index
    %c153 = arith.constant 153 : index
    %694 = vector.load %arg18[%c0_242, %c153] : memref<32x256xf32, #tpu.memory_space<vmem>>, vector<32x64xf32>
    %695 = vector.extract_strided_slice %4 {offsets = [0, 22], sizes = [32, 1], strides = [1, 1]} : vector<32x49xf32> to vector<32x1xf32>
    %696 = vector.broadcast %695 : vector<32x1xf32> to vector<32x64xf32>
    %697 = arith.mulf %694, %696 : vector<32x64xf32>
    %698 = arith.addf %693, %697 : vector<32x64xf32>
    %c0_243 = arith.constant 0 : index
    %c161 = arith.constant 161 : index
    %699 = vector.load %arg18[%c0_243, %c161] : memref<32x256xf32, #tpu.memory_space<vmem>>, vector<32x64xf32>
    %700 = vector.extract_strided_slice %4 {offsets = [0, 29], sizes = [32, 1], strides = [1, 1]} : vector<32x49xf32> to vector<32x1xf32>
    %701 = vector.broadcast %700 : vector<32x1xf32> to vector<32x64xf32>
    %702 = arith.mulf %699, %701 : vector<32x64xf32>
    %703 = arith.addf %698, %702 : vector<32x64xf32>
    %c0_244 = arith.constant 0 : index
    %c169 = arith.constant 169 : index
    %704 = vector.load %arg18[%c0_244, %c169] : memref<32x256xf32, #tpu.memory_space<vmem>>, vector<32x64xf32>
    %705 = vector.extract_strided_slice %4 {offsets = [0, 36], sizes = [32, 1], strides = [1, 1]} : vector<32x49xf32> to vector<32x1xf32>
    %706 = vector.broadcast %705 : vector<32x1xf32> to vector<32x64xf32>
    %707 = arith.mulf %704, %706 : vector<32x64xf32>
    %708 = arith.addf %703, %707 : vector<32x64xf32>
    %c0_245 = arith.constant 0 : index
    %c177 = arith.constant 177 : index
    %709 = vector.load %arg18[%c0_245, %c177] : memref<32x256xf32, #tpu.memory_space<vmem>>, vector<32x64xf32>
    %710 = vector.extract_strided_slice %4 {offsets = [0, 43], sizes = [32, 1], strides = [1, 1]} : vector<32x49xf32> to vector<32x1xf32>
    %711 = vector.broadcast %710 : vector<32x1xf32> to vector<32x64xf32>
    %712 = arith.mulf %709, %711 : vector<32x64xf32>
    %713 = arith.addf %708, %712 : vector<32x64xf32>
    %714 = vector.broadcast %12 : vector<1x64xf32> to vector<32x64xf32>
    %715 = arith.mulf %713, %714 : vector<32x64xf32>
    %716 = arith.addf %677, %715 : vector<32x64xf32>
    %cst_246 = arith.constant 0.000000e+00 : f32
    %717 = vector.broadcast %cst_246 : f32 to vector<32x64xf32>
    %c0_247 = arith.constant 0 : index
    %c130 = arith.constant 130 : index
    %718 = vector.load %arg18[%c0_247, %c130] : memref<32x256xf32, #tpu.memory_space<vmem>>, vector<32x64xf32>
    %719 = vector.extract_strided_slice %4 {offsets = [0, 2], sizes = [32, 1], strides = [1, 1]} : vector<32x49xf32> to vector<32x1xf32>
    %720 = vector.broadcast %719 : vector<32x1xf32> to vector<32x64xf32>
    %721 = arith.mulf %718, %720 : vector<32x64xf32>
    %722 = arith.addf %717, %721 : vector<32x64xf32>
    %c0_248 = arith.constant 0 : index
    %c138 = arith.constant 138 : index
    %723 = vector.load %arg18[%c0_248, %c138] : memref<32x256xf32, #tpu.memory_space<vmem>>, vector<32x64xf32>
    %724 = vector.extract_strided_slice %4 {offsets = [0, 9], sizes = [32, 1], strides = [1, 1]} : vector<32x49xf32> to vector<32x1xf32>
    %725 = vector.broadcast %724 : vector<32x1xf32> to vector<32x64xf32>
    %726 = arith.mulf %723, %725 : vector<32x64xf32>
    %727 = arith.addf %722, %726 : vector<32x64xf32>
    %c0_249 = arith.constant 0 : index
    %c146 = arith.constant 146 : index
    %728 = vector.load %arg18[%c0_249, %c146] : memref<32x256xf32, #tpu.memory_space<vmem>>, vector<32x64xf32>
    %729 = vector.extract_strided_slice %4 {offsets = [0, 16], sizes = [32, 1], strides = [1, 1]} : vector<32x49xf32> to vector<32x1xf32>
    %730 = vector.broadcast %729 : vector<32x1xf32> to vector<32x64xf32>
    %731 = arith.mulf %728, %730 : vector<32x64xf32>
    %732 = arith.addf %727, %731 : vector<32x64xf32>
    %c0_250 = arith.constant 0 : index
    %c154 = arith.constant 154 : index
    %733 = vector.load %arg18[%c0_250, %c154] : memref<32x256xf32, #tpu.memory_space<vmem>>, vector<32x64xf32>
    %734 = vector.extract_strided_slice %4 {offsets = [0, 23], sizes = [32, 1], strides = [1, 1]} : vector<32x49xf32> to vector<32x1xf32>
    %735 = vector.broadcast %734 : vector<32x1xf32> to vector<32x64xf32>
    %736 = arith.mulf %733, %735 : vector<32x64xf32>
    %737 = arith.addf %732, %736 : vector<32x64xf32>
    %c0_251 = arith.constant 0 : index
    %c162 = arith.constant 162 : index
    %738 = vector.load %arg18[%c0_251, %c162] : memref<32x256xf32, #tpu.memory_space<vmem>>, vector<32x64xf32>
    %739 = vector.extract_strided_slice %4 {offsets = [0, 30], sizes = [32, 1], strides = [1, 1]} : vector<32x49xf32> to vector<32x1xf32>
    %740 = vector.broadcast %739 : vector<32x1xf32> to vector<32x64xf32>
    %741 = arith.mulf %738, %740 : vector<32x64xf32>
    %742 = arith.addf %737, %741 : vector<32x64xf32>
    %c0_252 = arith.constant 0 : index
    %c170 = arith.constant 170 : index
    %743 = vector.load %arg18[%c0_252, %c170] : memref<32x256xf32, #tpu.memory_space<vmem>>, vector<32x64xf32>
    %744 = vector.extract_strided_slice %4 {offsets = [0, 37], sizes = [32, 1], strides = [1, 1]} : vector<32x49xf32> to vector<32x1xf32>
    %745 = vector.broadcast %744 : vector<32x1xf32> to vector<32x64xf32>
    %746 = arith.mulf %743, %745 : vector<32x64xf32>
    %747 = arith.addf %742, %746 : vector<32x64xf32>
    %c0_253 = arith.constant 0 : index
    %c178 = arith.constant 178 : index
    %748 = vector.load %arg18[%c0_253, %c178] : memref<32x256xf32, #tpu.memory_space<vmem>>, vector<32x64xf32>
    %749 = vector.extract_strided_slice %4 {offsets = [0, 44], sizes = [32, 1], strides = [1, 1]} : vector<32x49xf32> to vector<32x1xf32>
    %750 = vector.broadcast %749 : vector<32x1xf32> to vector<32x64xf32>
    %751 = arith.mulf %748, %750 : vector<32x64xf32>
    %752 = arith.addf %747, %751 : vector<32x64xf32>
    %753 = vector.broadcast %13 : vector<1x64xf32> to vector<32x64xf32>
    %754 = arith.mulf %752, %753 : vector<32x64xf32>
    %755 = arith.addf %716, %754 : vector<32x64xf32>
    %cst_254 = arith.constant 0.000000e+00 : f32
    %756 = vector.broadcast %cst_254 : f32 to vector<32x64xf32>
    %c0_255 = arith.constant 0 : index
    %c131 = arith.constant 131 : index
    %757 = vector.load %arg18[%c0_255, %c131] : memref<32x256xf32, #tpu.memory_space<vmem>>, vector<32x64xf32>
    %758 = vector.extract_strided_slice %4 {offsets = [0, 3], sizes = [32, 1], strides = [1, 1]} : vector<32x49xf32> to vector<32x1xf32>
    %759 = vector.broadcast %758 : vector<32x1xf32> to vector<32x64xf32>
    %760 = arith.mulf %757, %759 : vector<32x64xf32>
    %761 = arith.addf %756, %760 : vector<32x64xf32>
    %c0_256 = arith.constant 0 : index
    %c139 = arith.constant 139 : index
    %762 = vector.load %arg18[%c0_256, %c139] : memref<32x256xf32, #tpu.memory_space<vmem>>, vector<32x64xf32>
    %763 = vector.extract_strided_slice %4 {offsets = [0, 10], sizes = [32, 1], strides = [1, 1]} : vector<32x49xf32> to vector<32x1xf32>
    %764 = vector.broadcast %763 : vector<32x1xf32> to vector<32x64xf32>
    %765 = arith.mulf %762, %764 : vector<32x64xf32>
    %766 = arith.addf %761, %765 : vector<32x64xf32>
    %c0_257 = arith.constant 0 : index
    %c147 = arith.constant 147 : index
    %767 = vector.load %arg18[%c0_257, %c147] : memref<32x256xf32, #tpu.memory_space<vmem>>, vector<32x64xf32>
    %768 = vector.extract_strided_slice %4 {offsets = [0, 17], sizes = [32, 1], strides = [1, 1]} : vector<32x49xf32> to vector<32x1xf32>
    %769 = vector.broadcast %768 : vector<32x1xf32> to vector<32x64xf32>
    %770 = arith.mulf %767, %769 : vector<32x64xf32>
    %771 = arith.addf %766, %770 : vector<32x64xf32>
    %c0_258 = arith.constant 0 : index
    %c155_259 = arith.constant 155 : index
    %772 = vector.load %arg18[%c0_258, %c155_259] : memref<32x256xf32, #tpu.memory_space<vmem>>, vector<32x64xf32>
    %773 = vector.extract_strided_slice %4 {offsets = [0, 24], sizes = [32, 1], strides = [1, 1]} : vector<32x49xf32> to vector<32x1xf32>
    %774 = vector.broadcast %773 : vector<32x1xf32> to vector<32x64xf32>
    %775 = arith.mulf %772, %774 : vector<32x64xf32>
    %776 = arith.addf %771, %775 : vector<32x64xf32>
    %c0_260 = arith.constant 0 : index
    %c163 = arith.constant 163 : index
    %777 = vector.load %arg18[%c0_260, %c163] : memref<32x256xf32, #tpu.memory_space<vmem>>, vector<32x64xf32>
    %778 = vector.extract_strided_slice %4 {offsets = [0, 31], sizes = [32, 1], strides = [1, 1]} : vector<32x49xf32> to vector<32x1xf32>
    %779 = vector.broadcast %778 : vector<32x1xf32> to vector<32x64xf32>
    %780 = arith.mulf %777, %779 : vector<32x64xf32>
    %781 = arith.addf %776, %780 : vector<32x64xf32>
    %c0_261 = arith.constant 0 : index
    %c171 = arith.constant 171 : index
    %782 = vector.load %arg18[%c0_261, %c171] : memref<32x256xf32, #tpu.memory_space<vmem>>, vector<32x64xf32>
    %783 = vector.extract_strided_slice %4 {offsets = [0, 38], sizes = [32, 1], strides = [1, 1]} : vector<32x49xf32> to vector<32x1xf32>
    %784 = vector.broadcast %783 : vector<32x1xf32> to vector<32x64xf32>
    %785 = arith.mulf %782, %784 : vector<32x64xf32>
    %786 = arith.addf %781, %785 : vector<32x64xf32>
    %c0_262 = arith.constant 0 : index
    %c179 = arith.constant 179 : index
    %787 = vector.load %arg18[%c0_262, %c179] : memref<32x256xf32, #tpu.memory_space<vmem>>, vector<32x64xf32>
    %788 = vector.extract_strided_slice %4 {offsets = [0, 45], sizes = [32, 1], strides = [1, 1]} : vector<32x49xf32> to vector<32x1xf32>
    %789 = vector.broadcast %788 : vector<32x1xf32> to vector<32x64xf32>
    %790 = arith.mulf %787, %789 : vector<32x64xf32>
    %791 = arith.addf %786, %790 : vector<32x64xf32>
    %792 = arith.addf %755, %791 : vector<32x64xf32>
    %cst_263 = arith.constant 0.000000e+00 : f32
    %793 = vector.broadcast %cst_263 : f32 to vector<32x64xf32>
    %c0_264 = arith.constant 0 : index
    %c132 = arith.constant 132 : index
    %794 = vector.load %arg18[%c0_264, %c132] : memref<32x256xf32, #tpu.memory_space<vmem>>, vector<32x64xf32>
    %795 = vector.extract_strided_slice %4 {offsets = [0, 4], sizes = [32, 1], strides = [1, 1]} : vector<32x49xf32> to vector<32x1xf32>
    %796 = vector.broadcast %795 : vector<32x1xf32> to vector<32x64xf32>
    %797 = arith.mulf %794, %796 : vector<32x64xf32>
    %798 = arith.addf %793, %797 : vector<32x64xf32>
    %c0_265 = arith.constant 0 : index
    %c140 = arith.constant 140 : index
    %799 = vector.load %arg18[%c0_265, %c140] : memref<32x256xf32, #tpu.memory_space<vmem>>, vector<32x64xf32>
    %800 = vector.extract_strided_slice %4 {offsets = [0, 11], sizes = [32, 1], strides = [1, 1]} : vector<32x49xf32> to vector<32x1xf32>
    %801 = vector.broadcast %800 : vector<32x1xf32> to vector<32x64xf32>
    %802 = arith.mulf %799, %801 : vector<32x64xf32>
    %803 = arith.addf %798, %802 : vector<32x64xf32>
    %c0_266 = arith.constant 0 : index
    %c148 = arith.constant 148 : index
    %804 = vector.load %arg18[%c0_266, %c148] : memref<32x256xf32, #tpu.memory_space<vmem>>, vector<32x64xf32>
    %805 = vector.extract_strided_slice %4 {offsets = [0, 18], sizes = [32, 1], strides = [1, 1]} : vector<32x49xf32> to vector<32x1xf32>
    %806 = vector.broadcast %805 : vector<32x1xf32> to vector<32x64xf32>
    %807 = arith.mulf %804, %806 : vector<32x64xf32>
    %808 = arith.addf %803, %807 : vector<32x64xf32>
    %c0_267 = arith.constant 0 : index
    %c156 = arith.constant 156 : index
    %809 = vector.load %arg18[%c0_267, %c156] : memref<32x256xf32, #tpu.memory_space<vmem>>, vector<32x64xf32>
    %810 = vector.extract_strided_slice %4 {offsets = [0, 25], sizes = [32, 1], strides = [1, 1]} : vector<32x49xf32> to vector<32x1xf32>
    %811 = vector.broadcast %810 : vector<32x1xf32> to vector<32x64xf32>
    %812 = arith.mulf %809, %811 : vector<32x64xf32>
    %813 = arith.addf %808, %812 : vector<32x64xf32>
    %c0_268 = arith.constant 0 : index
    %c164 = arith.constant 164 : index
    %814 = vector.load %arg18[%c0_268, %c164] : memref<32x256xf32, #tpu.memory_space<vmem>>, vector<32x64xf32>
    %815 = vector.extract_strided_slice %4 {offsets = [0, 32], sizes = [32, 1], strides = [1, 1]} : vector<32x49xf32> to vector<32x1xf32>
    %816 = vector.broadcast %815 : vector<32x1xf32> to vector<32x64xf32>
    %817 = arith.mulf %814, %816 : vector<32x64xf32>
    %818 = arith.addf %813, %817 : vector<32x64xf32>
    %c0_269 = arith.constant 0 : index
    %c172 = arith.constant 172 : index
    %819 = vector.load %arg18[%c0_269, %c172] : memref<32x256xf32, #tpu.memory_space<vmem>>, vector<32x64xf32>
    %820 = vector.extract_strided_slice %4 {offsets = [0, 39], sizes = [32, 1], strides = [1, 1]} : vector<32x49xf32> to vector<32x1xf32>
    %821 = vector.broadcast %820 : vector<32x1xf32> to vector<32x64xf32>
    %822 = arith.mulf %819, %821 : vector<32x64xf32>
    %823 = arith.addf %818, %822 : vector<32x64xf32>
    %c0_270 = arith.constant 0 : index
    %c180 = arith.constant 180 : index
    %824 = vector.load %arg18[%c0_270, %c180] : memref<32x256xf32, #tpu.memory_space<vmem>>, vector<32x64xf32>
    %825 = vector.extract_strided_slice %4 {offsets = [0, 46], sizes = [32, 1], strides = [1, 1]} : vector<32x49xf32> to vector<32x1xf32>
    %826 = vector.broadcast %825 : vector<32x1xf32> to vector<32x64xf32>
    %827 = arith.mulf %824, %826 : vector<32x64xf32>
    %828 = arith.addf %823, %827 : vector<32x64xf32>
    %829 = vector.broadcast %14 : vector<1x64xf32> to vector<32x64xf32>
    %830 = arith.mulf %828, %829 : vector<32x64xf32>
    %831 = arith.addf %792, %830 : vector<32x64xf32>
    %cst_271 = arith.constant 0.000000e+00 : f32
    %832 = vector.broadcast %cst_271 : f32 to vector<32x64xf32>
    %c0_272 = arith.constant 0 : index
    %c133 = arith.constant 133 : index
    %833 = vector.load %arg18[%c0_272, %c133] : memref<32x256xf32, #tpu.memory_space<vmem>>, vector<32x64xf32>
    %834 = vector.extract_strided_slice %4 {offsets = [0, 5], sizes = [32, 1], strides = [1, 1]} : vector<32x49xf32> to vector<32x1xf32>
    %835 = vector.broadcast %834 : vector<32x1xf32> to vector<32x64xf32>
    %836 = arith.mulf %833, %835 : vector<32x64xf32>
    %837 = arith.addf %832, %836 : vector<32x64xf32>
    %c0_273 = arith.constant 0 : index
    %c141 = arith.constant 141 : index
    %838 = vector.load %arg18[%c0_273, %c141] : memref<32x256xf32, #tpu.memory_space<vmem>>, vector<32x64xf32>
    %839 = vector.extract_strided_slice %4 {offsets = [0, 12], sizes = [32, 1], strides = [1, 1]} : vector<32x49xf32> to vector<32x1xf32>
    %840 = vector.broadcast %839 : vector<32x1xf32> to vector<32x64xf32>
    %841 = arith.mulf %838, %840 : vector<32x64xf32>
    %842 = arith.addf %837, %841 : vector<32x64xf32>
    %c0_274 = arith.constant 0 : index
    %c149 = arith.constant 149 : index
    %843 = vector.load %arg18[%c0_274, %c149] : memref<32x256xf32, #tpu.memory_space<vmem>>, vector<32x64xf32>
    %844 = vector.extract_strided_slice %4 {offsets = [0, 19], sizes = [32, 1], strides = [1, 1]} : vector<32x49xf32> to vector<32x1xf32>
    %845 = vector.broadcast %844 : vector<32x1xf32> to vector<32x64xf32>
    %846 = arith.mulf %843, %845 : vector<32x64xf32>
    %847 = arith.addf %842, %846 : vector<32x64xf32>
    %c0_275 = arith.constant 0 : index
    %c157 = arith.constant 157 : index
    %848 = vector.load %arg18[%c0_275, %c157] : memref<32x256xf32, #tpu.memory_space<vmem>>, vector<32x64xf32>
    %849 = vector.extract_strided_slice %4 {offsets = [0, 26], sizes = [32, 1], strides = [1, 1]} : vector<32x49xf32> to vector<32x1xf32>
    %850 = vector.broadcast %849 : vector<32x1xf32> to vector<32x64xf32>
    %851 = arith.mulf %848, %850 : vector<32x64xf32>
    %852 = arith.addf %847, %851 : vector<32x64xf32>
    %c0_276 = arith.constant 0 : index
    %c165 = arith.constant 165 : index
    %853 = vector.load %arg18[%c0_276, %c165] : memref<32x256xf32, #tpu.memory_space<vmem>>, vector<32x64xf32>
    %854 = vector.extract_strided_slice %4 {offsets = [0, 33], sizes = [32, 1], strides = [1, 1]} : vector<32x49xf32> to vector<32x1xf32>
    %855 = vector.broadcast %854 : vector<32x1xf32> to vector<32x64xf32>
    %856 = arith.mulf %853, %855 : vector<32x64xf32>
    %857 = arith.addf %852, %856 : vector<32x64xf32>
    %c0_277 = arith.constant 0 : index
    %c173 = arith.constant 173 : index
    %858 = vector.load %arg18[%c0_277, %c173] : memref<32x256xf32, #tpu.memory_space<vmem>>, vector<32x64xf32>
    %859 = vector.extract_strided_slice %4 {offsets = [0, 40], sizes = [32, 1], strides = [1, 1]} : vector<32x49xf32> to vector<32x1xf32>
    %860 = vector.broadcast %859 : vector<32x1xf32> to vector<32x64xf32>
    %861 = arith.mulf %858, %860 : vector<32x64xf32>
    %862 = arith.addf %857, %861 : vector<32x64xf32>
    %c0_278 = arith.constant 0 : index
    %c181 = arith.constant 181 : index
    %863 = vector.load %arg18[%c0_278, %c181] : memref<32x256xf32, #tpu.memory_space<vmem>>, vector<32x64xf32>
    %864 = vector.extract_strided_slice %4 {offsets = [0, 47], sizes = [32, 1], strides = [1, 1]} : vector<32x49xf32> to vector<32x1xf32>
    %865 = vector.broadcast %864 : vector<32x1xf32> to vector<32x64xf32>
    %866 = arith.mulf %863, %865 : vector<32x64xf32>
    %867 = arith.addf %862, %866 : vector<32x64xf32>
    %868 = vector.broadcast %15 : vector<1x64xf32> to vector<32x64xf32>
    %869 = arith.mulf %867, %868 : vector<32x64xf32>
    %870 = arith.addf %831, %869 : vector<32x64xf32>
    %cst_279 = arith.constant 0.000000e+00 : f32
    %871 = vector.broadcast %cst_279 : f32 to vector<32x64xf32>
    %c0_280 = arith.constant 0 : index
    %c134 = arith.constant 134 : index
    %872 = vector.load %arg18[%c0_280, %c134] : memref<32x256xf32, #tpu.memory_space<vmem>>, vector<32x64xf32>
    %873 = vector.extract_strided_slice %4 {offsets = [0, 6], sizes = [32, 1], strides = [1, 1]} : vector<32x49xf32> to vector<32x1xf32>
    %874 = vector.broadcast %873 : vector<32x1xf32> to vector<32x64xf32>
    %875 = arith.mulf %872, %874 : vector<32x64xf32>
    %876 = arith.addf %871, %875 : vector<32x64xf32>
    %c0_281 = arith.constant 0 : index
    %c142 = arith.constant 142 : index
    %877 = vector.load %arg18[%c0_281, %c142] : memref<32x256xf32, #tpu.memory_space<vmem>>, vector<32x64xf32>
    %878 = vector.extract_strided_slice %4 {offsets = [0, 13], sizes = [32, 1], strides = [1, 1]} : vector<32x49xf32> to vector<32x1xf32>
    %879 = vector.broadcast %878 : vector<32x1xf32> to vector<32x64xf32>
    %880 = arith.mulf %877, %879 : vector<32x64xf32>
    %881 = arith.addf %876, %880 : vector<32x64xf32>
    %c0_282 = arith.constant 0 : index
    %c150 = arith.constant 150 : index
    %882 = vector.load %arg18[%c0_282, %c150] : memref<32x256xf32, #tpu.memory_space<vmem>>, vector<32x64xf32>
    %883 = vector.extract_strided_slice %4 {offsets = [0, 20], sizes = [32, 1], strides = [1, 1]} : vector<32x49xf32> to vector<32x1xf32>
    %884 = vector.broadcast %883 : vector<32x1xf32> to vector<32x64xf32>
    %885 = arith.mulf %882, %884 : vector<32x64xf32>
    %886 = arith.addf %881, %885 : vector<32x64xf32>
    %c0_283 = arith.constant 0 : index
    %c158 = arith.constant 158 : index
    %887 = vector.load %arg18[%c0_283, %c158] : memref<32x256xf32, #tpu.memory_space<vmem>>, vector<32x64xf32>
    %888 = vector.extract_strided_slice %4 {offsets = [0, 27], sizes = [32, 1], strides = [1, 1]} : vector<32x49xf32> to vector<32x1xf32>
    %889 = vector.broadcast %888 : vector<32x1xf32> to vector<32x64xf32>
    %890 = arith.mulf %887, %889 : vector<32x64xf32>
    %891 = arith.addf %886, %890 : vector<32x64xf32>
    %c0_284 = arith.constant 0 : index
    %c166 = arith.constant 166 : index
    %892 = vector.load %arg18[%c0_284, %c166] : memref<32x256xf32, #tpu.memory_space<vmem>>, vector<32x64xf32>
    %893 = vector.extract_strided_slice %4 {offsets = [0, 34], sizes = [32, 1], strides = [1, 1]} : vector<32x49xf32> to vector<32x1xf32>
    %894 = vector.broadcast %893 : vector<32x1xf32> to vector<32x64xf32>
    %895 = arith.mulf %892, %894 : vector<32x64xf32>
    %896 = arith.addf %891, %895 : vector<32x64xf32>
    %c0_285 = arith.constant 0 : index
    %c174 = arith.constant 174 : index
    %897 = vector.load %arg18[%c0_285, %c174] : memref<32x256xf32, #tpu.memory_space<vmem>>, vector<32x64xf32>
    %898 = vector.extract_strided_slice %4 {offsets = [0, 41], sizes = [32, 1], strides = [1, 1]} : vector<32x49xf32> to vector<32x1xf32>
    %899 = vector.broadcast %898 : vector<32x1xf32> to vector<32x64xf32>
    %900 = arith.mulf %897, %899 : vector<32x64xf32>
    %901 = arith.addf %896, %900 : vector<32x64xf32>
    %c0_286 = arith.constant 0 : index
    %c182 = arith.constant 182 : index
    %902 = vector.load %arg18[%c0_286, %c182] : memref<32x256xf32, #tpu.memory_space<vmem>>, vector<32x64xf32>
    %903 = vector.extract_strided_slice %4 {offsets = [0, 48], sizes = [32, 1], strides = [1, 1]} : vector<32x49xf32> to vector<32x1xf32>
    %904 = vector.broadcast %903 : vector<32x1xf32> to vector<32x64xf32>
    %905 = arith.mulf %902, %904 : vector<32x64xf32>
    %906 = arith.addf %901, %905 : vector<32x64xf32>
    %907 = vector.broadcast %16 : vector<1x64xf32> to vector<32x64xf32>
    %908 = arith.mulf %906, %907 : vector<32x64xf32>
    %909 = arith.addf %870, %908 : vector<32x64xf32>
    %910 = vector.broadcast %5 : vector<32x1xf32> to vector<32x64xf32>
    %911 = arith.addf %909, %910 : vector<32x64xf32>
    %cst_287 = arith.constant dense<0.000000e+00> : vector<32xf32>
    %912 = vector.multi_reduction <add>, %911, %cst_287 [1] : vector<32x64xf32> to vector<32xf32>
    %913 = vector.shape_cast %912 : vector<32xf32> to vector<32x1xf32>
    %cst_288 = arith.constant 6.400000e+01 : f32
    %914 = vector.broadcast %cst_288 : f32 to vector<32x1xf32>
    %915 = arith.divf %913, %914 : vector<32x1xf32>
    %cst_289 = arith.constant dense<0xFF800000> : vector<32xf32>
    %916 = vector.multi_reduction <maximumf>, %911, %cst_289 [1] : vector<32x64xf32> to vector<32xf32>
    %917 = vector.shape_cast %916 : vector<32xf32> to vector<32x1xf32>
    %918 = vector.broadcast %915 : vector<32x1xf32> to vector<32x2xf32>
    %919 = arith.mulf %918, %6 : vector<32x2xf32>
    %cst_290 = arith.constant dense<0.000000e+00> : vector<2xf32>
    %920 = vector.multi_reduction <add>, %919, %cst_290 [0] : vector<32x2xf32> to vector<2xf32>
    %921 = vector.shape_cast %920 : vector<2xf32> to vector<1x2xf32>
    %cst_291 = arith.constant 0.000000e+00 : f32
    %922 = vector.broadcast %cst_291 : f32 to vector<1x2xf32>
    %923 = arith.maximumf %921, %922 : vector<1x2xf32>
    %924 = vector.broadcast %917 : vector<32x1xf32> to vector<32x2xf32>
    %925 = arith.mulf %924, %6 : vector<32x2xf32>
    %cst_292 = arith.constant dense<0.000000e+00> : vector<2xf32>
    %926 = vector.multi_reduction <add>, %925, %cst_292 [0] : vector<32x2xf32> to vector<2xf32>
    %927 = vector.shape_cast %926 : vector<2xf32> to vector<1x2xf32>
    %cst_293 = arith.constant 0.000000e+00 : f32
    %928 = vector.broadcast %cst_293 : f32 to vector<1x2xf32>
    %929 = arith.maximumf %927, %928 : vector<1x2xf32>
    %930 = arith.addf %923, %929 : vector<1x2xf32>
    %931 = vector.broadcast %930 : vector<1x2xf32> to vector<32x2xf32>
    %932 = arith.mulf %7, %931 : vector<32x2xf32>
    %cst_294 = arith.constant dense<0.000000e+00> : vector<32xf32>
    %933 = vector.multi_reduction <add>, %932, %cst_294 [1] : vector<32x2xf32> to vector<32xf32>
    %934 = vector.shape_cast %933 : vector<32xf32> to vector<32x1xf32>
    %935 = arith.negf %934 : vector<32x1xf32>
    %936 = math.exp %935 : vector<32x1xf32>
    %cst_295 = arith.constant 1.000000e+00 : f32
    %937 = vector.broadcast %cst_295 : f32 to vector<32x1xf32>
    %938 = arith.addf %937, %936 : vector<32x1xf32>
    %939 = arith.divf %937, %938 : vector<32x1xf32>
    %940 = vector.broadcast %939 : vector<32x1xf32> to vector<32x64xf32>
    %941 = arith.mulf %911, %940 : vector<32x64xf32>
    %cst_296 = arith.constant dense<0.000000e+00> : vector<64xf32>
    %942 = vector.multi_reduction <add>, %941, %cst_296 [0] : vector<32x64xf32> to vector<64xf32>
    %943 = vector.shape_cast %942 : vector<64xf32> to vector<1x64xf32>
    %cst_297 = arith.constant 3.200000e+01 : f32
    %944 = vector.broadcast %cst_297 : f32 to vector<1x64xf32>
    %945 = arith.divf %943, %944 : vector<1x64xf32>
    %c0_298 = arith.constant 0 : index
    %c155_299 = arith.constant 155 : index
    %946 = vector.load %arg19[%c0_298, %c155_299] : memref<2x256xf32, #tpu.memory_space<vmem>>, vector<1x64xf32>
    tpu.vector_store %arg19[%c0_298, %c155_299], %945 {strides = array<i32>} : memref<2x256xf32, #tpu.memory_space<vmem>>, vector<1x64xf32>,
    %cst_300 = arith.constant dense<0xFF800000> : vector<64xf32>
    %947 = vector.multi_reduction <maximumf>, %941, %cst_300 [0] : vector<32x64xf32> to vector<64xf32>
    %948 = vector.shape_cast %947 : vector<64xf32> to vector<1x64xf32>
    %c1_301 = arith.constant 1 : index
    %c155_302 = arith.constant 155 : index
    %949 = vector.load %arg19[%c1_301, %c155_302] : memref<2x256xf32, #tpu.memory_space<vmem>>, vector<1x64xf32>
    tpu.vector_store %arg19[%c1_301, %c155_302], %948 {strides = array<i32>} : memref<2x256xf32, #tpu.memory_space<vmem>>, vector<1x64xf32>,
    %cst_303 = arith.constant 0.000000e+00 : f32
    %950 = vector.broadcast %cst_303 : f32 to vector<2x64xf32>
    %cst_304 = arith.constant 0.000000e+00 : f32
    %951 = vector.broadcast %cst_304 : f32 to vector<2x64xf32>
    %c0_305 = arith.constant 0 : index
    %c128_306 = arith.constant 128 : index
    %952 = vector.load %arg19[%c0_305, %c128_306] : memref<2x256xf32, #tpu.memory_space<vmem>>, vector<2x64xf32>
    %953 = vector.extract_strided_slice %8 {offsets = [0, 0], sizes = [2, 1], strides = [1, 1]} : vector<2x49xf32> to vector<2x1xf32>
    %954 = vector.broadcast %953 : vector<2x1xf32> to vector<2x64xf32>
    %955 = arith.mulf %952, %954 : vector<2x64xf32>
    %956 = arith.addf %951, %955 : vector<2x64xf32>
    %c0_307 = arith.constant 0 : index
    %c136_308 = arith.constant 136 : index
    %957 = vector.load %arg19[%c0_307, %c136_308] : memref<2x256xf32, #tpu.memory_space<vmem>>, vector<2x64xf32>
    %958 = vector.extract_strided_slice %8 {offsets = [0, 7], sizes = [2, 1], strides = [1, 1]} : vector<2x49xf32> to vector<2x1xf32>
    %959 = vector.broadcast %958 : vector<2x1xf32> to vector<2x64xf32>
    %960 = arith.mulf %957, %959 : vector<2x64xf32>
    %961 = arith.addf %956, %960 : vector<2x64xf32>
    %c0_309 = arith.constant 0 : index
    %c144_310 = arith.constant 144 : index
    %962 = vector.load %arg19[%c0_309, %c144_310] : memref<2x256xf32, #tpu.memory_space<vmem>>, vector<2x64xf32>
    %963 = vector.extract_strided_slice %8 {offsets = [0, 14], sizes = [2, 1], strides = [1, 1]} : vector<2x49xf32> to vector<2x1xf32>
    %964 = vector.broadcast %963 : vector<2x1xf32> to vector<2x64xf32>
    %965 = arith.mulf %962, %964 : vector<2x64xf32>
    %966 = arith.addf %961, %965 : vector<2x64xf32>
    %c0_311 = arith.constant 0 : index
    %c152_312 = arith.constant 152 : index
    %967 = vector.load %arg19[%c0_311, %c152_312] : memref<2x256xf32, #tpu.memory_space<vmem>>, vector<2x64xf32>
    %968 = vector.extract_strided_slice %8 {offsets = [0, 21], sizes = [2, 1], strides = [1, 1]} : vector<2x49xf32> to vector<2x1xf32>
    %969 = vector.broadcast %968 : vector<2x1xf32> to vector<2x64xf32>
    %970 = arith.mulf %967, %969 : vector<2x64xf32>
    %971 = arith.addf %966, %970 : vector<2x64xf32>
    %c0_313 = arith.constant 0 : index
    %c160_314 = arith.constant 160 : index
    %972 = vector.load %arg19[%c0_313, %c160_314] : memref<2x256xf32, #tpu.memory_space<vmem>>, vector<2x64xf32>
    %973 = vector.extract_strided_slice %8 {offsets = [0, 28], sizes = [2, 1], strides = [1, 1]} : vector<2x49xf32> to vector<2x1xf32>
    %974 = vector.broadcast %973 : vector<2x1xf32> to vector<2x64xf32>
    %975 = arith.mulf %972, %974 : vector<2x64xf32>
    %976 = arith.addf %971, %975 : vector<2x64xf32>
    %c0_315 = arith.constant 0 : index
    %c168_316 = arith.constant 168 : index
    %977 = vector.load %arg19[%c0_315, %c168_316] : memref<2x256xf32, #tpu.memory_space<vmem>>, vector<2x64xf32>
    %978 = vector.extract_strided_slice %8 {offsets = [0, 35], sizes = [2, 1], strides = [1, 1]} : vector<2x49xf32> to vector<2x1xf32>
    %979 = vector.broadcast %978 : vector<2x1xf32> to vector<2x64xf32>
    %980 = arith.mulf %977, %979 : vector<2x64xf32>
    %981 = arith.addf %976, %980 : vector<2x64xf32>
    %c0_317 = arith.constant 0 : index
    %c176_318 = arith.constant 176 : index
    %982 = vector.load %arg19[%c0_317, %c176_318] : memref<2x256xf32, #tpu.memory_space<vmem>>, vector<2x64xf32>
    %983 = vector.extract_strided_slice %8 {offsets = [0, 42], sizes = [2, 1], strides = [1, 1]} : vector<2x49xf32> to vector<2x1xf32>
    %984 = vector.broadcast %983 : vector<2x1xf32> to vector<2x64xf32>
    %985 = arith.mulf %982, %984 : vector<2x64xf32>
    %986 = arith.addf %981, %985 : vector<2x64xf32>
    %987 = vector.broadcast %11 : vector<1x64xf32> to vector<2x64xf32>
    %988 = arith.mulf %986, %987 : vector<2x64xf32>
    %989 = arith.addf %950, %988 : vector<2x64xf32>
    %cst_319 = arith.constant 0.000000e+00 : f32
    %990 = vector.broadcast %cst_319 : f32 to vector<2x64xf32>
    %c0_320 = arith.constant 0 : index
    %c129_321 = arith.constant 129 : index
    %991 = vector.load %arg19[%c0_320, %c129_321] : memref<2x256xf32, #tpu.memory_space<vmem>>, vector<2x64xf32>
    %992 = vector.extract_strided_slice %8 {offsets = [0, 1], sizes = [2, 1], strides = [1, 1]} : vector<2x49xf32> to vector<2x1xf32>
    %993 = vector.broadcast %992 : vector<2x1xf32> to vector<2x64xf32>
    %994 = arith.mulf %991, %993 : vector<2x64xf32>
    %995 = arith.addf %990, %994 : vector<2x64xf32>
    %c0_322 = arith.constant 0 : index
    %c137_323 = arith.constant 137 : index
    %996 = vector.load %arg19[%c0_322, %c137_323] : memref<2x256xf32, #tpu.memory_space<vmem>>, vector<2x64xf32>
    %997 = vector.extract_strided_slice %8 {offsets = [0, 8], sizes = [2, 1], strides = [1, 1]} : vector<2x49xf32> to vector<2x1xf32>
    %998 = vector.broadcast %997 : vector<2x1xf32> to vector<2x64xf32>
    %999 = arith.mulf %996, %998 : vector<2x64xf32>
    %1000 = arith.addf %995, %999 : vector<2x64xf32>
    %c0_324 = arith.constant 0 : index
    %c145_325 = arith.constant 145 : index
    %1001 = vector.load %arg19[%c0_324, %c145_325] : memref<2x256xf32, #tpu.memory_space<vmem>>, vector<2x64xf32>
    %1002 = vector.extract_strided_slice %8 {offsets = [0, 15], sizes = [2, 1], strides = [1, 1]} : vector<2x49xf32> to vector<2x1xf32>
    %1003 = vector.broadcast %1002 : vector<2x1xf32> to vector<2x64xf32>
    %1004 = arith.mulf %1001, %1003 : vector<2x64xf32>
    %1005 = arith.addf %1000, %1004 : vector<2x64xf32>
    %c0_326 = arith.constant 0 : index
    %c153_327 = arith.constant 153 : index
    %1006 = vector.load %arg19[%c0_326, %c153_327] : memref<2x256xf32, #tpu.memory_space<vmem>>, vector<2x64xf32>
    %1007 = vector.extract_strided_slice %8 {offsets = [0, 22], sizes = [2, 1], strides = [1, 1]} : vector<2x49xf32> to vector<2x1xf32>
    %1008 = vector.broadcast %1007 : vector<2x1xf32> to vector<2x64xf32>
    %1009 = arith.mulf %1006, %1008 : vector<2x64xf32>
    %1010 = arith.addf %1005, %1009 : vector<2x64xf32>
    %c0_328 = arith.constant 0 : index
    %c161_329 = arith.constant 161 : index
    %1011 = vector.load %arg19[%c0_328, %c161_329] : memref<2x256xf32, #tpu.memory_space<vmem>>, vector<2x64xf32>
    %1012 = vector.extract_strided_slice %8 {offsets = [0, 29], sizes = [2, 1], strides = [1, 1]} : vector<2x49xf32> to vector<2x1xf32>
    %1013 = vector.broadcast %1012 : vector<2x1xf32> to vector<2x64xf32>
    %1014 = arith.mulf %1011, %1013 : vector<2x64xf32>
    %1015 = arith.addf %1010, %1014 : vector<2x64xf32>
    %c0_330 = arith.constant 0 : index
    %c169_331 = arith.constant 169 : index
    %1016 = vector.load %arg19[%c0_330, %c169_331] : memref<2x256xf32, #tpu.memory_space<vmem>>, vector<2x64xf32>
    %1017 = vector.extract_strided_slice %8 {offsets = [0, 36], sizes = [2, 1], strides = [1, 1]} : vector<2x49xf32> to vector<2x1xf32>
    %1018 = vector.broadcast %1017 : vector<2x1xf32> to vector<2x64xf32>
    %1019 = arith.mulf %1016, %1018 : vector<2x64xf32>
    %1020 = arith.addf %1015, %1019 : vector<2x64xf32>
    %c0_332 = arith.constant 0 : index
    %c177_333 = arith.constant 177 : index
    %1021 = vector.load %arg19[%c0_332, %c177_333] : memref<2x256xf32, #tpu.memory_space<vmem>>, vector<2x64xf32>
    %1022 = vector.extract_strided_slice %8 {offsets = [0, 43], sizes = [2, 1], strides = [1, 1]} : vector<2x49xf32> to vector<2x1xf32>
    %1023 = vector.broadcast %1022 : vector<2x1xf32> to vector<2x64xf32>
    %1024 = arith.mulf %1021, %1023 : vector<2x64xf32>
    %1025 = arith.addf %1020, %1024 : vector<2x64xf32>
    %1026 = vector.broadcast %12 : vector<1x64xf32> to vector<2x64xf32>
    %1027 = arith.mulf %1025, %1026 : vector<2x64xf32>
    %1028 = arith.addf %989, %1027 : vector<2x64xf32>
    %cst_334 = arith.constant 0.000000e+00 : f32
    %1029 = vector.broadcast %cst_334 : f32 to vector<2x64xf32>
    %c0_335 = arith.constant 0 : index
    %c130_336 = arith.constant 130 : index
    %1030 = vector.load %arg19[%c0_335, %c130_336] : memref<2x256xf32, #tpu.memory_space<vmem>>, vector<2x64xf32>
    %1031 = vector.extract_strided_slice %8 {offsets = [0, 2], sizes = [2, 1], strides = [1, 1]} : vector<2x49xf32> to vector<2x1xf32>
    %1032 = vector.broadcast %1031 : vector<2x1xf32> to vector<2x64xf32>
    %1033 = arith.mulf %1030, %1032 : vector<2x64xf32>
    %1034 = arith.addf %1029, %1033 : vector<2x64xf32>
    %c0_337 = arith.constant 0 : index
    %c138_338 = arith.constant 138 : index
    %1035 = vector.load %arg19[%c0_337, %c138_338] : memref<2x256xf32, #tpu.memory_space<vmem>>, vector<2x64xf32>
    %1036 = vector.extract_strided_slice %8 {offsets = [0, 9], sizes = [2, 1], strides = [1, 1]} : vector<2x49xf32> to vector<2x1xf32>
    %1037 = vector.broadcast %1036 : vector<2x1xf32> to vector<2x64xf32>
    %1038 = arith.mulf %1035, %1037 : vector<2x64xf32>
    %1039 = arith.addf %1034, %1038 : vector<2x64xf32>
    %c0_339 = arith.constant 0 : index
    %c146_340 = arith.constant 146 : index
    %1040 = vector.load %arg19[%c0_339, %c146_340] : memref<2x256xf32, #tpu.memory_space<vmem>>, vector<2x64xf32>
    %1041 = vector.extract_strided_slice %8 {offsets = [0, 16], sizes = [2, 1], strides = [1, 1]} : vector<2x49xf32> to vector<2x1xf32>
    %1042 = vector.broadcast %1041 : vector<2x1xf32> to vector<2x64xf32>
    %1043 = arith.mulf %1040, %1042 : vector<2x64xf32>
    %1044 = arith.addf %1039, %1043 : vector<2x64xf32>
    %c0_341 = arith.constant 0 : index
    %c154_342 = arith.constant 154 : index
    %1045 = vector.load %arg19[%c0_341, %c154_342] : memref<2x256xf32, #tpu.memory_space<vmem>>, vector<2x64xf32>
    %1046 = vector.extract_strided_slice %8 {offsets = [0, 23], sizes = [2, 1], strides = [1, 1]} : vector<2x49xf32> to vector<2x1xf32>
    %1047 = vector.broadcast %1046 : vector<2x1xf32> to vector<2x64xf32>
    %1048 = arith.mulf %1045, %1047 : vector<2x64xf32>
    %1049 = arith.addf %1044, %1048 : vector<2x64xf32>
    %c0_343 = arith.constant 0 : index
    %c162_344 = arith.constant 162 : index
    %1050 = vector.load %arg19[%c0_343, %c162_344] : memref<2x256xf32, #tpu.memory_space<vmem>>, vector<2x64xf32>
    %1051 = vector.extract_strided_slice %8 {offsets = [0, 30], sizes = [2, 1], strides = [1, 1]} : vector<2x49xf32> to vector<2x1xf32>
    %1052 = vector.broadcast %1051 : vector<2x1xf32> to vector<2x64xf32>
    %1053 = arith.mulf %1050, %1052 : vector<2x64xf32>
    %1054 = arith.addf %1049, %1053 : vector<2x64xf32>
    %c0_345 = arith.constant 0 : index
    %c170_346 = arith.constant 170 : index
    %1055 = vector.load %arg19[%c0_345, %c170_346] : memref<2x256xf32, #tpu.memory_space<vmem>>, vector<2x64xf32>
    %1056 = vector.extract_strided_slice %8 {offsets = [0, 37], sizes = [2, 1], strides = [1, 1]} : vector<2x49xf32> to vector<2x1xf32>
    %1057 = vector.broadcast %1056 : vector<2x1xf32> to vector<2x64xf32>
    %1058 = arith.mulf %1055, %1057 : vector<2x64xf32>
    %1059 = arith.addf %1054, %1058 : vector<2x64xf32>
    %c0_347 = arith.constant 0 : index
    %c178_348 = arith.constant 178 : index
    %1060 = vector.load %arg19[%c0_347, %c178_348] : memref<2x256xf32, #tpu.memory_space<vmem>>, vector<2x64xf32>
    %1061 = vector.extract_strided_slice %8 {offsets = [0, 44], sizes = [2, 1], strides = [1, 1]} : vector<2x49xf32> to vector<2x1xf32>
    %1062 = vector.broadcast %1061 : vector<2x1xf32> to vector<2x64xf32>
    %1063 = arith.mulf %1060, %1062 : vector<2x64xf32>
    %1064 = arith.addf %1059, %1063 : vector<2x64xf32>
    %1065 = vector.broadcast %13 : vector<1x64xf32> to vector<2x64xf32>
    %1066 = arith.mulf %1064, %1065 : vector<2x64xf32>
    %1067 = arith.addf %1028, %1066 : vector<2x64xf32>
    %cst_349 = arith.constant 0.000000e+00 : f32
    %1068 = vector.broadcast %cst_349 : f32 to vector<2x64xf32>
    %c0_350 = arith.constant 0 : index
    %c131_351 = arith.constant 131 : index
    %1069 = vector.load %arg19[%c0_350, %c131_351] : memref<2x256xf32, #tpu.memory_space<vmem>>, vector<2x64xf32>
    %1070 = vector.extract_strided_slice %8 {offsets = [0, 3], sizes = [2, 1], strides = [1, 1]} : vector<2x49xf32> to vector<2x1xf32>
    %1071 = vector.broadcast %1070 : vector<2x1xf32> to vector<2x64xf32>
    %1072 = arith.mulf %1069, %1071 : vector<2x64xf32>
    %1073 = arith.addf %1068, %1072 : vector<2x64xf32>
    %c0_352 = arith.constant 0 : index
    %c139_353 = arith.constant 139 : index
    %1074 = vector.load %arg19[%c0_352, %c139_353] : memref<2x256xf32, #tpu.memory_space<vmem>>, vector<2x64xf32>
    %1075 = vector.extract_strided_slice %8 {offsets = [0, 10], sizes = [2, 1], strides = [1, 1]} : vector<2x49xf32> to vector<2x1xf32>
    %1076 = vector.broadcast %1075 : vector<2x1xf32> to vector<2x64xf32>
    %1077 = arith.mulf %1074, %1076 : vector<2x64xf32>
    %1078 = arith.addf %1073, %1077 : vector<2x64xf32>
    %c0_354 = arith.constant 0 : index
    %c147_355 = arith.constant 147 : index
    %1079 = vector.load %arg19[%c0_354, %c147_355] : memref<2x256xf32, #tpu.memory_space<vmem>>, vector<2x64xf32>
    %1080 = vector.extract_strided_slice %8 {offsets = [0, 17], sizes = [2, 1], strides = [1, 1]} : vector<2x49xf32> to vector<2x1xf32>
    %1081 = vector.broadcast %1080 : vector<2x1xf32> to vector<2x64xf32>
    %1082 = arith.mulf %1079, %1081 : vector<2x64xf32>
    %1083 = arith.addf %1078, %1082 : vector<2x64xf32>
    %c0_356 = arith.constant 0 : index
    %c155_357 = arith.constant 155 : index
    %1084 = vector.load %arg19[%c0_356, %c155_357] : memref<2x256xf32, #tpu.memory_space<vmem>>, vector<2x64xf32>
    %1085 = vector.extract_strided_slice %8 {offsets = [0, 24], sizes = [2, 1], strides = [1, 1]} : vector<2x49xf32> to vector<2x1xf32>
    %1086 = vector.broadcast %1085 : vector<2x1xf32> to vector<2x64xf32>
    %1087 = arith.mulf %1084, %1086 : vector<2x64xf32>
    %1088 = arith.addf %1083, %1087 : vector<2x64xf32>
    %c0_358 = arith.constant 0 : index
    %c163_359 = arith.constant 163 : index
    %1089 = vector.load %arg19[%c0_358, %c163_359] : memref<2x256xf32, #tpu.memory_space<vmem>>, vector<2x64xf32>
    %1090 = vector.extract_strided_slice %8 {offsets = [0, 31], sizes = [2, 1], strides = [1, 1]} : vector<2x49xf32> to vector<2x1xf32>
    %1091 = vector.broadcast %1090 : vector<2x1xf32> to vector<2x64xf32>
    %1092 = arith.mulf %1089, %1091 : vector<2x64xf32>
    %1093 = arith.addf %1088, %1092 : vector<2x64xf32>
    %c0_360 = arith.constant 0 : index
    %c171_361 = arith.constant 171 : index
    %1094 = vector.load %arg19[%c0_360, %c171_361] : memref<2x256xf32, #tpu.memory_space<vmem>>, vector<2x64xf32>
    %1095 = vector.extract_strided_slice %8 {offsets = [0, 38], sizes = [2, 1], strides = [1, 1]} : vector<2x49xf32> to vector<2x1xf32>
    %1096 = vector.broadcast %1095 : vector<2x1xf32> to vector<2x64xf32>
    %1097 = arith.mulf %1094, %1096 : vector<2x64xf32>
    %1098 = arith.addf %1093, %1097 : vector<2x64xf32>
    %c0_362 = arith.constant 0 : index
    %c179_363 = arith.constant 179 : index
    %1099 = vector.load %arg19[%c0_362, %c179_363] : memref<2x256xf32, #tpu.memory_space<vmem>>, vector<2x64xf32>
    %1100 = vector.extract_strided_slice %8 {offsets = [0, 45], sizes = [2, 1], strides = [1, 1]} : vector<2x49xf32> to vector<2x1xf32>
    %1101 = vector.broadcast %1100 : vector<2x1xf32> to vector<2x64xf32>
    %1102 = arith.mulf %1099, %1101 : vector<2x64xf32>
    %1103 = arith.addf %1098, %1102 : vector<2x64xf32>
    %1104 = arith.addf %1067, %1103 : vector<2x64xf32>
    %cst_364 = arith.constant 0.000000e+00 : f32
    %1105 = vector.broadcast %cst_364 : f32 to vector<2x64xf32>
    %c0_365 = arith.constant 0 : index
    %c132_366 = arith.constant 132 : index
    %1106 = vector.load %arg19[%c0_365, %c132_366] : memref<2x256xf32, #tpu.memory_space<vmem>>, vector<2x64xf32>
    %1107 = vector.extract_strided_slice %8 {offsets = [0, 4], sizes = [2, 1], strides = [1, 1]} : vector<2x49xf32> to vector<2x1xf32>
    %1108 = vector.broadcast %1107 : vector<2x1xf32> to vector<2x64xf32>
    %1109 = arith.mulf %1106, %1108 : vector<2x64xf32>
    %1110 = arith.addf %1105, %1109 : vector<2x64xf32>
    %c0_367 = arith.constant 0 : index
    %c140_368 = arith.constant 140 : index
    %1111 = vector.load %arg19[%c0_367, %c140_368] : memref<2x256xf32, #tpu.memory_space<vmem>>, vector<2x64xf32>
    %1112 = vector.extract_strided_slice %8 {offsets = [0, 11], sizes = [2, 1], strides = [1, 1]} : vector<2x49xf32> to vector<2x1xf32>
    %1113 = vector.broadcast %1112 : vector<2x1xf32> to vector<2x64xf32>
    %1114 = arith.mulf %1111, %1113 : vector<2x64xf32>
    %1115 = arith.addf %1110, %1114 : vector<2x64xf32>
    %c0_369 = arith.constant 0 : index
    %c148_370 = arith.constant 148 : index
    %1116 = vector.load %arg19[%c0_369, %c148_370] : memref<2x256xf32, #tpu.memory_space<vmem>>, vector<2x64xf32>
    %1117 = vector.extract_strided_slice %8 {offsets = [0, 18], sizes = [2, 1], strides = [1, 1]} : vector<2x49xf32> to vector<2x1xf32>
    %1118 = vector.broadcast %1117 : vector<2x1xf32> to vector<2x64xf32>
    %1119 = arith.mulf %1116, %1118 : vector<2x64xf32>
    %1120 = arith.addf %1115, %1119 : vector<2x64xf32>
    %c0_371 = arith.constant 0 : index
    %c156_372 = arith.constant 156 : index
    %1121 = vector.load %arg19[%c0_371, %c156_372] : memref<2x256xf32, #tpu.memory_space<vmem>>, vector<2x64xf32>
    %1122 = vector.extract_strided_slice %8 {offsets = [0, 25], sizes = [2, 1], strides = [1, 1]} : vector<2x49xf32> to vector<2x1xf32>
    %1123 = vector.broadcast %1122 : vector<2x1xf32> to vector<2x64xf32>
    %1124 = arith.mulf %1121, %1123 : vector<2x64xf32>
    %1125 = arith.addf %1120, %1124 : vector<2x64xf32>
    %c0_373 = arith.constant 0 : index
    %c164_374 = arith.constant 164 : index
    %1126 = vector.load %arg19[%c0_373, %c164_374] : memref<2x256xf32, #tpu.memory_space<vmem>>, vector<2x64xf32>
    %1127 = vector.extract_strided_slice %8 {offsets = [0, 32], sizes = [2, 1], strides = [1, 1]} : vector<2x49xf32> to vector<2x1xf32>
    %1128 = vector.broadcast %1127 : vector<2x1xf32> to vector<2x64xf32>
    %1129 = arith.mulf %1126, %1128 : vector<2x64xf32>
    %1130 = arith.addf %1125, %1129 : vector<2x64xf32>
    %c0_375 = arith.constant 0 : index
    %c172_376 = arith.constant 172 : index
    %1131 = vector.load %arg19[%c0_375, %c172_376] : memref<2x256xf32, #tpu.memory_space<vmem>>, vector<2x64xf32>
    %1132 = vector.extract_strided_slice %8 {offsets = [0, 39], sizes = [2, 1], strides = [1, 1]} : vector<2x49xf32> to vector<2x1xf32>
    %1133 = vector.broadcast %1132 : vector<2x1xf32> to vector<2x64xf32>
    %1134 = arith.mulf %1131, %1133 : vector<2x64xf32>
    %1135 = arith.addf %1130, %1134 : vector<2x64xf32>
    %c0_377 = arith.constant 0 : index
    %c180_378 = arith.constant 180 : index
    %1136 = vector.load %arg19[%c0_377, %c180_378] : memref<2x256xf32, #tpu.memory_space<vmem>>, vector<2x64xf32>
    %1137 = vector.extract_strided_slice %8 {offsets = [0, 46], sizes = [2, 1], strides = [1, 1]} : vector<2x49xf32> to vector<2x1xf32>
    %1138 = vector.broadcast %1137 : vector<2x1xf32> to vector<2x64xf32>
    %1139 = arith.mulf %1136, %1138 : vector<2x64xf32>
    %1140 = arith.addf %1135, %1139 : vector<2x64xf32>
    %1141 = vector.broadcast %14 : vector<1x64xf32> to vector<2x64xf32>
    %1142 = arith.mulf %1140, %1141 : vector<2x64xf32>
    %1143 = arith.addf %1104, %1142 : vector<2x64xf32>
    %cst_379 = arith.constant 0.000000e+00 : f32
    %1144 = vector.broadcast %cst_379 : f32 to vector<2x64xf32>
    %c0_380 = arith.constant 0 : index
    %c133_381 = arith.constant 133 : index
    %1145 = vector.load %arg19[%c0_380, %c133_381] : memref<2x256xf32, #tpu.memory_space<vmem>>, vector<2x64xf32>
    %1146 = vector.extract_strided_slice %8 {offsets = [0, 5], sizes = [2, 1], strides = [1, 1]} : vector<2x49xf32> to vector<2x1xf32>
    %1147 = vector.broadcast %1146 : vector<2x1xf32> to vector<2x64xf32>
    %1148 = arith.mulf %1145, %1147 : vector<2x64xf32>
    %1149 = arith.addf %1144, %1148 : vector<2x64xf32>
    %c0_382 = arith.constant 0 : index
    %c141_383 = arith.constant 141 : index
    %1150 = vector.load %arg19[%c0_382, %c141_383] : memref<2x256xf32, #tpu.memory_space<vmem>>, vector<2x64xf32>
    %1151 = vector.extract_strided_slice %8 {offsets = [0, 12], sizes = [2, 1], strides = [1, 1]} : vector<2x49xf32> to vector<2x1xf32>
    %1152 = vector.broadcast %1151 : vector<2x1xf32> to vector<2x64xf32>
    %1153 = arith.mulf %1150, %1152 : vector<2x64xf32>
    %1154 = arith.addf %1149, %1153 : vector<2x64xf32>
    %c0_384 = arith.constant 0 : index
    %c149_385 = arith.constant 149 : index
    %1155 = vector.load %arg19[%c0_384, %c149_385] : memref<2x256xf32, #tpu.memory_space<vmem>>, vector<2x64xf32>
    %1156 = vector.extract_strided_slice %8 {offsets = [0, 19], sizes = [2, 1], strides = [1, 1]} : vector<2x49xf32> to vector<2x1xf32>
    %1157 = vector.broadcast %1156 : vector<2x1xf32> to vector<2x64xf32>
    %1158 = arith.mulf %1155, %1157 : vector<2x64xf32>
    %1159 = arith.addf %1154, %1158 : vector<2x64xf32>
    %c0_386 = arith.constant 0 : index
    %c157_387 = arith.constant 157 : index
    %1160 = vector.load %arg19[%c0_386, %c157_387] : memref<2x256xf32, #tpu.memory_space<vmem>>, vector<2x64xf32>
    %1161 = vector.extract_strided_slice %8 {offsets = [0, 26], sizes = [2, 1], strides = [1, 1]} : vector<2x49xf32> to vector<2x1xf32>
    %1162 = vector.broadcast %1161 : vector<2x1xf32> to vector<2x64xf32>
    %1163 = arith.mulf %1160, %1162 : vector<2x64xf32>
    %1164 = arith.addf %1159, %1163 : vector<2x64xf32>
    %c0_388 = arith.constant 0 : index
    %c165_389 = arith.constant 165 : index
    %1165 = vector.load %arg19[%c0_388, %c165_389] : memref<2x256xf32, #tpu.memory_space<vmem>>, vector<2x64xf32>
    %1166 = vector.extract_strided_slice %8 {offsets = [0, 33], sizes = [2, 1], strides = [1, 1]} : vector<2x49xf32> to vector<2x1xf32>
    %1167 = vector.broadcast %1166 : vector<2x1xf32> to vector<2x64xf32>
    %1168 = arith.mulf %1165, %1167 : vector<2x64xf32>
    %1169 = arith.addf %1164, %1168 : vector<2x64xf32>
    %c0_390 = arith.constant 0 : index
    %c173_391 = arith.constant 173 : index
    %1170 = vector.load %arg19[%c0_390, %c173_391] : memref<2x256xf32, #tpu.memory_space<vmem>>, vector<2x64xf32>
    %1171 = vector.extract_strided_slice %8 {offsets = [0, 40], sizes = [2, 1], strides = [1, 1]} : vector<2x49xf32> to vector<2x1xf32>
    %1172 = vector.broadcast %1171 : vector<2x1xf32> to vector<2x64xf32>
    %1173 = arith.mulf %1170, %1172 : vector<2x64xf32>
    %1174 = arith.addf %1169, %1173 : vector<2x64xf32>
    %c0_392 = arith.constant 0 : index
    %c181_393 = arith.constant 181 : index
    %1175 = vector.load %arg19[%c0_392, %c181_393] : memref<2x256xf32, #tpu.memory_space<vmem>>, vector<2x64xf32>
    %1176 = vector.extract_strided_slice %8 {offsets = [0, 47], sizes = [2, 1], strides = [1, 1]} : vector<2x49xf32> to vector<2x1xf32>
    %1177 = vector.broadcast %1176 : vector<2x1xf32> to vector<2x64xf32>
    %1178 = arith.mulf %1175, %1177 : vector<2x64xf32>
    %1179 = arith.addf %1174, %1178 : vector<2x64xf32>
    %1180 = vector.broadcast %15 : vector<1x64xf32> to vector<2x64xf32>
    %1181 = arith.mulf %1179, %1180 : vector<2x64xf32>
    %1182 = arith.addf %1143, %1181 : vector<2x64xf32>
    %cst_394 = arith.constant 0.000000e+00 : f32
    %1183 = vector.broadcast %cst_394 : f32 to vector<2x64xf32>
    %c0_395 = arith.constant 0 : index
    %c134_396 = arith.constant 134 : index
    %1184 = vector.load %arg19[%c0_395, %c134_396] : memref<2x256xf32, #tpu.memory_space<vmem>>, vector<2x64xf32>
    %1185 = vector.extract_strided_slice %8 {offsets = [0, 6], sizes = [2, 1], strides = [1, 1]} : vector<2x49xf32> to vector<2x1xf32>
    %1186 = vector.broadcast %1185 : vector<2x1xf32> to vector<2x64xf32>
    %1187 = arith.mulf %1184, %1186 : vector<2x64xf32>
    %1188 = arith.addf %1183, %1187 : vector<2x64xf32>
    %c0_397 = arith.constant 0 : index
    %c142_398 = arith.constant 142 : index
    %1189 = vector.load %arg19[%c0_397, %c142_398] : memref<2x256xf32, #tpu.memory_space<vmem>>, vector<2x64xf32>
    %1190 = vector.extract_strided_slice %8 {offsets = [0, 13], sizes = [2, 1], strides = [1, 1]} : vector<2x49xf32> to vector<2x1xf32>
    %1191 = vector.broadcast %1190 : vector<2x1xf32> to vector<2x64xf32>
    %1192 = arith.mulf %1189, %1191 : vector<2x64xf32>
    %1193 = arith.addf %1188, %1192 : vector<2x64xf32>
    %c0_399 = arith.constant 0 : index
    %c150_400 = arith.constant 150 : index
    %1194 = vector.load %arg19[%c0_399, %c150_400] : memref<2x256xf32, #tpu.memory_space<vmem>>, vector<2x64xf32>
    %1195 = vector.extract_strided_slice %8 {offsets = [0, 20], sizes = [2, 1], strides = [1, 1]} : vector<2x49xf32> to vector<2x1xf32>
    %1196 = vector.broadcast %1195 : vector<2x1xf32> to vector<2x64xf32>
    %1197 = arith.mulf %1194, %1196 : vector<2x64xf32>
    %1198 = arith.addf %1193, %1197 : vector<2x64xf32>
    %c0_401 = arith.constant 0 : index
    %c158_402 = arith.constant 158 : index
    %1199 = vector.load %arg19[%c0_401, %c158_402] : memref<2x256xf32, #tpu.memory_space<vmem>>, vector<2x64xf32>
    %1200 = vector.extract_strided_slice %8 {offsets = [0, 27], sizes = [2, 1], strides = [1, 1]} : vector<2x49xf32> to vector<2x1xf32>
    %1201 = vector.broadcast %1200 : vector<2x1xf32> to vector<2x64xf32>
    %1202 = arith.mulf %1199, %1201 : vector<2x64xf32>
    %1203 = arith.addf %1198, %1202 : vector<2x64xf32>
    %c0_403 = arith.constant 0 : index
    %c166_404 = arith.constant 166 : index
    %1204 = vector.load %arg19[%c0_403, %c166_404] : memref<2x256xf32, #tpu.memory_space<vmem>>, vector<2x64xf32>
    %1205 = vector.extract_strided_slice %8 {offsets = [0, 34], sizes = [2, 1], strides = [1, 1]} : vector<2x49xf32> to vector<2x1xf32>
    %1206 = vector.broadcast %1205 : vector<2x1xf32> to vector<2x64xf32>
    %1207 = arith.mulf %1204, %1206 : vector<2x64xf32>
    %1208 = arith.addf %1203, %1207 : vector<2x64xf32>
    %c0_405 = arith.constant 0 : index
    %c174_406 = arith.constant 174 : index
    %1209 = vector.load %arg19[%c0_405, %c174_406] : memref<2x256xf32, #tpu.memory_space<vmem>>, vector<2x64xf32>
    %1210 = vector.extract_strided_slice %8 {offsets = [0, 41], sizes = [2, 1], strides = [1, 1]} : vector<2x49xf32> to vector<2x1xf32>
    %1211 = vector.broadcast %1210 : vector<2x1xf32> to vector<2x64xf32>
    %1212 = arith.mulf %1209, %1211 : vector<2x64xf32>
    %1213 = arith.addf %1208, %1212 : vector<2x64xf32>
    %c0_407 = arith.constant 0 : index
    %c182_408 = arith.constant 182 : index
    %1214 = vector.load %arg19[%c0_407, %c182_408] : memref<2x256xf32, #tpu.memory_space<vmem>>, vector<2x64xf32>
    %1215 = vector.extract_strided_slice %8 {offsets = [0, 48], sizes = [2, 1], strides = [1, 1]} : vector<2x49xf32> to vector<2x1xf32>
    %1216 = vector.broadcast %1215 : vector<2x1xf32> to vector<2x64xf32>
    %1217 = arith.mulf %1214, %1216 : vector<2x64xf32>
    %1218 = arith.addf %1213, %1217 : vector<2x64xf32>
    %1219 = vector.broadcast %16 : vector<1x64xf32> to vector<2x64xf32>
    %1220 = arith.mulf %1218, %1219 : vector<2x64xf32>
    %1221 = arith.addf %1182, %1220 : vector<2x64xf32>
    %cst_409 = arith.constant dense<0.000000e+00> : vector<64xf32>
    %1222 = vector.multi_reduction <add>, %1221, %cst_409 [0] : vector<2x64xf32> to vector<64xf32>
    %1223 = vector.shape_cast %1222 : vector<64xf32> to vector<1x64xf32>
    %1224 = arith.negf %1223 : vector<1x64xf32>
    %1225 = math.exp %1224 : vector<1x64xf32>
    %cst_410 = arith.constant 1.000000e+00 : f32
    %1226 = vector.broadcast %cst_410 : f32 to vector<1x64xf32>
    %1227 = arith.addf %1226, %1225 : vector<1x64xf32>
    %1228 = arith.divf %1226, %1227 : vector<1x64xf32>
    %1229 = vector.broadcast %1228 : vector<1x64xf32> to vector<32x64xf32>
    %1230 = arith.mulf %941, %1229 : vector<32x64xf32>
    %cst_411 = arith.constant dense<0.000000e+00> : vector<32xf32>
    %1231 = vector.multi_reduction <add>, %1230, %cst_411 [1] : vector<32x64xf32> to vector<32xf32>
    %1232 = vector.shape_cast %1231 : vector<32xf32> to vector<32x1xf32>
    %cst_412 = arith.constant 6.400000e+01 : f32
    %1233 = vector.broadcast %cst_412 : f32 to vector<32x1xf32>
    %1234 = arith.divf %1232, %1233 : vector<32x1xf32>
    %1235 = vector.broadcast %1234 : vector<32x1xf32> to vector<32x8xf32>
    %1236 = arith.mulf %1235, %9 : vector<32x8xf32>
    %cst_413 = arith.constant dense<0.000000e+00> : vector<8xf32>
    %1237 = vector.multi_reduction <add>, %1236, %cst_413 [0] : vector<32x8xf32> to vector<8xf32>
    %1238 = vector.shape_cast %1237 : vector<8xf32> to vector<1x8xf32>
    %cst_414 = arith.constant 0.000000e+00 : f32
    %1239 = vector.broadcast %cst_414 : f32 to vector<1x8xf32>
    %1240 = arith.maximumf %1238, %1239 : vector<1x8xf32>
    %1241 = vector.broadcast %1240 : vector<1x8xf32> to vector<32x8xf32>
    %1242 = arith.mulf %10, %1241 : vector<32x8xf32>
    %cst_415 = arith.constant dense<0.000000e+00> : vector<32xf32>
    %1243 = vector.multi_reduction <add>, %1242, %cst_415 [1] : vector<32x8xf32> to vector<32xf32>
    %1244 = vector.shape_cast %1243 : vector<32xf32> to vector<32x1xf32>
    %1245 = arith.negf %1244 : vector<32x1xf32>
    %1246 = math.exp %1245 : vector<32x1xf32>
    %cst_416 = arith.constant 1.000000e+00 : f32
    %1247 = vector.broadcast %cst_416 : f32 to vector<32x1xf32>
    %1248 = arith.addf %1247, %1246 : vector<32x1xf32>
    %1249 = arith.divf %1247, %1248 : vector<32x1xf32>
    %1250 = vector.broadcast %1249 : vector<32x1xf32> to vector<32x64xf32>
    %1251 = arith.mulf %1230, %1250 : vector<32x64xf32>
    %c0_417 = arith.constant 0 : index
    %c64 = arith.constant 64 : index
    %1252 = vector.load %arg20[%c0_417, %c64] : memref<32x128xf32, #tpu.memory_space<vmem>>, vector<32x64xf32>
    tpu.vector_store %arg20[%c0_417, %c64], %1251 {strides = array<i32>} : memref<32x128xf32, #tpu.memory_space<vmem>>, vector<32x64xf32>,
    %c0_418 = arith.constant 0 : index
    %c0_419 = arith.constant 0 : index
    %1253 = vector.load %arg20[%c0_418, %c0_419] : memref<32x128xf32, #tpu.memory_space<vmem>>, vector<32x128xf32>
    %cst_420 = arith.constant dense<0.000000e+00> : vector<128xf32>
    %1254 = vector.multi_reduction <add>, %1253, %cst_420 [0] : vector<32x128xf32> to vector<128xf32>
    %1255 = vector.shape_cast %1254 : vector<128xf32> to vector<1x128xf32>
    %cst_421 = arith.constant 3.200000e+01 : f32
    %1256 = vector.broadcast %cst_421 : f32 to vector<1x128xf32>
    %1257 = arith.divf %1255, %1256 : vector<1x128xf32>
    %1258 = vector.broadcast %1257 : vector<1x128xf32> to vector<32x128xf32>
    %1259 = arith.subf %1253, %1258 : vector<32x128xf32>
    %1260 = arith.mulf %1259, %1259 : vector<32x128xf32>
    %cst_422 = arith.constant dense<0.000000e+00> : vector<128xf32>
    %1261 = vector.multi_reduction <add>, %1260, %cst_422 [0] : vector<32x128xf32> to vector<128xf32>
    %1262 = vector.shape_cast %1261 : vector<128xf32> to vector<1x128xf32>
    %cst_423 = arith.constant 3.200000e+01 : f32
    %1263 = vector.broadcast %cst_423 : f32 to vector<1x128xf32>
    %1264 = arith.divf %1262, %1263 : vector<1x128xf32>
    %1265 = vector.broadcast %1257 : vector<1x128xf32> to vector<32x128xf32>
    %1266 = arith.subf %1253, %1265 : vector<32x128xf32>
    %cst_424 = arith.constant 9.99999997E-7 : f32
    %1267 = vector.broadcast %cst_424 : f32 to vector<1x128xf32>
    %1268 = arith.addf %1264, %1267 : vector<1x128xf32>
    %1269 = math.rsqrt %1268 : vector<1x128xf32>
    %1270 = vector.broadcast %1269 : vector<1x128xf32> to vector<32x128xf32>
    %1271 = arith.mulf %1266, %1270 : vector<32x128xf32>
    %c0_425 = arith.constant 0 : index
    %c0_426 = arith.constant 0 : index
    %1272 = vector.load %arg10[%c0_425, %c0_426] : memref<32x1xf32, #tpu.memory_space<vmem>>, vector<32x1xf32>
    %1273 = vector.broadcast %1272 : vector<32x1xf32> to vector<32x128xf32>
    %1274 = arith.mulf %1271, %1273 : vector<32x128xf32>
    %c0_427 = arith.constant 0 : index
    %c0_428 = arith.constant 0 : index
    %1275 = vector.load %arg11[%c0_427, %c0_428] : memref<32x1xf32, #tpu.memory_space<vmem>>, vector<32x1xf32>
    %1276 = vector.broadcast %1275 : vector<32x1xf32> to vector<32x128xf32>
    %1277 = arith.addf %1274, %1276 : vector<32x128xf32>
    %c0_429 = arith.constant 0 : index
    %c0_430 = arith.constant 0 : index
    %1278 = vector.load %arg12[%c0_429, %c0_430] : memref<128x32xbf16, #tpu.memory_space<vmem>>, vector<128x32xbf16>
    %1279 = arith.truncf %1277 : vector<32x128xf32> to vector<32x128xbf16>
    %cst_431 = arith.constant dense<0.000000e+00> : vector<128x128xf32>
    %1280 = tpu.matmul %1278, %1279, %cst_431 {dimension_numbers = #tpu.dot_dimension_numbers<[1], [0], [0], [1], [0, 0, 1, 1], [], []>} : vector<128x32xbf16>, vector<32x128xbf16>, vector<128x128xf32> -> vector<128x128xf32>
    %c0_432 = arith.constant 0 : index
    %c0_433 = arith.constant 0 : index
    %1281 = vector.load %arg13[%c0_432, %c0_433] : memref<128x1xf32, #tpu.memory_space<vmem>>, vector<128x1xf32>
    %1282 = vector.broadcast %1281 : vector<128x1xf32> to vector<128x128xf32>
    %1283 = arith.addf %1280, %1282 : vector<128x128xf32>
    %cst_434 = arith.constant 5.000000e-01 : f32
    %1284 = vector.broadcast %cst_434 : f32 to vector<128x128xf32>
    %1285 = arith.mulf %1284, %1283 : vector<128x128xf32>
    %cst_435 = arith.constant 4.471500e-02 : f32
    %1286 = vector.broadcast %cst_435 : f32 to vector<128x128xf32>
    %1287 = arith.mulf %1286, %1283 : vector<128x128xf32>
    %1288 = arith.mulf %1287, %1283 : vector<128x128xf32>
    %1289 = arith.mulf %1288, %1283 : vector<128x128xf32>
    %1290 = arith.addf %1283, %1289 : vector<128x128xf32>
    %cst_436 = arith.constant 0.797884583 : f32
    %1291 = vector.broadcast %cst_436 : f32 to vector<128x128xf32>
    %1292 = arith.mulf %1291, %1290 : vector<128x128xf32>
    %1293 = math.tanh %1292 : vector<128x128xf32>
    %cst_437 = arith.constant 1.000000e+00 : f32
    %1294 = vector.broadcast %cst_437 : f32 to vector<128x128xf32>
    %1295 = arith.addf %1294, %1293 : vector<128x128xf32>
    %1296 = arith.mulf %1285, %1295 : vector<128x128xf32>
    %c0_438 = arith.constant 0 : index
    %c0_439 = arith.constant 0 : index
    %1297 = vector.load %arg14[%c0_438, %c0_439] : memref<32x128xbf16, #tpu.memory_space<vmem>>, vector<32x128xbf16>
    %1298 = arith.truncf %1296 : vector<128x128xf32> to vector<128x128xbf16>
    %cst_440 = arith.constant dense<0.000000e+00> : vector<32x128xf32>
    %1299 = tpu.matmul %1297, %1298, %cst_440 {dimension_numbers = #tpu.dot_dimension_numbers<[1], [0], [0], [1], [0, 0, 1, 1], [], []>} : vector<32x128xbf16>, vector<128x128xbf16>, vector<32x128xf32> -> vector<32x128xf32>
    %c0_441 = arith.constant 0 : index
    %c0_442 = arith.constant 0 : index
    %1300 = vector.load %arg15[%c0_441, %c0_442] : memref<32x1xf32, #tpu.memory_space<vmem>>, vector<32x1xf32>
    %1301 = vector.broadcast %1300 : vector<32x1xf32> to vector<32x128xf32>
    %1302 = arith.addf %1299, %1301 : vector<32x128xf32>
    %c0_443 = arith.constant 0 : index
    %c0_444 = arith.constant 0 : index
    %1303 = vector.load %arg16[%c0_443, %c0_444] : memref<32x1xf32, #tpu.memory_space<vmem>>, vector<32x1xf32>
    %1304 = vector.broadcast %1303 : vector<32x1xf32> to vector<32x128xf32>
    %1305 = arith.mulf %1302, %1304 : vector<32x128xf32>
    %1306 = vector.extract_strided_slice %1305 {offsets = [0, 0], sizes = [32, 64], strides = [1, 1]} : vector<32x128xf32> to vector<32x64xf32>
    %1307 = arith.addf %18, %1306 : vector<32x64xf32>
    %c0_445 = arith.constant 0 : index
    %c0_446 = arith.constant 0 : index
    %c0_447 = arith.constant 0 : index
    %1308 = vector.load %arg17[%c0_445, %c0_446, %c0_447] : memref<2x32x64xf32, #tpu.memory_space<vmem>>, vector<1x32x64xf32>
    %1309 = vector.shape_cast %1308 : vector<1x32x64xf32> to vector<32x64xf32>
    %1310 = vector.shape_cast %1307 : vector<32x64xf32> to vector<1x32x64xf32>
    tpu.vector_store %arg17[%c0_445, %c0_446, %c0_447], %1310 {strides = array<i32>} : memref<2x32x64xf32, #tpu.memory_space<vmem>>, vector<1x32x64xf32>,
    %1311 = vector.extract_strided_slice %1305 {offsets = [0, 64], sizes = [32, 64], strides = [1, 1]} : vector<32x128xf32> to vector<32x64xf32>
    %1312 = arith.addf %636, %1311 : vector<32x64xf32>
    %c1_448 = arith.constant 1 : index
    %c0_449 = arith.constant 0 : index
    %c0_450 = arith.constant 0 : index
    %1313 = vector.load %arg17[%c1_448, %c0_449, %c0_450] : memref<2x32x64xf32, #tpu.memory_space<vmem>>, vector<1x32x64xf32>
    %1314 = vector.shape_cast %1313 : vector<1x32x64xf32> to vector<32x64xf32>
    %1315 = vector.shape_cast %1312 : vector<32x64xf32> to vector<1x32x64xf32>
    tpu.vector_store %arg17[%c1_448, %c0_449, %c0_450], %1315 {strides = array<i32>} : memref<2x32x64xf32, #tpu.memory_space<vmem>>, vector<1x32x64xf32>,
    return
  }
  func.func @transform_0(%arg0: i32) -> (i32, i32, i32) {
    %c0_i32 = arith.constant 0 : i32
    %c0_i32_0 = arith.constant 0 : i32
    %c0_i32_1 = arith.constant 0 : i32
    %c0_i32_2 = arith.constant 0 : i32
    return %c0_i32, %c0_i32_0, %c0_i32_1 : i32, i32, i32
  }
  func.func @transform_1(%arg0: i32) -> (i32, i32) {
    %c0_i32 = arith.constant 0 : i32
    %c0_i32_0 = arith.constant 0 : i32
    %c0_i32_1 = arith.constant 0 : i32
    return %c0_i32, %c0_i32_0 : i32, i32
  }
  func.func @transform_2(%arg0: i32) -> (i32, i32) {
    %c0_i32 = arith.constant 0 : i32
    %c0_i32_0 = arith.constant 0 : i32
    %c0_i32_1 = arith.constant 0 : i32
    return %c0_i32, %c0_i32_0 : i32, i32
  }
  func.func @transform_3(%arg0: i32) -> (i32, i32) {
    %c0_i32 = arith.constant 0 : i32
    %c0_i32_0 = arith.constant 0 : i32
    %c0_i32_1 = arith.constant 0 : i32
    return %c0_i32, %c0_i32_0 : i32, i32
  }
  func.func @transform_4(%arg0: i32) -> (i32, i32) {
    %c0_i32 = arith.constant 0 : i32
    %c0_i32_0 = arith.constant 0 : i32
    %c0_i32_1 = arith.constant 0 : i32
    return %c0_i32, %c0_i32_0 : i32, i32
  }
  func.func @transform_5(%arg0: i32) -> (i32, i32) {
    %c0_i32 = arith.constant 0 : i32
    %c0_i32_0 = arith.constant 0 : i32
    %c0_i32_1 = arith.constant 0 : i32
    return %c0_i32, %c0_i32_0 : i32, i32
  }
  func.func @transform_6(%arg0: i32) -> (i32, i32) {
    %c0_i32 = arith.constant 0 : i32
    %c0_i32_0 = arith.constant 0 : i32
    %c0_i32_1 = arith.constant 0 : i32
    return %c0_i32, %c0_i32_0 : i32, i32
  }
  func.func @transform_7(%arg0: i32) -> (i32, i32) {
    %c0_i32 = arith.constant 0 : i32
    %c0_i32_0 = arith.constant 0 : i32
    %c0_i32_1 = arith.constant 0 : i32
    return %c0_i32, %c0_i32_0 : i32, i32
  }
  func.func @transform_8(%arg0: i32) -> (i32, i32) {
    %c0_i32 = arith.constant 0 : i32
    %c0_i32_0 = arith.constant 0 : i32
    %c0_i32_1 = arith.constant 0 : i32
    return %c0_i32, %c0_i32_0 : i32, i32
  }
  func.func @transform_9(%arg0: i32) -> (i32, i32) {
    %c0_i32 = arith.constant 0 : i32
    %c0_i32_0 = arith.constant 0 : i32
    %c0_i32_1 = arith.constant 0 : i32
    return %c0_i32, %c0_i32_0 : i32, i32
  }
  func.func @transform_10(%arg0: i32) -> (i32, i32) {
    %c0_i32 = arith.constant 0 : i32
    %c0_i32_0 = arith.constant 0 : i32
    %c0_i32_1 = arith.constant 0 : i32
    return %c0_i32, %c0_i32_0 : i32, i32
  }
  func.func @transform_11(%arg0: i32) -> (i32, i32) {
    %c0_i32 = arith.constant 0 : i32
    %c0_i32_0 = arith.constant 0 : i32
    %c0_i32_1 = arith.constant 0 : i32
    return %c0_i32, %c0_i32_0 : i32, i32
  }
  func.func @transform_12(%arg0: i32) -> (i32, i32) {
    %c0_i32 = arith.constant 0 : i32
    %c0_i32_0 = arith.constant 0 : i32
    %c0_i32_1 = arith.constant 0 : i32
    return %c0_i32, %c0_i32_0 : i32, i32
  }
  func.func @transform_13(%arg0: i32) -> (i32, i32) {
    %c0_i32 = arith.constant 0 : i32
    %c0_i32_0 = arith.constant 0 : i32
    %c0_i32_1 = arith.constant 0 : i32
    return %c0_i32, %c0_i32_0 : i32, i32
  }
  func.func @transform_14(%arg0: i32) -> (i32, i32) {
    %c0_i32 = arith.constant 0 : i32
    %c0_i32_0 = arith.constant 0 : i32
    %c0_i32_1 = arith.constant 0 : i32
    return %c0_i32, %c0_i32_0 : i32, i32
  }
  func.func @transform_15(%arg0: i32) -> (i32, i32) {
    %c0_i32 = arith.constant 0 : i32
    %c0_i32_0 = arith.constant 0 : i32
    %c0_i32_1 = arith.constant 0 : i32
    return %c0_i32, %c0_i32_0 : i32, i32
  }
  func.func @transform_16(%arg0: i32) -> (i32, i32, i32) {
    %c0_i32 = arith.constant 0 : i32
    %c0_i32_0 = arith.constant 0 : i32
    %c0_i32_1 = arith.constant 0 : i32
    %c0_i32_2 = arith.constant 0 : i32
    return %c0_i32, %c0_i32_0, %c0_i32_1 : i32, i32, i32
  }
}

</mosaic_0001>

<llo_original>
// kernel: block_forward.1
$region0: #{block_forward.1}
  #allocation0 [shape = 'u32[]', space=smem, size = 0x4, offset = 0x4, fixed_abs, tag = 'smem constant byte address 0x4 - core index']
  #allocation1 [shape = 'u32[144,128]{1,0:T(1,128)}', space=vmem, size = 0x12000, scoped, tag = 'internal scratch']
  #allocation2 [shape = 'f32[32,256]{1,0:T(8,128)}', space=vmem, size = 0x8000, scoped, tag = 'scratch operand']
  #allocation3 [shape = 'f32[2,256]{1,0:T(2,128)}', space=vmem, size = 0x800, scoped, tag = 'scratch operand']
  #allocation4 [shape = 'f32[32,128]{1,0:T(8,128)}', space=vmem, size = 0x4000, scoped, tag = 'scratch operand']
  %s0 = inlined_call_operand.vmem [shape: f32[2,32,64], index: 0, kind: input, shape index: {}]
  %s1 = inlined_call_operand.vmem [shape: f32[8,64], index: 1, kind: input, shape index: {}]
  %s2 = inlined_call_operand.vmem [shape: f32[32,49], index: 2, kind: input, shape index: {}]
  %s3 = inlined_call_operand.vmem [shape: f32[32,1], index: 3, kind: input, shape index: {}]
  %s4 = inlined_call_operand.vmem [shape: f32[32,2], index: 4, kind: input, shape index: {}]
  %s5 = inlined_call_operand.vmem [shape: f32[32,2], index: 5, kind: input, shape index: {}]
  %s6 = inlined_call_operand.vmem [shape: f32[2,49], index: 6, kind: input, shape index: {}]
  %s7 = inlined_call_operand.vmem [shape: f32[32,8], index: 7, kind: input, shape index: {}]
  %s8 = inlined_call_operand.vmem [shape: f32[32,8], index: 8, kind: input, shape index: {}]
  %s9 = inlined_call_operand.vmem [shape: f32[32,1], index: 9, kind: input, shape index: {}]
  %s10 = inlined_call_operand.vmem [shape: f32[32,1], index: 10, kind: input, shape index: {}]
  %s11 = inlined_call_operand.vmem [shape: bf16[128,32], index: 11, kind: input, shape index: {}]
  %s12 = inlined_call_operand.vmem [shape: f32[128,1], index: 12, kind: input, shape index: {}]
  %s13 = inlined_call_operand.vmem [shape: bf16[32,128], index: 13, kind: input, shape index: {}]
  %s14 = inlined_call_operand.vmem [shape: f32[32,1], index: 14, kind: input, shape index: {}]
  %s15 = inlined_call_operand.vmem [shape: f32[32,1], index: 15, kind: input, shape index: {}]
  %s16 = inlined_call_operand.vmem [shape: f32[2,32,64], index: 16, kind: output, shape index: {}]
  %s17 = sld [smem:[#allocation0]]
  $region74: #{block_forward.1} parent=0
    _
  %s19 = ssub.s32 1, %s17
  %s20 = scalar_select 0, %s19, %s17
  // Predicated region
  $region2: #{block_forward.1} parent=0 // pred_check
    _
  $region3: #{block_forward.1} parent=0 // pred_check_branch
    %22 = sbr.rel (0) target = $region5
  $region4: #{block_forward.1} parent=0 // pred_region
    _
  $region5: #{block_forward.1} parent=0 // pred_fallthru
    _
  // Predicated region
  $region6: #{block_forward.1} parent=0 // pred_check
    _
  $region7: #{block_forward.1} parent=0 // pred_check_branch
    %24 = sbr.rel (0) target = $region9
  $region8: #{block_forward.1} parent=0 // pred_region
    _
  $region9: #{block_forward.1} parent=0 // pred_fallthru
    _
  // Predicated region
  $region10: #{block_forward.1} parent=0 // pred_check
    _
  $region11: #{block_forward.1} parent=0 // pred_check_branch
    %26 = sbr.rel (0) target = $region13
  $region12: #{block_forward.1} parent=0 // pred_region
    _
  $region13: #{block_forward.1} parent=0 // pred_fallthru
    _
  // Predicated region
  $region14: #{block_forward.1} parent=0 // pred_check
    _
  $region15: #{block_forward.1} parent=0 // pred_check_branch
    %28 = sbr.rel (0) target = $region17
  $region16: #{block_forward.1} parent=0 // pred_region
    _
  $region17: #{block_forward.1} parent=0 // pred_fallthru
    _
  // Predicated region
  $region18: #{block_forward.1} parent=0 // pred_check
    _
  $region19: #{block_forward.1} parent=0 // pred_check_branch
    %30 = sbr.rel (0) target = $region21
  $region20: #{block_forward.1} parent=0 // pred_region
    _
  $region21: #{block_forward.1} parent=0 // pred_fallthru
    _
  // Predicated region
  $region22: #{block_forward.1} parent=0 // pred_check
    _
  $region23: #{block_forward.1} parent=0 // pred_check_branch
    %32 = sbr.rel (0) target = $region25
  $region24: #{block_forward.1} parent=0 // pred_region
    _
  $region25: #{block_forward.1} parent=0 // pred_fallthru
    _
  // Predicated region
  $region26: #{block_forward.1} parent=0 // pred_check
    _
  $region27: #{block_forward.1} parent=0 // pred_check_branch
    %34 = sbr.rel (0) target = $region29
  $region28: #{block_forward.1} parent=0 // pred_region
    _
  $region29: #{block_forward.1} parent=0 // pred_fallthru
    _
  // Predicated region
  $region30: #{block_forward.1} parent=0 // pred_check
    _
  $region31: #{block_forward.1} parent=0 // pred_check_branch
    %36 = sbr.rel (0) target = $region33
  $region32: #{block_forward.1} parent=0 // pred_region
    _
  $region33: #{block_forward.1} parent=0 // pred_fallthru
    _
  // Predicated region
  $region34: #{block_forward.1} parent=0 // pred_check
    _
  $region35: #{block_forward.1} parent=0 // pred_check_branch
    %38 = sbr.rel (0) target = $region37
  $region36: #{block_forward.1} parent=0 // pred_region
    _
  $region37: #{block_forward.1} parent=0 // pred_fallthru
    _
  // Predicated region
  $region38: #{block_forward.1} parent=0 // pred_check
    _
  $region39: #{block_forward.1} parent=0 // pred_check_branch
    %40 = sbr.rel (0) target = $region41
  $region40: #{block_forward.1} parent=0 // pred_region
    _
  $region41: #{block_forward.1} parent=0 // pred_fallthru
    _
  // Predicated region
  $region42: #{block_forward.1} parent=0 // pred_check
    _
  $region43: #{block_forward.1} parent=0 // pred_check_branch
    %42 = sbr.rel (0) target = $region45
  $region44: #{block_forward.1} parent=0 // pred_region
    _
  $region45: #{block_forward.1} parent=0 // pred_fallthru
    _
  // Predicated region
  $region46: #{block_forward.1} parent=0 // pred_check
    _
  $region47: #{block_forward.1} parent=0 // pred_check_branch
    %44 = sbr.rel (0) target = $region49
  $region48: #{block_forward.1} parent=0 // pred_region
    _
  $region49: #{block_forward.1} parent=0 // pred_fallthru
    _
  // Predicated region
  $region50: #{block_forward.1} parent=0 // pred_check
    _
  $region51: #{block_forward.1} parent=0 // pred_check_branch
    %46 = sbr.rel (0) target = $region53
  $region52: #{block_forward.1} parent=0 // pred_region
    _
  $region53: #{block_forward.1} parent=0 // pred_fallthru
    _
  // Predicated region
  $region54: #{block_forward.1} parent=0 // pred_check
    _
  $region55: #{block_forward.1} parent=0 // pred_check_branch
    %48 = sbr.rel (0) target = $region57
  $region56: #{block_forward.1} parent=0 // pred_region
    _
  $region57: #{block_forward.1} parent=0 // pred_fallthru
    _
  // Predicated region
  $region58: #{block_forward.1} parent=0 // pred_check
    _
  $region59: #{block_forward.1} parent=0 // pred_check_branch
    %50 = sbr.rel (0) target = $region61
  $region60: #{block_forward.1} parent=0 // pred_region
    _
  $region61: #{block_forward.1} parent=0 // pred_fallthru
    _
  // Predicated region
  $region62: #{block_forward.1} parent=0 // pred_check
    _
  $region63: #{block_forward.1} parent=0 // pred_check_branch
    %52 = sbr.rel (0) target = $region65
  $region64: #{block_forward.1} parent=0 // pred_region
    _
  $region65: #{block_forward.1} parent=0 // pred_fallthru
    _
  %54 = vst [vmem:[#allocation2] sm:$0xff] 0.0
  %55 = vst [vmem:[#allocation2 + $0x8] sm:$0xff] 0.0
  %56 = vst [vmem:[#allocation2 + $0x10] sm:$0xff] 0.0
  %57 = vst [vmem:[#allocation2 + $0x18] sm:$0xff] 0.0
  %58 = vst [vmem:[#allocation2 + $0x20] sm:$0xff] 0.0
  %59 = vst [vmem:[#allocation2 + $0x28] sm:$0xff] 0.0
  %60 = vst [vmem:[#allocation2 + $0x30] sm:$0xff] 0.0
  %61 = vst [vmem:[#allocation2 + $0x38] sm:$0xff] 0.0
  %62 = vst [vmem:[#allocation3] sm:$0xf] 0.0
  %v63 = vld [vmem:[%s2] sm:$0xff]
  %v64 = vld [vmem:[%s2 + $0x8] sm:$0xff]
  %v65 = vld [vmem:[%s2 + $0x10] sm:$0xff]
  %v66 = vld [vmem:[%s2 + $0x18] sm:$0xff]
  %v67 = vld [vmem:[%s3] sm:$0xff]
  %v68 = vld [vmem:[%s3 + $0x8] sm:$0xff]
  %v69 = vld [vmem:[%s3 + $0x10] sm:$0xff]
  %v70 = vld [vmem:[%s3 + $0x18] sm:$0xff]
  %v71 = vld [vmem:[%s4] sm:$0xff]
  %v72 = vld [vmem:[%s4 + $0x8] sm:$0xff]
  %v73 = vld [vmem:[%s4 + $0x10] sm:$0xff]
  %v74 = vld [vmem:[%s4 + $0x18] sm:$0xff]
  %v75 = vld [vmem:[%s5] sm:$0xff]
  %v76 = vld [vmem:[%s5 + $0x8] sm:$0xff]
  %v77 = vld [vmem:[%s5 + $0x10] sm:$0xff]
  %v78 = vld [vmem:[%s5 + $0x18] sm:$0xff]
  %v79 = vld [vmem:[%s6] sm:$0x3]
  %v80 = vld [vmem:[%s7] sm:$0xff]
  %v81 = vld [vmem:[%s7 + $0x8] sm:$0xff]
  %v82 = vld [vmem:[%s7 + $0x10] sm:$0xff]
  %v83 = vld [vmem:[%s7 + $0x18] sm:$0xff]
  %v84 = vld [vmem:[%s8] sm:$0xff]
  %v85 = vld [vmem:[%s8 + $0x8] sm:$0xff]
  %v86 = vld [vmem:[%s8 + $0x10] sm:$0xff]
  %v87 = vld [vmem:[%s8 + $0x18] sm:$0xff]
  %v88 = vld [vmem:[%s1] sm:$0x1]
  %v89 = vld [vmem:[%s1 + $0x1] sm:$0x1]
  %v90 = vld [vmem:[%s1 + $0x2] sm:$0x1]
  %v91 = vld [vmem:[%s1 + $0x4] sm:$0x1]
  %v92 = vld [vmem:[%s1 + $0x5] sm:$0x1]
  %v93 = vld [vmem:[%s1 + $0x6] sm:$0x1]
  %v94 = vld [vmem:[%s0] sm:$0xff]
  %v95 = vld [vmem:[%s0 + $0x8] sm:$0xff]
  %v96 = vld [vmem:[%s0 + $0x10] sm:$0xff]
  %v97 = vld [vmem:[%s0 + $0x18] sm:$0xff]
  %102 = vrot.lane.b32.xlu0 %v94, 27
  %v103 = vpop.permute.xlu0 %102
  %104 = vrot.lane.b32.xlu0 %v95, 27
  %v105 = vpop.permute.xlu0 %104
  %106 = vrot.lane.b32.xlu0 %v96, 27
  %v107 = vpop.permute.xlu0 %106
  %108 = vrot.lane.b32.xlu0 %v97, 27
  %v109 = vpop.permute.xlu0 %108
  %vm114 = vcmask 744664
  %115 = vst.msk [vmem:[#allocation2] sm:$0xff] %vm114, %v103
  %116 = vst.msk [vmem:[#allocation2 + $0x10] sm:$0xff] %vm114, %v105
  %117 = vst.msk [vmem:[#allocation2 + $0x20] sm:$0xff] %vm114, %v107
  %118 = vst.msk [vmem:[#allocation2 + $0x30] sm:$0xff] %vm114, %v109
  %v119 = vld [vmem:[#allocation2] sm:$0xff]
  %v120 = vld [vmem:[#allocation2 + $0x10] sm:$0xff]
  %v121 = vld [vmem:[#allocation2 + $0x20] sm:$0xff]
  %v122 = vld [vmem:[#allocation2 + $0x30] sm:$0xff]
  %124 = vset.pattern.permute.xlu0 0
  %125 = vperm.xlu0 %124, %v63
  %v126 = vpop.permute.xlu0 %125
  %129 = vset.pattern.permute.xlu0 0
  %130 = vperm.xlu0 %129, %v64
  %v131 = vpop.permute.xlu0 %130
  %134 = vset.pattern.permute.xlu0 0
  %135 = vperm.xlu0 %134, %v65
  %v136 = vpop.permute.xlu0 %135
  %139 = vset.pattern.permute.xlu0 0
  %140 = vperm.xlu0 %139, %v66
  %v141 = vpop.permute.xlu0 %140
  %v143 = vmul.f32 %v119, %v126
  %v144 = vmul.f32 %v120, %v131
  %v145 = vmul.f32 %v121, %v136
  %v146 = vmul.f32 %v122, %v141
  %v147 = vadd.f32 %v143, 0.0
  %v148 = vadd.f32 %v144, 0.0
  %v149 = vadd.f32 %v145, 0.0
  %v150 = vadd.f32 %v146, 0.0
  %151 = vset.pattern.permute.xlu0 7
  %152 = vperm.xlu0 %151, %v63
  %v153 = vpop.permute.xlu0 %152
  %155 = vset.pattern.permute.xlu0 7
  %156 = vperm.xlu0 %155, %v64
  %v157 = vpop.permute.xlu0 %156
  %159 = vset.pattern.permute.xlu0 7
  %160 = vperm.xlu0 %159, %v65
  %v161 = vpop.permute.xlu0 %160
  %163 = vset.pattern.permute.xlu0 7
  %164 = vperm.xlu0 %163, %v66
  %v165 = vpop.permute.xlu0 %164
  %v167 = vmul.f32 %v119, %v153
  %v168 = vmul.f32 %v120, %v157
  %v169 = vmul.f32 %v121, %v161
  %v170 = vmul.f32 %v122, %v165
  %175 = vrot.lane.b32.xlu0 %v167, 120
  %v176 = vpop.permute.xlu0 %175
  %177 = vrot.lane.b32.xlu0 %v168, 120
  %v178 = vpop.permute.xlu0 %177
  %179 = vrot.lane.b32.xlu0 %v169, 120
  %v180 = vpop.permute.xlu0 %179
  %181 = vrot.lane.b32.xlu0 %v170, 120
  %v182 = vpop.permute.xlu0 %181
  %v187 = vadd.f32 %v147, %v176
  %v188 = vadd.f32 %v148, %v178
  %v189 = vadd.f32 %v149, %v180
  %v190 = vadd.f32 %v150, %v182
  %191 = vset.pattern.permute.xlu0 14
  %192 = vperm.xlu0 %191, %v63
  %v193 = vpop.permute.xlu0 %192
  %195 = vset.pattern.permute.xlu0 14
  %196 = vperm.xlu0 %195, %v64
  %v197 = vpop.permute.xlu0 %196
  %199 = vset.pattern.permute.xlu0 14
  %200 = vperm.xlu0 %199, %v65
  %v201 = vpop.permute.xlu0 %200
  %203 = vset.pattern.permute.xlu0 14
  %204 = vperm.xlu0 %203, %v66
  %v205 = vpop.permute.xlu0 %204
  %v207 = vmul.f32 %v119, %v193
  %v208 = vmul.f32 %v120, %v197
  %v209 = vmul.f32 %v121, %v201
  %v210 = vmul.f32 %v122, %v205
  %215 = vrot.lane.b32.xlu0 %v207, 112
  %v216 = vpop.permute.xlu0 %215
  %217 = vrot.lane.b32.xlu0 %v208, 112
  %v218 = vpop.permute.xlu0 %217
  %219 = vrot.lane.b32.xlu0 %v209, 112
  %v220 = vpop.permute.xlu0 %219
  %221 = vrot.lane.b32.xlu0 %v210, 112
  %v222 = vpop.permute.xlu0 %221
  %v227 = vadd.f32 %v187, %v216
  %v228 = vadd.f32 %v188, %v218
  %v229 = vadd.f32 %v189, %v220
  %v230 = vadd.f32 %v190, %v222
  %231 = vset.pattern.permute.xlu0 21
  %232 = vperm.xlu0 %231, %v63
  %v233 = vpop.permute.xlu0 %232
  %235 = vset.pattern.permute.xlu0 21
  %236 = vperm.xlu0 %235, %v64
  %v237 = vpop.permute.xlu0 %236
  %239 = vset.pattern.permute.xlu0 21
  %240 = vperm.xlu0 %239, %v65
  %v241 = vpop.permute.xlu0 %240
  %243 = vset.pattern.permute.xlu0 21
  %244 = vperm.xlu0 %243, %v66
  %v245 = vpop.permute.xlu0 %244
  %v247 = vmul.f32 %v119, %v233
  %v248 = vmul.f32 %v120, %v237
  %v249 = vmul.f32 %v121, %v241
  %v250 = vmul.f32 %v122, %v245
  %255 = vrot.lane.b32.xlu0 %v247, 104
  %v256 = vpop.permute.xlu0 %255
  %257 = vrot.lane.b32.xlu0 %v248, 104
  %v258 = vpop.permute.xlu0 %257
  %259 = vrot.lane.b32.xlu0 %v249, 104
  %v260 = vpop.permute.xlu0 %259
  %261 = vrot.lane.b32.xlu0 %v250, 104
  %v262 = vpop.permute.xlu0 %261
  %v267 = vadd.f32 %v227, %v256
  %v268 = vadd.f32 %v228, %v258
  %v269 = vadd.f32 %v229, %v260
  %v270 = vadd.f32 %v230, %v262
  %271 = vset.pattern.permute.xlu0 28
  %272 = vperm.xlu0 %271, %v63
  %v273 = vpop.permute.xlu0 %272
  %275 = vset.pattern.permute.xlu0 28
  %276 = vperm.xlu0 %275, %v64
  %v277 = vpop.permute.xlu0 %276
  %279 = vset.pattern.permute.xlu0 28
  %280 = vperm.xlu0 %279, %v65
  %v281 = vpop.permute.xlu0 %280
  %283 = vset.pattern.permute.xlu0 28
  %284 = vperm.xlu0 %283, %v66
  %v285 = vpop.permute.xlu0 %284
  %v287 = vmul.f32 %v119, %v273
  %v288 = vmul.f32 %v120, %v277
  %v289 = vmul.f32 %v121, %v281
  %v290 = vmul.f32 %v122, %v285
  %295 = vrot.lane.b32.xlu0 %v287, 96
  %v296 = vpop.permute.xlu0 %295
  %297 = vrot.lane.b32.xlu0 %v288, 96
  %v298 = vpop.permute.xlu0 %297
  %299 = vrot.lane.b32.xlu0 %v289, 96
  %v300 = vpop.permute.xlu0 %299
  %301 = vrot.lane.b32.xlu0 %v290, 96
  %v302 = vpop.permute.xlu0 %301
  %v307 = vadd.f32 %v267, %v296
  %v308 = vadd.f32 %v268, %v298
  %v309 = vadd.f32 %v269, %v300
  %v310 = vadd.f32 %v270, %v302
  %311 = vset.pattern.permute.xlu0 35
  %312 = vperm.xlu0 %311, %v63
  %v313 = vpop.permute.xlu0 %312
  %315 = vset.pattern.permute.xlu0 35
  %316 = vperm.xlu0 %315, %v64
  %v317 = vpop.permute.xlu0 %316
  %319 = vset.pattern.permute.xlu0 35
  %320 = vperm.xlu0 %319, %v65
  %v321 = vpop.permute.xlu0 %320
  %323 = vset.pattern.permute.xlu0 35
  %324 = vperm.xlu0 %323, %v66
  %v325 = vpop.permute.xlu0 %324
  %v327 = vmul.f32 %v119, %v313
  %v328 = vmul.f32 %v120, %v317
  %v329 = vmul.f32 %v121, %v321
  %v330 = vmul.f32 %v122, %v325
  %335 = vrot.lane.b32.xlu0 %v327, 88
  %v336 = vpop.permute.xlu0 %335
  %337 = vrot.lane.b32.xlu0 %v328, 88
  %v338 = vpop.permute.xlu0 %337
  %339 = vrot.lane.b32.xlu0 %v329, 88
  %v340 = vpop.permute.xlu0 %339
  %341 = vrot.lane.b32.xlu0 %v330, 88
  %v342 = vpop.permute.xlu0 %341
  %v347 = vadd.f32 %v307, %v336
  %v348 = vadd.f32 %v308, %v338
  %v349 = vadd.f32 %v309, %v340
  %v350 = vadd.f32 %v310, %v342
  %351 = vset.pattern.permute.xlu0 42
  %352 = vperm.xlu0 %351, %v63
  %v353 = vpop.permute.xlu0 %352
  %355 = vset.pattern.permute.xlu0 42
  %356 = vperm.xlu0 %355, %v64
  %v357 = vpop.permute.xlu0 %356
  %359 = vset.pattern.permute.xlu0 42
  %360 = vperm.xlu0 %359, %v65
  %v361 = vpop.permute.xlu0 %360
  %363 = vset.pattern.permute.xlu0 42
  %364 = vperm.xlu0 %363, %v66
  %v365 = vpop.permute.xlu0 %364
  %v367 = vmul.f32 %v119, %v353
  %v368 = vmul.f32 %v120, %v357
  %v369 = vmul.f32 %v121, %v361
  %v370 = vmul.f32 %v122, %v365
  %375 = vrot.lane.b32.xlu0 %v367, 80
  %v376 = vpop.permute.xlu0 %375
  %377 = vrot.lane.b32.xlu0 %v368, 80
  %v378 = vpop.permute.xlu0 %377
  %379 = vrot.lane.b32.xlu0 %v369, 80
  %v380 = vpop.permute.xlu0 %379
  %381 = vrot.lane.b32.xlu0 %v370, 80
  %v382 = vpop.permute.xlu0 %381
  %v387 = vadd.f32 %v347, %v376
  %v388 = vadd.f32 %v348, %v378
  %v389 = vadd.f32 %v349, %v380
  %v390 = vadd.f32 %v350, %v382
  %v391 = vlaneseq
  %v392 = vshrl.u32 %v391, 7
  %v393 = vsub.s32 0, %v392
  %v394 = vrot.slane %v88, %v393
  %v395 = vmul.f32 %v387, %v394
  %v396 = vmul.f32 %v388, %v394
  %v397 = vmul.f32 %v389, %v394
  %v398 = vmul.f32 %v390, %v394
  %v399 = vadd.f32 %v395, 0.0
  %v400 = vadd.f32 %v396, 0.0
  %v401 = vadd.f32 %v397, 0.0
  %v402 = vadd.f32 %v398, 0.0
  %403 = vset.pattern.permute.xlu0 1
  %404 = vperm.xlu0 %403, %v63
  %v405 = vpop.permute.xlu0 %404
  %407 = vset.pattern.permute.xlu0 1
  %408 = vperm.xlu0 %407, %v64
  %v409 = vpop.permute.xlu0 %408
  %411 = vset.pattern.permute.xlu0 1
  %412 = vperm.xlu0 %411, %v65
  %v413 = vpop.permute.xlu0 %412
  %415 = vset.pattern.permute.xlu0 1
  %416 = vperm.xlu0 %415, %v66
  %v417 = vpop.permute.xlu0 %416
  %v419 = vmul.f32 %v119, %v405
  %v420 = vmul.f32 %v120, %v409
  %v421 = vmul.f32 %v121, %v413
  %v422 = vmul.f32 %v122, %v417
  %v423 = vadd.f32 %v419, 0.0
  %v424 = vadd.f32 %v420, 0.0
  %v425 = vadd.f32 %v421, 0.0
  %v426 = vadd.f32 %v422, 0.0
  %427 = vset.pattern.permute.xlu0 8
  %428 = vperm.xlu0 %427, %v63
  %v429 = vpop.permute.xlu0 %428
  %431 = vset.pattern.permute.xlu0 8
  %432 = vperm.xlu0 %431, %v64
  %v433 = vpop.permute.xlu0 %432
  %435 = vset.pattern.permute.xlu0 8
  %436 = vperm.xlu0 %435, %v65
  %v437 = vpop.permute.xlu0 %436
  %439 = vset.pattern.permute.xlu0 8
  %440 = vperm.xlu0 %439, %v66
  %v441 = vpop.permute.xlu0 %440
  %v443 = vmul.f32 %v119, %v429
  %v444 = vmul.f32 %v120, %v433
  %v445 = vmul.f32 %v121, %v437
  %v446 = vmul.f32 %v122, %v441
  %451 = vrot.lane.b32.xlu0 %v443, 120
  %v452 = vpop.permute.xlu0 %451
  %453 = vrot.lane.b32.xlu0 %v444, 120
  %v454 = vpop.permute.xlu0 %453
  %455 = vrot.lane.b32.xlu0 %v445, 120
  %v456 = vpop.permute.xlu0 %455
  %457 = vrot.lane.b32.xlu0 %v446, 120
  %v458 = vpop.permute.xlu0 %457
  %v463 = vadd.f32 %v423, %v452
  %v464 = vadd.f32 %v424, %v454
  %v465 = vadd.f32 %v425, %v456
  %v466 = vadd.f32 %v426, %v458
  %467 = vset.pattern.permute.xlu0 15
  %468 = vperm.xlu0 %467, %v63
  %v469 = vpop.permute.xlu0 %468
  %471 = vset.pattern.permute.xlu0 15
  %472 = vperm.xlu0 %471, %v64
  %v473 = vpop.permute.xlu0 %472
  %475 = vset.pattern.permute.xlu0 15
  %476 = vperm.xlu0 %475, %v65
  %v477 = vpop.permute.xlu0 %476
  %479 = vset.pattern.permute.xlu0 15
  %480 = vperm.xlu0 %479, %v66
  %v481 = vpop.permute.xlu0 %480
  %v483 = vmul.f32 %v119, %v469
  %v484 = vmul.f32 %v120, %v473
  %v485 = vmul.f32 %v121, %v477
  %v486 = vmul.f32 %v122, %v481
  %491 = vrot.lane.b32.xlu0 %v483, 112
  %v492 = vpop.permute.xlu0 %491
  %493 = vrot.lane.b32.xlu0 %v484, 112
  %v494 = vpop.permute.xlu0 %493
  %495 = vrot.lane.b32.xlu0 %v485, 112
  %v496 = vpop.permute.xlu0 %495
  %497 = vrot.lane.b32.xlu0 %v486, 112
  %v498 = vpop.permute.xlu0 %497
  %v503 = vadd.f32 %v463, %v492
  %v504 = vadd.f32 %v464, %v494
  %v505 = vadd.f32 %v465, %v496
  %v506 = vadd.f32 %v466, %v498
  %507 = vset.pattern.permute.xlu0 22
  %508 = vperm.xlu0 %507, %v63
  %v509 = vpop.permute.xlu0 %508
  %511 = vset.pattern.permute.xlu0 22
  %512 = vperm.xlu0 %511, %v64
  %v513 = vpop.permute.xlu0 %512
  %515 = vset.pattern.permute.xlu0 22
  %516 = vperm.xlu0 %515, %v65
  %v517 = vpop.permute.xlu0 %516
  %519 = vset.pattern.permute.xlu0 22
  %520 = vperm.xlu0 %519, %v66
  %v521 = vpop.permute.xlu0 %520
  %v523 = vmul.f32 %v119, %v509
  %v524 = vmul.f32 %v120, %v513
  %v525 = vmul.f32 %v121, %v517
  %v526 = vmul.f32 %v122, %v521
  %531 = vrot.lane.b32.xlu0 %v523, 104
  %v532 = vpop.permute.xlu0 %531
  %533 = vrot.lane.b32.xlu0 %v524, 104
  %v534 = vpop.permute.xlu0 %533
  %535 = vrot.lane.b32.xlu0 %v525, 104
  %v536 = vpop.permute.xlu0 %535
  %537 = vrot.lane.b32.xlu0 %v526, 104
  %v538 = vpop.permute.xlu0 %537
  %v543 = vadd.f32 %v503, %v532
  %v544 = vadd.f32 %v504, %v534
  %v545 = vadd.f32 %v505, %v536
  %v546 = vadd.f32 %v506, %v538
  %547 = vset.pattern.permute.xlu0 29
  %548 = vperm.xlu0 %547, %v63
  %v549 = vpop.permute.xlu0 %548
  %551 = vset.pattern.permute.xlu0 29
  %552 = vperm.xlu0 %551, %v64
  %v553 = vpop.permute.xlu0 %552
  %555 = vset.pattern.permute.xlu0 29
  %556 = vperm.xlu0 %555, %v65
  %v557 = vpop.permute.xlu0 %556
  %559 = vset.pattern.permute.xlu0 29
  %560 = vperm.xlu0 %559, %v66
  %v561 = vpop.permute.xlu0 %560
  %v563 = vmul.f32 %v119, %v549
  %v564 = vmul.f32 %v120, %v553
  %v565 = vmul.f32 %v121, %v557
  %v566 = vmul.f32 %v122, %v561
  %571 = vrot.lane.b32.xlu0 %v563, 96
  %v572 = vpop.permute.xlu0 %571
  %573 = vrot.lane.b32.xlu0 %v564, 96
  %v574 = vpop.permute.xlu0 %573
  %575 = vrot.lane.b32.xlu0 %v565, 96
  %v576 = vpop.permute.xlu0 %575
  %577 = vrot.lane.b32.xlu0 %v566, 96
  %v578 = vpop.permute.xlu0 %577
  %v583 = vadd.f32 %v543, %v572
  %v584 = vadd.f32 %v544, %v574
  %v585 = vadd.f32 %v545, %v576
  %v586 = vadd.f32 %v546, %v578
  %587 = vset.pattern.permute.xlu0 36
  %588 = vperm.xlu0 %587, %v63
  %v589 = vpop.permute.xlu0 %588
  %591 = vset.pattern.permute.xlu0 36
  %592 = vperm.xlu0 %591, %v64
  %v593 = vpop.permute.xlu0 %592
  %595 = vset.pattern.permute.xlu0 36
  %596 = vperm.xlu0 %595, %v65
  %v597 = vpop.permute.xlu0 %596
  %599 = vset.pattern.permute.xlu0 36
  %600 = vperm.xlu0 %599, %v66
  %v601 = vpop.permute.xlu0 %600
  %v603 = vmul.f32 %v119, %v589
  %v604 = vmul.f32 %v120, %v593
  %v605 = vmul.f32 %v121, %v597
  %v606 = vmul.f32 %v122, %v601
  %611 = vrot.lane.b32.xlu0 %v603, 88
  %v612 = vpop.permute.xlu0 %611
  %613 = vrot.lane.b32.xlu0 %v604, 88
  %v614 = vpop.permute.xlu0 %613
  %615 = vrot.lane.b32.xlu0 %v605, 88
  %v616 = vpop.permute.xlu0 %615
  %617 = vrot.lane.b32.xlu0 %v606, 88
  %v618 = vpop.permute.xlu0 %617
  %v623 = vadd.f32 %v583, %v612
  %v624 = vadd.f32 %v584, %v614
  %v625 = vadd.f32 %v585, %v616
  %v626 = vadd.f32 %v586, %v618
  %627 = vset.pattern.permute.xlu0 43
  %628 = vperm.xlu0 %627, %v63
  %v629 = vpop.permute.xlu0 %628
  %631 = vset.pattern.permute.xlu0 43
  %632 = vperm.xlu0 %631, %v64
  %v633 = vpop.permute.xlu0 %632
  %635 = vset.pattern.permute.xlu0 43
  %636 = vperm.xlu0 %635, %v65
  %v637 = vpop.permute.xlu0 %636
  %639 = vset.pattern.permute.xlu0 43
  %640 = vperm.xlu0 %639, %v66
  %v641 = vpop.permute.xlu0 %640
  %v643 = vmul.f32 %v119, %v629
  %v644 = vmul.f32 %v120, %v633
  %v645 = vmul.f32 %v121, %v637
  %v646 = vmul.f32 %v122, %v641
  %651 = vrot.lane.b32.xlu0 %v643, 80
  %v652 = vpop.permute.xlu0 %651
  %653 = vrot.lane.b32.xlu0 %v644, 80
  %v654 = vpop.permute.xlu0 %653
  %655 = vrot.lane.b32.xlu0 %v645, 80
  %v656 = vpop.permute.xlu0 %655
  %657 = vrot.lane.b32.xlu0 %v646, 80
  %v658 = vpop.permute.xlu0 %657
  %v663 = vadd.f32 %v623, %v652
  %v664 = vadd.f32 %v624, %v654
  %v665 = vadd.f32 %v625, %v656
  %v666 = vadd.f32 %v626, %v658
  %v667 = vlaneseq
  %v668 = vshrl.u32 %v667, 7
  %v669 = vsub.s32 0, %v668
  %v670 = vrot.slane %v89, %v669
  %672 = vrot.lane.b32.xlu0 %v670, 1
  %v673 = vpop.permute.xlu0 %672
  %v675 = vmul.f32 %v663, %v673
  %v676 = vmul.f32 %v664, %v673
  %v677 = vmul.f32 %v665, %v673
  %v678 = vmul.f32 %v666, %v673
  %683 = vrot.lane.b32.xlu0 %v675, 127
  %v684 = vpop.permute.xlu0 %683
  %685 = vrot.lane.b32.xlu0 %v676, 127
  %v686 = vpop.permute.xlu0 %685
  %687 = vrot.lane.b32.xlu0 %v677, 127
  %v688 = vpop.permute.xlu0 %687
  %689 = vrot.lane.b32.xlu0 %v678, 127
  %v690 = vpop.permute.xlu0 %689
  %v695 = vadd.f32 %v399, %v684
  %v696 = vadd.f32 %v400, %v686
  %v697 = vadd.f32 %v401, %v688
  %v698 = vadd.f32 %v402, %v690
  %699 = vset.pattern.permute.xlu0 2
  %700 = vperm.xlu0 %699, %v63
  %v701 = vpop.permute.xlu0 %700
  %703 = vset.pattern.permute.xlu0 2
  %704 = vperm.xlu0 %703, %v64
  %v705 = vpop.permute.xlu0 %704
  %707 = vset.pattern.permute.xlu0 2
  %708 = vperm.xlu0 %707, %v65
  %v709 = vpop.permute.xlu0 %708
  %711 = vset.pattern.permute.xlu0 2
  %712 = vperm.xlu0 %711, %v66
  %v713 = vpop.permute.xlu0 %712
  %v715 = vmul.f32 %v119, %v701
  %v716 = vmul.f32 %v120, %v705
  %v717 = vmul.f32 %v121, %v709
  %v718 = vmul.f32 %v122, %v713
  %v719 = vadd.f32 %v715, 0.0
  %v720 = vadd.f32 %v716, 0.0
  %v721 = vadd.f32 %v717, 0.0
  %v722 = vadd.f32 %v718, 0.0
  %723 = vset.pattern.permute.xlu0 9
  %724 = vperm.xlu0 %723, %v63
  %v725 = vpop.permute.xlu0 %724
  %727 = vset.pattern.permute.xlu0 9
  %728 = vperm.xlu0 %727, %v64
  %v729 = vpop.permute.xlu0 %728
  %731 = vset.pattern.permute.xlu0 9
  %732 = vperm.xlu0 %731, %v65
  %v733 = vpop.permute.xlu0 %732
  %735 = vset.pattern.permute.xlu0 9
  %736 = vperm.xlu0 %735, %v66
  %v737 = vpop.permute.xlu0 %736
  %v739 = vmul.f32 %v119, %v725
  %v740 = vmul.f32 %v120, %v729
  %v741 = vmul.f32 %v121, %v733
  %v742 = vmul.f32 %v122, %v737
  %747 = vrot.lane.b32.xlu0 %v739, 120
  %v748 = vpop.permute.xlu0 %747
  %749 = vrot.lane.b32.xlu0 %v740, 120
  %v750 = vpop.permute.xlu0 %749
  %751 = vrot.lane.b32.xlu0 %v741, 120
  %v752 = vpop.permute.xlu0 %751
  %753 = vrot.lane.b32.xlu0 %v742, 120
  %v754 = vpop.permute.xlu0 %753
  %v759 = vadd.f32 %v719, %v748
  %v760 = vadd.f32 %v720, %v750
  %v761 = vadd.f32 %v721, %v752
  %v762 = vadd.f32 %v722, %v754
  %763 = vset.pattern.permute.xlu0 16
  %764 = vperm.xlu0 %763, %v63
  %v765 = vpop.permute.xlu0 %764
  %767 = vset.pattern.permute.xlu0 16
  %768 = vperm.xlu0 %767, %v64
  %v769 = vpop.permute.xlu0 %768
  %771 = vset.pattern.permute.xlu0 16
  %772 = vperm.xlu0 %771, %v65
  %v773 = vpop.permute.xlu0 %772
  %775 = vset.pattern.permute.xlu0 16
  %776 = vperm.xlu0 %775, %v66
  %v777 = vpop.permute.xlu0 %776
  %v779 = vmul.f32 %v119, %v765
  %v780 = vmul.f32 %v120, %v769
  %v781 = vmul.f32 %v121, %v773
  %v782 = vmul.f32 %v122, %v777
  %787 = vrot.lane.b32.xlu0 %v779, 112
  %v788 = vpop.permute.xlu0 %787
  %789 = vrot.lane.b32.xlu0 %v780, 112
  %v790 = vpop.permute.xlu0 %789
  %791 = vrot.lane.b32.xlu0 %v781, 112
  %v792 = vpop.permute.xlu0 %791
  %793 = vrot.lane.b32.xlu0 %v782, 112
  %v794 = vpop.permute.xlu0 %793
  %v799 = vadd.f32 %v759, %v788
  %v800 = vadd.f32 %v760, %v790
  %v801 = vadd.f32 %v761, %v792
  %v802 = vadd.f32 %v762, %v794
  %803 = vset.pattern.permute.xlu0 23
  %804 = vperm.xlu0 %803, %v63
  %v805 = vpop.permute.xlu0 %804
  %807 = vset.pattern.permute.xlu0 23
  %808 = vperm.xlu0 %807, %v64
  %v809 = vpop.permute.xlu0 %808
  %811 = vset.pattern.permute.xlu0 23
  %812 = vperm.xlu0 %811, %v65
  %v813 = vpop.permute.xlu0 %812
  %815 = vset.pattern.permute.xlu0 23
  %816 = vperm.xlu0 %815, %v66
  %v817 = vpop.permute.xlu0 %816
  %v819 = vmul.f32 %v119, %v805
  %v820 = vmul.f32 %v120, %v809
  %v821 = vmul.f32 %v121, %v813
  %v822 = vmul.f32 %v122, %v817
  %827 = vrot.lane.b32.xlu0 %v819, 104
  %v828 = vpop.permute.xlu0 %827
  %829 = vrot.lane.b32.xlu0 %v820, 104
  %v830 = vpop.permute.xlu0 %829
  %831 = vrot.lane.b32.xlu0 %v821, 104
  %v832 = vpop.permute.xlu0 %831
  %833 = vrot.lane.b32.xlu0 %v822, 104
  %v834 = vpop.permute.xlu0 %833
  %v839 = vadd.f32 %v799, %v828
  %v840 = vadd.f32 %v800, %v830
  %v841 = vadd.f32 %v801, %v832
  %v842 = vadd.f32 %v802, %v834
  %843 = vset.pattern.permute.xlu0 30
  %844 = vperm.xlu0 %843, %v63
  %v845 = vpop.permute.xlu0 %844
  %847 = vset.pattern.permute.xlu0 30
  %848 = vperm.xlu0 %847, %v64
  %v849 = vpop.permute.xlu0 %848
  %851 = vset.pattern.permute.xlu0 30
  %852 = vperm.xlu0 %851, %v65
  %v853 = vpop.permute.xlu0 %852
  %855 = vset.pattern.permute.xlu0 30
  %856 = vperm.xlu0 %855, %v66
  %v857 = vpop.permute.xlu0 %856
  %v859 = vmul.f32 %v119, %v845
  %v860 = vmul.f32 %v120, %v849
  %v861 = vmul.f32 %v121, %v853
  %v862 = vmul.f32 %v122, %v857
  %867 = vrot.lane.b32.xlu0 %v859, 96
  %v868 = vpop.permute.xlu0 %867
  %869 = vrot.lane.b32.xlu0 %v860, 96
  %v870 = vpop.permute.xlu0 %869
  %871 = vrot.lane.b32.xlu0 %v861, 96
  %v872 = vpop.permute.xlu0 %871
  %873 = vrot.lane.b32.xlu0 %v862, 96
  %v874 = vpop.permute.xlu0 %873
  %v879 = vadd.f32 %v839, %v868
  %v880 = vadd.f32 %v840, %v870
  %v881 = vadd.f32 %v841, %v872
  %v882 = vadd.f32 %v842, %v874
  %883 = vset.pattern.permute.xlu0 37
  %884 = vperm.xlu0 %883, %v63
  %v885 = vpop.permute.xlu0 %884
  %887 = vset.pattern.permute.xlu0 37
  %888 = vperm.xlu0 %887, %v64
  %v889 = vpop.permute.xlu0 %888
  %891 = vset.pattern.permute.xlu0 37
  %892 = vperm.xlu0 %891, %v65
  %v893 = vpop.permute.xlu0 %892
  %895 = vset.pattern.permute.xlu0 37
  %896 = vperm.xlu0 %895, %v66
  %v897 = vpop.permute.xlu0 %896
  %v899 = vmul.f32 %v119, %v885
  %v900 = vmul.f32 %v120, %v889
  %v901 = vmul.f32 %v121, %v893
  %v902 = vmul.f32 %v122, %v897
  %907 = vrot.lane.b32.xlu0 %v899, 88
  %v908 = vpop.permute.xlu0 %907
  %909 = vrot.lane.b32.xlu0 %v900, 88
  %v910 = vpop.permute.xlu0 %909
  %911 = vrot.lane.b32.xlu0 %v901, 88
  %v912 = vpop.permute.xlu0 %911
  %913 = vrot.lane.b32.xlu0 %v902, 88
  %v914 = vpop.permute.xlu0 %913
  %v919 = vadd.f32 %v879, %v908
  %v920 = vadd.f32 %v880, %v910
  %v921 = vadd.f32 %v881, %v912
  %v922 = vadd.f32 %v882, %v914
  %923 = vset.pattern.permute.xlu0 44
  %924 = vperm.xlu0 %923, %v63
  %v925 = vpop.permute.xlu0 %924
  %927 = vset.pattern.permute.xlu0 44
  %928 = vperm.xlu0 %927, %v64
  %v929 = vpop.permute.xlu0 %928
  %931 = vset.pattern.permute.xlu0 44
  %932 = vperm.xlu0 %931, %v65
  %v933 = vpop.permute.xlu0 %932
  %935 = vset.pattern.permute.xlu0 44
  %936 = vperm.xlu0 %935, %v66
  %v937 = vpop.permute.xlu0 %936
  %v939 = vmul.f32 %v119, %v925
  %v940 = vmul.f32 %v120, %v929
  %v941 = vmul.f32 %v121, %v933
  %v942 = vmul.f32 %v122, %v937
  %947 = vrot.lane.b32.xlu0 %v939, 80
  %v948 = vpop.permute.xlu0 %947
  %949 = vrot.lane.b32.xlu0 %v940, 80
  %v950 = vpop.permute.xlu0 %949
  %951 = vrot.lane.b32.xlu0 %v941, 80
  %v952 = vpop.permute.xlu0 %951
  %953 = vrot.lane.b32.xlu0 %v942, 80
  %v954 = vpop.permute.xlu0 %953
  %v959 = vadd.f32 %v919, %v948
  %v960 = vadd.f32 %v920, %v950
  %v961 = vadd.f32 %v921, %v952
  %v962 = vadd.f32 %v922, %v954
  %v963 = vlaneseq
  %v964 = vshrl.u32 %v963, 7
  %v965 = vsub.s32 0, %v964
  %v966 = vrot.slane %v90, %v965
  %968 = vrot.lane.b32.xlu0 %v966, 2
  %v969 = vpop.permute.xlu0 %968
  %v971 = vmul.f32 %v959, %v969
  %v972 = vmul.f32 %v960, %v969
  %v973 = vmul.f32 %v961, %v969
  %v974 = vmul.f32 %v962, %v969
  %979 = vrot.lane.b32.xlu0 %v971, 126
  %v980 = vpop.permute.xlu0 %979
  %981 = vrot.lane.b32.xlu0 %v972, 126
  %v982 = vpop.permute.xlu0 %981
  %983 = vrot.lane.b32.xlu0 %v973, 126
  %v984 = vpop.permute.xlu0 %983
  %985 = vrot.lane.b32.xlu0 %v974, 126
  %v986 = vpop.permute.xlu0 %985
  %v991 = vadd.f32 %v695, %v980
  %v992 = vadd.f32 %v696, %v982
  %v993 = vadd.f32 %v697, %v984
  %v994 = vadd.f32 %v698, %v986
  %995 = vset.pattern.permute.xlu0 3
  %996 = vperm.xlu0 %995, %v63
  %v997 = vpop.permute.xlu0 %996
  %999 = vset.pattern.permute.xlu0 3
  %1000 = vperm.xlu0 %999, %v64
  %v1001 = vpop.permute.xlu0 %1000
  %1003 = vset.pattern.permute.xlu0 3
  %1004 = vperm.xlu0 %1003, %v65
  %v1005 = vpop.permute.xlu0 %1004
  %1007 = vset.pattern.permute.xlu0 3
  %1008 = vperm.xlu0 %1007, %v66
  %v1009 = vpop.permute.xlu0 %1008
  %v1011 = vmul.f32 %v119, %v997
  %v1012 = vmul.f32 %v120, %v1001
  %v1013 = vmul.f32 %v121, %v1005
  %v1014 = vmul.f32 %v122, %v1009
  %v1015 = vadd.f32 %v1011, 0.0
  %v1016 = vadd.f32 %v1012, 0.0
  %v1017 = vadd.f32 %v1013, 0.0
  %v1018 = vadd.f32 %v1014, 0.0
  %1019 = vset.pattern.permute.xlu0 10
  %1020 = vperm.xlu0 %1019, %v63
  %v1021 = vpop.permute.xlu0 %1020
  %1023 = vset.pattern.permute.xlu0 10
  %1024 = vperm.xlu0 %1023, %v64
  %v1025 = vpop.permute.xlu0 %1024
  %1027 = vset.pattern.permute.xlu0 10
  %1028 = vperm.xlu0 %1027, %v65
  %v1029 = vpop.permute.xlu0 %1028
  %1031 = vset.pattern.permute.xlu0 10
  %1032 = vperm.xlu0 %1031, %v66
  %v1033 = vpop.permute.xlu0 %1032
  %v1035 = vmul.f32 %v119, %v1021
  %v1036 = vmul.f32 %v120, %v1025
  %v1037 = vmul.f32 %v121, %v1029
  %v1038 = vmul.f32 %v122, %v1033
  %1043 = vrot.lane.b32.xlu0 %v1035, 120
  %v1044 = vpop.permute.xlu0 %1043
  %1045 = vrot.lane.b32.xlu0 %v1036, 120
  %v1046 = vpop.permute.xlu0 %1045
  %1047 = vrot.lane.b32.xlu0 %v1037, 120
  %v1048 = vpop.permute.xlu0 %1047
  %1049 = vrot.lane.b32.xlu0 %v1038, 120
  %v1050 = vpop.permute.xlu0 %1049
  %v1055 = vadd.f32 %v1015, %v1044
  %v1056 = vadd.f32 %v1016, %v1046
  %v1057 = vadd.f32 %v1017, %v1048
  %v1058 = vadd.f32 %v1018, %v1050
  %1059 = vset.pattern.permute.xlu0 17
  %1060 = vperm.xlu0 %1059, %v63
  %v1061 = vpop.permute.xlu0 %1060
  %1063 = vset.pattern.permute.xlu0 17
  %1064 = vperm.xlu0 %1063, %v64
  %v1065 = vpop.permute.xlu0 %1064
  %1067 = vset.pattern.permute.xlu0 17
  %1068 = vperm.xlu0 %1067, %v65
  %v1069 = vpop.permute.xlu0 %1068
  %1071 = vset.pattern.permute.xlu0 17
  %1072 = vperm.xlu0 %1071, %v66
  %v1073 = vpop.permute.xlu0 %1072
  %v1075 = vmul.f32 %v119, %v1061
  %v1076 = vmul.f32 %v120, %v1065
  %v1077 = vmul.f32 %v121, %v1069
  %v1078 = vmul.f32 %v122, %v1073
  %1083 = vrot.lane.b32.xlu0 %v1075, 112
  %v1084 = vpop.permute.xlu0 %1083
  %1085 = vrot.lane.b32.xlu0 %v1076, 112
  %v1086 = vpop.permute.xlu0 %1085
  %1087 = vrot.lane.b32.xlu0 %v1077, 112
  %v1088 = vpop.permute.xlu0 %1087
  %1089 = vrot.lane.b32.xlu0 %v1078, 112
  %v1090 = vpop.permute.xlu0 %1089
  %v1095 = vadd.f32 %v1055, %v1084
  %v1096 = vadd.f32 %v1056, %v1086
  %v1097 = vadd.f32 %v1057, %v1088
  %v1098 = vadd.f32 %v1058, %v1090
  %1099 = vset.pattern.permute.xlu0 24
  %1100 = vperm.xlu0 %1099, %v63
  %v1101 = vpop.permute.xlu0 %1100
  %1103 = vset.pattern.permute.xlu0 24
  %1104 = vperm.xlu0 %1103, %v64
  %v1105 = vpop.permute.xlu0 %1104
  %1107 = vset.pattern.permute.xlu0 24
  %1108 = vperm.xlu0 %1107, %v65
  %v1109 = vpop.permute.xlu0 %1108
  %1111 = vset.pattern.permute.xlu0 24
  %1112 = vperm.xlu0 %1111, %v66
  %v1113 = vpop.permute.xlu0 %1112
  %v1115 = vmul.f32 %v119, %v1101
  %v1116 = vmul.f32 %v120, %v1105
  %v1117 = vmul.f32 %v121, %v1109
  %v1118 = vmul.f32 %v122, %v1113
  %1123 = vrot.lane.b32.xlu0 %v1115, 104
  %v1124 = vpop.permute.xlu0 %1123
  %1125 = vrot.lane.b32.xlu0 %v1116, 104
  %v1126 = vpop.permute.xlu0 %1125
  %1127 = vrot.lane.b32.xlu0 %v1117, 104
  %v1128 = vpop.permute.xlu0 %1127
  %1129 = vrot.lane.b32.xlu0 %v1118, 104
  %v1130 = vpop.permute.xlu0 %1129
  %v1135 = vadd.f32 %v1095, %v1124
  %v1136 = vadd.f32 %v1096, %v1126
  %v1137 = vadd.f32 %v1097, %v1128
  %v1138 = vadd.f32 %v1098, %v1130
  %1139 = vset.pattern.permute.xlu0 31
  %1140 = vperm.xlu0 %1139, %v63
  %v1141 = vpop.permute.xlu0 %1140
  %1143 = vset.pattern.permute.xlu0 31
  %1144 = vperm.xlu0 %1143, %v64
  %v1145 = vpop.permute.xlu0 %1144
  %1147 = vset.pattern.permute.xlu0 31
  %1148 = vperm.xlu0 %1147, %v65
  %v1149 = vpop.permute.xlu0 %1148
  %1151 = vset.pattern.permute.xlu0 31
  %1152 = vperm.xlu0 %1151, %v66
  %v1153 = vpop.permute.xlu0 %1152
  %v1155 = vmul.f32 %v119, %v1141
  %v1156 = vmul.f32 %v120, %v1145
  %v1157 = vmul.f32 %v121, %v1149
  %v1158 = vmul.f32 %v122, %v1153
  %1163 = vrot.lane.b32.xlu0 %v1155, 96
  %v1164 = vpop.permute.xlu0 %1163
  %1165 = vrot.lane.b32.xlu0 %v1156, 96
  %v1166 = vpop.permute.xlu0 %1165
  %1167 = vrot.lane.b32.xlu0 %v1157, 96
  %v1168 = vpop.permute.xlu0 %1167
  %1169 = vrot.lane.b32.xlu0 %v1158, 96
  %v1170 = vpop.permute.xlu0 %1169
  %v1175 = vadd.f32 %v1135, %v1164
  %v1176 = vadd.f32 %v1136, %v1166
  %v1177 = vadd.f32 %v1137, %v1168
  %v1178 = vadd.f32 %v1138, %v1170
  %1179 = vset.pattern.permute.xlu0 38
  %1180 = vperm.xlu0 %1179, %v63
  %v1181 = vpop.permute.xlu0 %1180
  %1183 = vset.pattern.permute.xlu0 38
  %1184 = vperm.xlu0 %1183, %v64
  %v1185 = vpop.permute.xlu0 %1184
  %1187 = vset.pattern.permute.xlu0 38
  %1188 = vperm.xlu0 %1187, %v65
  %v1189 = vpop.permute.xlu0 %1188
  %1191 = vset.pattern.permute.xlu0 38
  %1192 = vperm.xlu0 %1191, %v66
  %v1193 = vpop.permute.xlu0 %1192
  %v1195 = vmul.f32 %v119, %v1181
  %v1196 = vmul.f32 %v120, %v1185
  %v1197 = vmul.f32 %v121, %v1189
  %v1198 = vmul.f32 %v122, %v1193
  %1203 = vrot.lane.b32.xlu0 %v1195, 88
  %v1204 = vpop.permute.xlu0 %1203
  %1205 = vrot.lane.b32.xlu0 %v1196, 88
  %v1206 = vpop.permute.xlu0 %1205
  %1207 = vrot.lane.b32.xlu0 %v1197, 88
  %v1208 = vpop.permute.xlu0 %1207
  %1209 = vrot.lane.b32.xlu0 %v1198, 88
  %v1210 = vpop.permute.xlu0 %1209
  %v1215 = vadd.f32 %v1175, %v1204
  %v1216 = vadd.f32 %v1176, %v1206
  %v1217 = vadd.f32 %v1177, %v1208
  %v1218 = vadd.f32 %v1178, %v1210
  %1219 = vset.pattern.permute.xlu0 45
  %1220 = vperm.xlu0 %1219, %v63
  %v1221 = vpop.permute.xlu0 %1220
  %1223 = vset.pattern.permute.xlu0 45
  %1224 = vperm.xlu0 %1223, %v64
  %v1225 = vpop.permute.xlu0 %1224
  %1227 = vset.pattern.permute.xlu0 45
  %1228 = vperm.xlu0 %1227, %v65
  %v1229 = vpop.permute.xlu0 %1228
  %1231 = vset.pattern.permute.xlu0 45
  %1232 = vperm.xlu0 %1231, %v66
  %v1233 = vpop.permute.xlu0 %1232
  %v1235 = vmul.f32 %v119, %v1221
  %v1236 = vmul.f32 %v120, %v1225
  %v1237 = vmul.f32 %v121, %v1229
  %v1238 = vmul.f32 %v122, %v1233
  %1243 = vrot.lane.b32.xlu0 %v1235, 80
  %v1244 = vpop.permute.xlu0 %1243
  %1245 = vrot.lane.b32.xlu0 %v1236, 80
  %v1246 = vpop.permute.xlu0 %1245
  %1247 = vrot.lane.b32.xlu0 %v1237, 80
  %v1248 = vpop.permute.xlu0 %1247
  %1249 = vrot.lane.b32.xlu0 %v1238, 80
  %v1250 = vpop.permute.xlu0 %1249
  %v1255 = vadd.f32 %v1215, %v1244
  %v1256 = vadd.f32 %v1216, %v1246
  %v1257 = vadd.f32 %v1217, %v1248
  %v1258 = vadd.f32 %v1218, %v1250
  %1263 = vrot.lane.b32.xlu0 %v1255, 125
  %v1264 = vpop.permute.xlu0 %1263
  %1265 = vrot.lane.b32.xlu0 %v1256, 125
  %v1266 = vpop.permute.xlu0 %1265
  %1267 = vrot.lane.b32.xlu0 %v1257, 125
  %v1268 = vpop.permute.xlu0 %1267
  %1269 = vrot.lane.b32.xlu0 %v1258, 125
  %v1270 = vpop.permute.xlu0 %1269
  %v1275 = vadd.f32 %v991, %v1264
  %v1276 = vadd.f32 %v992, %v1266
  %v1277 = vadd.f32 %v993, %v1268
  %v1278 = vadd.f32 %v994, %v1270
  %1279 = vset.pattern.permute.xlu0 4
  %1280 = vperm.xlu0 %1279, %v63
  %v1281 = vpop.permute.xlu0 %1280
  %1283 = vset.pattern.permute.xlu0 4
  %1284 = vperm.xlu0 %1283, %v64
  %v1285 = vpop.permute.xlu0 %1284
  %1287 = vset.pattern.permute.xlu0 4
  %1288 = vperm.xlu0 %1287, %v65
  %v1289 = vpop.permute.xlu0 %1288
  %1291 = vset.pattern.permute.xlu0 4
  %1292 = vperm.xlu0 %1291, %v66
  %v1293 = vpop.permute.xlu0 %1292
  %v1295 = vmul.f32 %v119, %v1281
  %v1296 = vmul.f32 %v120, %v1285
  %v1297 = vmul.f32 %v121, %v1289
  %v1298 = vmul.f32 %v122, %v1293
  %v1299 = vadd.f32 %v1295, 0.0
  %v1300 = vadd.f32 %v1296, 0.0
  %v1301 = vadd.f32 %v1297, 0.0
  %v1302 = vadd.f32 %v1298, 0.0
  %1303 = vset.pattern.permute.xlu0 11
  %1304 = vperm.xlu0 %1303, %v63
  %v1305 = vpop.permute.xlu0 %1304
  %1307 = vset.pattern.permute.xlu0 11
  %1308 = vperm.xlu0 %1307, %v64
  %v1309 = vpop.permute.xlu0 %1308
  %1311 = vset.pattern.permute.xlu0 11
  %1312 = vperm.xlu0 %1311, %v65
  %v1313 = vpop.permute.xlu0 %1312
  %1315 = vset.pattern.permute.xlu0 11
  %1316 = vperm.xlu0 %1315, %v66
  %v1317 = vpop.permute.xlu0 %1316
  %v1319 = vmul.f32 %v119, %v1305
  %v1320 = vmul.f32 %v120, %v1309
  %v1321 = vmul.f32 %v121, %v1313
  %v1322 = vmul.f32 %v122, %v1317
  %1327 = vrot.lane.b32.xlu0 %v1319, 120
  %v1328 = vpop.permute.xlu0 %1327
  %1329 = vrot.lane.b32.xlu0 %v1320, 120
  %v1330 = vpop.permute.xlu0 %1329
  %1331 = vrot.lane.b32.xlu0 %v1321, 120
  %v1332 = vpop.permute.xlu0 %1331
  %1333 = vrot.lane.b32.xlu0 %v1322, 120
  %v1334 = vpop.permute.xlu0 %1333
  %v1339 = vadd.f32 %v1299, %v1328
  %v1340 = vadd.f32 %v1300, %v1330
  %v1341 = vadd.f32 %v1301, %v1332
  %v1342 = vadd.f32 %v1302, %v1334
  %1343 = vset.pattern.permute.xlu0 18
  %1344 = vperm.xlu0 %1343, %v63
  %v1345 = vpop.permute.xlu0 %1344
  %1347 = vset.pattern.permute.xlu0 18
  %1348 = vperm.xlu0 %1347, %v64
  %v1349 = vpop.permute.xlu0 %1348
  %1351 = vset.pattern.permute.xlu0 18
  %1352 = vperm.xlu0 %1351, %v65
  %v1353 = vpop.permute.xlu0 %1352
  %1355 = vset.pattern.permute.xlu0 18
  %1356 = vperm.xlu0 %1355, %v66
  %v1357 = vpop.permute.xlu0 %1356
  %v1359 = vmul.f32 %v119, %v1345
  %v1360 = vmul.f32 %v120, %v1349
  %v1361 = vmul.f32 %v121, %v1353
  %v1362 = vmul.f32 %v122, %v1357
  %1367 = vrot.lane.b32.xlu0 %v1359, 112
  %v1368 = vpop.permute.xlu0 %1367
  %1369 = vrot.lane.b32.xlu0 %v1360, 112
  %v1370 = vpop.permute.xlu0 %1369
  %1371 = vrot.lane.b32.xlu0 %v1361, 112
  %v1372 = vpop.permute.xlu0 %1371
  %1373 = vrot.lane.b32.xlu0 %v1362, 112
  %v1374 = vpop.permute.xlu0 %1373
  %v1379 = vadd.f32 %v1339, %v1368
  %v1380 = vadd.f32 %v1340, %v1370
  %v1381 = vadd.f32 %v1341, %v1372
  %v1382 = vadd.f32 %v1342, %v1374
  %1383 = vset.pattern.permute.xlu0 25
  %1384 = vperm.xlu0 %1383, %v63
  %v1385 = vpop.permute.xlu0 %1384
  %1387 = vset.pattern.permute.xlu0 25
  %1388 = vperm.xlu0 %1387, %v64
  %v1389 = vpop.permute.xlu0 %1388
  %1391 = vset.pattern.permute.xlu0 25
  %1392 = vperm.xlu0 %1391, %v65
  %v1393 = vpop.permute.xlu0 %1392
  %1395 = vset.pattern.permute.xlu0 25
  %1396 = vperm.xlu0 %1395, %v66
  %v1397 = vpop.permute.xlu0 %1396
  %v1399 = vmul.f32 %v119, %v1385
  %v1400 = vmul.f32 %v120, %v1389
  %v1401 = vmul.f32 %v121, %v1393
  %v1402 = vmul.f32 %v122, %v1397
  %1407 = vrot.lane.b32.xlu0 %v1399, 104
  %v1408 = vpop.permute.xlu0 %1407
  %1409 = vrot.lane.b32.xlu0 %v1400, 104
  %v1410 = vpop.permute.xlu0 %1409
  %1411 = vrot.lane.b32.xlu0 %v1401, 104
  %v1412 = vpop.permute.xlu0 %1411
  %1413 = vrot.lane.b32.xlu0 %v1402, 104
  %v1414 = vpop.permute.xlu0 %1413
  %v1419 = vadd.f32 %v1379, %v1408
  %v1420 = vadd.f32 %v1380, %v1410
  %v1421 = vadd.f32 %v1381, %v1412
  %v1422 = vadd.f32 %v1382, %v1414
  %1423 = vset.pattern.permute.xlu0 32
  %1424 = vperm.xlu0 %1423, %v63
  %v1425 = vpop.permute.xlu0 %1424
  %1427 = vset.pattern.permute.xlu0 32
  %1428 = vperm.xlu0 %1427, %v64
  %v1429 = vpop.permute.xlu0 %1428
  %1431 = vset.pattern.permute.xlu0 32
  %1432 = vperm.xlu0 %1431, %v65
  %v1433 = vpop.permute.xlu0 %1432
  %1435 = vset.pattern.permute.xlu0 32
  %1436 = vperm.xlu0 %1435, %v66
  %v1437 = vpop.permute.xlu0 %1436
  %v1439 = vmul.f32 %v119, %v1425
  %v1440 = vmul.f32 %v120, %v1429
  %v1441 = vmul.f32 %v121, %v1433
  %v1442 = vmul.f32 %v122, %v1437
  %1447 = vrot.lane.b32.xlu0 %v1439, 96
  %v1448 = vpop.permute.xlu0 %1447
  %1449 = vrot.lane.b32.xlu0 %v1440, 96
  %v1450 = vpop.permute.xlu0 %1449
  %1451 = vrot.lane.b32.xlu0 %v1441, 96
  %v1452 = vpop.permute.xlu0 %1451
  %1453 = vrot.lane.b32.xlu0 %v1442, 96
  %v1454 = vpop.permute.xlu0 %1453
  %v1459 = vadd.f32 %v1419, %v1448
  %v1460 = vadd.f32 %v1420, %v1450
  %v1461 = vadd.f32 %v1421, %v1452
  %v1462 = vadd.f32 %v1422, %v1454
  %1463 = vset.pattern.permute.xlu0 39
  %1464 = vperm.xlu0 %1463, %v63
  %v1465 = vpop.permute.xlu0 %1464
  %1467 = vset.pattern.permute.xlu0 39
  %1468 = vperm.xlu0 %1467, %v64
  %v1469 = vpop.permute.xlu0 %1468
  %1471 = vset.pattern.permute.xlu0 39
  %1472 = vperm.xlu0 %1471, %v65
  %v1473 = vpop.permute.xlu0 %1472
  %1475 = vset.pattern.permute.xlu0 39
  %1476 = vperm.xlu0 %1475, %v66
  %v1477 = vpop.permute.xlu0 %1476
  %v1479 = vmul.f32 %v119, %v1465
  %v1480 = vmul.f32 %v120, %v1469
  %v1481 = vmul.f32 %v121, %v1473
  %v1482 = vmul.f32 %v122, %v1477
  %1487 = vrot.lane.b32.xlu0 %v1479, 88
  %v1488 = vpop.permute.xlu0 %1487
  %1489 = vrot.lane.b32.xlu0 %v1480, 88
  %v1490 = vpop.permute.xlu0 %1489
  %1491 = vrot.lane.b32.xlu0 %v1481, 88
  %v1492 = vpop.permute.xlu0 %1491
  %1493 = vrot.lane.b32.xlu0 %v1482, 88
  %v1494 = vpop.permute.xlu0 %1493
  %v1499 = vadd.f32 %v1459, %v1488
  %v1500 = vadd.f32 %v1460, %v1490
  %v1501 = vadd.f32 %v1461, %v1492
  %v1502 = vadd.f32 %v1462, %v1494
  %1503 = vset.pattern.permute.xlu0 46
  %1504 = vperm.xlu0 %1503, %v63
  %v1505 = vpop.permute.xlu0 %1504
  %1507 = vset.pattern.permute.xlu0 46
  %1508 = vperm.xlu0 %1507, %v64
  %v1509 = vpop.permute.xlu0 %1508
  %1511 = vset.pattern.permute.xlu0 46
  %1512 = vperm.xlu0 %1511, %v65
  %v1513 = vpop.permute.xlu0 %1512
  %1515 = vset.pattern.permute.xlu0 46
  %1516 = vperm.xlu0 %1515, %v66
  %v1517 = vpop.permute.xlu0 %1516
  %v1519 = vmul.f32 %v119, %v1505
  %v1520 = vmul.f32 %v120, %v1509
  %v1521 = vmul.f32 %v121, %v1513
  %v1522 = vmul.f32 %v122, %v1517
  %1527 = vrot.lane.b32.xlu0 %v1519, 80
  %v1528 = vpop.permute.xlu0 %1527
  %1529 = vrot.lane.b32.xlu0 %v1520, 80
  %v1530 = vpop.permute.xlu0 %1529
  %1531 = vrot.lane.b32.xlu0 %v1521, 80
  %v1532 = vpop.permute.xlu0 %1531
  %1533 = vrot.lane.b32.xlu0 %v1522, 80
  %v1534 = vpop.permute.xlu0 %1533
  %v1539 = vadd.f32 %v1499, %v1528
  %v1540 = vadd.f32 %v1500, %v1530
  %v1541 = vadd.f32 %v1501, %v1532
  %v1542 = vadd.f32 %v1502, %v1534
  %v1543 = vlaneseq
  %v1544 = vshrl.u32 %v1543, 7
  %v1545 = vsub.s32 0, %v1544
  %v1546 = vrot.slane %v91, %v1545
  %1548 = vrot.lane.b32.xlu0 %v1546, 4
  %v1549 = vpop.permute.xlu0 %1548
  %v1551 = vmul.f32 %v1539, %v1549
  %v1552 = vmul.f32 %v1540, %v1549
  %v1553 = vmul.f32 %v1541, %v1549
  %v1554 = vmul.f32 %v1542, %v1549
  %1559 = vrot.lane.b32.xlu0 %v1551, 124
  %v1560 = vpop.permute.xlu0 %1559
  %1561 = vrot.lane.b32.xlu0 %v1552, 124
  %v1562 = vpop.permute.xlu0 %1561
  %1563 = vrot.lane.b32.xlu0 %v1553, 124
  %v1564 = vpop.permute.xlu0 %1563
  %1565 = vrot.lane.b32.xlu0 %v1554, 124
  %v1566 = vpop.permute.xlu0 %1565
  %v1571 = vadd.f32 %v1275, %v1560
  %v1572 = vadd.f32 %v1276, %v1562
  %v1573 = vadd.f32 %v1277, %v1564
  %v1574 = vadd.f32 %v1278, %v1566
  %1575 = vset.pattern.permute.xlu0 5
  %1576 = vperm.xlu0 %1575, %v63
  %v1577 = vpop.permute.xlu0 %1576
  %1579 = vset.pattern.permute.xlu0 5
  %1580 = vperm.xlu0 %1579, %v64
  %v1581 = vpop.permute.xlu0 %1580
  %1583 = vset.pattern.permute.xlu0 5
  %1584 = vperm.xlu0 %1583, %v65
  %v1585 = vpop.permute.xlu0 %1584
  %1587 = vset.pattern.permute.xlu0 5
  %1588 = vperm.xlu0 %1587, %v66
  %v1589 = vpop.permute.xlu0 %1588
  %v1591 = vmul.f32 %v119, %v1577
  %v1592 = vmul.f32 %v120, %v1581
  %v1593 = vmul.f32 %v121, %v1585
  %v1594 = vmul.f32 %v122, %v1589
  %v1595 = vadd.f32 %v1591, 0.0
  %v1596 = vadd.f32 %v1592, 0.0
  %v1597 = vadd.f32 %v1593, 0.0
  %v1598 = vadd.f32 %v1594, 0.0
  %1599 = vset.pattern.permute.xlu0 12
  %1600 = vperm.xlu0 %1599, %v63
  %v1601 = vpop.permute.xlu0 %1600
  %1603 = vset.pattern.permute.xlu0 12
  %1604 = vperm.xlu0 %1603, %v64
  %v1605 = vpop.permute.xlu0 %1604
  %1607 = vset.pattern.permute.xlu0 12
  %1608 = vperm.xlu0 %1607, %v65
  %v1609 = vpop.permute.xlu0 %1608
  %1611 = vset.pattern.permute.xlu0 12
  %1612 = vperm.xlu0 %1611, %v66
  %v1613 = vpop.permute.xlu0 %1612
  %v1615 = vmul.f32 %v119, %v1601
  %v1616 = vmul.f32 %v120, %v1605
  %v1617 = vmul.f32 %v121, %v1609
  %v1618 = vmul.f32 %v122, %v1613
  %1623 = vrot.lane.b32.xlu0 %v1615, 120
  %v1624 = vpop.permute.xlu0 %1623
  %1625 = vrot.lane.b32.xlu0 %v1616, 120
  %v1626 = vpop.permute.xlu0 %1625
  %1627 = vrot.lane.b32.xlu0 %v1617, 120
  %v1628 = vpop.permute.xlu0 %1627
  %1629 = vrot.lane.b32.xlu0 %v1618, 120
  %v1630 = vpop.permute.xlu0 %1629
  %v1635 = vadd.f32 %v1595, %v1624
  %v1636 = vadd.f32 %v1596, %v1626
  %v1637 = vadd.f32 %v1597, %v1628
  %v1638 = vadd.f32 %v1598, %v1630
  %1639 = vset.pattern.permute.xlu0 19
  %1640 = vperm.xlu0 %1639, %v63
  %v1641 = vpop.permute.xlu0 %1640
  %1643 = vset.pattern.permute.xlu0 19
  %1644 = vperm.xlu0 %1643, %v64
  %v1645 = vpop.permute.xlu0 %1644
  %1647 = vset.pattern.permute.xlu0 19
  %1648 = vperm.xlu0 %1647, %v65
  %v1649 = vpop.permute.xlu0 %1648
  %1651 = vset.pattern.permute.xlu0 19
  %1652 = vperm.xlu0 %1651, %v66
  %v1653 = vpop.permute.xlu0 %1652
  %v1655 = vmul.f32 %v119, %v1641
  %v1656 = vmul.f32 %v120, %v1645
  %v1657 = vmul.f32 %v121, %v1649
  %v1658 = vmul.f32 %v122, %v1653
  %1663 = vrot.lane.b32.xlu0 %v1655, 112
  %v1664 = vpop.permute.xlu0 %1663
  %1665 = vrot.lane.b32.xlu0 %v1656, 112
  %v1666 = vpop.permute.xlu0 %1665
  %1667 = vrot.lane.b32.xlu0 %v1657, 112
  %v1668 = vpop.permute.xlu0 %1667
  %1669 = vrot.lane.b32.xlu0 %v1658, 112
  %v1670 = vpop.permute.xlu0 %1669
  %v1675 = vadd.f32 %v1635, %v1664
  %v1676 = vadd.f32 %v1636, %v1666
  %v1677 = vadd.f32 %v1637, %v1668
  %v1678 = vadd.f32 %v1638, %v1670
  %1679 = vset.pattern.permute.xlu0 26
  %1680 = vperm.xlu0 %1679, %v63
  %v1681 = vpop.permute.xlu0 %1680
  %1683 = vset.pattern.permute.xlu0 26
  %1684 = vperm.xlu0 %1683, %v64
  %v1685 = vpop.permute.xlu0 %1684
  %1687 = vset.pattern.permute.xlu0 26
  %1688 = vperm.xlu0 %1687, %v65
  %v1689 = vpop.permute.xlu0 %1688
  %1691 = vset.pattern.permute.xlu0 26
  %1692 = vperm.xlu0 %1691, %v66
  %v1693 = vpop.permute.xlu0 %1692
  %v1695 = vmul.f32 %v119, %v1681
  %v1696 = vmul.f32 %v120, %v1685
  %v1697 = vmul.f32 %v121, %v1689
  %v1698 = vmul.f32 %v122, %v1693
  %1703 = vrot.lane.b32.xlu0 %v1695, 104
  %v1704 = vpop.permute.xlu0 %1703
  %1705 = vrot.lane.b32.xlu0 %v1696, 104
  %v1706 = vpop.permute.xlu0 %1705
  %1707 = vrot.lane.b32.xlu0 %v1697, 104
  %v1708 = vpop.permute.xlu0 %1707
  %1709 = vrot.lane.b32.xlu0 %v1698, 104
  %v1710 = vpop.permute.xlu0 %1709
  %v1715 = vadd.f32 %v1675, %v1704
  %v1716 = vadd.f32 %v1676, %v1706
  %v1717 = vadd.f32 %v1677, %v1708
  %v1718 = vadd.f32 %v1678, %v1710
  %1719 = vset.pattern.permute.xlu0 33
  %1720 = vperm.xlu0 %1719, %v63
  %v1721 = vpop.permute.xlu0 %1720
  %1723 = vset.pattern.permute.xlu0 33
  %1724 = vperm.xlu0 %1723, %v64
  %v1725 = vpop.permute.xlu0 %1724
  %1727 = vset.pattern.permute.xlu0 33
  %1728 = vperm.xlu0 %1727, %v65
  %v1729 = vpop.permute.xlu0 %1728
  %1731 = vset.pattern.permute.xlu0 33
  %1732 = vperm.xlu0 %1731, %v66
  %v1733 = vpop.permute.xlu0 %1732
  %v1735 = vmul.f32 %v119, %v1721
  %v1736 = vmul.f32 %v120, %v1725
  %v1737 = vmul.f32 %v121, %v1729
  %v1738 = vmul.f32 %v122, %v1733
  %1743 = vrot.lane.b32.xlu0 %v1735, 96
  %v1744 = vpop.permute.xlu0 %1743
  %1745 = vrot.lane.b32.xlu0 %v1736, 96
  %v1746 = vpop.permute.xlu0 %1745
  %1747 = vrot.lane.b32.xlu0 %v1737, 96
  %v1748 = vpop.permute.xlu0 %1747
  %1749 = vrot.lane.b32.xlu0 %v1738, 96
  %v1750 = vpop.permute.xlu0 %1749
  %v1755 = vadd.f32 %v1715, %v1744
  %v1756 = vadd.f32 %v1716, %v1746
  %v1757 = vadd.f32 %v1717, %v1748
  %v1758 = vadd.f32 %v1718, %v1750
  %1759 = vset.pattern.permute.xlu0 40
  %1760 = vperm.xlu0 %1759, %v63
  %v1761 = vpop.permute.xlu0 %1760
  %1763 = vset.pattern.permute.xlu0 40
  %1764 = vperm.xlu0 %1763, %v64
  %v1765 = vpop.permute.xlu0 %1764
  %1767 = vset.pattern.permute.xlu0 40
  %1768 = vperm.xlu0 %1767, %v65
  %v1769 = vpop.permute.xlu0 %1768
  %1771 = vset.pattern.permute.xlu0 40
  %1772 = vperm.xlu0 %1771, %v66
  %v1773 = vpop.permute.xlu0 %1772
  %v1775 = vmul.f32 %v119, %v1761
  %v1776 = vmul.f32 %v120, %v1765
  %v1777 = vmul.f32 %v121, %v1769
  %v1778 = vmul.f32 %v122, %v1773
  %1783 = vrot.lane.b32.xlu0 %v1775, 88
  %v1784 = vpop.permute.xlu0 %1783
  %1785 = vrot.lane.b32.xlu0 %v1776, 88
  %v1786 = vpop.permute.xlu0 %1785
  %1787 = vrot.lane.b32.xlu0 %v1777, 88
  %v1788 = vpop.permute.xlu0 %1787
  %1789 = vrot.lane.b32.xlu0 %v1778, 88
  %v1790 = vpop.permute.xlu0 %1789
  %v1795 = vadd.f32 %v1755, %v1784
  %v1796 = vadd.f32 %v1756, %v1786
  %v1797 = vadd.f32 %v1757, %v1788
  %v1798 = vadd.f32 %v1758, %v1790
  %1799 = vset.pattern.permute.xlu0 47
  %1800 = vperm.xlu0 %1799, %v63
  %v1801 = vpop.permute.xlu0 %1800
  %1803 = vset.pattern.permute.xlu0 47
  %1804 = vperm.xlu0 %1803, %v64
  %v1805 = vpop.permute.xlu0 %1804
  %1807 = vset.pattern.permute.xlu0 47
  %1808 = vperm.xlu0 %1807, %v65
  %v1809 = vpop.permute.xlu0 %1808
  %1811 = vset.pattern.permute.xlu0 47
  %1812 = vperm.xlu0 %1811, %v66
  %v1813 = vpop.permute.xlu0 %1812
  %v1815 = vmul.f32 %v119, %v1801
  %v1816 = vmul.f32 %v120, %v1805
  %v1817 = vmul.f32 %v121, %v1809
  %v1818 = vmul.f32 %v122, %v1813
  %1823 = vrot.lane.b32.xlu0 %v1815, 80
  %v1824 = vpop.permute.xlu0 %1823
  %1825 = vrot.lane.b32.xlu0 %v1816, 80
  %v1826 = vpop.permute.xlu0 %1825
  %1827 = vrot.lane.b32.xlu0 %v1817, 80
  %v1828 = vpop.permute.xlu0 %1827
  %1829 = vrot.lane.b32.xlu0 %v1818, 80
  %v1830 = vpop.permute.xlu0 %1829
  %v1835 = vadd.f32 %v1795, %v1824
  %v1836 = vadd.f32 %v1796, %v1826
  %v1837 = vadd.f32 %v1797, %v1828
  %v1838 = vadd.f32 %v1798, %v1830
  %v1839 = vlaneseq
  %v1840 = vshrl.u32 %v1839, 7
  %v1841 = vsub.s32 0, %v1840
  %v1842 = vrot.slane %v92, %v1841
  %1844 = vrot.lane.b32.xlu0 %v1842, 5
  %v1845 = vpop.permute.xlu0 %1844
  %v1847 = vmul.f32 %v1835, %v1845
  %v1848 = vmul.f32 %v1836, %v1845
  %v1849 = vmul.f32 %v1837, %v1845
  %v1850 = vmul.f32 %v1838, %v1845
  %1855 = vrot.lane.b32.xlu0 %v1847, 123
  %v1856 = vpop.permute.xlu0 %1855
  %1857 = vrot.lane.b32.xlu0 %v1848, 123
  %v1858 = vpop.permute.xlu0 %1857
  %1859 = vrot.lane.b32.xlu0 %v1849, 123
  %v1860 = vpop.permute.xlu0 %1859
  %1861 = vrot.lane.b32.xlu0 %v1850, 123
  %v1862 = vpop.permute.xlu0 %1861
  %v1867 = vadd.f32 %v1571, %v1856
  %v1868 = vadd.f32 %v1572, %v1858
  %v1869 = vadd.f32 %v1573, %v1860
  %v1870 = vadd.f32 %v1574, %v1862
  %1871 = vset.pattern.permute.xlu0 6
  %1872 = vperm.xlu0 %1871, %v63
  %v1873 = vpop.permute.xlu0 %1872
  %1875 = vset.pattern.permute.xlu0 6
  %1876 = vperm.xlu0 %1875, %v64
  %v1877 = vpop.permute.xlu0 %1876
  %1879 = vset.pattern.permute.xlu0 6
  %1880 = vperm.xlu0 %1879, %v65
  %v1881 = vpop.permute.xlu0 %1880
  %1883 = vset.pattern.permute.xlu0 6
  %1884 = vperm.xlu0 %1883, %v66
  %v1885 = vpop.permute.xlu0 %1884
  %v1887 = vmul.f32 %v119, %v1873
  %v1888 = vmul.f32 %v120, %v1877
  %v1889 = vmul.f32 %v121, %v1881
  %v1890 = vmul.f32 %v122, %v1885
  %v1891 = vadd.f32 %v1887, 0.0
  %v1892 = vadd.f32 %v1888, 0.0
  %v1893 = vadd.f32 %v1889, 0.0
  %v1894 = vadd.f32 %v1890, 0.0
  %1895 = vset.pattern.permute.xlu0 13
  %1896 = vperm.xlu0 %1895, %v63
  %v1897 = vpop.permute.xlu0 %1896
  %1899 = vset.pattern.permute.xlu0 13
  %1900 = vperm.xlu0 %1899, %v64
  %v1901 = vpop.permute.xlu0 %1900
  %1903 = vset.pattern.permute.xlu0 13
  %1904 = vperm.xlu0 %1903, %v65
  %v1905 = vpop.permute.xlu0 %1904
  %1907 = vset.pattern.permute.xlu0 13
  %1908 = vperm.xlu0 %1907, %v66
  %v1909 = vpop.permute.xlu0 %1908
  %v1911 = vmul.f32 %v119, %v1897
  %v1912 = vmul.f32 %v120, %v1901
  %v1913 = vmul.f32 %v121, %v1905
  %v1914 = vmul.f32 %v122, %v1909
  %1919 = vrot.lane.b32.xlu0 %v1911, 120
  %v1920 = vpop.permute.xlu0 %1919
  %1921 = vrot.lane.b32.xlu0 %v1912, 120
  %v1922 = vpop.permute.xlu0 %1921
  %1923 = vrot.lane.b32.xlu0 %v1913, 120
  %v1924 = vpop.permute.xlu0 %1923
  %1925 = vrot.lane.b32.xlu0 %v1914, 120
  %v1926 = vpop.permute.xlu0 %1925
  %v1931 = vadd.f32 %v1891, %v1920
  %v1932 = vadd.f32 %v1892, %v1922
  %v1933 = vadd.f32 %v1893, %v1924
  %v1934 = vadd.f32 %v1894, %v1926
  %1935 = vset.pattern.permute.xlu0 20
  %1936 = vperm.xlu0 %1935, %v63
  %v1937 = vpop.permute.xlu0 %1936
  %1939 = vset.pattern.permute.xlu0 20
  %1940 = vperm.xlu0 %1939, %v64
  %v1941 = vpop.permute.xlu0 %1940
  %1943 = vset.pattern.permute.xlu0 20
  %1944 = vperm.xlu0 %1943, %v65
  %v1945 = vpop.permute.xlu0 %1944
  %1947 = vset.pattern.permute.xlu0 20
  %1948 = vperm.xlu0 %1947, %v66
  %v1949 = vpop.permute.xlu0 %1948
  %v1951 = vmul.f32 %v119, %v1937
  %v1952 = vmul.f32 %v120, %v1941
  %v1953 = vmul.f32 %v121, %v1945
  %v1954 = vmul.f32 %v122, %v1949
  %1959 = vrot.lane.b32.xlu0 %v1951, 112
  %v1960 = vpop.permute.xlu0 %1959
  %1961 = vrot.lane.b32.xlu0 %v1952, 112
  %v1962 = vpop.permute.xlu0 %1961
  %1963 = vrot.lane.b32.xlu0 %v1953, 112
  %v1964 = vpop.permute.xlu0 %1963
  %1965 = vrot.lane.b32.xlu0 %v1954, 112
  %v1966 = vpop.permute.xlu0 %1965
  %v1971 = vadd.f32 %v1931, %v1960
  %v1972 = vadd.f32 %v1932, %v1962
  %v1973 = vadd.f32 %v1933, %v1964
  %v1974 = vadd.f32 %v1934, %v1966
  %1975 = vset.pattern.permute.xlu0 27
  %1976 = vperm.xlu0 %1975, %v63
  %v1977 = vpop.permute.xlu0 %1976
  %1979 = vset.pattern.permute.xlu0 27
  %1980 = vperm.xlu0 %1979, %v64
  %v1981 = vpop.permute.xlu0 %1980
  %1983 = vset.pattern.permute.xlu0 27
  %1984 = vperm.xlu0 %1983, %v65
  %v1985 = vpop.permute.xlu0 %1984
  %1987 = vset.pattern.permute.xlu0 27
  %1988 = vperm.xlu0 %1987, %v66
  %v1989 = vpop.permute.xlu0 %1988
  %v1991 = vmul.f32 %v119, %v1977
  %v1992 = vmul.f32 %v120, %v1981
  %v1993 = vmul.f32 %v121, %v1985
  %v1994 = vmul.f32 %v122, %v1989
  %1999 = vrot.lane.b32.xlu0 %v1991, 104
  %v2000 = vpop.permute.xlu0 %1999
  %2001 = vrot.lane.b32.xlu0 %v1992, 104
  %v2002 = vpop.permute.xlu0 %2001
  %2003 = vrot.lane.b32.xlu0 %v1993, 104
  %v2004 = vpop.permute.xlu0 %2003
  %2005 = vrot.lane.b32.xlu0 %v1994, 104
  %v2006 = vpop.permute.xlu0 %2005
  %v2011 = vadd.f32 %v1971, %v2000
  %v2012 = vadd.f32 %v1972, %v2002
  %v2013 = vadd.f32 %v1973, %v2004
  %v2014 = vadd.f32 %v1974, %v2006
  %2015 = vset.pattern.permute.xlu0 34
  %2016 = vperm.xlu0 %2015, %v63
  %v2017 = vpop.permute.xlu0 %2016
  %2019 = vset.pattern.permute.xlu0 34
  %2020 = vperm.xlu0 %2019, %v64
  %v2021 = vpop.permute.xlu0 %2020
  %2023 = vset.pattern.permute.xlu0 34
  %2024 = vperm.xlu0 %2023, %v65
  %v2025 = vpop.permute.xlu0 %2024
  %2027 = vset.pattern.permute.xlu0 34
  %2028 = vperm.xlu0 %2027, %v66
  %v2029 = vpop.permute.xlu0 %2028
  %v2031 = vmul.f32 %v119, %v2017
  %v2032 = vmul.f32 %v120, %v2021
  %v2033 = vmul.f32 %v121, %v2025
  %v2034 = vmul.f32 %v122, %v2029
  %2039 = vrot.lane.b32.xlu0 %v2031, 96
  %v2040 = vpop.permute.xlu0 %2039
  %2041 = vrot.lane.b32.xlu0 %v2032, 96
  %v2042 = vpop.permute.xlu0 %2041
  %2043 = vrot.lane.b32.xlu0 %v2033, 96
  %v2044 = vpop.permute.xlu0 %2043
  %2045 = vrot.lane.b32.xlu0 %v2034, 96
  %v2046 = vpop.permute.xlu0 %2045
  %v2051 = vadd.f32 %v2011, %v2040
  %v2052 = vadd.f32 %v2012, %v2042
  %v2053 = vadd.f32 %v2013, %v2044
  %v2054 = vadd.f32 %v2014, %v2046
  %2055 = vset.pattern.permute.xlu0 41
  %2056 = vperm.xlu0 %2055, %v63
  %v2057 = vpop.permute.xlu0 %2056
  %2059 = vset.pattern.permute.xlu0 41
  %2060 = vperm.xlu0 %2059, %v64
  %v2061 = vpop.permute.xlu0 %2060
  %2063 = vset.pattern.permute.xlu0 41
  %2064 = vperm.xlu0 %2063, %v65
  %v2065 = vpop.permute.xlu0 %2064
  %2067 = vset.pattern.permute.xlu0 41
  %2068 = vperm.xlu0 %2067, %v66
  %v2069 = vpop.permute.xlu0 %2068
  %v2071 = vmul.f32 %v119, %v2057
  %v2072 = vmul.f32 %v120, %v2061
  %v2073 = vmul.f32 %v121, %v2065
  %v2074 = vmul.f32 %v122, %v2069
  %2079 = vrot.lane.b32.xlu0 %v2071, 88
  %v2080 = vpop.permute.xlu0 %2079
  %2081 = vrot.lane.b32.xlu0 %v2072, 88
  %v2082 = vpop.permute.xlu0 %2081
  %2083 = vrot.lane.b32.xlu0 %v2073, 88
  %v2084 = vpop.permute.xlu0 %2083
  %2085 = vrot.lane.b32.xlu0 %v2074, 88
  %v2086 = vpop.permute.xlu0 %2085
  %v2091 = vadd.f32 %v2051, %v2080
  %v2092 = vadd.f32 %v2052, %v2082
  %v2093 = vadd.f32 %v2053, %v2084
  %v2094 = vadd.f32 %v2054, %v2086
  %2095 = vset.pattern.permute.xlu0 48
  %2096 = vperm.xlu0 %2095, %v63
  %v2097 = vpop.permute.xlu0 %2096
  %2099 = vset.pattern.permute.xlu0 48
  %2100 = vperm.xlu0 %2099, %v64
  %v2101 = vpop.permute.xlu0 %2100
  %2103 = vset.pattern.permute.xlu0 48
  %2104 = vperm.xlu0 %2103, %v65
  %v2105 = vpop.permute.xlu0 %2104
  %2107 = vset.pattern.permute.xlu0 48
  %2108 = vperm.xlu0 %2107, %v66
  %v2109 = vpop.permute.xlu0 %2108
  %v2111 = vmul.f32 %v119, %v2097
  %v2112 = vmul.f32 %v120, %v2101
  %v2113 = vmul.f32 %v121, %v2105
  %v2114 = vmul.f32 %v122, %v2109
  %2119 = vrot.lane.b32.xlu0 %v2111, 80
  %v2120 = vpop.permute.xlu0 %2119
  %2121 = vrot.lane.b32.xlu0 %v2112, 80
  %v2122 = vpop.permute.xlu0 %2121
  %2123 = vrot.lane.b32.xlu0 %v2113, 80
  %v2124 = vpop.permute.xlu0 %2123
  %2125 = vrot.lane.b32.xlu0 %v2114, 80
  %v2126 = vpop.permute.xlu0 %2125
  %v2131 = vadd.f32 %v2091, %v2120
  %v2132 = vadd.f32 %v2092, %v2122
  %v2133 = vadd.f32 %v2093, %v2124
  %v2134 = vadd.f32 %v2094, %v2126
  %v2135 = vlaneseq
  %v2136 = vshrl.u32 %v2135, 7
  %v2137 = vsub.s32 0, %v2136
  %v2138 = vrot.slane %v93, %v2137
  %2140 = vrot.lane.b32.xlu0 %v2138, 6
  %v2141 = vpop.permute.xlu0 %2140
  %v2143 = vmul.f32 %v2131, %v2141
  %v2144 = vmul.f32 %v2132, %v2141
  %v2145 = vmul.f32 %v2133, %v2141
  %v2146 = vmul.f32 %v2134, %v2141
  %2151 = vrot.lane.b32.xlu0 %v2143, 122
  %v2152 = vpop.permute.xlu0 %2151
  %2153 = vrot.lane.b32.xlu0 %v2144, 122
  %v2154 = vpop.permute.xlu0 %2153
  %2155 = vrot.lane.b32.xlu0 %v2145, 122
  %v2156 = vpop.permute.xlu0 %2155
  %2157 = vrot.lane.b32.xlu0 %v2146, 122
  %v2158 = vpop.permute.xlu0 %2157
  %v2163 = vadd.f32 %v1867, %v2152
  %v2164 = vadd.f32 %v1868, %v2154
  %v2165 = vadd.f32 %v1869, %v2156
  %v2166 = vadd.f32 %v1870, %v2158
  %2168 = vset.pattern.permute.xlu0 0
  %2169 = vperm.xlu0 %2168, %v67
  %v2170 = vpop.permute.xlu0 %2169
  %2173 = vset.pattern.permute.xlu0 0
  %2174 = vperm.xlu0 %2173, %v68
  %v2175 = vpop.permute.xlu0 %2174
  %2178 = vset.pattern.permute.xlu0 0
  %2179 = vperm.xlu0 %2178, %v69
  %v2180 = vpop.permute.xlu0 %2179
  %2183 = vset.pattern.permute.xlu0 0
  %2184 = vperm.xlu0 %2183, %v70
  %v2185 = vpop.permute.xlu0 %2184
  %v2187 = vadd.f32 %v2163, %v2170
  %v2188 = vadd.f32 %v2164, %v2175
  %v2189 = vadd.f32 %v2165, %v2180
  %v2190 = vadd.f32 %v2166, %v2185
  %vm2191 = vcmask 523264
  %v2192 = vsel %vm2191, %v2187, 0.0
  %2193 = vadd.xlane.f32.xlu0 %v2192
  %v2194 = vpop.xlane.xlu0 %2193
  %v2195 = vsel %vm2191, %v2188, 0.0
  %2196 = vadd.xlane.f32.xlu0 %v2195
  %v2197 = vpop.xlane.xlu0 %2196
  %v2198 = vsel %vm2191, %v2189, 0.0
  %2199 = vadd.xlane.f32.xlu0 %v2198
  %v2200 = vpop.xlane.xlu0 %2199
  %v2201 = vsel %vm2191, %v2190, 0.0
  %2202 = vadd.xlane.f32.xlu0 %v2201
  %v2203 = vpop.xlane.xlu0 %2202
  %v2204 = vrcp.pop 64.0
  %v2205 = vmul.f32 %v2194, %v2204
  %v2206 = vmul.f32 %v2197, %v2204
  %v2207 = vmul.f32 %v2200, %v2204
  %v2208 = vmul.f32 %v2203, %v2204
  %v2209 = vsel %vm2191, %v2187, -inf
  %2210 = vmax.xlane.f32.xlu0 %v2209
  %v2211 = vpop.xlane.xlu0 %2210
  %v2212 = vsel %vm2191, %v2188, -inf
  %2213 = vmax.xlane.f32.xlu0 %v2212
  %v2214 = vpop.xlane.xlu0 %2213
  %v2215 = vsel %vm2191, %v2189, -inf
  %2216 = vmax.xlane.f32.xlu0 %v2215
  %v2217 = vpop.xlane.xlu0 %2216
  %v2218 = vsel %vm2191, %v2190, -inf
  %2219 = vmax.xlane.f32.xlu0 %v2218
  %v2220 = vpop.xlane.xlu0 %2219
  %v2221 = vmul.f32 %v2205, %v71
  %v2222 = vmul.f32 %v2206, %v72
  %v2223 = vmul.f32 %v2207, %v73
  %v2224 = vmul.f32 %v2208, %v74
  %vm2225 = vcmask 15360
  %v2226 = vsel %vm2225, %v2221, 0.0
  %v2227 = vsel %vm2225, %v2222, 0.0
  %v2228 = vadd.f32 %v2226, %v2227
  %v2229 = vsel %vm2225, %v2223, 0.0
  %v2230 = vadd.f32 %v2228, %v2229
  %v2231 = vsel %vm2225, %v2224, 0.0
  %v2232 = vadd.f32 %v2230, %v2231
  %v2233 = vrot.slane %v2232, 4
  %v2234 = vadd.f32 %v2232, %v2233
  %v2235 = vrot.slane %v2234, 2
  %v2236 = vadd.f32 %v2234, %v2235
  %v2237 = vrot.slane %v2236, 1
  %v2238 = vadd.f32 %v2236, %v2237
  %v2239 = vmax.f32 %v2238, 0.0
  %v2240 = vmul.f32 %v2211, %v71
  %v2241 = vmul.f32 %v2214, %v72
  %v2242 = vmul.f32 %v2217, %v73
  %v2243 = vmul.f32 %v2220, %v74
  %v2244 = vsel %vm2225, %v2240, 0.0
  %v2245 = vsel %vm2225, %v2241, 0.0
  %v2246 = vadd.f32 %v2244, %v2245
  %v2247 = vsel %vm2225, %v2242, 0.0
  %v2248 = vadd.f32 %v2246, %v2247
  %v2249 = vsel %vm2225, %v2243, 0.0
  %v2250 = vadd.f32 %v2248, %v2249
  %v2251 = vrot.slane %v2250, 4
  %v2252 = vadd.f32 %v2250, %v2251
  %v2253 = vrot.slane %v2252, 2
  %v2254 = vadd.f32 %v2252, %v2253
  %v2255 = vrot.slane %v2254, 1
  %v2256 = vadd.f32 %v2254, %v2255
  %v2257 = vmax.f32 %v2256, 0.0
  %v2258 = vadd.f32 %v2239, %v2257
  %v2259 = vmul.f32 %v75, %v2258
  %v2260 = vmul.f32 %v76, %v2258
  %v2261 = vmul.f32 %v77, %v2258
  %v2262 = vmul.f32 %v78, %v2258
  %v2263 = vsel %vm2225, %v2259, 0.0
  %2264 = vadd.xlane.f32.xlu0 %v2263
  %v2265 = vpop.xlane.xlu0 %2264
  %v2266 = vsel %vm2225, %v2260, 0.0
  %2267 = vadd.xlane.f32.xlu0 %v2266
  %v2268 = vpop.xlane.xlu0 %2267
  %v2269 = vsel %vm2225, %v2261, 0.0
  %2270 = vadd.xlane.f32.xlu0 %v2269
  %v2271 = vpop.xlane.xlu0 %2270
  %v2272 = vsel %vm2225, %v2262, 0.0
  %2273 = vadd.xlane.f32.xlu0 %v2272
  %v2274 = vpop.xlane.xlu0 %2273
  %v2275 = vxor.u32 %v2265, 2147483648
  %v2276 = vxor.u32 %v2268, 2147483648
  %v2277 = vxor.u32 %v2271, 2147483648
  %v2278 = vxor.u32 %v2274, 2147483648
  %v2279 = vmul.f32 %v2275, 1.442695
  %v2280 = vpow.pop %v2279
  %v2281 = vmul.f32 %v2276, 1.442695
  %v2282 = vpow.pop %v2281
  %v2283 = vmul.f32 %v2277, 1.442695
  %v2284 = vpow.pop %v2283
  %v2285 = vmul.f32 %v2278, 1.442695
  %v2286 = vpow.pop %v2285
  %v2287 = vadd.f32 %v2280, 1.0
  %v2288 = vadd.f32 %v2282, 1.0
  %v2289 = vadd.f32 %v2284, 1.0
  %v2290 = vadd.f32 %v2286, 1.0
  %v2291 = vrcp.pop %v2287
  %v2292 = vmul.f32 1.0, %v2291
  %v2293 = vrcp.pop %v2288
  %v2294 = vmul.f32 1.0, %v2293
  %v2295 = vrcp.pop %v2289
  %v2296 = vmul.f32 1.0, %v2295
  %v2297 = vrcp.pop %v2290
  %v2298 = vmul.f32 1.0, %v2297
  %v2299 = vmul.f32 %v2187, %v2292
  %v2300 = vmul.f32 %v2188, %v2294
  %v2301 = vmul.f32 %v2189, %v2296
  %v2302 = vmul.f32 %v2190, %v2298
  %v2303 = vsel %vm2191, %v2299, 0.0
  %v2304 = vsel %vm2191, %v2300, 0.0
  %v2305 = vadd.f32 %v2303, %v2304
  %v2306 = vsel %vm2191, %v2301, 0.0
  %v2307 = vadd.f32 %v2305, %v2306
  %v2308 = vsel %vm2191, %v2302, 0.0
  %v2309 = vadd.f32 %v2307, %v2308
  %v2310 = vrot.slane %v2309, 4
  %v2311 = vadd.f32 %v2309, %v2310
  %v2312 = vrot.slane %v2311, 2
  %v2313 = vadd.f32 %v2311, %v2312
  %v2314 = vrot.slane %v2313, 1
  %v2315 = vadd.f32 %v2313, %v2314
  %v2316 = vrcp.pop 32.0
  %v2317 = vmul.f32 %v2315, %v2316
  %v2320 = vunpack.c.l.s4 1983009808
  %v2321 = vunpack.c.0.s8 %v2320
  %v2322 = vlaneseq
  %v2323 = vshrl.u32 %v2322, 7
  %v2324 = vsub.s32 %v2321, %v2323
  %v2325 = vrot.slane %v2317, %v2324
  %2326 = vrot.lane.b32.xlu0 %v2325, 27
  %v2327 = vpop.permute.xlu0 %2326
  %vm2329 = vcmask 737496
  %2330 = vst.msk [vmem:[#allocation3] sm:$0x1] %vm2329, %v2327
  %v2331 = vsel %vm2191, %v2299, -inf
  %v2332 = vsel %vm2191, %v2300, -inf
  %v2333 = vsel %vm2191, %v2301, -inf
  %v2334 = vsel %vm2191, %v2302, -inf
  %v2335 = vmax.f32 %v2331, %v2332
  %v2336 = vmax.f32 %v2333, %v2334
  %v2337 = vmax.f32 %v2335, %v2336
  %v2338 = vrot.slane %v2337, 4
  %v2339 = vmax.f32 %v2337, %v2338
  %v2340 = vrot.slane %v2339, 2
  %v2341 = vmax.f32 %v2339, %v2340
  %v2342 = vrot.slane %v2341, 1
  %v2343 = vmax.f32 %v2341, %v2342
  %v2346 = vunpack.c.l.s4 1983009808
  %v2347 = vunpack.c.0.s8 %v2346
  %v2348 = vlaneseq
  %v2349 = vshrl.u32 %v2348, 7
  %v2350 = vsub.s32 %v2347, %v2349
  %v2351 = vrot.slane %v2343, %v2350
  %2352 = vrot.lane.b32.xlu0 %v2351, 27
  %v2353 = vpop.permute.xlu0 %2352
  %2355 = vst.msk [vmem:[#allocation3 + $0x1] sm:$0x1] %vm2329, %v2353
  %v2356 = vld [vmem:[#allocation3] sm:$0x3]
  %2358 = vset.pattern.permute.xlu0 0
  %2359 = vperm.xlu0 %2358, %v79
  %v2360 = vpop.permute.xlu0 %2359
  %v2362 = vmul.f32 %v2356, %v2360
  %v2363 = vadd.f32 %v2362, 0.0
  %2364 = vset.pattern.permute.xlu0 7
  %2365 = vperm.xlu0 %2364, %v79
  %v2366 = vpop.permute.xlu0 %2365
  %v2368 = vmul.f32 %v2356, %v2366
  %2370 = vrot.lane.b32.xlu0 %v2368, 120
  %v2371 = vpop.permute.xlu0 %2370
  %v2373 = vadd.f32 %v2363, %v2371
  %2374 = vset.pattern.permute.xlu0 14
  %2375 = vperm.xlu0 %2374, %v79
  %v2376 = vpop.permute.xlu0 %2375
  %v2378 = vmul.f32 %v2356, %v2376
  %2380 = vrot.lane.b32.xlu0 %v2378, 112
  %v2381 = vpop.permute.xlu0 %2380
  %v2383 = vadd.f32 %v2373, %v2381
  %2384 = vset.pattern.permute.xlu0 21
  %2385 = vperm.xlu0 %2384, %v79
  %v2386 = vpop.permute.xlu0 %2385
  %v2388 = vmul.f32 %v2356, %v2386
  %2390 = vrot.lane.b32.xlu0 %v2388, 104
  %v2391 = vpop.permute.xlu0 %2390
  %v2393 = vadd.f32 %v2383, %v2391
  %2394 = vset.pattern.permute.xlu0 28
  %2395 = vperm.xlu0 %2394, %v79
  %v2396 = vpop.permute.xlu0 %2395
  %v2398 = vmul.f32 %v2356, %v2396
  %2400 = vrot.lane.b32.xlu0 %v2398, 96
  %v2401 = vpop.permute.xlu0 %2400
  %v2403 = vadd.f32 %v2393, %v2401
  %2404 = vset.pattern.permute.xlu0 35
  %2405 = vperm.xlu0 %2404, %v79
  %v2406 = vpop.permute.xlu0 %2405
  %v2408 = vmul.f32 %v2356, %v2406
  %2410 = vrot.lane.b32.xlu0 %v2408, 88
  %v2411 = vpop.permute.xlu0 %2410
  %v2413 = vadd.f32 %v2403, %v2411
  %2414 = vset.pattern.permute.xlu0 42
  %2415 = vperm.xlu0 %2414, %v79
  %v2416 = vpop.permute.xlu0 %2415
  %v2418 = vmul.f32 %v2356, %v2416
  %2420 = vrot.lane.b32.xlu0 %v2418, 80
  %v2421 = vpop.permute.xlu0 %2420
  %v2423 = vadd.f32 %v2413, %v2421
  %v2424 = vmul.f32 %v2423, %v394
  %v2425 = vadd.f32 %v2424, 0.0
  %2426 = vset.pattern.permute.xlu0 1
  %2427 = vperm.xlu0 %2426, %v79
  %v2428 = vpop.permute.xlu0 %2427
  %v2430 = vmul.f32 %v2356, %v2428
  %v2431 = vadd.f32 %v2430, 0.0
  %2432 = vset.pattern.permute.xlu0 8
  %2433 = vperm.xlu0 %2432, %v79
  %v2434 = vpop.permute.xlu0 %2433
  %v2436 = vmul.f32 %v2356, %v2434
  %2438 = vrot.lane.b32.xlu0 %v2436, 120
  %v2439 = vpop.permute.xlu0 %2438
  %v2441 = vadd.f32 %v2431, %v2439
  %2442 = vset.pattern.permute.xlu0 15
  %2443 = vperm.xlu0 %2442, %v79
  %v2444 = vpop.permute.xlu0 %2443
  %v2446 = vmul.f32 %v2356, %v2444
  %2448 = vrot.lane.b32.xlu0 %v2446, 112
  %v2449 = vpop.permute.xlu0 %2448
  %v2451 = vadd.f32 %v2441, %v2449
  %2452 = vset.pattern.permute.xlu0 22
  %2453 = vperm.xlu0 %2452, %v79
  %v2454 = vpop.permute.xlu0 %2453
  %v2456 = vmul.f32 %v2356, %v2454
  %2458 = vrot.lane.b32.xlu0 %v2456, 104
  %v2459 = vpop.permute.xlu0 %2458
  %v2461 = vadd.f32 %v2451, %v2459
  %2462 = vset.pattern.permute.xlu0 29
  %2463 = vperm.xlu0 %2462, %v79
  %v2464 = vpop.permute.xlu0 %2463
  %v2466 = vmul.f32 %v2356, %v2464
  %2468 = vrot.lane.b32.xlu0 %v2466, 96
  %v2469 = vpop.permute.xlu0 %2468
  %v2471 = vadd.f32 %v2461, %v2469
  %2472 = vset.pattern.permute.xlu0 36
  %2473 = vperm.xlu0 %2472, %v79
  %v2474 = vpop.permute.xlu0 %2473
  %v2476 = vmul.f32 %v2356, %v2474
  %2478 = vrot.lane.b32.xlu0 %v2476, 88
  %v2479 = vpop.permute.xlu0 %2478
  %v2481 = vadd.f32 %v2471, %v2479
  %2482 = vset.pattern.permute.xlu0 43
  %2483 = vperm.xlu0 %2482, %v79
  %v2484 = vpop.permute.xlu0 %2483
  %v2486 = vmul.f32 %v2356, %v2484
  %2488 = vrot.lane.b32.xlu0 %v2486, 80
  %v2489 = vpop.permute.xlu0 %2488
  %v2491 = vadd.f32 %v2481, %v2489
  %v2493 = vunpack.c.l.s4 1983009808
  %v2494 = vunpack.c.0.s8 %v2493
  %v2495 = vlaneseq
  %v2496 = vshrl.u32 %v2495, 7
  %v2497 = vsub.s32 %v2494, %v2496
  %v2498 = vrot.slane %v670, %v2497
  %2499 = vrot.lane.b32.xlu0 %v2498, 1
  %v2500 = vpop.permute.xlu0 %2499
  %v2502 = vmul.f32 %v2491, %v2500
  %2504 = vrot.lane.b32.xlu0 %v2502, 127
  %v2505 = vpop.permute.xlu0 %2504
  %v2507 = vadd.f32 %v2425, %v2505
  %v2508 = vld [vmem:[#allocation3] sm:$0x3]
  %2509 = vset.pattern.permute.xlu0 2
  %2510 = vperm.xlu0 %2509, %v79
  %v2511 = vpop.permute.xlu0 %2510
  %v2513 = vmul.f32 %v2508, %v2511
  %v2514 = vadd.f32 %v2513, 0.0
  %2515 = vset.pattern.permute.xlu0 9
  %2516 = vperm.xlu0 %2515, %v79
  %v2517 = vpop.permute.xlu0 %2516
  %v2519 = vmul.f32 %v2508, %v2517
  %2521 = vrot.lane.b32.xlu0 %v2519, 120
  %v2522 = vpop.permute.xlu0 %2521
  %v2524 = vadd.f32 %v2514, %v2522
  %2525 = vset.pattern.permute.xlu0 16
  %2526 = vperm.xlu0 %2525, %v79
  %v2527 = vpop.permute.xlu0 %2526
  %v2529 = vmul.f32 %v2508, %v2527
  %2531 = vrot.lane.b32.xlu0 %v2529, 112
  %v2532 = vpop.permute.xlu0 %2531
  %v2534 = vadd.f32 %v2524, %v2532
  %2535 = vset.pattern.permute.xlu0 23
  %2536 = vperm.xlu0 %2535, %v79
  %v2537 = vpop.permute.xlu0 %2536
  %v2539 = vmul.f32 %v2508, %v2537
  %2541 = vrot.lane.b32.xlu0 %v2539, 104
  %v2542 = vpop.permute.xlu0 %2541
  %v2544 = vadd.f32 %v2534, %v2542
  %2545 = vset.pattern.permute.xlu0 30
  %2546 = vperm.xlu0 %2545, %v79
  %v2547 = vpop.permute.xlu0 %2546
  %v2549 = vmul.f32 %v2508, %v2547
  %2551 = vrot.lane.b32.xlu0 %v2549, 96
  %v2552 = vpop.permute.xlu0 %2551
  %v2554 = vadd.f32 %v2544, %v2552
  %2555 = vset.pattern.permute.xlu0 37
  %2556 = vperm.xlu0 %2555, %v79
  %v2557 = vpop.permute.xlu0 %2556
  %v2559 = vmul.f32 %v2508, %v2557
  %2561 = vrot.lane.b32.xlu0 %v2559, 88
  %v2562 = vpop.permute.xlu0 %2561
  %v2564 = vadd.f32 %v2554, %v2562
  %2565 = vset.pattern.permute.xlu0 44
  %2566 = vperm.xlu0 %2565, %v79
  %v2567 = vpop.permute.xlu0 %2566
  %v2569 = vmul.f32 %v2508, %v2567
  %2571 = vrot.lane.b32.xlu0 %v2569, 80
  %v2572 = vpop.permute.xlu0 %2571
  %v2574 = vadd.f32 %v2564, %v2572
  %v2576 = vunpack.c.l.s4 1983009808
  %v2577 = vunpack.c.0.s8 %v2576
  %v2578 = vlaneseq
  %v2579 = vshrl.u32 %v2578, 7
  %v2580 = vsub.s32 %v2577, %v2579
  %v2581 = vrot.slane %v966, %v2580
  %2582 = vrot.lane.b32.xlu0 %v2581, 2
  %v2583 = vpop.permute.xlu0 %2582
  %v2585 = vmul.f32 %v2574, %v2583
  %2587 = vrot.lane.b32.xlu0 %v2585, 126
  %v2588 = vpop.permute.xlu0 %2587
  %v2590 = vadd.f32 %v2507, %v2588
  %v2591 = vld [vmem:[#allocation3] sm:$0x3]
  %2592 = vset.pattern.permute.xlu0 3
  %2593 = vperm.xlu0 %2592, %v79
  %v2594 = vpop.permute.xlu0 %2593
  %v2596 = vmul.f32 %v2591, %v2594
  %v2597 = vadd.f32 %v2596, 0.0
  %2598 = vset.pattern.permute.xlu0 10
  %2599 = vperm.xlu0 %2598, %v79
  %v2600 = vpop.permute.xlu0 %2599
  %v2602 = vmul.f32 %v2591, %v2600
  %2604 = vrot.lane.b32.xlu0 %v2602, 120
  %v2605 = vpop.permute.xlu0 %2604
  %v2607 = vadd.f32 %v2597, %v2605
  %2608 = vset.pattern.permute.xlu0 17
  %2609 = vperm.xlu0 %2608, %v79
  %v2610 = vpop.permute.xlu0 %2609
  %v2612 = vmul.f32 %v2591, %v2610
  %2614 = vrot.lane.b32.xlu0 %v2612, 112
  %v2615 = vpop.permute.xlu0 %2614
  %v2617 = vadd.f32 %v2607, %v2615
  %2618 = vset.pattern.permute.xlu0 24
  %2619 = vperm.xlu0 %2618, %v79
  %v2620 = vpop.permute.xlu0 %2619
  %v2622 = vmul.f32 %v2591, %v2620
  %2624 = vrot.lane.b32.xlu0 %v2622, 104
  %v2625 = vpop.permute.xlu0 %2624
  %v2627 = vadd.f32 %v2617, %v2625
  %2628 = vset.pattern.permute.xlu0 31
  %2629 = vperm.xlu0 %2628, %v79
  %v2630 = vpop.permute.xlu0 %2629
  %v2632 = vmul.f32 %v2591, %v2630
  %2634 = vrot.lane.b32.xlu0 %v2632, 96
  %v2635 = vpop.permute.xlu0 %2634
  %v2637 = vadd.f32 %v2627, %v2635
  %2638 = vset.pattern.permute.xlu0 38
  %2639 = vperm.xlu0 %2638, %v79
  %v2640 = vpop.permute.xlu0 %2639
  %v2642 = vmul.f32 %v2591, %v2640
  %2644 = vrot.lane.b32.xlu0 %v2642, 88
  %v2645 = vpop.permute.xlu0 %2644
  %v2647 = vadd.f32 %v2637, %v2645
  %2648 = vset.pattern.permute.xlu0 45
  %2649 = vperm.xlu0 %2648, %v79
  %v2650 = vpop.permute.xlu0 %2649
  %v2652 = vmul.f32 %v2591, %v2650
  %2654 = vrot.lane.b32.xlu0 %v2652, 80
  %v2655 = vpop.permute.xlu0 %2654
  %v2657 = vadd.f32 %v2647, %v2655
  %2659 = vrot.lane.b32.xlu0 %v2657, 125
  %v2660 = vpop.permute.xlu0 %2659
  %v2662 = vadd.f32 %v2590, %v2660
  %2663 = vset.pattern.permute.xlu0 4
  %2664 = vperm.xlu0 %2663, %v79
  %v2665 = vpop.permute.xlu0 %2664
  %v2667 = vmul.f32 %v2591, %v2665
  %v2668 = vadd.f32 %v2667, 0.0
  %2669 = vset.pattern.permute.xlu0 11
  %2670 = vperm.xlu0 %2669, %v79
  %v2671 = vpop.permute.xlu0 %2670
  %v2673 = vmul.f32 %v2591, %v2671
  %2675 = vrot.lane.b32.xlu0 %v2673, 120
  %v2676 = vpop.permute.xlu0 %2675
  %v2678 = vadd.f32 %v2668, %v2676
  %2679 = vset.pattern.permute.xlu0 18
  %2680 = vperm.xlu0 %2679, %v79
  %v2681 = vpop.permute.xlu0 %2680
  %v2683 = vmul.f32 %v2591, %v2681
  %2685 = vrot.lane.b32.xlu0 %v2683, 112
  %v2686 = vpop.permute.xlu0 %2685
  %v2688 = vadd.f32 %v2678, %v2686
  %2689 = vset.pattern.permute.xlu0 25
  %2690 = vperm.xlu0 %2689, %v79
  %v2691 = vpop.permute.xlu0 %2690
  %v2693 = vmul.f32 %v2591, %v2691
  %2695 = vrot.lane.b32.xlu0 %v2693, 104
  %v2696 = vpop.permute.xlu0 %2695
  %v2698 = vadd.f32 %v2688, %v2696
  %2699 = vset.pattern.permute.xlu0 32
  %2700 = vperm.xlu0 %2699, %v79
  %v2701 = vpop.permute.xlu0 %2700
  %v2703 = vmul.f32 %v2591, %v2701
  %2705 = vrot.lane.b32.xlu0 %v2703, 96
  %v2706 = vpop.permute.xlu0 %2705
  %v2708 = vadd.f32 %v2698, %v2706
  %2709 = vset.pattern.permute.xlu0 39
  %2710 = vperm.xlu0 %2709, %v79
  %v2711 = vpop.permute.xlu0 %2710
  %v2713 = vmul.f32 %v2591, %v2711
  %2715 = vrot.lane.b32.xlu0 %v2713, 88
  %v2716 = vpop.permute.xlu0 %2715
  %v2718 = vadd.f32 %v2708, %v2716
  %2719 = vset.pattern.permute.xlu0 46
  %2720 = vperm.xlu0 %2719, %v79
  %v2721 = vpop.permute.xlu0 %2720
  %v2723 = vmul.f32 %v2591, %v2721
  %2725 = vrot.lane.b32.xlu0 %v2723, 80
  %v2726 = vpop.permute.xlu0 %2725
  %v2728 = vadd.f32 %v2718, %v2726
  %v2730 = vunpack.c.l.s4 1983009808
  %v2731 = vunpack.c.0.s8 %v2730
  %v2732 = vlaneseq
  %v2733 = vshrl.u32 %v2732, 7
  %v2734 = vsub.s32 %v2731, %v2733
  %v2735 = vrot.slane %v1546, %v2734
  %2736 = vrot.lane.b32.xlu0 %v2735, 4
  %v2737 = vpop.permute.xlu0 %2736
  %v2739 = vmul.f32 %v2728, %v2737
  %2741 = vrot.lane.b32.xlu0 %v2739, 124
  %v2742 = vpop.permute.xlu0 %2741
  %v2744 = vadd.f32 %v2662, %v2742
  %v2745 = vld [vmem:[#allocation3] sm:$0x3]
  %2746 = vset.pattern.permute.xlu0 5
  %2747 = vperm.xlu0 %2746, %v79
  %v2748 = vpop.permute.xlu0 %2747
  %v2750 = vmul.f32 %v2745, %v2748
  %v2751 = vadd.f32 %v2750, 0.0
  %2752 = vset.pattern.permute.xlu0 12
  %2753 = vperm.xlu0 %2752, %v79
  %v2754 = vpop.permute.xlu0 %2753
  %v2756 = vmul.f32 %v2745, %v2754
  %2758 = vrot.lane.b32.xlu0 %v2756, 120
  %v2759 = vpop.permute.xlu0 %2758
  %v2761 = vadd.f32 %v2751, %v2759
  %2762 = vset.pattern.permute.xlu0 19
  %2763 = vperm.xlu0 %2762, %v79
  %v2764 = vpop.permute.xlu0 %2763
  %v2766 = vmul.f32 %v2745, %v2764
  %2768 = vrot.lane.b32.xlu0 %v2766, 112
  %v2769 = vpop.permute.xlu0 %2768
  %v2771 = vadd.f32 %v2761, %v2769
  %2772 = vset.pattern.permute.xlu0 26
  %2773 = vperm.xlu0 %2772, %v79
  %v2774 = vpop.permute.xlu0 %2773
  %v2776 = vmul.f32 %v2745, %v2774
  %2778 = vrot.lane.b32.xlu0 %v2776, 104
  %v2779 = vpop.permute.xlu0 %2778
  %v2781 = vadd.f32 %v2771, %v2779
  %2782 = vset.pattern.permute.xlu0 33
  %2783 = vperm.xlu0 %2782, %v79
  %v2784 = vpop.permute.xlu0 %2783
  %v2786 = vmul.f32 %v2745, %v2784
  %2788 = vrot.lane.b32.xlu0 %v2786, 96
  %v2789 = vpop.permute.xlu0 %2788
  %v2791 = vadd.f32 %v2781, %v2789
  %2792 = vset.pattern.permute.xlu0 40
  %2793 = vperm.xlu0 %2792, %v79
  %v2794 = vpop.permute.xlu0 %2793
  %v2796 = vmul.f32 %v2745, %v2794
  %2798 = vrot.lane.b32.xlu0 %v2796, 88
  %v2799 = vpop.permute.xlu0 %2798
  %v2801 = vadd.f32 %v2791, %v2799
  %2802 = vset.pattern.permute.xlu0 47
  %2803 = vperm.xlu0 %2802, %v79
  %v2804 = vpop.permute.xlu0 %2803
  %v2806 = vmul.f32 %v2745, %v2804
  %2808 = vrot.lane.b32.xlu0 %v2806, 80
  %v2809 = vpop.permute.xlu0 %2808
  %v2811 = vadd.f32 %v2801, %v2809
  %v2813 = vunpack.c.l.s4 1983009808
  %v2814 = vunpack.c.0.s8 %v2813
  %v2815 = vlaneseq
  %v2816 = vshrl.u32 %v2815, 7
  %v2817 = vsub.s32 %v2814, %v2816
  %v2818 = vrot.slane %v1842, %v2817
  %2819 = vrot.lane.b32.xlu0 %v2818, 5
  %v2820 = vpop.permute.xlu0 %2819
  %v2822 = vmul.f32 %v2811, %v2820
  %2824 = vrot.lane.b32.xlu0 %v2822, 123
  %v2825 = vpop.permute.xlu0 %2824
  %v2827 = vadd.f32 %v2744, %v2825
  %v2828 = vld [vmem:[#allocation3] sm:$0x3]
  %2829 = vset.pattern.permute.xlu0 6
  %2830 = vperm.xlu0 %2829, %v79
  %v2831 = vpop.permute.xlu0 %2830
  %v2833 = vmul.f32 %v2828, %v2831
  %v2834 = vadd.f32 %v2833, 0.0
  %2835 = vset.pattern.permute.xlu0 13
  %2836 = vperm.xlu0 %2835, %v79
  %v2837 = vpop.permute.xlu0 %2836
  %v2839 = vmul.f32 %v2828, %v2837
  %2841 = vrot.lane.b32.xlu0 %v2839, 120
  %v2842 = vpop.permute.xlu0 %2841
  %v2844 = vadd.f32 %v2834, %v2842
  %2845 = vset.pattern.permute.xlu0 20
  %2846 = vperm.xlu0 %2845, %v79
  %v2847 = vpop.permute.xlu0 %2846
  %v2849 = vmul.f32 %v2828, %v2847
  %2851 = vrot.lane.b32.xlu0 %v2849, 112
  %v2852 = vpop.permute.xlu0 %2851
  %v2854 = vadd.f32 %v2844, %v2852
  %2855 = vset.pattern.permute.xlu0 27
  %2856 = vperm.xlu0 %2855, %v79
  %v2857 = vpop.permute.xlu0 %2856
  %v2859 = vmul.f32 %v2828, %v2857
  %2861 = vrot.lane.b32.xlu0 %v2859, 104
  %v2862 = vpop.permute.xlu0 %2861
  %v2864 = vadd.f32 %v2854, %v2862
  %2865 = vset.pattern.permute.xlu0 34
  %2866 = vperm.xlu0 %2865, %v79
  %v2867 = vpop.permute.xlu0 %2866
  %v2869 = vmul.f32 %v2828, %v2867
  %2871 = vrot.lane.b32.xlu0 %v2869, 96
  %v2872 = vpop.permute.xlu0 %2871
  %v2874 = vadd.f32 %v2864, %v2872
  %2875 = vset.pattern.permute.xlu0 41
  %2876 = vperm.xlu0 %2875, %v79
  %v2877 = vpop.permute.xlu0 %2876
  %v2879 = vmul.f32 %v2828, %v2877
  %2881 = vrot.lane.b32.xlu0 %v2879, 88
  %v2882 = vpop.permute.xlu0 %2881
  %v2884 = vadd.f32 %v2874, %v2882
  %2885 = vset.pattern.permute.xlu0 48
  %2886 = vperm.xlu0 %2885, %v79
  %v2887 = vpop.permute.xlu0 %2886
  %v2889 = vmul.f32 %v2828, %v2887
  %2891 = vrot.lane.b32.xlu0 %v2889, 80
  %v2892 = vpop.permute.xlu0 %2891
  %v2894 = vadd.f32 %v2884, %v2892
  %v2896 = vunpack.c.l.s4 1983009808
  %v2897 = vunpack.c.0.s8 %v2896
  %v2898 = vlaneseq
  %v2899 = vshrl.u32 %v2898, 7
  %v2900 = vsub.s32 %v2897, %v2899
  %v2901 = vrot.slane %v2138, %v2900
  %2902 = vrot.lane.b32.xlu0 %v2901, 6
  %v2903 = vpop.permute.xlu0 %2902
  %v2905 = vmul.f32 %v2894, %v2903
  %2907 = vrot.lane.b32.xlu0 %v2905, 122
  %v2908 = vpop.permute.xlu0 %2907
  %v2910 = vadd.f32 %v2827, %v2908
  %vm2911 = vcmask 517120
  %v2912 = vsel %vm2911, %v2910, 0.0
  %v2913 = vrot.slane %v2912, 4
  %v2914 = vadd.f32 %v2912, %v2913
  %v2915 = vrot.slane %v2914, 2
  %v2916 = vadd.f32 %v2914, %v2915
  %v2917 = vrot.slane %v2916, 1
  %v2918 = vadd.f32 %v2916, %v2917
  %v2919 = vxor.u32 %v2918, 2147483648
  %v2920 = vmul.f32 %v2919, 1.442695
  %v2921 = vpow.pop %v2920
  %v2922 = vadd.f32 %v2921, 1.0
  %v2923 = vrcp.pop %v2922
  %v2924 = vmul.f32 1.0, %v2923
  %v2925 = vmul.f32 %v2299, %v2924
  %v2926 = vmul.f32 %v2300, %v2924
  %v2927 = vmul.f32 %v2301, %v2924
  %v2928 = vmul.f32 %v2302, %v2924
  %v2929 = vsel %vm2191, %v2925, 0.0
  %2930 = vadd.xlane.f32.xlu0 %v2929
  %v2931 = vpop.xlane.xlu0 %2930
  %v2932 = vsel %vm2191, %v2926, 0.0
  %2933 = vadd.xlane.f32.xlu0 %v2932
  %v2934 = vpop.xlane.xlu0 %2933
  %v2935 = vsel %vm2191, %v2927, 0.0
  %2936 = vadd.xlane.f32.xlu0 %v2935
  %v2937 = vpop.xlane.xlu0 %2936
  %v2938 = vsel %vm2191, %v2928, 0.0
  %2939 = vadd.xlane.f32.xlu0 %v2938
  %v2940 = vpop.xlane.xlu0 %2939
  %v2941 = vmul.f32 %v2931, %v2204
  %v2942 = vmul.f32 %v2934, %v2204
  %v2943 = vmul.f32 %v2937, %v2204
  %v2944 = vmul.f32 %v2940, %v2204
  %v2945 = vmul.f32 %v2941, %v80
  %v2946 = vmul.f32 %v2942, %v81
  %v2947 = vmul.f32 %v2943, %v82
  %v2948 = vmul.f32 %v2944, %v83
  %vm2949 = vcmask 64512
  %v2950 = vsel %vm2949, %v2945, 0.0
  %v2951 = vsel %vm2949, %v2946, 0.0
  %v2952 = vadd.f32 %v2950, %v2951
  %v2953 = vsel %vm2949, %v2947, 0.0
  %v2954 = vadd.f32 %v2952, %v2953
  %v2955 = vsel %vm2949, %v2948, 0.0
  %v2956 = vadd.f32 %v2954, %v2955
  %v2957 = vrot.slane %v2956, 4
  %v2958 = vadd.f32 %v2956, %v2957
  %v2959 = vrot.slane %v2958, 2
  %v2960 = vadd.f32 %v2958, %v2959
  %v2961 = vrot.slane %v2960, 1
  %v2962 = vadd.f32 %v2960, %v2961
  %v2963 = vmax.f32 %v2962, 0.0
  %v2964 = vmul.f32 %v84, %v2963
  %v2965 = vmul.f32 %v85, %v2963
  %v2966 = vmul.f32 %v86, %v2963
  %v2967 = vmul.f32 %v87, %v2963
  %v2968 = vsel %vm2949, %v2964, 0.0
  %2969 = vadd.xlane.f32.xlu0 %v2968
  %v2970 = vpop.xlane.xlu0 %2969
  %v2971 = vsel %vm2949, %v2965, 0.0
  %2972 = vadd.xlane.f32.xlu0 %v2971
  %v2973 = vpop.xlane.xlu0 %2972
  %v2974 = vsel %vm2949, %v2966, 0.0
  %2975 = vadd.xlane.f32.xlu0 %v2974
  %v2976 = vpop.xlane.xlu0 %2975
  %v2977 = vsel %vm2949, %v2967, 0.0
  %2978 = vadd.xlane.f32.xlu0 %v2977
  %v2979 = vpop.xlane.xlu0 %2978
  %v2980 = vxor.u32 %v2970, 2147483648
  %v2981 = vxor.u32 %v2973, 2147483648
  %v2982 = vxor.u32 %v2976, 2147483648
  %v2983 = vxor.u32 %v2979, 2147483648
  %v2984 = vmul.f32 %v2980, 1.442695
  %v2985 = vpow.pop %v2984
  %v2986 = vmul.f32 %v2981, 1.442695
  %v2987 = vpow.pop %v2986
  %v2988 = vmul.f32 %v2982, 1.442695
  %v2989 = vpow.pop %v2988
  %v2990 = vmul.f32 %v2983, 1.442695
  %v2991 = vpow.pop %v2990
  %v2992 = vadd.f32 %v2985, 1.0
  %v2993 = vadd.f32 %v2987, 1.0
  %v2994 = vadd.f32 %v2989, 1.0
  %v2995 = vadd.f32 %v2991, 1.0
  %v2996 = vrcp.pop %v2992
  %v2997 = vmul.f32 1.0, %v2996
  %v2998 = vrcp.pop %v2993
  %v2999 = vmul.f32 1.0, %v2998
  %v3000 = vrcp.pop %v2994
  %v3001 = vmul.f32 1.0, %v3000
  %v3002 = vrcp.pop %v2995
  %v3003 = vmul.f32 1.0, %v3002
  %v3004 = vmul.f32 %v2925, %v2997
  %v3005 = vmul.f32 %v2926, %v2999
  %v3006 = vmul.f32 %v2927, %v3001
  %v3007 = vmul.f32 %v2928, %v3003
  %3008 = vst.msk [vmem:[#allocation4] sm:$0xff] %vm2191, %v3004
  %3009 = vst.msk [vmem:[#allocation4 + $0x8] sm:$0xff] %vm2191, %v3005
  %3010 = vst.msk [vmem:[#allocation4 + $0x10] sm:$0xff] %vm2191, %v3006
  %3011 = vst.msk [vmem:[#allocation4 + $0x18] sm:$0xff] %vm2191, %v3007
  %s3012 = scalar_lea.vmem %s0, 32
  %v3013 = vld [vmem:[%s3012] sm:$0xff]
  %v3014 = vld [vmem:[%s3012 + $0x8] sm:$0xff]
  %v3015 = vld [vmem:[%s3012 + $0x10] sm:$0xff]
  %v3016 = vld [vmem:[%s3012 + $0x18] sm:$0xff]
  %3021 = vrot.lane.b32.xlu0 %v3013, 27
  %v3022 = vpop.permute.xlu0 %3021
  %3023 = vrot.lane.b32.xlu0 %v3014, 27
  %v3024 = vpop.permute.xlu0 %3023
  %3025 = vrot.lane.b32.xlu0 %v3015, 27
  %v3026 = vpop.permute.xlu0 %3025
  %3027 = vrot.lane.b32.xlu0 %v3016, 27
  %v3028 = vpop.permute.xlu0 %3027
  %3033 = vst.msk [vmem:[#allocation2 + $0x8] sm:$0xff] %vm114, %v3022
  %3034 = vst.msk [vmem:[#allocation2 + $0x18] sm:$0xff] %vm114, %v3024
  %3035 = vst.msk [vmem:[#allocation2 + $0x28] sm:$0xff] %vm114, %v3026
  %3036 = vst.msk [vmem:[#allocation2 + $0x38] sm:$0xff] %vm114, %v3028
  %v3037 = vld [vmem:[#allocation2 + $0x8] sm:$0xff]
  %v3038 = vld [vmem:[#allocation2 + $0x18] sm:$0xff]
  %v3039 = vld [vmem:[#allocation2 + $0x28] sm:$0xff]
  %v3040 = vld [vmem:[#allocation2 + $0x38] sm:$0xff]
  %v3041 = vmul.f32 %v3037, %v126
  %v3042 = vmul.f32 %v3038, %v131
  %v3043 = vmul.f32 %v3039, %v136
  %v3044 = vmul.f32 %v3040, %v141
  %v3045 = vadd.f32 %v3041, 0.0
  %v3046 = vadd.f32 %v3042, 0.0
  %v3047 = vadd.f32 %v3043, 0.0
  %v3048 = vadd.f32 %v3044, 0.0
  %v3049 = vmul.f32 %v3037, %v153
  %v3050 = vmul.f32 %v3038, %v157
  %v3051 = vmul.f32 %v3039, %v161
  %v3052 = vmul.f32 %v3040, %v165
  %3057 = vrot.lane.b32.xlu0 %v3049, 120
  %v3058 = vpop.permute.xlu0 %3057
  %3059 = vrot.lane.b32.xlu0 %v3050, 120
  %v3060 = vpop.permute.xlu0 %3059
  %3061 = vrot.lane.b32.xlu0 %v3051, 120
  %v3062 = vpop.permute.xlu0 %3061
  %3063 = vrot.lane.b32.xlu0 %v3052, 120
  %v3064 = vpop.permute.xlu0 %3063
  %v3069 = vadd.f32 %v3045, %v3058
  %v3070 = vadd.f32 %v3046, %v3060
  %v3071 = vadd.f32 %v3047, %v3062
  %v3072 = vadd.f32 %v3048, %v3064
  %v3073 = vmul.f32 %v3037, %v193
  %v3074 = vmul.f32 %v3038, %v197
  %v3075 = vmul.f32 %v3039, %v201
  %v3076 = vmul.f32 %v3040, %v205
  %3081 = vrot.lane.b32.xlu0 %v3073, 112
  %v3082 = vpop.permute.xlu0 %3081
  %3083 = vrot.lane.b32.xlu0 %v3074, 112
  %v3084 = vpop.permute.xlu0 %3083
  %3085 = vrot.lane.b32.xlu0 %v3075, 112
  %v3086 = vpop.permute.xlu0 %3085
  %3087 = vrot.lane.b32.xlu0 %v3076, 112
  %v3088 = vpop.permute.xlu0 %3087
  %v3093 = vadd.f32 %v3069, %v3082
  %v3094 = vadd.f32 %v3070, %v3084
  %v3095 = vadd.f32 %v3071, %v3086
  %v3096 = vadd.f32 %v3072, %v3088
  %v3097 = vmul.f32 %v3037, %v233
  %v3098 = vmul.f32 %v3038, %v237
  %v3099 = vmul.f32 %v3039, %v241
  %v3100 = vmul.f32 %v3040, %v245
  %3105 = vrot.lane.b32.xlu0 %v3097, 104
  %v3106 = vpop.permute.xlu0 %3105
  %3107 = vrot.lane.b32.xlu0 %v3098, 104
  %v3108 = vpop.permute.xlu0 %3107
  %3109 = vrot.lane.b32.xlu0 %v3099, 104
  %v3110 = vpop.permute.xlu0 %3109
  %3111 = vrot.lane.b32.xlu0 %v3100, 104
  %v3112 = vpop.permute.xlu0 %3111
  %v3117 = vadd.f32 %v3093, %v3106
  %v3118 = vadd.f32 %v3094, %v3108
  %v3119 = vadd.f32 %v3095, %v3110
  %v3120 = vadd.f32 %v3096, %v3112
  %v3121 = vmul.f32 %v3037, %v273
  %v3122 = vmul.f32 %v3038, %v277
  %v3123 = vmul.f32 %v3039, %v281
  %v3124 = vmul.f32 %v3040, %v285
  %3129 = vrot.lane.b32.xlu0 %v3121, 96
  %v3130 = vpop.permute.xlu0 %3129
  %3131 = vrot.lane.b32.xlu0 %v3122, 96
  %v3132 = vpop.permute.xlu0 %3131
  %3133 = vrot.lane.b32.xlu0 %v3123, 96
  %v3134 = vpop.permute.xlu0 %3133
  %3135 = vrot.lane.b32.xlu0 %v3124, 96
  %v3136 = vpop.permute.xlu0 %3135
  %v3141 = vadd.f32 %v3117, %v3130
  %v3142 = vadd.f32 %v3118, %v3132
  %v3143 = vadd.f32 %v3119, %v3134
  %v3144 = vadd.f32 %v3120, %v3136
  %v3145 = vmul.f32 %v3037, %v313
  %v3146 = vmul.f32 %v3038, %v317
  %v3147 = vmul.f32 %v3039, %v321
  %v3148 = vmul.f32 %v3040, %v325
  %3153 = vrot.lane.b32.xlu0 %v3145, 88
  %v3154 = vpop.permute.xlu0 %3153
  %3155 = vrot.lane.b32.xlu0 %v3146, 88
  %v3156 = vpop.permute.xlu0 %3155
  %3157 = vrot.lane.b32.xlu0 %v3147, 88
  %v3158 = vpop.permute.xlu0 %3157
  %3159 = vrot.lane.b32.xlu0 %v3148, 88
  %v3160 = vpop.permute.xlu0 %3159
  %v3165 = vadd.f32 %v3141, %v3154
  %v3166 = vadd.f32 %v3142, %v3156
  %v3167 = vadd.f32 %v3143, %v3158
  %v3168 = vadd.f32 %v3144, %v3160
  %v3169 = vmul.f32 %v3037, %v353
  %v3170 = vmul.f32 %v3038, %v357
  %v3171 = vmul.f32 %v3039, %v361
  %v3172 = vmul.f32 %v3040, %v365
  %3177 = vrot.lane.b32.xlu0 %v3169, 80
  %v3178 = vpop.permute.xlu0 %3177
  %3179 = vrot.lane.b32.xlu0 %v3170, 80
  %v3180 = vpop.permute.xlu0 %3179
  %3181 = vrot.lane.b32.xlu0 %v3171, 80
  %v3182 = vpop.permute.xlu0 %3181
  %3183 = vrot.lane.b32.xlu0 %v3172, 80
  %v3184 = vpop.permute.xlu0 %3183
  %v3189 = vadd.f32 %v3165, %v3178
  %v3190 = vadd.f32 %v3166, %v3180
  %v3191 = vadd.f32 %v3167, %v3182
  %v3192 = vadd.f32 %v3168, %v3184
  %v3193 = vmul.f32 %v3189, %v394
  %v3194 = vmul.f32 %v3190, %v394
  %v3195 = vmul.f32 %v3191, %v394
  %v3196 = vmul.f32 %v3192, %v394
  %v3197 = vadd.f32 %v3193, 0.0
  %v3198 = vadd.f32 %v3194, 0.0
  %v3199 = vadd.f32 %v3195, 0.0
  %v3200 = vadd.f32 %v3196, 0.0
  %v3201 = vmul.f32 %v3037, %v405
  %v3202 = vmul.f32 %v3038, %v409
  %v3203 = vmul.f32 %v3039, %v413
  %v3204 = vmul.f32 %v3040, %v417
  %v3205 = vadd.f32 %v3201, 0.0
  %v3206 = vadd.f32 %v3202, 0.0
  %v3207 = vadd.f32 %v3203, 0.0
  %v3208 = vadd.f32 %v3204, 0.0
  %v3209 = vmul.f32 %v3037, %v429
  %v3210 = vmul.f32 %v3038, %v433
  %v3211 = vmul.f32 %v3039, %v437
  %v3212 = vmul.f32 %v3040, %v441
  %3217 = vrot.lane.b32.xlu0 %v3209, 120
  %v3218 = vpop.permute.xlu0 %3217
  %3219 = vrot.lane.b32.xlu0 %v3210, 120
  %v3220 = vpop.permute.xlu0 %3219
  %3221 = vrot.lane.b32.xlu0 %v3211, 120
  %v3222 = vpop.permute.xlu0 %3221
  %3223 = vrot.lane.b32.xlu0 %v3212, 120
  %v3224 = vpop.permute.xlu0 %3223
  %v3229 = vadd.f32 %v3205, %v3218
  %v3230 = vadd.f32 %v3206, %v3220
  %v3231 = vadd.f32 %v3207, %v3222
  %v3232 = vadd.f32 %v3208, %v3224
  %v3233 = vmul.f32 %v3037, %v469
  %v3234 = vmul.f32 %v3038, %v473
  %v3235 = vmul.f32 %v3039, %v477
  %v3236 = vmul.f32 %v3040, %v481
  %3241 = vrot.lane.b32.xlu0 %v3233, 112
  %v3242 = vpop.permute.xlu0 %3241
  %3243 = vrot.lane.b32.xlu0 %v3234, 112
  %v3244 = vpop.permute.xlu0 %3243
  %3245 = vrot.lane.b32.xlu0 %v3235, 112
  %v3246 = vpop.permute.xlu0 %3245
  %3247 = vrot.lane.b32.xlu0 %v3236, 112
  %v3248 = vpop.permute.xlu0 %3247
  %v3253 = vadd.f32 %v3229, %v3242
  %v3254 = vadd.f32 %v3230, %v3244
  %v3255 = vadd.f32 %v3231, %v3246
  %v3256 = vadd.f32 %v3232, %v3248
  %v3257 = vmul.f32 %v3037, %v509
  %v3258 = vmul.f32 %v3038, %v513
  %v3259 = vmul.f32 %v3039, %v517
  %v3260 = vmul.f32 %v3040, %v521
  %3265 = vrot.lane.b32.xlu0 %v3257, 104
  %v3266 = vpop.permute.xlu0 %3265
  %3267 = vrot.lane.b32.xlu0 %v3258, 104
  %v3268 = vpop.permute.xlu0 %3267
  %3269 = vrot.lane.b32.xlu0 %v3259, 104
  %v3270 = vpop.permute.xlu0 %3269
  %3271 = vrot.lane.b32.xlu0 %v3260, 104
  %v3272 = vpop.permute.xlu0 %3271
  %v3277 = vadd.f32 %v3253, %v3266
  %v3278 = vadd.f32 %v3254, %v3268
  %v3279 = vadd.f32 %v3255, %v3270
  %v3280 = vadd.f32 %v3256, %v3272
  %v3281 = vmul.f32 %v3037, %v549
  %v3282 = vmul.f32 %v3038, %v553
  %v3283 = vmul.f32 %v3039, %v557
  %v3284 = vmul.f32 %v3040, %v561
  %3289 = vrot.lane.b32.xlu0 %v3281, 96
  %v3290 = vpop.permute.xlu0 %3289
  %3291 = vrot.lane.b32.xlu0 %v3282, 96
  %v3292 = vpop.permute.xlu0 %3291
  %3293 = vrot.lane.b32.xlu0 %v3283, 96
  %v3294 = vpop.permute.xlu0 %3293
  %3295 = vrot.lane.b32.xlu0 %v3284, 96
  %v3296 = vpop.permute.xlu0 %3295
  %v3301 = vadd.f32 %v3277, %v3290
  %v3302 = vadd.f32 %v3278, %v3292
  %v3303 = vadd.f32 %v3279, %v3294
  %v3304 = vadd.f32 %v3280, %v3296
  %v3305 = vmul.f32 %v3037, %v589
  %v3306 = vmul.f32 %v3038, %v593
  %v3307 = vmul.f32 %v3039, %v597
  %v3308 = vmul.f32 %v3040, %v601
  %3313 = vrot.lane.b32.xlu0 %v3305, 88
  %v3314 = vpop.permute.xlu0 %3313
  %3315 = vrot.lane.b32.xlu0 %v3306, 88
  %v3316 = vpop.permute.xlu0 %3315
  %3317 = vrot.lane.b32.xlu0 %v3307, 88
  %v3318 = vpop.permute.xlu0 %3317
  %3319 = vrot.lane.b32.xlu0 %v3308, 88
  %v3320 = vpop.permute.xlu0 %3319
  %v3325 = vadd.f32 %v3301, %v3314
  %v3326 = vadd.f32 %v3302, %v3316
  %v3327 = vadd.f32 %v3303, %v3318
  %v3328 = vadd.f32 %v3304, %v3320
  %v3329 = vmul.f32 %v3037, %v629
  %v3330 = vmul.f32 %v3038, %v633
  %v3331 = vmul.f32 %v3039, %v637
  %v3332 = vmul.f32 %v3040, %v641
  %3337 = vrot.lane.b32.xlu0 %v3329, 80
  %v3338 = vpop.permute.xlu0 %3337
  %3339 = vrot.lane.b32.xlu0 %v3330, 80
  %v3340 = vpop.permute.xlu0 %3339
  %3341 = vrot.lane.b32.xlu0 %v3331, 80
  %v3342 = vpop.permute.xlu0 %3341
  %3343 = vrot.lane.b32.xlu0 %v3332, 80
  %v3344 = vpop.permute.xlu0 %3343
  %v3349 = vadd.f32 %v3325, %v3338
  %v3350 = vadd.f32 %v3326, %v3340
  %v3351 = vadd.f32 %v3327, %v3342
  %v3352 = vadd.f32 %v3328, %v3344
  %v3353 = vmul.f32 %v3349, %v673
  %v3354 = vmul.f32 %v3350, %v673
  %v3355 = vmul.f32 %v3351, %v673
  %v3356 = vmul.f32 %v3352, %v673
  %3361 = vrot.lane.b32.xlu0 %v3353, 127
  %v3362 = vpop.permute.xlu0 %3361
  %3363 = vrot.lane.b32.xlu0 %v3354, 127
  %v3364 = vpop.permute.xlu0 %3363
  %3365 = vrot.lane.b32.xlu0 %v3355, 127
  %v3366 = vpop.permute.xlu0 %3365
  %3367 = vrot.lane.b32.xlu0 %v3356, 127
  %v3368 = vpop.permute.xlu0 %3367
  %v3373 = vadd.f32 %v3197, %v3362
  %v3374 = vadd.f32 %v3198, %v3364
  %v3375 = vadd.f32 %v3199, %v3366
  %v3376 = vadd.f32 %v3200, %v3368
  %v3377 = vmul.f32 %v3037, %v701
  %v3378 = vmul.f32 %v3038, %v705
  %v3379 = vmul.f32 %v3039, %v709
  %v3380 = vmul.f32 %v3040, %v713
  %v3381 = vadd.f32 %v3377, 0.0
  %v3382 = vadd.f32 %v3378, 0.0
  %v3383 = vadd.f32 %v3379, 0.0
  %v3384 = vadd.f32 %v3380, 0.0
  %v3385 = vmul.f32 %v3037, %v725
  %v3386 = vmul.f32 %v3038, %v729
  %v3387 = vmul.f32 %v3039, %v733
  %v3388 = vmul.f32 %v3040, %v737
  %3393 = vrot.lane.b32.xlu0 %v3385, 120
  %v3394 = vpop.permute.xlu0 %3393
  %3395 = vrot.lane.b32.xlu0 %v3386, 120
  %v3396 = vpop.permute.xlu0 %3395
  %3397 = vrot.lane.b32.xlu0 %v3387, 120
  %v3398 = vpop.permute.xlu0 %3397
  %3399 = vrot.lane.b32.xlu0 %v3388, 120
  %v3400 = vpop.permute.xlu0 %3399
  %v3405 = vadd.f32 %v3381, %v3394
  %v3406 = vadd.f32 %v3382, %v3396
  %v3407 = vadd.f32 %v3383, %v3398
  %v3408 = vadd.f32 %v3384, %v3400
  %v3409 = vmul.f32 %v3037, %v765
  %v3410 = vmul.f32 %v3038, %v769
  %v3411 = vmul.f32 %v3039, %v773
  %v3412 = vmul.f32 %v3040, %v777
  %3417 = vrot.lane.b32.xlu0 %v3409, 112
  %v3418 = vpop.permute.xlu0 %3417
  %3419 = vrot.lane.b32.xlu0 %v3410, 112
  %v3420 = vpop.permute.xlu0 %3419
  %3421 = vrot.lane.b32.xlu0 %v3411, 112
  %v3422 = vpop.permute.xlu0 %3421
  %3423 = vrot.lane.b32.xlu0 %v3412, 112
  %v3424 = vpop.permute.xlu0 %3423
  %v3429 = vadd.f32 %v3405, %v3418
  %v3430 = vadd.f32 %v3406, %v3420
  %v3431 = vadd.f32 %v3407, %v3422
  %v3432 = vadd.f32 %v3408, %v3424
  %v3433 = vmul.f32 %v3037, %v805
  %v3434 = vmul.f32 %v3038, %v809
  %v3435 = vmul.f32 %v3039, %v813
  %v3436 = vmul.f32 %v3040, %v817
  %3441 = vrot.lane.b32.xlu0 %v3433, 104
  %v3442 = vpop.permute.xlu0 %3441
  %3443 = vrot.lane.b32.xlu0 %v3434, 104
  %v3444 = vpop.permute.xlu0 %3443
  %3445 = vrot.lane.b32.xlu0 %v3435, 104
  %v3446 = vpop.permute.xlu0 %3445
  %3447 = vrot.lane.b32.xlu0 %v3436, 104
  %v3448 = vpop.permute.xlu0 %3447
  %v3453 = vadd.f32 %v3429, %v3442
  %v3454 = vadd.f32 %v3430, %v3444
  %v3455 = vadd.f32 %v3431, %v3446
  %v3456 = vadd.f32 %v3432, %v3448
  %v3457 = vmul.f32 %v3037, %v845
  %v3458 = vmul.f32 %v3038, %v849
  %v3459 = vmul.f32 %v3039, %v853
  %v3460 = vmul.f32 %v3040, %v857
  %3465 = vrot.lane.b32.xlu0 %v3457, 96
  %v3466 = vpop.permute.xlu0 %3465
  %3467 = vrot.lane.b32.xlu0 %v3458, 96
  %v3468 = vpop.permute.xlu0 %3467
  %3469 = vrot.lane.b32.xlu0 %v3459, 96
  %v3470 = vpop.permute.xlu0 %3469
  %3471 = vrot.lane.b32.xlu0 %v3460, 96
  %v3472 = vpop.permute.xlu0 %3471
  %v3477 = vadd.f32 %v3453, %v3466
  %v3478 = vadd.f32 %v3454, %v3468
  %v3479 = vadd.f32 %v3455, %v3470
  %v3480 = vadd.f32 %v3456, %v3472
  %v3481 = vmul.f32 %v3037, %v885
  %v3482 = vmul.f32 %v3038, %v889
  %v3483 = vmul.f32 %v3039, %v893
  %v3484 = vmul.f32 %v3040, %v897
  %3489 = vrot.lane.b32.xlu0 %v3481, 88
  %v3490 = vpop.permute.xlu0 %3489
  %3491 = vrot.lane.b32.xlu0 %v3482, 88
  %v3492 = vpop.permute.xlu0 %3491
  %3493 = vrot.lane.b32.xlu0 %v3483, 88
  %v3494 = vpop.permute.xlu0 %3493
  %3495 = vrot.lane.b32.xlu0 %v3484, 88
  %v3496 = vpop.permute.xlu0 %3495
  %v3501 = vadd.f32 %v3477, %v3490
  %v3502 = vadd.f32 %v3478, %v3492
  %v3503 = vadd.f32 %v3479, %v3494
  %v3504 = vadd.f32 %v3480, %v3496
  %v3505 = vmul.f32 %v3037, %v925
  %v3506 = vmul.f32 %v3038, %v929
  %v3507 = vmul.f32 %v3039, %v933
  %v3508 = vmul.f32 %v3040, %v937
  %3513 = vrot.lane.b32.xlu0 %v3505, 80
  %v3514 = vpop.permute.xlu0 %3513
  %3515 = vrot.lane.b32.xlu0 %v3506, 80
  %v3516 = vpop.permute.xlu0 %3515
  %3517 = vrot.lane.b32.xlu0 %v3507, 80
  %v3518 = vpop.permute.xlu0 %3517
  %3519 = vrot.lane.b32.xlu0 %v3508, 80
  %v3520 = vpop.permute.xlu0 %3519
  %v3525 = vadd.f32 %v3501, %v3514
  %v3526 = vadd.f32 %v3502, %v3516
  %v3527 = vadd.f32 %v3503, %v3518
  %v3528 = vadd.f32 %v3504, %v3520
  %v3529 = vmul.f32 %v3525, %v969
  %v3530 = vmul.f32 %v3526, %v969
  %v3531 = vmul.f32 %v3527, %v969
  %v3532 = vmul.f32 %v3528, %v969
  %3537 = vrot.lane.b32.xlu0 %v3529, 126
  %v3538 = vpop.permute.xlu0 %3537
  %3539 = vrot.lane.b32.xlu0 %v3530, 126
  %v3540 = vpop.permute.xlu0 %3539
  %3541 = vrot.lane.b32.xlu0 %v3531, 126
  %v3542 = vpop.permute.xlu0 %3541
  %3543 = vrot.lane.b32.xlu0 %v3532, 126
  %v3544 = vpop.permute.xlu0 %3543
  %v3549 = vadd.f32 %v3373, %v3538
  %v3550 = vadd.f32 %v3374, %v3540
  %v3551 = vadd.f32 %v3375, %v3542
  %v3552 = vadd.f32 %v3376, %v3544
  %v3553 = vmul.f32 %v3037, %v997
  %v3554 = vmul.f32 %v3038, %v1001
  %v3555 = vmul.f32 %v3039, %v1005
  %v3556 = vmul.f32 %v3040, %v1009
  %v3557 = vadd.f32 %v3553, 0.0
  %v3558 = vadd.f32 %v3554, 0.0
  %v3559 = vadd.f32 %v3555, 0.0
  %v3560 = vadd.f32 %v3556, 0.0
  %v3561 = vmul.f32 %v3037, %v1021
  %v3562 = vmul.f32 %v3038, %v1025
  %v3563 = vmul.f32 %v3039, %v1029
  %v3564 = vmul.f32 %v3040, %v1033
  %3569 = vrot.lane.b32.xlu0 %v3561, 120
  %v3570 = vpop.permute.xlu0 %3569
  %3571 = vrot.lane.b32.xlu0 %v3562, 120
  %v3572 = vpop.permute.xlu0 %3571
  %3573 = vrot.lane.b32.xlu0 %v3563, 120
  %v3574 = vpop.permute.xlu0 %3573
  %3575 = vrot.lane.b32.xlu0 %v3564, 120
  %v3576 = vpop.permute.xlu0 %3575
  %v3581 = vadd.f32 %v3557, %v3570
  %v3582 = vadd.f32 %v3558, %v3572
  %v3583 = vadd.f32 %v3559, %v3574
  %v3584 = vadd.f32 %v3560, %v3576
  %v3585 = vmul.f32 %v3037, %v1061
  %v3586 = vmul.f32 %v3038, %v1065
  %v3587 = vmul.f32 %v3039, %v1069
  %v3588 = vmul.f32 %v3040, %v1073
  %3593 = vrot.lane.b32.xlu0 %v3585, 112
  %v3594 = vpop.permute.xlu0 %3593
  %3595 = vrot.lane.b32.xlu0 %v3586, 112
  %v3596 = vpop.permute.xlu0 %3595
  %3597 = vrot.lane.b32.xlu0 %v3587, 112
  %v3598 = vpop.permute.xlu0 %3597
  %3599 = vrot.lane.b32.xlu0 %v3588, 112
  %v3600 = vpop.permute.xlu0 %3599
  %v3605 = vadd.f32 %v3581, %v3594
  %v3606 = vadd.f32 %v3582, %v3596
  %v3607 = vadd.f32 %v3583, %v3598
  %v3608 = vadd.f32 %v3584, %v3600
  %v3609 = vmul.f32 %v3037, %v1101
  %v3610 = vmul.f32 %v3038, %v1105
  %v3611 = vmul.f32 %v3039, %v1109
  %v3612 = vmul.f32 %v3040, %v1113
  %3617 = vrot.lane.b32.xlu0 %v3609, 104
  %v3618 = vpop.permute.xlu0 %3617
  %3619 = vrot.lane.b32.xlu0 %v3610, 104
  %v3620 = vpop.permute.xlu0 %3619
  %3621 = vrot.lane.b32.xlu0 %v3611, 104
  %v3622 = vpop.permute.xlu0 %3621
  %3623 = vrot.lane.b32.xlu0 %v3612, 104
  %v3624 = vpop.permute.xlu0 %3623
  %v3629 = vadd.f32 %v3605, %v3618
  %v3630 = vadd.f32 %v3606, %v3620
  %v3631 = vadd.f32 %v3607, %v3622
  %v3632 = vadd.f32 %v3608, %v3624
  %v3633 = vmul.f32 %v3037, %v1141
  %v3634 = vmul.f32 %v3038, %v1145
  %v3635 = vmul.f32 %v3039, %v1149
  %v3636 = vmul.f32 %v3040, %v1153
  %3641 = vrot.lane.b32.xlu0 %v3633, 96
  %v3642 = vpop.permute.xlu0 %3641
  %3643 = vrot.lane.b32.xlu0 %v3634, 96
  %v3644 = vpop.permute.xlu0 %3643
  %3645 = vrot.lane.b32.xlu0 %v3635, 96
  %v3646 = vpop.permute.xlu0 %3645
  %3647 = vrot.lane.b32.xlu0 %v3636, 96
  %v3648 = vpop.permute.xlu0 %3647
  %v3653 = vadd.f32 %v3629, %v3642
  %v3654 = vadd.f32 %v3630, %v3644
  %v3655 = vadd.f32 %v3631, %v3646
  %v3656 = vadd.f32 %v3632, %v3648
  %v3657 = vmul.f32 %v3037, %v1181
  %v3658 = vmul.f32 %v3038, %v1185
  %v3659 = vmul.f32 %v3039, %v1189
  %v3660 = vmul.f32 %v3040, %v1193
  %3665 = vrot.lane.b32.xlu0 %v3657, 88
  %v3666 = vpop.permute.xlu0 %3665
  %3667 = vrot.lane.b32.xlu0 %v3658, 88
  %v3668 = vpop.permute.xlu0 %3667
  %3669 = vrot.lane.b32.xlu0 %v3659, 88
  %v3670 = vpop.permute.xlu0 %3669
  %3671 = vrot.lane.b32.xlu0 %v3660, 88
  %v3672 = vpop.permute.xlu0 %3671
  %v3677 = vadd.f32 %v3653, %v3666
  %v3678 = vadd.f32 %v3654, %v3668
  %v3679 = vadd.f32 %v3655, %v3670
  %v3680 = vadd.f32 %v3656, %v3672
  %v3681 = vmul.f32 %v3037, %v1221
  %v3682 = vmul.f32 %v3038, %v1225
  %v3683 = vmul.f32 %v3039, %v1229
  %v3684 = vmul.f32 %v3040, %v1233
  %3689 = vrot.lane.b32.xlu0 %v3681, 80
  %v3690 = vpop.permute.xlu0 %3689
  %3691 = vrot.lane.b32.xlu0 %v3682, 80
  %v3692 = vpop.permute.xlu0 %3691
  %3693 = vrot.lane.b32.xlu0 %v3683, 80
  %v3694 = vpop.permute.xlu0 %3693
  %3695 = vrot.lane.b32.xlu0 %v3684, 80
  %v3696 = vpop.permute.xlu0 %3695
  %v3701 = vadd.f32 %v3677, %v3690
  %v3702 = vadd.f32 %v3678, %v3692
  %v3703 = vadd.f32 %v3679, %v3694
  %v3704 = vadd.f32 %v3680, %v3696
  %3709 = vrot.lane.b32.xlu0 %v3701, 125
  %v3710 = vpop.permute.xlu0 %3709
  %3711 = vrot.lane.b32.xlu0 %v3702, 125
  %v3712 = vpop.permute.xlu0 %3711
  %3713 = vrot.lane.b32.xlu0 %v3703, 125
  %v3714 = vpop.permute.xlu0 %3713
  %3715 = vrot.lane.b32.xlu0 %v3704, 125
  %v3716 = vpop.permute.xlu0 %3715
  %v3721 = vadd.f32 %v3549, %v3710
  %v3722 = vadd.f32 %v3550, %v3712
  %v3723 = vadd.f32 %v3551, %v3714
  %v3724 = vadd.f32 %v3552, %v3716
  %v3725 = vmul.f32 %v3037, %v1281
  %v3726 = vmul.f32 %v3038, %v1285
  %v3727 = vmul.f32 %v3039, %v1289
  %v3728 = vmul.f32 %v3040, %v1293
  %v3729 = vadd.f32 %v3725, 0.0
  %v3730 = vadd.f32 %v3726, 0.0
  %v3731 = vadd.f32 %v3727, 0.0
  %v3732 = vadd.f32 %v3728, 0.0
  %v3733 = vmul.f32 %v3037, %v1305
  %v3734 = vmul.f32 %v3038, %v1309
  %v3735 = vmul.f32 %v3039, %v1313
  %v3736 = vmul.f32 %v3040, %v1317
  %3741 = vrot.lane.b32.xlu0 %v3733, 120
  %v3742 = vpop.permute.xlu0 %3741
  %3743 = vrot.lane.b32.xlu0 %v3734, 120
  %v3744 = vpop.permute.xlu0 %3743
  %3745 = vrot.lane.b32.xlu0 %v3735, 120
  %v3746 = vpop.permute.xlu0 %3745
  %3747 = vrot.lane.b32.xlu0 %v3736, 120
  %v3748 = vpop.permute.xlu0 %3747
  %v3753 = vadd.f32 %v3729, %v3742
  %v3754 = vadd.f32 %v3730, %v3744
  %v3755 = vadd.f32 %v3731, %v3746
  %v3756 = vadd.f32 %v3732, %v3748
  %v3757 = vmul.f32 %v3037, %v1345
  %v3758 = vmul.f32 %v3038, %v1349
  %v3759 = vmul.f32 %v3039, %v1353
  %v3760 = vmul.f32 %v3040, %v1357
  %3765 = vrot.lane.b32.xlu0 %v3757, 112
  %v3766 = vpop.permute.xlu0 %3765
  %3767 = vrot.lane.b32.xlu0 %v3758, 112
  %v3768 = vpop.permute.xlu0 %3767
  %3769 = vrot.lane.b32.xlu0 %v3759, 112
  %v3770 = vpop.permute.xlu0 %3769
  %3771 = vrot.lane.b32.xlu0 %v3760, 112
  %v3772 = vpop.permute.xlu0 %3771
  %v3777 = vadd.f32 %v3753, %v3766
  %v3778 = vadd.f32 %v3754, %v3768
  %v3779 = vadd.f32 %v3755, %v3770
  %v3780 = vadd.f32 %v3756, %v3772
  %v3781 = vmul.f32 %v3037, %v1385
  %v3782 = vmul.f32 %v3038, %v1389
  %v3783 = vmul.f32 %v3039, %v1393
  %v3784 = vmul.f32 %v3040, %v1397
  %3789 = vrot.lane.b32.xlu0 %v3781, 104
  %v3790 = vpop.permute.xlu0 %3789
  %3791 = vrot.lane.b32.xlu0 %v3782, 104
  %v3792 = vpop.permute.xlu0 %3791
  %3793 = vrot.lane.b32.xlu0 %v3783, 104
  %v3794 = vpop.permute.xlu0 %3793
  %3795 = vrot.lane.b32.xlu0 %v3784, 104
  %v3796 = vpop.permute.xlu0 %3795
  %v3801 = vadd.f32 %v3777, %v3790
  %v3802 = vadd.f32 %v3778, %v3792
  %v3803 = vadd.f32 %v3779, %v3794
  %v3804 = vadd.f32 %v3780, %v3796
  %v3805 = vmul.f32 %v3037, %v1425
  %v3806 = vmul.f32 %v3038, %v1429
  %v3807 = vmul.f32 %v3039, %v1433
  %v3808 = vmul.f32 %v3040, %v1437
  %3813 = vrot.lane.b32.xlu0 %v3805, 96
  %v3814 = vpop.permute.xlu0 %3813
  %3815 = vrot.lane.b32.xlu0 %v3806, 96
  %v3816 = vpop.permute.xlu0 %3815
  %3817 = vrot.lane.b32.xlu0 %v3807, 96
  %v3818 = vpop.permute.xlu0 %3817
  %3819 = vrot.lane.b32.xlu0 %v3808, 96
  %v3820 = vpop.permute.xlu0 %3819
  %v3825 = vadd.f32 %v3801, %v3814
  %v3826 = vadd.f32 %v3802, %v3816
  %v3827 = vadd.f32 %v3803, %v3818
  %v3828 = vadd.f32 %v3804, %v3820
  %v3829 = vmul.f32 %v3037, %v1465
  %v3830 = vmul.f32 %v3038, %v1469
  %v3831 = vmul.f32 %v3039, %v1473
  %v3832 = vmul.f32 %v3040, %v1477
  %3837 = vrot.lane.b32.xlu0 %v3829, 88
  %v3838 = vpop.permute.xlu0 %3837
  %3839 = vrot.lane.b32.xlu0 %v3830, 88
  %v3840 = vpop.permute.xlu0 %3839
  %3841 = vrot.lane.b32.xlu0 %v3831, 88
  %v3842 = vpop.permute.xlu0 %3841
  %3843 = vrot.lane.b32.xlu0 %v3832, 88
  %v3844 = vpop.permute.xlu0 %3843
  %v3849 = vadd.f32 %v3825, %v3838
  %v3850 = vadd.f32 %v3826, %v3840
  %v3851 = vadd.f32 %v3827, %v3842
  %v3852 = vadd.f32 %v3828, %v3844
  %v3853 = vmul.f32 %v3037, %v1505
  %v3854 = vmul.f32 %v3038, %v1509
  %v3855 = vmul.f32 %v3039, %v1513
  %v3856 = vmul.f32 %v3040, %v1517
  %3861 = vrot.lane.b32.xlu0 %v3853, 80
  %v3862 = vpop.permute.xlu0 %3861
  %3863 = vrot.lane.b32.xlu0 %v3854, 80
  %v3864 = vpop.permute.xlu0 %3863
  %3865 = vrot.lane.b32.xlu0 %v3855, 80
  %v3866 = vpop.permute.xlu0 %3865
  %3867 = vrot.lane.b32.xlu0 %v3856, 80
  %v3868 = vpop.permute.xlu0 %3867
  %v3873 = vadd.f32 %v3849, %v3862
  %v3874 = vadd.f32 %v3850, %v3864
  %v3875 = vadd.f32 %v3851, %v3866
  %v3876 = vadd.f32 %v3852, %v3868
  %v3877 = vmul.f32 %v3873, %v1549
  %v3878 = vmul.f32 %v3874, %v1549
  %v3879 = vmul.f32 %v3875, %v1549
  %v3880 = vmul.f32 %v3876, %v1549
  %3885 = vrot.lane.b32.xlu0 %v3877, 124
  %v3886 = vpop.permute.xlu0 %3885
  %3887 = vrot.lane.b32.xlu0 %v3878, 124
  %v3888 = vpop.permute.xlu0 %3887
  %3889 = vrot.lane.b32.xlu0 %v3879, 124
  %v3890 = vpop.permute.xlu0 %3889
  %3891 = vrot.lane.b32.xlu0 %v3880, 124
  %v3892 = vpop.permute.xlu0 %3891
  %v3897 = vadd.f32 %v3721, %v3886
  %v3898 = vadd.f32 %v3722, %v3888
  %v3899 = vadd.f32 %v3723, %v3890
  %v3900 = vadd.f32 %v3724, %v3892
  %v3901 = vmul.f32 %v3037, %v1577
  %v3902 = vmul.f32 %v3038, %v1581
  %v3903 = vmul.f32 %v3039, %v1585
  %v3904 = vmul.f32 %v3040, %v1589
  %v3905 = vadd.f32 %v3901, 0.0
  %v3906 = vadd.f32 %v3902, 0.0
  %v3907 = vadd.f32 %v3903, 0.0
  %v3908 = vadd.f32 %v3904, 0.0
  %v3909 = vmul.f32 %v3037, %v1601
  %v3910 = vmul.f32 %v3038, %v1605
  %v3911 = vmul.f32 %v3039, %v1609
  %v3912 = vmul.f32 %v3040, %v1613
  %3917 = vrot.lane.b32.xlu0 %v3909, 120
  %v3918 = vpop.permute.xlu0 %3917
  %3919 = vrot.lane.b32.xlu0 %v3910, 120
  %v3920 = vpop.permute.xlu0 %3919
  %3921 = vrot.lane.b32.xlu0 %v3911, 120
  %v3922 = vpop.permute.xlu0 %3921
  %3923 = vrot.lane.b32.xlu0 %v3912, 120
  %v3924 = vpop.permute.xlu0 %3923
  %v3929 = vadd.f32 %v3905, %v3918
  %v3930 = vadd.f32 %v3906, %v3920
  %v3931 = vadd.f32 %v3907, %v3922
  %v3932 = vadd.f32 %v3908, %v3924
  %v3933 = vmul.f32 %v3037, %v1641
  %v3934 = vmul.f32 %v3038, %v1645
  %v3935 = vmul.f32 %v3039, %v1649
  %v3936 = vmul.f32 %v3040, %v1653
  %3941 = vrot.lane.b32.xlu0 %v3933, 112
  %v3942 = vpop.permute.xlu0 %3941
  %3943 = vrot.lane.b32.xlu0 %v3934, 112
  %v3944 = vpop.permute.xlu0 %3943
  %3945 = vrot.lane.b32.xlu0 %v3935, 112
  %v3946 = vpop.permute.xlu0 %3945
  %3947 = vrot.lane.b32.xlu0 %v3936, 112
  %v3948 = vpop.permute.xlu0 %3947
  %v3953 = vadd.f32 %v3929, %v3942
  %v3954 = vadd.f32 %v3930, %v3944
  %v3955 = vadd.f32 %v3931, %v3946
  %v3956 = vadd.f32 %v3932, %v3948
  %v3957 = vmul.f32 %v3037, %v1681
  %v3958 = vmul.f32 %v3038, %v1685
  %v3959 = vmul.f32 %v3039, %v1689
  %v3960 = vmul.f32 %v3040, %v1693
  %3965 = vrot.lane.b32.xlu0 %v3957, 104
  %v3966 = vpop.permute.xlu0 %3965
  %3967 = vrot.lane.b32.xlu0 %v3958, 104
  %v3968 = vpop.permute.xlu0 %3967
  %3969 = vrot.lane.b32.xlu0 %v3959, 104
  %v3970 = vpop.permute.xlu0 %3969
  %3971 = vrot.lane.b32.xlu0 %v3960, 104
  %v3972 = vpop.permute.xlu0 %3971
  %v3977 = vadd.f32 %v3953, %v3966
  %v3978 = vadd.f32 %v3954, %v3968
  %v3979 = vadd.f32 %v3955, %v3970
  %v3980 = vadd.f32 %v3956, %v3972
  %v3981 = vmul.f32 %v3037, %v1721
  %v3982 = vmul.f32 %v3038, %v1725
  %v3983 = vmul.f32 %v3039, %v1729
  %v3984 = vmul.f32 %v3040, %v1733
  %3989 = vrot.lane.b32.xlu0 %v3981, 96
  %v3990 = vpop.permute.xlu0 %3989
  %3991 = vrot.lane.b32.xlu0 %v3982, 96
  %v3992 = vpop.permute.xlu0 %3991
  %3993 = vrot.lane.b32.xlu0 %v3983, 96
  %v3994 = vpop.permute.xlu0 %3993
  %3995 = vrot.lane.b32.xlu0 %v3984, 96
  %v3996 = vpop.permute.xlu0 %3995
  %v4001 = vadd.f32 %v3977, %v3990
  %v4002 = vadd.f32 %v3978, %v3992
  %v4003 = vadd.f32 %v3979, %v3994
  %v4004 = vadd.f32 %v3980, %v3996
  %v4005 = vmul.f32 %v3037, %v1761
  %v4006 = vmul.f32 %v3038, %v1765
  %v4007 = vmul.f32 %v3039, %v1769
  %v4008 = vmul.f32 %v3040, %v1773
  %4013 = vrot.lane.b32.xlu0 %v4005, 88
  %v4014 = vpop.permute.xlu0 %4013
  %4015 = vrot.lane.b32.xlu0 %v4006, 88
  %v4016 = vpop.permute.xlu0 %4015
  %4017 = vrot.lane.b32.xlu0 %v4007, 88
  %v4018 = vpop.permute.xlu0 %4017
  %4019 = vrot.lane.b32.xlu0 %v4008, 88
  %v4020 = vpop.permute.xlu0 %4019
  %v4025 = vadd.f32 %v4001, %v4014
  %v4026 = vadd.f32 %v4002, %v4016
  %v4027 = vadd.f32 %v4003, %v4018
  %v4028 = vadd.f32 %v4004, %v4020
  %v4029 = vmul.f32 %v3037, %v1801
  %v4030 = vmul.f32 %v3038, %v1805
  %v4031 = vmul.f32 %v3039, %v1809
  %v4032 = vmul.f32 %v3040, %v1813
  %4037 = vrot.lane.b32.xlu0 %v4029, 80
  %v4038 = vpop.permute.xlu0 %4037
  %4039 = vrot.lane.b32.xlu0 %v4030, 80
  %v4040 = vpop.permute.xlu0 %4039
  %4041 = vrot.lane.b32.xlu0 %v4031, 80
  %v4042 = vpop.permute.xlu0 %4041
  %4043 = vrot.lane.b32.xlu0 %v4032, 80
  %v4044 = vpop.permute.xlu0 %4043
  %v4049 = vadd.f32 %v4025, %v4038
  %v4050 = vadd.f32 %v4026, %v4040
  %v4051 = vadd.f32 %v4027, %v4042
  %v4052 = vadd.f32 %v4028, %v4044
  %v4053 = vmul.f32 %v4049, %v1845
  %v4054 = vmul.f32 %v4050, %v1845
  %v4055 = vmul.f32 %v4051, %v1845
  %v4056 = vmul.f32 %v4052, %v1845
  %4061 = vrot.lane.b32.xlu0 %v4053, 123
  %v4062 = vpop.permute.xlu0 %4061
  %4063 = vrot.lane.b32.xlu0 %v4054, 123
  %v4064 = vpop.permute.xlu0 %4063
  %4065 = vrot.lane.b32.xlu0 %v4055, 123
  %v4066 = vpop.permute.xlu0 %4065
  %4067 = vrot.lane.b32.xlu0 %v4056, 123
  %v4068 = vpop.permute.xlu0 %4067
  %v4073 = vadd.f32 %v3897, %v4062
  %v4074 = vadd.f32 %v3898, %v4064
  %v4075 = vadd.f32 %v3899, %v4066
  %v4076 = vadd.f32 %v3900, %v4068
  %v4077 = vmul.f32 %v3037, %v1873
  %v4078 = vmul.f32 %v3038, %v1877
  %v4079 = vmul.f32 %v3039, %v1881
  %v4080 = vmul.f32 %v3040, %v1885
  %v4081 = vadd.f32 %v4077, 0.0
  %v4082 = vadd.f32 %v4078, 0.0
  %v4083 = vadd.f32 %v4079, 0.0
  %v4084 = vadd.f32 %v4080, 0.0
  %v4085 = vmul.f32 %v3037, %v1897
  %v4086 = vmul.f32 %v3038, %v1901
  %v4087 = vmul.f32 %v3039, %v1905
  %v4088 = vmul.f32 %v3040, %v1909
  %4093 = vrot.lane.b32.xlu0 %v4085, 120
  %v4094 = vpop.permute.xlu0 %4093
  %4095 = vrot.lane.b32.xlu0 %v4086, 120
  %v4096 = vpop.permute.xlu0 %4095
  %4097 = vrot.lane.b32.xlu0 %v4087, 120
  %v4098 = vpop.permute.xlu0 %4097
  %4099 = vrot.lane.b32.xlu0 %v4088, 120
  %v4100 = vpop.permute.xlu0 %4099
  %v4105 = vadd.f32 %v4081, %v4094
  %v4106 = vadd.f32 %v4082, %v4096
  %v4107 = vadd.f32 %v4083, %v4098
  %v4108 = vadd.f32 %v4084, %v4100
  %v4109 = vmul.f32 %v3037, %v1937
  %v4110 = vmul.f32 %v3038, %v1941
  %v4111 = vmul.f32 %v3039, %v1945
  %v4112 = vmul.f32 %v3040, %v1949
  %4117 = vrot.lane.b32.xlu0 %v4109, 112
  %v4118 = vpop.permute.xlu0 %4117
  %4119 = vrot.lane.b32.xlu0 %v4110, 112
  %v4120 = vpop.permute.xlu0 %4119
  %4121 = vrot.lane.b32.xlu0 %v4111, 112
  %v4122 = vpop.permute.xlu0 %4121
  %4123 = vrot.lane.b32.xlu0 %v4112, 112
  %v4124 = vpop.permute.xlu0 %4123
  %v4129 = vadd.f32 %v4105, %v4118
  %v4130 = vadd.f32 %v4106, %v4120
  %v4131 = vadd.f32 %v4107, %v4122
  %v4132 = vadd.f32 %v4108, %v4124
  %v4133 = vmul.f32 %v3037, %v1977
  %v4134 = vmul.f32 %v3038, %v1981
  %v4135 = vmul.f32 %v3039, %v1985
  %v4136 = vmul.f32 %v3040, %v1989
  %4141 = vrot.lane.b32.xlu0 %v4133, 104
  %v4142 = vpop.permute.xlu0 %4141
  %4143 = vrot.lane.b32.xlu0 %v4134, 104
  %v4144 = vpop.permute.xlu0 %4143
  %4145 = vrot.lane.b32.xlu0 %v4135, 104
  %v4146 = vpop.permute.xlu0 %4145
  %4147 = vrot.lane.b32.xlu0 %v4136, 104
  %v4148 = vpop.permute.xlu0 %4147
  %v4153 = vadd.f32 %v4129, %v4142
  %v4154 = vadd.f32 %v4130, %v4144
  %v4155 = vadd.f32 %v4131, %v4146
  %v4156 = vadd.f32 %v4132, %v4148
  %v4157 = vmul.f32 %v3037, %v2017
  %v4158 = vmul.f32 %v3038, %v2021
  %v4159 = vmul.f32 %v3039, %v2025
  %v4160 = vmul.f32 %v3040, %v2029
  %4165 = vrot.lane.b32.xlu0 %v4157, 96
  %v4166 = vpop.permute.xlu0 %4165
  %4167 = vrot.lane.b32.xlu0 %v4158, 96
  %v4168 = vpop.permute.xlu0 %4167
  %4169 = vrot.lane.b32.xlu0 %v4159, 96
  %v4170 = vpop.permute.xlu0 %4169
  %4171 = vrot.lane.b32.xlu0 %v4160, 96
  %v4172 = vpop.permute.xlu0 %4171
  %v4177 = vadd.f32 %v4153, %v4166
  %v4178 = vadd.f32 %v4154, %v4168
  %v4179 = vadd.f32 %v4155, %v4170
  %v4180 = vadd.f32 %v4156, %v4172
  %v4181 = vmul.f32 %v3037, %v2057
  %v4182 = vmul.f32 %v3038, %v2061
  %v4183 = vmul.f32 %v3039, %v2065
  %v4184 = vmul.f32 %v3040, %v2069
  %4189 = vrot.lane.b32.xlu0 %v4181, 88
  %v4190 = vpop.permute.xlu0 %4189
  %4191 = vrot.lane.b32.xlu0 %v4182, 88
  %v4192 = vpop.permute.xlu0 %4191
  %4193 = vrot.lane.b32.xlu0 %v4183, 88
  %v4194 = vpop.permute.xlu0 %4193
  %4195 = vrot.lane.b32.xlu0 %v4184, 88
  %v4196 = vpop.permute.xlu0 %4195
  %v4201 = vadd.f32 %v4177, %v4190
  %v4202 = vadd.f32 %v4178, %v4192
  %v4203 = vadd.f32 %v4179, %v4194
  %v4204 = vadd.f32 %v4180, %v4196
  %v4205 = vmul.f32 %v3037, %v2097
  %v4206 = vmul.f32 %v3038, %v2101
  %v4207 = vmul.f32 %v3039, %v2105
  %v4208 = vmul.f32 %v3040, %v2109
  %4213 = vrot.lane.b32.xlu0 %v4205, 80
  %v4214 = vpop.permute.xlu0 %4213
  %4215 = vrot.lane.b32.xlu0 %v4206, 80
  %v4216 = vpop.permute.xlu0 %4215
  %4217 = vrot.lane.b32.xlu0 %v4207, 80
  %v4218 = vpop.permute.xlu0 %4217
  %4219 = vrot.lane.b32.xlu0 %v4208, 80
  %v4220 = vpop.permute.xlu0 %4219
  %v4225 = vadd.f32 %v4201, %v4214
  %v4226 = vadd.f32 %v4202, %v4216
  %v4227 = vadd.f32 %v4203, %v4218
  %v4228 = vadd.f32 %v4204, %v4220
  %v4229 = vmul.f32 %v4225, %v2141
  %v4230 = vmul.f32 %v4226, %v2141
  %v4231 = vmul.f32 %v4227, %v2141
  %v4232 = vmul.f32 %v4228, %v2141
  %4237 = vrot.lane.b32.xlu0 %v4229, 122
  %v4238 = vpop.permute.xlu0 %4237
  %4239 = vrot.lane.b32.xlu0 %v4230, 122
  %v4240 = vpop.permute.xlu0 %4239
  %4241 = vrot.lane.b32.xlu0 %v4231, 122
  %v4242 = vpop.permute.xlu0 %4241
  %4243 = vrot.lane.b32.xlu0 %v4232, 122
  %v4244 = vpop.permute.xlu0 %4243
  %v4249 = vadd.f32 %v4073, %v4238
  %v4250 = vadd.f32 %v4074, %v4240
  %v4251 = vadd.f32 %v4075, %v4242
  %v4252 = vadd.f32 %v4076, %v4244
  %v4253 = vadd.f32 %v4249, %v2170
  %v4254 = vadd.f32 %v4250, %v2175
  %v4255 = vadd.f32 %v4251, %v2180
  %v4256 = vadd.f32 %v4252, %v2185
  %v4257 = vsel %vm2191, %v4253, 0.0
  %4258 = vadd.xlane.f32.xlu0 %v4257
  %v4259 = vpop.xlane.xlu0 %4258
  %v4260 = vsel %vm2191, %v4254, 0.0
  %4261 = vadd.xlane.f32.xlu0 %v4260
  %v4262 = vpop.xlane.xlu0 %4261
  %v4263 = vsel %vm2191, %v4255, 0.0
  %4264 = vadd.xlane.f32.xlu0 %v4263
  %v4265 = vpop.xlane.xlu0 %4264
  %v4266 = vsel %vm2191, %v4256, 0.0
  %4267 = vadd.xlane.f32.xlu0 %v4266
  %v4268 = vpop.xlane.xlu0 %4267
  %v4269 = vmul.f32 %v4259, %v2204
  %v4270 = vmul.f32 %v4262, %v2204
  %v4271 = vmul.f32 %v4265, %v2204
  %v4272 = vmul.f32 %v4268, %v2204
  %v4273 = vsel %vm2191, %v4253, -inf
  %4274 = vmax.xlane.f32.xlu0 %v4273
  %v4275 = vpop.xlane.xlu0 %4274
  %v4276 = vsel %vm2191, %v4254, -inf
  %4277 = vmax.xlane.f32.xlu0 %v4276
  %v4278 = vpop.xlane.xlu0 %4277
  %v4279 = vsel %vm2191, %v4255, -inf
  %4280 = vmax.xlane.f32.xlu0 %v4279
  %v4281 = vpop.xlane.xlu0 %4280
  %v4282 = vsel %vm2191, %v4256, -inf
  %4283 = vmax.xlane.f32.xlu0 %v4282
  %v4284 = vpop.xlane.xlu0 %4283
  %v4285 = vmul.f32 %v4269, %v71
  %v4286 = vmul.f32 %v4270, %v72
  %v4287 = vmul.f32 %v4271, %v73
  %v4288 = vmul.f32 %v4272, %v74
  %v4289 = vsel %vm2225, %v4285, 0.0
  %v4290 = vsel %vm2225, %v4286, 0.0
  %v4291 = vadd.f32 %v4289, %v4290
  %v4292 = vsel %vm2225, %v4287, 0.0
  %v4293 = vadd.f32 %v4291, %v4292
  %v4294 = vsel %vm2225, %v4288, 0.0
  %v4295 = vadd.f32 %v4293, %v4294
  %v4296 = vrot.slane %v4295, 4
  %v4297 = vadd.f32 %v4295, %v4296
  %v4298 = vrot.slane %v4297, 2
  %v4299 = vadd.f32 %v4297, %v4298
  %v4300 = vrot.slane %v4299, 1
  %v4301 = vadd.f32 %v4299, %v4300
  %v4302 = vmax.f32 %v4301, 0.0
  %v4303 = vmul.f32 %v4275, %v71
  %v4304 = vmul.f32 %v4278, %v72
  %v4305 = vmul.f32 %v4281, %v73
  %v4306 = vmul.f32 %v4284, %v74
  %v4307 = vsel %vm2225, %v4303, 0.0
  %v4308 = vsel %vm2225, %v4304, 0.0
  %v4309 = vadd.f32 %v4307, %v4308
  %v4310 = vsel %vm2225, %v4305, 0.0
  %v4311 = vadd.f32 %v4309, %v4310
  %v4312 = vsel %vm2225, %v4306, 0.0
  %v4313 = vadd.f32 %v4311, %v4312
  %v4314 = vrot.slane %v4313, 4
  %v4315 = vadd.f32 %v4313, %v4314
  %v4316 = vrot.slane %v4315, 2
  %v4317 = vadd.f32 %v4315, %v4316
  %v4318 = vrot.slane %v4317, 1
  %v4319 = vadd.f32 %v4317, %v4318
  %v4320 = vmax.f32 %v4319, 0.0
  %v4321 = vadd.f32 %v4302, %v4320
  %v4322 = vmul.f32 %v75, %v4321
  %v4323 = vmul.f32 %v76, %v4321
  %v4324 = vmul.f32 %v77, %v4321
  %v4325 = vmul.f32 %v78, %v4321
  %v4326 = vsel %vm2225, %v4322, 0.0
  %4327 = vadd.xlane.f32.xlu0 %v4326
  %v4328 = vpop.xlane.xlu0 %4327
  %v4329 = vsel %vm2225, %v4323, 0.0
  %4330 = vadd.xlane.f32.xlu0 %v4329
  %v4331 = vpop.xlane.xlu0 %4330
  %v4332 = vsel %vm2225, %v4324, 0.0
  %4333 = vadd.xlane.f32.xlu0 %v4332
  %v4334 = vpop.xlane.xlu0 %4333
  %v4335 = vsel %vm2225, %v4325, 0.0
  %4336 = vadd.xlane.f32.xlu0 %v4335
  %v4337 = vpop.xlane.xlu0 %4336
  %v4338 = vxor.u32 %v4328, 2147483648
  %v4339 = vxor.u32 %v4331, 2147483648
  %v4340 = vxor.u32 %v4334, 2147483648
  %v4341 = vxor.u32 %v4337, 2147483648
  %v4342 = vmul.f32 %v4338, 1.442695
  %v4343 = vpow.pop %v4342
  %v4344 = vmul.f32 %v4339, 1.442695
  %v4345 = vpow.pop %v4344
  %v4346 = vmul.f32 %v4340, 1.442695
  %v4347 = vpow.pop %v4346
  %v4348 = vmul.f32 %v4341, 1.442695
  %v4349 = vpow.pop %v4348
  %v4350 = vadd.f32 %v4343, 1.0
  %v4351 = vadd.f32 %v4345, 1.0
  %v4352 = vadd.f32 %v4347, 1.0
  %v4353 = vadd.f32 %v4349, 1.0
  %v4354 = vrcp.pop %v4350
  %v4355 = vmul.f32 1.0, %v4354
  %v4356 = vrcp.pop %v4351
  %v4357 = vmul.f32 1.0, %v4356
  %v4358 = vrcp.pop %v4352
  %v4359 = vmul.f32 1.0, %v4358
  %v4360 = vrcp.pop %v4353
  %v4361 = vmul.f32 1.0, %v4360
  %v4362 = vmul.f32 %v4253, %v4355
  %v4363 = vmul.f32 %v4254, %v4357
  %v4364 = vmul.f32 %v4255, %v4359
  %v4365 = vmul.f32 %v4256, %v4361
  %v4366 = vsel %vm2191, %v4362, 0.0
  %v4367 = vsel %vm2191, %v4363, 0.0
  %v4368 = vadd.f32 %v4366, %v4367
  %v4369 = vsel %vm2191, %v4364, 0.0
  %v4370 = vadd.f32 %v4368, %v4369
  %v4371 = vsel %vm2191, %v4365, 0.0
  %v4372 = vadd.f32 %v4370, %v4371
  %v4373 = vrot.slane %v4372, 4
  %v4374 = vadd.f32 %v4372, %v4373
  %v4375 = vrot.slane %v4374, 2
  %v4376 = vadd.f32 %v4374, %v4375
  %v4377 = vrot.slane %v4376, 1
  %v4378 = vadd.f32 %v4376, %v4377
  %v4379 = vmul.f32 %v4378, %v2316
  %v4382 = vunpack.c.l.s4 1983009808
  %v4383 = vunpack.c.0.s8 %v4382
  %v4384 = vlaneseq
  %v4385 = vshrl.u32 %v4384, 7
  %v4386 = vsub.s32 %v4383, %v4385
  %v4387 = vrot.slane %v4379, %v4386
  %4388 = vrot.lane.b32.xlu0 %v4387, 27
  %v4389 = vpop.permute.xlu0 %4388
  %4391 = vst.msk [vmem:[#allocation3 + $0x2] sm:$0x1] %vm2329, %v4389
  %v4392 = vsel %vm2191, %v4362, -inf
  %v4393 = vsel %vm2191, %v4363, -inf
  %v4394 = vsel %vm2191, %v4364, -inf
  %v4395 = vsel %vm2191, %v4365, -inf
  %v4396 = vmax.f32 %v4392, %v4393
  %v4397 = vmax.f32 %v4394, %v4395
  %v4398 = vmax.f32 %v4396, %v4397
  %v4399 = vrot.slane %v4398, 4
  %v4400 = vmax.f32 %v4398, %v4399
  %v4401 = vrot.slane %v4400, 2
  %v4402 = vmax.f32 %v4400, %v4401
  %v4403 = vrot.slane %v4402, 1
  %v4404 = vmax.f32 %v4402, %v4403
  %v4407 = vunpack.c.l.s4 1983009808
  %v4408 = vunpack.c.0.s8 %v4407
  %v4409 = vlaneseq
  %v4410 = vshrl.u32 %v4409, 7
  %v4411 = vsub.s32 %v4408, %v4410
  %v4412 = vrot.slane %v4404, %v4411
  %4413 = vrot.lane.b32.xlu0 %v4412, 27
  %v4414 = vpop.permute.xlu0 %4413
  %4416 = vst.msk [vmem:[#allocation3 + $0x3] sm:$0x1] %vm2329, %v4414
  %v4417 = vld [vmem:[#allocation3 + $0x2] sm:$0x3]
  %v4418 = vmul.f32 %v4417, %v2360
  %v4419 = vadd.f32 %v4418, 0.0
  %v4420 = vmul.f32 %v4417, %v2366
  %4422 = vrot.lane.b32.xlu0 %v4420, 120
  %v4423 = vpop.permute.xlu0 %4422
  %v4425 = vadd.f32 %v4419, %v4423
  %v4426 = vmul.f32 %v4417, %v2376
  %4428 = vrot.lane.b32.xlu0 %v4426, 112
  %v4429 = vpop.permute.xlu0 %4428
  %v4431 = vadd.f32 %v4425, %v4429
  %v4432 = vmul.f32 %v4417, %v2386
  %4434 = vrot.lane.b32.xlu0 %v4432, 104
  %v4435 = vpop.permute.xlu0 %4434
  %v4437 = vadd.f32 %v4431, %v4435
  %v4438 = vmul.f32 %v4417, %v2396
  %4440 = vrot.lane.b32.xlu0 %v4438, 96
  %v4441 = vpop.permute.xlu0 %4440
  %v4443 = vadd.f32 %v4437, %v4441
  %v4444 = vmul.f32 %v4417, %v2406
  %4446 = vrot.lane.b32.xlu0 %v4444, 88
  %v4447 = vpop.permute.xlu0 %4446
  %v4449 = vadd.f32 %v4443, %v4447
  %v4450 = vmul.f32 %v4417, %v2416
  %4452 = vrot.lane.b32.xlu0 %v4450, 80
  %v4453 = vpop.permute.xlu0 %4452
  %v4455 = vadd.f32 %v4449, %v4453
  %v4456 = vmul.f32 %v4455, %v394
  %v4457 = vadd.f32 %v4456, 0.0
  %v4458 = vmul.f32 %v4417, %v2428
  %v4459 = vadd.f32 %v4458, 0.0
  %v4460 = vmul.f32 %v4417, %v2434
  %4462 = vrot.lane.b32.xlu0 %v4460, 120
  %v4463 = vpop.permute.xlu0 %4462
  %v4465 = vadd.f32 %v4459, %v4463
  %v4466 = vmul.f32 %v4417, %v2444
  %4468 = vrot.lane.b32.xlu0 %v4466, 112
  %v4469 = vpop.permute.xlu0 %4468
  %v4471 = vadd.f32 %v4465, %v4469
  %v4472 = vmul.f32 %v4417, %v2454
  %4474 = vrot.lane.b32.xlu0 %v4472, 104
  %v4475 = vpop.permute.xlu0 %4474
  %v4477 = vadd.f32 %v4471, %v4475
  %v4478 = vmul.f32 %v4417, %v2464
  %4480 = vrot.lane.b32.xlu0 %v4478, 96
  %v4481 = vpop.permute.xlu0 %4480
  %v4483 = vadd.f32 %v4477, %v4481
  %v4484 = vmul.f32 %v4417, %v2474
  %4486 = vrot.lane.b32.xlu0 %v4484, 88
  %v4487 = vpop.permute.xlu0 %4486
  %v4489 = vadd.f32 %v4483, %v4487
  %v4490 = vmul.f32 %v4417, %v2484
  %4492 = vrot.lane.b32.xlu0 %v4490, 80
  %v4493 = vpop.permute.xlu0 %4492
  %v4495 = vadd.f32 %v4489, %v4493
  %v4496 = vmul.f32 %v4495, %v2500
  %4498 = vrot.lane.b32.xlu0 %v4496, 127
  %v4499 = vpop.permute.xlu0 %4498
  %v4501 = vadd.f32 %v4457, %v4499
  %v4502 = vmul.f32 %v4417, %v2511
  %v4503 = vadd.f32 %v4502, 0.0
  %v4504 = vmul.f32 %v4417, %v2517
  %4506 = vrot.lane.b32.xlu0 %v4504, 120
  %v4507 = vpop.permute.xlu0 %4506
  %v4509 = vadd.f32 %v4503, %v4507
  %v4510 = vmul.f32 %v4417, %v2527
  %4512 = vrot.lane.b32.xlu0 %v4510, 112
  %v4513 = vpop.permute.xlu0 %4512
  %v4515 = vadd.f32 %v4509, %v4513
  %v4516 = vmul.f32 %v4417, %v2537
  %4518 = vrot.lane.b32.xlu0 %v4516, 104
  %v4519 = vpop.permute.xlu0 %4518
  %v4521 = vadd.f32 %v4515, %v4519
  %v4522 = vmul.f32 %v4417, %v2547
  %4524 = vrot.lane.b32.xlu0 %v4522, 96
  %v4525 = vpop.permute.xlu0 %4524
  %v4527 = vadd.f32 %v4521, %v4525
  %v4528 = vmul.f32 %v4417, %v2557
  %4530 = vrot.lane.b32.xlu0 %v4528, 88
  %v4531 = vpop.permute.xlu0 %4530
  %v4533 = vadd.f32 %v4527, %v4531
  %v4534 = vmul.f32 %v4417, %v2567
  %4536 = vrot.lane.b32.xlu0 %v4534, 80
  %v4537 = vpop.permute.xlu0 %4536
  %v4539 = vadd.f32 %v4533, %v4537
  %v4540 = vmul.f32 %v4539, %v2583
  %4542 = vrot.lane.b32.xlu0 %v4540, 126
  %v4543 = vpop.permute.xlu0 %4542
  %v4545 = vadd.f32 %v4501, %v4543
  %v4546 = vmul.f32 %v4417, %v2594
  %v4547 = vadd.f32 %v4546, 0.0
  %v4548 = vmul.f32 %v4417, %v2600
  %4550 = vrot.lane.b32.xlu0 %v4548, 120
  %v4551 = vpop.permute.xlu0 %4550
  %v4553 = vadd.f32 %v4547, %v4551
  %v4554 = vmul.f32 %v4417, %v2610
  %4556 = vrot.lane.b32.xlu0 %v4554, 112
  %v4557 = vpop.permute.xlu0 %4556
  %v4559 = vadd.f32 %v4553, %v4557
  %v4560 = vmul.f32 %v4417, %v2620
  %4562 = vrot.lane.b32.xlu0 %v4560, 104
  %v4563 = vpop.permute.xlu0 %4562
  %v4565 = vadd.f32 %v4559, %v4563
  %v4566 = vmul.f32 %v4417, %v2630
  %4568 = vrot.lane.b32.xlu0 %v4566, 96
  %v4569 = vpop.permute.xlu0 %4568
  %v4571 = vadd.f32 %v4565, %v4569
  %v4572 = vmul.f32 %v4417, %v2640
  %4574 = vrot.lane.b32.xlu0 %v4572, 88
  %v4575 = vpop.permute.xlu0 %4574
  %v4577 = vadd.f32 %v4571, %v4575
  %v4578 = vmul.f32 %v4417, %v2650
  %4580 = vrot.lane.b32.xlu0 %v4578, 80
  %v4581 = vpop.permute.xlu0 %4580
  %v4583 = vadd.f32 %v4577, %v4581
  %4585 = vrot.lane.b32.xlu0 %v4583, 125
  %v4586 = vpop.permute.xlu0 %4585
  %v4588 = vadd.f32 %v4545, %v4586
  %v4589 = vmul.f32 %v4417, %v2665
  %v4590 = vadd.f32 %v4589, 0.0
  %v4591 = vmul.f32 %v4417, %v2671
  %4593 = vrot.lane.b32.xlu0 %v4591, 120
  %v4594 = vpop.permute.xlu0 %4593
  %v4596 = vadd.f32 %v4590, %v4594
  %v4597 = vmul.f32 %v4417, %v2681
  %4599 = vrot.lane.b32.xlu0 %v4597, 112
  %v4600 = vpop.permute.xlu0 %4599
  %v4602 = vadd.f32 %v4596, %v4600
  %v4603 = vmul.f32 %v4417, %v2691
  %4605 = vrot.lane.b32.xlu0 %v4603, 104
  %v4606 = vpop.permute.xlu0 %4605
  %v4608 = vadd.f32 %v4602, %v4606
  %v4609 = vmul.f32 %v4417, %v2701
  %4611 = vrot.lane.b32.xlu0 %v4609, 96
  %v4612 = vpop.permute.xlu0 %4611
  %v4614 = vadd.f32 %v4608, %v4612
  %v4615 = vmul.f32 %v4417, %v2711
  %4617 = vrot.lane.b32.xlu0 %v4615, 88
  %v4618 = vpop.permute.xlu0 %4617
  %v4620 = vadd.f32 %v4614, %v4618
  %v4621 = vmul.f32 %v4417, %v2721
  %4623 = vrot.lane.b32.xlu0 %v4621, 80
  %v4624 = vpop.permute.xlu0 %4623
  %v4626 = vadd.f32 %v4620, %v4624
  %v4627 = vmul.f32 %v4626, %v2737
  %4629 = vrot.lane.b32.xlu0 %v4627, 124
  %v4630 = vpop.permute.xlu0 %4629
  %v4632 = vadd.f32 %v4588, %v4630
  %v4633 = vmul.f32 %v4417, %v2748
  %v4634 = vadd.f32 %v4633, 0.0
  %v4635 = vmul.f32 %v4417, %v2754
  %4637 = vrot.lane.b32.xlu0 %v4635, 120
  %v4638 = vpop.permute.xlu0 %4637
  %v4640 = vadd.f32 %v4634, %v4638
  %v4641 = vmul.f32 %v4417, %v2764
  %4643 = vrot.lane.b32.xlu0 %v4641, 112
  %v4644 = vpop.permute.xlu0 %4643
  %v4646 = vadd.f32 %v4640, %v4644
  %v4647 = vmul.f32 %v4417, %v2774
  %4649 = vrot.lane.b32.xlu0 %v4647, 104
  %v4650 = vpop.permute.xlu0 %4649
  %v4652 = vadd.f32 %v4646, %v4650
  %v4653 = vmul.f32 %v4417, %v2784
  %4655 = vrot.lane.b32.xlu0 %v4653, 96
  %v4656 = vpop.permute.xlu0 %4655
  %v4658 = vadd.f32 %v4652, %v4656
  %v4659 = vmul.f32 %v4417, %v2794
  %4661 = vrot.lane.b32.xlu0 %v4659, 88
  %v4662 = vpop.permute.xlu0 %4661
  %v4664 = vadd.f32 %v4658, %v4662
  %v4665 = vmul.f32 %v4417, %v2804
  %4667 = vrot.lane.b32.xlu0 %v4665, 80
  %v4668 = vpop.permute.xlu0 %4667
  %v4670 = vadd.f32 %v4664, %v4668
  %v4671 = vmul.f32 %v4670, %v2820
  %4673 = vrot.lane.b32.xlu0 %v4671, 123
  %v4674 = vpop.permute.xlu0 %4673
  %v4676 = vadd.f32 %v4632, %v4674
  %v4677 = vmul.f32 %v4417, %v2831
  %v4678 = vadd.f32 %v4677, 0.0
  %v4679 = vmul.f32 %v4417, %v2837
  %4681 = vrot.lane.b32.xlu0 %v4679, 120
  %v4682 = vpop.permute.xlu0 %4681
  %v4684 = vadd.f32 %v4678, %v4682
  %v4685 = vmul.f32 %v4417, %v2847
  %4687 = vrot.lane.b32.xlu0 %v4685, 112
  %v4688 = vpop.permute.xlu0 %4687
  %v4690 = vadd.f32 %v4684, %v4688
  %v4691 = vmul.f32 %v4417, %v2857
  %4693 = vrot.lane.b32.xlu0 %v4691, 104
  %v4694 = vpop.permute.xlu0 %4693
  %v4696 = vadd.f32 %v4690, %v4694
  %v4697 = vmul.f32 %v4417, %v2867
  %4699 = vrot.lane.b32.xlu0 %v4697, 96
  %v4700 = vpop.permute.xlu0 %4699
  %v4702 = vadd.f32 %v4696, %v4700
  %v4703 = vmul.f32 %v4417, %v2877
  %4705 = vrot.lane.b32.xlu0 %v4703, 88
  %v4706 = vpop.permute.xlu0 %4705
  %v4708 = vadd.f32 %v4702, %v4706
  %v4709 = vmul.f32 %v4417, %v2887
  %4711 = vrot.lane.b32.xlu0 %v4709, 80
  %v4712 = vpop.permute.xlu0 %4711
  %v4714 = vadd.f32 %v4708, %v4712
  %v4715 = vmul.f32 %v4714, %v2903
  %4717 = vrot.lane.b32.xlu0 %v4715, 122
  %v4718 = vpop.permute.xlu0 %4717
  %v4720 = vadd.f32 %v4676, %v4718
  %v4721 = vsel %vm2911, %v4720, 0.0
  %v4722 = vrot.slane %v4721, 4
  %v4723 = vadd.f32 %v4721, %v4722
  %v4724 = vrot.slane %v4723, 2
  %v4725 = vadd.f32 %v4723, %v4724
  %v4726 = vrot.slane %v4725, 1
  %v4727 = vadd.f32 %v4725, %v4726
  %v4728 = vxor.u32 %v4727, 2147483648
  %v4729 = vmul.f32 %v4728, 1.442695
  %v4730 = vpow.pop %v4729
  %v4731 = vadd.f32 %v4730, 1.0
  %v4732 = vrcp.pop %v4731
  %v4733 = vmul.f32 1.0, %v4732
  %v4734 = vmul.f32 %v4362, %v4733
  %v4735 = vmul.f32 %v4363, %v4733
  %v4736 = vmul.f32 %v4364, %v4733
  %v4737 = vmul.f32 %v4365, %v4733
  %v4738 = vsel %vm2191, %v4734, 0.0
  %4739 = vadd.xlane.f32.xlu0 %v4738
  %v4740 = vpop.xlane.xlu0 %4739
  %v4741 = vsel %vm2191, %v4735, 0.0
  %4742 = vadd.xlane.f32.xlu0 %v4741
  %v4743 = vpop.xlane.xlu0 %4742
  %v4744 = vsel %vm2191, %v4736, 0.0
  %4745 = vadd.xlane.f32.xlu0 %v4744
  %v4746 = vpop.xlane.xlu0 %4745
  %v4747 = vsel %vm2191, %v4737, 0.0
  %4748 = vadd.xlane.f32.xlu0 %v4747
  %v4749 = vpop.xlane.xlu0 %4748
  %v4750 = vmul.f32 %v4740, %v2204
  %v4751 = vmul.f32 %v4743, %v2204
  %v4752 = vmul.f32 %v4746, %v2204
  %v4753 = vmul.f32 %v4749, %v2204
  %v4754 = vmul.f32 %v4750, %v80
  %v4755 = vmul.f32 %v4751, %v81
  %v4756 = vmul.f32 %v4752, %v82
  %v4757 = vmul.f32 %v4753, %v83
  %v4758 = vsel %vm2949, %v4754, 0.0
  %v4759 = vsel %vm2949, %v4755, 0.0
  %v4760 = vadd.f32 %v4758, %v4759
  %v4761 = vsel %vm2949, %v4756, 0.0
  %v4762 = vadd.f32 %v4760, %v4761
  %v4763 = vsel %vm2949, %v4757, 0.0
  %v4764 = vadd.f32 %v4762, %v4763
  %v4765 = vrot.slane %v4764, 4
  %v4766 = vadd.f32 %v4764, %v4765
  %v4767 = vrot.slane %v4766, 2
  %v4768 = vadd.f32 %v4766, %v4767
  %v4769 = vrot.slane %v4768, 1
  %v4770 = vadd.f32 %v4768, %v4769
  %v4771 = vmax.f32 %v4770, 0.0
  %v4772 = vmul.f32 %v84, %v4771
  %v4773 = vmul.f32 %v85, %v4771
  %v4774 = vmul.f32 %v86, %v4771
  %v4775 = vmul.f32 %v87, %v4771
  %v4776 = vsel %vm2949, %v4772, 0.0
  %4777 = vadd.xlane.f32.xlu0 %v4776
  %v4778 = vpop.xlane.xlu0 %4777
  %v4779 = vsel %vm2949, %v4773, 0.0
  %4780 = vadd.xlane.f32.xlu0 %v4779
  %v4781 = vpop.xlane.xlu0 %4780
  %v4782 = vsel %vm2949, %v4774, 0.0
  %4783 = vadd.xlane.f32.xlu0 %v4782
  %v4784 = vpop.xlane.xlu0 %4783
  %v4785 = vsel %vm2949, %v4775, 0.0
  %4786 = vadd.xlane.f32.xlu0 %v4785
  %v4787 = vpop.xlane.xlu0 %4786
  %v4788 = vxor.u32 %v4778, 2147483648
  %v4789 = vxor.u32 %v4781, 2147483648
  %v4790 = vxor.u32 %v4784, 2147483648
  %v4791 = vxor.u32 %v4787, 2147483648
  %v4792 = vmul.f32 %v4788, 1.442695
  %v4793 = vpow.pop %v4792
  %v4794 = vmul.f32 %v4789, 1.442695
  %v4795 = vpow.pop %v4794
  %v4796 = vmul.f32 %v4790, 1.442695
  %v4797 = vpow.pop %v4796
  %v4798 = vmul.f32 %v4791, 1.442695
  %v4799 = vpow.pop %v4798
  %v4800 = vadd.f32 %v4793, 1.0
  %v4801 = vadd.f32 %v4795, 1.0
  %v4802 = vadd.f32 %v4797, 1.0
  %v4803 = vadd.f32 %v4799, 1.0
  %v4804 = vrcp.pop %v4800
  %v4805 = vmul.f32 1.0, %v4804
  %v4806 = vrcp.pop %v4801
  %v4807 = vmul.f32 1.0, %v4806
  %v4808 = vrcp.pop %v4802
  %v4809 = vmul.f32 1.0, %v4808
  %v4810 = vrcp.pop %v4803
  %v4811 = vmul.f32 1.0, %v4810
  %v4812 = vmul.f32 %v4734, %v4805
  %v4813 = vmul.f32 %v4735, %v4807
  %v4814 = vmul.f32 %v4736, %v4809
  %v4815 = vmul.f32 %v4737, %v4811
  %4820 = vrot.lane.b32.xlu0 %v4812, 64
  %v4821 = vpop.permute.xlu0 %4820
  %4822 = vrot.lane.b32.xlu0 %v4813, 64
  %v4823 = vpop.permute.xlu0 %4822
  %4824 = vrot.lane.b32.xlu0 %v4814, 64
  %v4825 = vpop.permute.xlu0 %4824
  %4826 = vrot.lane.b32.xlu0 %v4815, 64
  %v4827 = vpop.permute.xlu0 %4826
  %vm4832 = vcmask 1048064
  %4833 = vst.msk [vmem:[#allocation4] sm:$0xff] %vm4832, %v4821
  %4834 = vst.msk [vmem:[#allocation4 + $0x8] sm:$0xff] %vm4832, %v4823
  %4835 = vst.msk [vmem:[#allocation4 + $0x10] sm:$0xff] %vm4832, %v4825
  %4836 = vst.msk [vmem:[#allocation4 + $0x18] sm:$0xff] %vm4832, %v4827
  %v4837 = vld [vmem:[#allocation4] sm:$0xff]
  %v4838 = vld [vmem:[#allocation4 + $0x8] sm:$0xff]
  %v4839 = vld [vmem:[#allocation4 + $0x10] sm:$0xff]
  %v4840 = vld [vmem:[#allocation4 + $0x18] sm:$0xff]
  %v4841 = vadd.f32 %v4837, %v4838
  %v4842 = vadd.f32 %v4841, %v4839
  %v4843 = vadd.f32 %v4842, %v4840
  %v4844 = vrot.slane %v4843, 4
  %v4845 = vadd.f32 %v4843, %v4844
  %v4846 = vrot.slane %v4845, 2
  %v4847 = vadd.f32 %v4845, %v4846
  %v4848 = vrot.slane %v4847, 1
  %v4849 = vadd.f32 %v4847, %v4848
  %v4850 = vmul.f32 %v4849, %v2316
  %v4851 = vsub.f32 %v4837, %v4850
  %v4852 = vsub.f32 %v4838, %v4850
  %v4853 = vsub.f32 %v4839, %v4850
  %v4854 = vsub.f32 %v4840, %v4850
  %v4855 = vmul.f32 %v4851, %v4851
  %v4856 = vmul.f32 %v4852, %v4852
  %v4857 = vmul.f32 %v4853, %v4853
  %v4858 = vmul.f32 %v4854, %v4854
  %v4859 = vadd.f32 %v4855, %v4856
  %v4860 = vadd.f32 %v4859, %v4857
  %v4861 = vadd.f32 %v4860, %v4858
  %v4862 = vrot.slane %v4861, 4
  %v4863 = vadd.f32 %v4861, %v4862
  %v4864 = vrot.slane %v4863, 2
  %v4865 = vadd.f32 %v4863, %v4864
  %v4866 = vrot.slane %v4865, 1
  %v4867 = vadd.f32 %v4865, %v4866
  %v4868 = vmul.f32 %v4867, %v2316
  %v4869 = vadd.f32 %v4868, 1e-06
  %v4870 = vrsqrt.pop %v4869
  %v4871 = vmul.f32 %v4851, %v4870
  %v4872 = vmul.f32 %v4852, %v4870
  %v4873 = vmul.f32 %v4853, %v4870
  %v4874 = vmul.f32 %v4854, %v4870
  %v4875 = vld [vmem:[%s9] sm:$0xff]
  %v4876 = vld [vmem:[%s9 + $0x8] sm:$0xff]
  %v4877 = vld [vmem:[%s9 + $0x10] sm:$0xff]
  %v4878 = vld [vmem:[%s9 + $0x18] sm:$0xff]
  %4880 = vset.pattern.permute.xlu0 0
  %4881 = vperm.xlu0 %4880, %v4875
  %v4882 = vpop.permute.xlu0 %4881
  %4885 = vset.pattern.permute.xlu0 0
  %4886 = vperm.xlu0 %4885, %v4876
  %v4887 = vpop.permute.xlu0 %4886
  %4890 = vset.pattern.permute.xlu0 0
  %4891 = vperm.xlu0 %4890, %v4877
  %v4892 = vpop.permute.xlu0 %4891
  %4895 = vset.pattern.permute.xlu0 0
  %4896 = vperm.xlu0 %4895, %v4878
  %v4897 = vpop.permute.xlu0 %4896
  %v4899 = vmul.f32 %v4871, %v4882
  %v4900 = vmul.f32 %v4872, %v4887
  %v4901 = vmul.f32 %v4873, %v4892
  %v4902 = vmul.f32 %v4874, %v4897
  %v4903 = vld [vmem:[%s10] sm:$0xff]
  %v4904 = vld [vmem:[%s10 + $0x8] sm:$0xff]
  %v4905 = vld [vmem:[%s10 + $0x10] sm:$0xff]
  %v4906 = vld [vmem:[%s10 + $0x18] sm:$0xff]
  %4908 = vset.pattern.permute.xlu0 0
  %4909 = vperm.xlu0 %4908, %v4903
  %v4910 = vpop.permute.xlu0 %4909
  %4913 = vset.pattern.permute.xlu0 0
  %4914 = vperm.xlu0 %4913, %v4904
  %v4915 = vpop.permute.xlu0 %4914
  %4918 = vset.pattern.permute.xlu0 0
  %4919 = vperm.xlu0 %4918, %v4905
  %v4920 = vpop.permute.xlu0 %4919
  %4923 = vset.pattern.permute.xlu0 0
  %4924 = vperm.xlu0 %4923, %v4906
  %v4925 = vpop.permute.xlu0 %4924
  %v4927 = vadd.f32 %v4899, %v4910
  %v4928 = vadd.f32 %v4900, %v4915
  %v4929 = vadd.f32 %v4901, %v4920
  %v4930 = vadd.f32 %v4902, %v4925
  %v4931 = vld [vmem:[%s11] sm:$0xf]
  %v4932 = vld [vmem:[%s11 + $0x4] sm:$0xf]
  %v4933 = vld [vmem:[%s11 + $0x8] sm:$0xf]
  %v4934 = vld [vmem:[%s11 + $0xc] sm:$0xf]
  %v4935 = vld [vmem:[%s11 + $0x10] sm:$0xf]
  %v4936 = vld [vmem:[%s11 + $0x14] sm:$0xf]
  %v4937 = vld [vmem:[%s11 + $0x18] sm:$0xf]
  %v4938 = vld [vmem:[%s11 + $0x1c] sm:$0xf]
  %v4939 = vld [vmem:[%s11 + $0x20] sm:$0xf]
  %v4940 = vld [vmem:[%s11 + $0x24] sm:$0xf]
  %v4941 = vld [vmem:[%s11 + $0x28] sm:$0xf]
  %v4942 = vld [vmem:[%s11 + $0x2c] sm:$0xf]
  %v4943 = vld [vmem:[%s11 + $0x30] sm:$0xf]
  %v4944 = vld [vmem:[%s11 + $0x34] sm:$0xf]
  %v4945 = vld [vmem:[%s11 + $0x38] sm:$0xf]
  %v4946 = vld [vmem:[%s11 + $0x3c] sm:$0xf]
  %v4947 = vpack.c.bf16 %v4928, %v4927
  %v4948 = vpack.c.bf16 %v4930, %v4929
  %v4949 = vld [vmem:[%s12] sm:$0xff]
  %v4950 = vld [vmem:[%s12 + $0x8] sm:$0xff]
  %v4951 = vld [vmem:[%s12 + $0x10] sm:$0xff]
  %v4952 = vld [vmem:[%s12 + $0x18] sm:$0xff]
  %v4953 = vld [vmem:[%s12 + $0x20] sm:$0xff]
  %v4954 = vld [vmem:[%s12 + $0x28] sm:$0xff]
  %v4955 = vld [vmem:[%s12 + $0x30] sm:$0xff]
  %v4956 = vld [vmem:[%s12 + $0x38] sm:$0xff]
  %v4957 = vld [vmem:[%s12 + $0x40] sm:$0xff]
  %v4958 = vld [vmem:[%s12 + $0x48] sm:$0xff]
  %v4959 = vld [vmem:[%s12 + $0x50] sm:$0xff]
  %v4960 = vld [vmem:[%s12 + $0x58] sm:$0xff]
  %v4961 = vld [vmem:[%s12 + $0x60] sm:$0xff]
  %v4962 = vld [vmem:[%s12 + $0x68] sm:$0xff]
  %v4963 = vld [vmem:[%s12 + $0x70] sm:$0xff]
  %v4964 = vld [vmem:[%s12 + $0x78] sm:$0xff]
  %4966 = vset.pattern.permute.xlu0 0
  %4967 = vperm.xlu0 %4966, %v4949
  %v4968 = vpop.permute.xlu0 %4967
  %4971 = vset.pattern.permute.xlu0 0
  %4972 = vperm.xlu0 %4971, %v4950
  %v4973 = vpop.permute.xlu0 %4972
  %4976 = vset.pattern.permute.xlu0 0
  %4977 = vperm.xlu0 %4976, %v4951
  %v4978 = vpop.permute.xlu0 %4977
  %4981 = vset.pattern.permute.xlu0 0
  %4982 = vperm.xlu0 %4981, %v4952
  %v4983 = vpop.permute.xlu0 %4982
  %4986 = vset.pattern.permute.xlu0 0
  %4987 = vperm.xlu0 %4986, %v4953
  %v4988 = vpop.permute.xlu0 %4987
  %4991 = vset.pattern.permute.xlu0 0
  %4992 = vperm.xlu0 %4991, %v4954
  %v4993 = vpop.permute.xlu0 %4992
  %4996 = vset.pattern.permute.xlu0 0
  %4997 = vperm.xlu0 %4996, %v4955
  %v4998 = vpop.permute.xlu0 %4997
  %5001 = vset.pattern.permute.xlu0 0
  %5002 = vperm.xlu0 %5001, %v4956
  %v5003 = vpop.permute.xlu0 %5002
  %5006 = vset.pattern.permute.xlu0 0
  %5007 = vperm.xlu0 %5006, %v4957
  %v5008 = vpop.permute.xlu0 %5007
  %5011 = vset.pattern.permute.xlu0 0
  %5012 = vperm.xlu0 %5011, %v4958
  %v5013 = vpop.permute.xlu0 %5012
  %5016 = vset.pattern.permute.xlu0 0
  %5017 = vperm.xlu0 %5016, %v4959
  %v5018 = vpop.permute.xlu0 %5017
  %5021 = vset.pattern.permute.xlu0 0
  %5022 = vperm.xlu0 %5021, %v4960
  %v5023 = vpop.permute.xlu0 %5022
  %5026 = vset.pattern.permute.xlu0 0
  %5027 = vperm.xlu0 %5026, %v4961
  %v5028 = vpop.permute.xlu0 %5027
  %5031 = vset.pattern.permute.xlu0 0
  %5032 = vperm.xlu0 %5031, %v4962
  %v5033 = vpop.permute.xlu0 %5032
  %5036 = vset.pattern.permute.xlu0 0
  %5037 = vperm.xlu0 %5036, %v4963
  %v5038 = vpop.permute.xlu0 %5037
  %5041 = vset.pattern.permute.xlu0 0
  %5042 = vperm.xlu0 %5041, %v4964
  %v5043 = vpop.permute.xlu0 %5042
  %v5061 = vunpack.c.l.b16 %v4931
  %v5062 = vunpack.c.l.b16 %v4932
  %v5063 = vunpack.c.l.b16 %v4933
  %v5064 = vunpack.c.l.b16 %v4934
  %v5065 = vunpack.c.l.b16 %v4935
  %v5066 = vunpack.c.l.b16 %v4936
  %v5067 = vunpack.c.l.b16 %v4937
  %v5068 = vunpack.c.l.b16 %v4938
  %v5069 = vunpack.c.l.b16 %v4939
  %v5070 = vunpack.c.l.b16 %v4940
  %v5071 = vunpack.c.l.b16 %v4941
  %v5072 = vunpack.c.l.b16 %v4942
  %v5073 = vunpack.c.l.b16 %v4943
  %v5074 = vunpack.c.l.b16 %v4944
  %v5075 = vunpack.c.l.b16 %v4945
  %v5076 = vunpack.c.l.b16 %v4946
  %v5077 = vpack.c.b16 %v5062, %v5061
  %v5078 = vpack.c.b16 %v5064, %v5063
  %v5079 = vpack.c.b16 %v5066, %v5065
  %v5080 = vpack.c.b16 %v5068, %v5067
  %v5081 = vpack.c.b16 %v5070, %v5069
  %v5082 = vpack.c.b16 %v5072, %v5071
  %v5083 = vpack.c.b16 %v5074, %v5073
  %v5084 = vpack.c.b16 %v5076, %v5075
  %vm5085 = vcmask 261120
  %v5087 = vsel %vm5085, %v5077, 0
  %v5090 = vsel %vm5085, %v5078, 0
  %v5093 = vsel %vm5085, %v5079, 0
  %v5096 = vsel %vm5085, %v5080, 0
  %v5099 = vsel %vm5085, %v5081, 0
  %v5102 = vsel %vm5085, %v5082, 0
  %v5105 = vsel %vm5085, %v5083, 0
  %v5108 = vsel %vm5085, %v5084, 0
  %5110 = vmatprep.subr.bf16.mxu0 0
  %5111 = vmatpush1.bf16.msra.mxu0 0
  %5112 = vmatprep.subr.bf16.mxu0 0
  %5113 = vmatpush1.bf16.msra.mxu0 0
  %5114 = vmatprep.subr.bf16.mxu0 0
  %5115 = vmatpush1.bf16.msra.mxu0 0
  %5116 = vmatprep.subr.bf16.mxu0 0
  %5117 = vmatpush1.bf16.msra.mxu0 0
  %5118 = vmatprep.subr.bf16.mxu0 0
  %5119 = vmatpush1.bf16.msra.mxu0 0
  %5120 = vmatprep.subr.bf16.mxu0 0
  %5121 = vmatpush1.bf16.msra.mxu0 0
  %5122 = vmatprep.subr.bf16.mxu0 0
  %5123 = vmatpush1.bf16.msra.mxu0 %v4948
  %5124 = vmatprep.subr.bf16.mxu0 0
  %5125 = vmatpush1.bf16.msra.mxu0 %v4947
  %5126 = vmatprep.subr.bf16.mxu0 0
  %5127 = vmatpush2.bf16.msra.mxu0 0
  %5128 = vmatprep.subr.bf16.mxu0 0
  %5129 = vmatpush2.bf16.msra.mxu0 0
  %5130 = vmatprep.subr.bf16.mxu0 0
  %5131 = vmatpush2.bf16.msra.mxu0 0
  %5132 = vmatprep.subr.bf16.mxu0 0
  %5133 = vmatpush2.bf16.msra.mxu0 0
  %5134 = vmatprep.subr.bf16.mxu0 0
  %5135 = vmatpush2.bf16.msra.mxu0 0
  %5136 = vmatprep.subr.bf16.mxu0 0
  %5137 = vmatpush2.bf16.msra.mxu0 0
  %5138 = vmatprep.subr.bf16.mxu0 0
  %5139 = vmatpush2.bf16.msra.mxu0 0
  %5140 = vmatprep.subr.bf16.mxu0 0
  %5141 = vmatpush2.bf16.msra.mxu0 0
  %5142 = vmatprep.mubr.bf16.mxu0 0
  %5143 = vmatmul.mubr.bf16.gmra.mxu0 %v5087
  %v5144 = vpop.f32.mrf.mxu0
  %v5145 = vadd.f32 %v4968, %v5144
  %v5146 = vpop.f32.mrf.mxu0
  %v5147 = vpop.f32.mrf.mxu0
  %v5148 = vadd.f32 %v4973, %v5147
  %v5149 = vpop.f32.mrf.mxu0
  %5150 = vmatprep.mubr.bf16.mxu0 0
  %5151 = vmatmul.mubr.bf16.gmra.mxu0 %v5090
  %v5152 = vpop.f32.mrf.mxu0
  %v5153 = vadd.f32 %v4978, %v5152
  %v5154 = vpop.f32.mrf.mxu0
  %v5155 = vpop.f32.mrf.mxu0
  %v5156 = vadd.f32 %v4983, %v5155
  %v5157 = vpop.f32.mrf.mxu0
  %5158 = vmatprep.mubr.bf16.mxu0 0
  %5159 = vmatmul.mubr.bf16.gmra.mxu0 %v5093
  %v5160 = vpop.f32.mrf.mxu0
  %v5161 = vadd.f32 %v4988, %v5160
  %v5162 = vpop.f32.mrf.mxu0
  %v5163 = vpop.f32.mrf.mxu0
  %v5164 = vadd.f32 %v4993, %v5163
  %v5165 = vpop.f32.mrf.mxu0
  %5166 = vmatprep.mubr.bf16.mxu0 0
  %5167 = vmatmul.mubr.bf16.gmra.mxu0 %v5096
  %v5168 = vpop.f32.mrf.mxu0
  %v5169 = vadd.f32 %v4998, %v5168
  %v5170 = vpop.f32.mrf.mxu0
  %v5171 = vpop.f32.mrf.mxu0
  %v5172 = vadd.f32 %v5003, %v5171
  %v5173 = vpop.f32.mrf.mxu0
  %5174 = vmatprep.mubr.bf16.mxu0 0
  %5175 = vmatmul.mubr.bf16.gmra.mxu0 %v5099
  %v5176 = vpop.f32.mrf.mxu0
  %v5177 = vadd.f32 %v5008, %v5176
  %v5178 = vpop.f32.mrf.mxu0
  %v5179 = vpop.f32.mrf.mxu0
  %v5180 = vadd.f32 %v5013, %v5179
  %v5181 = vpop.f32.mrf.mxu0
  %5182 = vmatprep.mubr.bf16.mxu0 0
  %5183 = vmatmul.mubr.bf16.gmra.mxu0 %v5102
  %v5184 = vpop.f32.mrf.mxu0
  %v5185 = vadd.f32 %v5018, %v5184
  %v5186 = vpop.f32.mrf.mxu0
  %v5187 = vpop.f32.mrf.mxu0
  %v5188 = vadd.f32 %v5023, %v5187
  %v5189 = vpop.f32.mrf.mxu0
  %5190 = vmatprep.mubr.bf16.mxu0 0
  %5191 = vmatmul.mubr.bf16.gmra.mxu0 %v5105
  %v5192 = vpop.f32.mrf.mxu0
  %v5193 = vadd.f32 %v5028, %v5192
  %v5194 = vpop.f32.mrf.mxu0
  %v5195 = vpop.f32.mrf.mxu0
  %v5196 = vadd.f32 %v5033, %v5195
  %v5197 = vpop.f32.mrf.mxu0
  %5198 = vmatprep.mubr.bf16.mxu0 0
  %5199 = vmatmul.mubr.bf16.gmra.mxu0 %v5108
  %v5200 = vpop.f32.mrf.mxu0
  %v5201 = vadd.f32 %v5038, %v5200
  %v5202 = vpop.f32.mrf.mxu0
  %v5203 = vpop.f32.mrf.mxu0
  %v5204 = vadd.f32 %v5043, %v5203
  %v5205 = vpop.f32.mrf.mxu0
  %5206 = vdwg.mxu0
  %v5207 = vmul.f32 %v5145, 0.5
  %v5208 = vmul.f32 %v5148, 0.5
  %v5209 = vmul.f32 %v5153, 0.5
  %v5210 = vmul.f32 %v5156, 0.5
  %v5211 = vmul.f32 %v5161, 0.5
  %v5212 = vmul.f32 %v5164, 0.5
  %v5213 = vmul.f32 %v5169, 0.5
  %v5214 = vmul.f32 %v5172, 0.5
  %v5215 = vmul.f32 %v5177, 0.5
  %v5216 = vmul.f32 %v5180, 0.5
  %v5217 = vmul.f32 %v5185, 0.5
  %v5218 = vmul.f32 %v5188, 0.5
  %v5219 = vmul.f32 %v5193, 0.5
  %v5220 = vmul.f32 %v5196, 0.5
  %v5221 = vmul.f32 %v5201, 0.5
  %v5222 = vmul.f32 %v5204, 0.5
  %v5223 = vmul.f32 %v5145, 0.044715
  %v5224 = vmul.f32 %v5148, 0.044715
  %v5225 = vmul.f32 %v5153, 0.044715
  %v5226 = vmul.f32 %v5156, 0.044715
  %v5227 = vmul.f32 %v5161, 0.044715
  %v5228 = vmul.f32 %v5164, 0.044715
  %v5229 = vmul.f32 %v5169, 0.044715
  %v5230 = vmul.f32 %v5172, 0.044715
  %v5231 = vmul.f32 %v5177, 0.044715
  %v5232 = vmul.f32 %v5180, 0.044715
  %v5233 = vmul.f32 %v5185, 0.044715
  %v5234 = vmul.f32 %v5188, 0.044715
  %v5235 = vmul.f32 %v5193, 0.044715
  %v5236 = vmul.f32 %v5196, 0.044715
  %v5237 = vmul.f32 %v5201, 0.044715
  %v5238 = vmul.f32 %v5204, 0.044715
  %v5239 = vmul.f32 %v5223, %v5145
  %v5240 = vmul.f32 %v5224, %v5148
  %v5241 = vmul.f32 %v5225, %v5153
  %v5242 = vmul.f32 %v5226, %v5156
  %v5243 = vmul.f32 %v5227, %v5161
  %v5244 = vmul.f32 %v5228, %v5164
  %v5245 = vmul.f32 %v5229, %v5169
  %v5246 = vmul.f32 %v5230, %v5172
  %v5247 = vmul.f32 %v5231, %v5177
  %v5248 = vmul.f32 %v5232, %v5180
  %v5249 = vmul.f32 %v5233, %v5185
  %v5250 = vmul.f32 %v5234, %v5188
  %v5251 = vmul.f32 %v5235, %v5193
  %v5252 = vmul.f32 %v5236, %v5196
  %v5253 = vmul.f32 %v5237, %v5201
  %v5254 = vmul.f32 %v5238, %v5204
  %v5255 = vmul.f32 %v5239, %v5145
  %v5256 = vmul.f32 %v5240, %v5148
  %v5257 = vmul.f32 %v5241, %v5153
  %v5258 = vmul.f32 %v5242, %v5156
  %v5259 = vmul.f32 %v5243, %v5161
  %v5260 = vmul.f32 %v5244, %v5164
  %v5261 = vmul.f32 %v5245, %v5169
  %v5262 = vmul.f32 %v5246, %v5172
  %v5263 = vmul.f32 %v5247, %v5177
  %v5264 = vmul.f32 %v5248, %v5180
  %v5265 = vmul.f32 %v5249, %v5185
  %v5266 = vmul.f32 %v5250, %v5188
  %v5267 = vmul.f32 %v5251, %v5193
  %v5268 = vmul.f32 %v5252, %v5196
  %v5269 = vmul.f32 %v5253, %v5201
  %v5270 = vmul.f32 %v5254, %v5204
  %v5271 = vadd.f32 %v5145, %v5255
  %v5272 = vadd.f32 %v5148, %v5256
  %v5273 = vadd.f32 %v5153, %v5257
  %v5274 = vadd.f32 %v5156, %v5258
  %v5275 = vadd.f32 %v5161, %v5259
  %v5276 = vadd.f32 %v5164, %v5260
  %v5277 = vadd.f32 %v5169, %v5261
  %v5278 = vadd.f32 %v5172, %v5262
  %v5279 = vadd.f32 %v5177, %v5263
  %v5280 = vadd.f32 %v5180, %v5264
  %v5281 = vadd.f32 %v5185, %v5265
  %v5282 = vadd.f32 %v5188, %v5266
  %v5283 = vadd.f32 %v5193, %v5267
  %v5284 = vadd.f32 %v5196, %v5268
  %v5285 = vadd.f32 %v5201, %v5269
  %v5286 = vadd.f32 %v5204, %v5270
  %v5287 = vmul.f32 %v5271, 0.7978846
  %v5288 = vmul.f32 %v5272, 0.7978846
  %v5289 = vmul.f32 %v5273, 0.7978846
  %v5290 = vmul.f32 %v5274, 0.7978846
  %v5291 = vmul.f32 %v5275, 0.7978846
  %v5292 = vmul.f32 %v5276, 0.7978846
  %v5293 = vmul.f32 %v5277, 0.7978846
  %v5294 = vmul.f32 %v5278, 0.7978846
  %v5295 = vmul.f32 %v5279, 0.7978846
  %v5296 = vmul.f32 %v5280, 0.7978846
  %v5297 = vmul.f32 %v5281, 0.7978846
  %v5298 = vmul.f32 %v5282, 0.7978846
  %v5299 = vmul.f32 %v5283, 0.7978846
  %v5300 = vmul.f32 %v5284, 0.7978846
  %v5301 = vmul.f32 %v5285, 0.7978846
  %v5302 = vmul.f32 %v5286, 0.7978846
  %v5303 = vtanh.pop %v5287
  %v5304 = vtanh.pop %v5288
  %v5305 = vtanh.pop %v5289
  %v5306 = vtanh.pop %v5290
  %v5307 = vtanh.pop %v5291
  %v5308 = vtanh.pop %v5292
  %v5309 = vtanh.pop %v5293
  %v5310 = vtanh.pop %v5294
  %v5311 = vtanh.pop %v5295
  %v5312 = vtanh.pop %v5296
  %v5313 = vtanh.pop %v5297
  %v5314 = vtanh.pop %v5298
  %v5315 = vtanh.pop %v5299
  %v5316 = vtanh.pop %v5300
  %v5317 = vtanh.pop %v5301
  %v5318 = vtanh.pop %v5302
  %v5319 = vadd.f32 %v5303, 1.0
  %v5320 = vadd.f32 %v5304, 1.0
  %v5321 = vadd.f32 %v5305, 1.0
  %v5322 = vadd.f32 %v5306, 1.0
  %v5323 = vadd.f32 %v5307, 1.0
  %v5324 = vadd.f32 %v5308, 1.0
  %v5325 = vadd.f32 %v5309, 1.0
  %v5326 = vadd.f32 %v5310, 1.0
  %v5327 = vadd.f32 %v5311, 1.0
  %v5328 = vadd.f32 %v5312, 1.0
  %v5329 = vadd.f32 %v5313, 1.0
  %v5330 = vadd.f32 %v5314, 1.0
  %v5331 = vadd.f32 %v5315, 1.0
  %v5332 = vadd.f32 %v5316, 1.0
  %v5333 = vadd.f32 %v5317, 1.0
  %v5334 = vadd.f32 %v5318, 1.0
  %v5335 = vmul.f32 %v5207, %v5319
  %v5336 = vmul.f32 %v5208, %v5320
  %v5337 = vmul.f32 %v5209, %v5321
  %v5338 = vmul.f32 %v5210, %v5322
  %v5339 = vmul.f32 %v5211, %v5323
  %v5340 = vmul.f32 %v5212, %v5324
  %v5341 = vmul.f32 %v5213, %v5325
  %v5342 = vmul.f32 %v5214, %v5326
  %v5343 = vmul.f32 %v5215, %v5327
  %v5344 = vmul.f32 %v5216, %v5328
  %v5345 = vmul.f32 %v5217, %v5329
  %v5346 = vmul.f32 %v5218, %v5330
  %v5347 = vmul.f32 %v5219, %v5331
  %v5348 = vmul.f32 %v5220, %v5332
  %v5349 = vmul.f32 %v5221, %v5333
  %v5350 = vmul.f32 %v5222, %v5334
  %v5351 = vld [vmem:[%s13] sm:$0xf]
  %v5352 = vld [vmem:[%s13 + $0x4] sm:$0xf]
  %v5353 = vld [vmem:[%s13 + $0x8] sm:$0xf]
  %v5354 = vld [vmem:[%s13 + $0xc] sm:$0xf]
  %v5355 = vpack.c.bf16 %v5336, %v5335
  %v5356 = vpack.c.bf16 %v5338, %v5337
  %v5357 = vpack.c.bf16 %v5340, %v5339
  %v5358 = vpack.c.bf16 %v5342, %v5341
  %v5359 = vpack.c.bf16 %v5344, %v5343
  %v5360 = vpack.c.bf16 %v5346, %v5345
  %v5361 = vpack.c.bf16 %v5348, %v5347
  %v5362 = vpack.c.bf16 %v5350, %v5349
  %v5363 = vld [vmem:[%s14] sm:$0xff]
  %v5364 = vld [vmem:[%s14 + $0x8] sm:$0xff]
  %v5365 = vld [vmem:[%s14 + $0x10] sm:$0xff]
  %v5366 = vld [vmem:[%s14 + $0x18] sm:$0xff]
  %5368 = vset.pattern.permute.xlu0 0
  %5369 = vperm.xlu0 %5368, %v5363
  %v5370 = vpop.permute.xlu0 %5369
  %5373 = vset.pattern.permute.xlu0 0
  %5374 = vperm.xlu0 %5373, %v5364
  %v5375 = vpop.permute.xlu0 %5374
  %5378 = vset.pattern.permute.xlu0 0
  %5379 = vperm.xlu0 %5378, %v5365
  %v5380 = vpop.permute.xlu0 %5379
  %5383 = vset.pattern.permute.xlu0 0
  %5384 = vperm.xlu0 %5383, %v5366
  %v5385 = vpop.permute.xlu0 %5384
  %v5391 = vunpack.c.l.b16 %v5351
  %v5392 = vunpack.c.l.b16 %v5352
  %v5393 = vunpack.c.l.b16 %v5353
  %v5394 = vunpack.c.l.b16 %v5354
  %v5395 = vpack.c.b16 %v5392, %v5391
  %v5396 = vpack.c.b16 %v5394, %v5393
  %5399 = vmatprep.subr.bf16.mxu0 0
  %5400 = vmatpush1.bf16.msra.mxu0 %v5362
  %5401 = vmatprep.subr.bf16.mxu0 0
  %5402 = vmatpush1.bf16.msra.mxu0 %v5361
  %5403 = vmatprep.subr.bf16.mxu0 0
  %5404 = vmatpush1.bf16.msra.mxu0 %v5360
  %5405 = vmatprep.subr.bf16.mxu0 0
  %5406 = vmatpush1.bf16.msra.mxu0 %v5359
  %5407 = vmatprep.subr.bf16.mxu0 0
  %5408 = vmatpush1.bf16.msra.mxu0 %v5358
  %5409 = vmatprep.subr.bf16.mxu0 0
  %5410 = vmatpush1.bf16.msra.mxu0 %v5357
  %5411 = vmatprep.subr.bf16.mxu0 0
  %5412 = vmatpush1.bf16.msra.mxu0 %v5356
  %5413 = vmatprep.subr.bf16.mxu0 0
  %5414 = vmatpush1.bf16.msra.mxu0 %v5355
  %5415 = vmatprep.subr.bf16.mxu0 0
  %5416 = vmatpush2.bf16.msra.mxu0 0
  %5417 = vmatprep.subr.bf16.mxu0 0
  %5418 = vmatpush2.bf16.msra.mxu0 0
  %5419 = vmatprep.subr.bf16.mxu0 0
  %5420 = vmatpush2.bf16.msra.mxu0 0
  %5421 = vmatprep.subr.bf16.mxu0 0
  %5422 = vmatpush2.bf16.msra.mxu0 0
  %5423 = vmatprep.subr.bf16.mxu0 0
  %5424 = vmatpush2.bf16.msra.mxu0 0
  %5425 = vmatprep.subr.bf16.mxu0 0
  %5426 = vmatpush2.bf16.msra.mxu0 0
  %5427 = vmatprep.subr.bf16.mxu0 0
  %5428 = vmatpush2.bf16.msra.mxu0 0
  %5429 = vmatprep.subr.bf16.mxu0 0
  %5430 = vmatpush2.bf16.msra.mxu0 0
  %5431 = vmatprep.mubr.bf16.mxu0 0
  %5432 = vmatmul.mubr.bf16.gmra.mxu0 %v5395
  %v5433 = vpop.f32.mrf.mxu0
  %v5434 = vadd.f32 %v5370, %v5433
  %v5435 = vpop.f32.mrf.mxu0
  %v5436 = vpop.f32.mrf.mxu0
  %v5437 = vadd.f32 %v5375, %v5436
  %v5438 = vpop.f32.mrf.mxu0
  %5439 = vmatprep.mubr.bf16.mxu0 0
  %5440 = vmatmul.mubr.bf16.gmra.mxu0 %v5396
  %v5441 = vpop.f32.mrf.mxu0
  %v5442 = vadd.f32 %v5380, %v5441
  %v5443 = vpop.f32.mrf.mxu0
  %v5444 = vpop.f32.mrf.mxu0
  %v5445 = vadd.f32 %v5385, %v5444
  %v5446 = vpop.f32.mrf.mxu0
  %5447 = vdwg.mxu0
  %v5448 = vld [vmem:[%s15] sm:$0xff]
  %v5449 = vld [vmem:[%s15 + $0x8] sm:$0xff]
  %v5450 = vld [vmem:[%s15 + $0x10] sm:$0xff]
  %v5451 = vld [vmem:[%s15 + $0x18] sm:$0xff]
  %5453 = vset.pattern.permute.xlu0 0
  %5454 = vperm.xlu0 %5453, %v5448
  %v5455 = vpop.permute.xlu0 %5454
  %5458 = vset.pattern.permute.xlu0 0
  %5459 = vperm.xlu0 %5458, %v5449
  %v5460 = vpop.permute.xlu0 %5459
  %5463 = vset.pattern.permute.xlu0 0
  %5464 = vperm.xlu0 %5463, %v5450
  %v5465 = vpop.permute.xlu0 %5464
  %5468 = vset.pattern.permute.xlu0 0
  %5469 = vperm.xlu0 %5468, %v5451
  %v5470 = vpop.permute.xlu0 %5469
  %v5472 = vmul.f32 %v5434, %v5455
  %v5473 = vmul.f32 %v5437, %v5460
  %v5474 = vmul.f32 %v5442, %v5465
  %v5475 = vmul.f32 %v5445, %v5470
  %v5476 = vadd.f32 %v94, %v5472
  %v5477 = vadd.f32 %v95, %v5473
  %v5478 = vadd.f32 %v96, %v5474
  %v5479 = vadd.f32 %v97, %v5475
  %5480 = vst.msk [vmem:[%s16] sm:$0xff] %vm2191, %v5476
  %5481 = vst.msk [vmem:[%s16 + $0x8] sm:$0xff] %vm2191, %v5477
  %5482 = vst.msk [vmem:[%s16 + $0x10] sm:$0xff] %vm2191, %v5478
  %5483 = vst.msk [vmem:[%s16 + $0x18] sm:$0xff] %vm2191, %v5479
  %5488 = vrot.lane.b32.xlu0 %v5472, 64
  %v5489 = vpop.permute.xlu0 %5488
  %5490 = vrot.lane.b32.xlu0 %v5473, 64
  %v5491 = vpop.permute.xlu0 %5490
  %5492 = vrot.lane.b32.xlu0 %v5474, 64
  %v5493 = vpop.permute.xlu0 %5492
  %5494 = vrot.lane.b32.xlu0 %v5475, 64
  %v5495 = vpop.permute.xlu0 %5494
  %v5500 = vadd.f32 %v3013, %v5489
  %v5501 = vadd.f32 %v3014, %v5491
  %v5502 = vadd.f32 %v3015, %v5493
  %v5503 = vadd.f32 %v3016, %v5495
  %s5504 = scalar_lea.vmem %s16, 32
  %5505 = vst.msk [vmem:[%s5504] sm:$0xff] %vm2191, %v5500
  %5506 = vst.msk [vmem:[%s5504 + $0x8] sm:$0xff] %vm2191, %v5501
  %5507 = vst.msk [vmem:[%s5504 + $0x10] sm:$0xff] %vm2191, %v5502
  %5508 = vst.msk [vmem:[%s5504 + $0x18] sm:$0xff] %vm2191, %v5503
  // Predicated region
  $region66: #{block_forward.1} parent=0 // pred_check
    _
  $region67: #{block_forward.1} parent=0 // pred_check_branch
    %5510 = sbr.rel (0) target = $region69
  $region68: #{block_forward.1} parent=0 // pred_region
    _
  $region69: #{block_forward.1} parent=0 // pred_fallthru
    _
  // Predicated region
  $region70: #{block_forward.1} parent=0 // pred_check
    _
  $region71: #{block_forward.1} parent=0 // pred_check_branch
    %5512 = sbr.rel (0) target = $region73
  $region72: #{block_forward.1} parent=0 // pred_region
    _
  $region73: #{block_forward.1} parent=0 // pred_fallthru
    _

</llo_original>
